<compile_context>
chip_gen: v7x
topology: tpu7x:2x2x1
jax: 0.10.0
libtpu: 0.0.40
codegen_flags: <defaults>
</compile_context>

<pallas_src>
import functools

import jax
import jax.numpy as jnp
import numpy as np
from jax import lax
from jax.experimental import pallas as pl
from jax.experimental.pallas import tpu as pltpu

_MXU_DTYPE = jnp.bfloat16            # MXU operand dtype (f32 accumulation)
_VMEM_LIMIT = 32 * 1024 * 1024       # explicit scoped-VMEM limit (safe on v5e/v6e/v7x)
_VMEM_TILE_BUDGET = 12 * 1024 * 1024  # double-buffered working-set budget per call
_BN_EPS = 1e-5

# ConvTranspose2d(k=3, s=2, p=1, output_padding=1) parity-phase tap tables:
# output row 2m+dy gets contributions from input rows m+ry with kernel index ky.
_PHASE_YTAPS = {0: ((0, 1),), 1: ((0, 2), (1, 0))}
_PHASES = ((0, 0), (0, 1), (1, 0), (1, 1))


def _phase_taps(dy, dx):
    return [(ry, ky, rx, kx)
            for (ry, ky) in _PHASE_YTAPS[dy]
            for (rx, kx) in _PHASE_YTAPS[dx]]


# ------------------------------ Pallas kernels ------------------------------ #

def _matmul_stats_kernel(p_ref, w_ref, o_ref, sum_ref, sq_ref):
    """One M-tile of y = patches @ w (bf16 in, f32 acc) + running BN statistics."""
    y = jnp.dot(p_ref[...], w_ref[...], preferred_element_type=jnp.float32)
    o_ref[...] = y.astype(o_ref.dtype)
    s = jnp.sum(y, axis=0, keepdims=True)
    q = jnp.sum(y * y, axis=0, keepdims=True)

    @pl.when(pl.program_id(0) == 0)
    def _():
        sum_ref[...] = s
        sq_ref[...] = q

    @pl.when(pl.program_id(0) != 0)
    def _():
        sum_ref[...] += s
        sq_ref[...] += q


def _bn_finalize_kernel(*refs, count, eps, act, has_res):
    """Fused BatchNorm normalize + optional residual add + optional ReLU (one M-tile)."""
    if has_res:
        y_ref, sum_ref, sq_ref, g_ref, b_ref, r_ref, o_ref = refs
    else:
        y_ref, sum_ref, sq_ref, g_ref, b_ref, o_ref = refs
        r_ref = None
    inv_n = 1.0 / count
    mean = sum_ref[...] * inv_n
    var = sq_ref[...] * inv_n - mean * mean
    scale = lax.rsqrt(var + eps) * g_ref[...]
    shift = b_ref[...] - mean * scale
    out = y_ref[...] * scale + shift
    if has_res:
        out = out + r_ref[...]
    if act == "relu":
        out = jnp.maximum(out, 0.0)
    o_ref[...] = out.astype(o_ref.dtype)


def _matmul_bias_tanh_kernel(p_ref, w_ref, b_ref, o_ref):
    """Final 7x7 conv tile: matmul + bias + tanh epilogue."""
    y = jnp.dot(p_ref[...], w_ref[...], preferred_element_type=jnp.float32)
    o_ref[...] = jnp.tanh(y + b_ref[...]).astype(o_ref.dtype)


# ------------------------------ call wrappers ------------------------------- #

def _round_up(x, m):
    return -(-x // m) * m


def _pick_tile_m(m, bytes_per_row, fixed=0, budget=_VMEM_TILE_BUDGET):
    """Largest row tile whose double-buffered working set fits the VMEM budget."""
    tile = 8
    for t in (4096, 2048, 1024, 512, 256, 128, 64, 32, 16, 8):
        if 2 * t * bytes_per_row + fixed <= budget:
            tile = t
            break
    return min(tile, _round_up(m, 8))


def _matmul_stats_call(patches_pad, w2d, tile):
    mp, k = patches_pad.shape
    c = w2d.shape[1]
    grid = (mp // tile,)
    return pl.pallas_call(
        _matmul_stats_kernel,
        out_shape=(jax.ShapeDtypeStruct((mp, c), jnp.float32),
                   jax.ShapeDtypeStruct((1, c), jnp.float32),
                   jax.ShapeDtypeStruct((1, c), jnp.float32)),
        grid_spec=pltpu.PrefetchScalarGridSpec(
            num_scalar_prefetch=0,
            grid=grid,
            in_specs=[pl.BlockSpec((tile, k), lambda i: (i, 0)),
                      pl.BlockSpec((k, c), lambda i: (0, 0))],
            out_specs=(pl.BlockSpec((tile, c), lambda i: (i, 0)),
                       pl.BlockSpec((1, c), lambda i: (0, 0)),
                       pl.BlockSpec((1, c), lambda i: (0, 0)))),
        compiler_params=pltpu.CompilerParams(
            dimension_semantics=("arbitrary",),      # stats accumulate across M tiles
            vmem_limit_bytes=_VMEM_LIMIT),
        cost_estimate=pl.CostEstimate(
            flops=2 * mp * k * c, transcendentals=0,
            bytes_accessed=mp * k * 2 + k * c * 2 + mp * c * 4 + 8 * c),
    )(patches_pad.astype(_MXU_DTYPE), w2d.astype(_MXU_DTYPE))


def _bn_finalize_call(y_pad, ssum, ssq, gamma_1c, beta_1c, *, tile, count, act,
                      residual=None, eps=_BN_EPS):
    mp, c = y_pad.shape
    grid = (mp // tile,)
    has_res = residual is not None
    args = [y_pad, ssum, ssq, gamma_1c, beta_1c]
    in_specs = [pl.BlockSpec((tile, c), lambda i: (i, 0)),
                pl.BlockSpec((1, c), lambda i: (0, 0)),
                pl.BlockSpec((1, c), lambda i: (0, 0)),
                pl.BlockSpec((1, c), lambda i: (0, 0)),
                pl.BlockSpec((1, c), lambda i: (0, 0))]
    if has_res:
        args.append(residual)
        in_specs.append(pl.BlockSpec((tile, c), lambda i: (i, 0)))
    kern = functools.partial(_bn_finalize_kernel, count=float(count), eps=eps,
                             act=act, has_res=has_res)
    return pl.pallas_call(
        kern,
        out_shape=jax.ShapeDtypeStruct((mp, c), jnp.float32),
        grid_spec=pltpu.PrefetchScalarGridSpec(
            num_scalar_prefetch=0,
            grid=grid,
            in_specs=in_specs,
            out_specs=pl.BlockSpec((tile, c), lambda i: (i, 0))),
        compiler_params=pltpu.CompilerParams(
            dimension_semantics=("parallel",),
            vmem_limit_bytes=_VMEM_LIMIT),
    )(*args)


# ------------------------------- JAX glue ----------------------------------- #

def _im2col(x_pad_nhwc, k, stride):
    """k x k patches of a padded NHWC tensor -> [N*Ho*Wo, k*k*C] (taps major, C minor)."""
    n, h, w, c = x_pad_nhwc.shape
    ho = (h - k) // stride + 1
    wo = (w - k) // stride + 1
    cols = []
    for i in range(k):
        for j in range(k):
            cols.append(x_pad_nhwc[:, i:i + stride * (ho - 1) + 1:stride,
                                   j:j + stride * (wo - 1) + 1:stride, :])
    p = jnp.stack(cols, axis=3)                       # [N, Ho, Wo, k*k, C]
    return p.reshape(n * ho * wo, k * k * c), (n, ho, wo)


def _conv_bn_act(x_nhwc, layer, *, k, stride, pad, pad_mode, act, residual=None):
    """Conv(k,stride,pad, bias=False) -> BN(train stats) -> [+residual] -> [ReLU]."""
    if pad > 0:
        x_p = jnp.pad(x_nhwc, ((0, 0), (pad, pad), (pad, pad), (0, 0)), mode=pad_mode)
    else:
        x_p = x_nhwc
    patches, (n, ho, wo) = _im2col(x_p, k, stride)
    m, kk = patches.shape
    c = layer["w2d"].shape[1]
    tile = _pick_tile_m(m, 2 * kk + 4 * c, fixed=4 * kk * c)
    mp = _round_up(m, tile)
    if mp != m:
        patches = jnp.pad(patches, ((0, mp - m), (0, 0)))
    y_pad, ssum, ssq = _matmul_stats_call(patches, layer["w2d"], tile)
    res_pad = None
    if residual is not None:
        res_pad = residual.reshape(m, c)
        if mp != m:
            res_pad = jnp.pad(res_pad, ((0, mp - m), (0, 0)))
    out_pad = _bn_finalize_call(y_pad, ssum, ssq, layer["gamma"], layer["beta"],
                                tile=tile, count=m, act=act, residual=res_pad)
    return out_pad[:m].reshape(n, ho, wo, c)


def _convt_bn_relu(x_nhwc, layer):
    """ConvTranspose2d(3, s=2, p=1, op=1, bias=False) -> BN -> ReLU via 4-phase matmuls."""
    n, h, w, cin = x_nhwc.shape
    cout = layer["gamma"].shape[1]
    xpad = jnp.pad(x_nhwc, ((0, 0), (0, 1), (0, 1), (0, 0)))   # zero row/col bottom-right
    m = n * h * w
    phase_out, ssum, ssq = [], None, None
    for idx, (dy, dx) in enumerate(_PHASES):
        taps = _phase_taps(dy, dx)
        cols = [xpad[:, ry:ry + h, rx:rx + w, :] for (ry, _, rx, _) in taps]
        patches = jnp.concatenate(cols, axis=-1).reshape(m, len(taps) * cin)
        kk = len(taps) * cin
        tile = _pick_tile_m(m, 2 * kk + 4 * cout, fixed=4 * kk * cout)
        mp = _round_up(m, tile)
        if mp != m:
            patches = jnp.pad(patches, ((0, mp - m), (0, 0)))
        y_pad, s, q = _matmul_stats_call(patches, layer["w_phases"][idx], tile)
        phase_out.append(y_pad[:m].reshape(n, h, w, cout))
        ssum = s if ssum is None else ssum + s
        ssq = q if ssq is None else ssq + q
    # Interleave the four parity outputs -> (n, 2h, 2w, cout).
    stacked = jnp.stack(phase_out, axis=0).reshape(2, 2, n, h, w, cout)
    y_full = jnp.transpose(stacked, (2, 3, 0, 4, 1, 5)).reshape(n, 2 * h, 2 * w, cout)
    m_full = n * 4 * h * w
    yf = y_full.reshape(m_full, cout)
    tile = _pick_tile_m(m_full, 8 * cout)
    mp = _round_up(m_full, tile)
    if mp != m_full:
        yf = jnp.pad(yf, ((0, mp - m_full), (0, 0)))
    out_pad = _bn_finalize_call(yf, ssum, ssq, layer["gamma"], layer["beta"],
                                tile=tile, count=m_full, act="relu")
    return out_pad[:m_full].reshape(n, 2 * h, 2 * w, cout)


def _final_conv_tanh(x_nhwc, layer):
    """ReflectionPad(3) -> Conv 7x7 (bias) -> Tanh, fused matmul+bias+tanh kernel."""
    x_p = jnp.pad(x_nhwc, ((0, 0), (3, 3), (3, 3), (0, 0)), mode="reflect")
    patches, (n, ho, wo) = _im2col(x_p, 7, 1)
    m, kk = patches.shape
    c = layer["w2d"].shape[1]
    tile = _pick_tile_m(m, 2 * kk + 4 * c, fixed=4 * kk * c)
    mp = _round_up(m, tile)
    if mp != m:
        patches = jnp.pad(patches, ((0, mp - m), (0, 0)))
    grid = (mp // tile,)
    out = pl.pallas_call(
        _matmul_bias_tanh_kernel,
        out_shape=jax.ShapeDtypeStruct((mp, c), jnp.float32),
        grid_spec=pltpu.PrefetchScalarGridSpec(
            num_scalar_prefetch=0,
            grid=grid,
            in_specs=[pl.BlockSpec((tile, kk), lambda i: (i, 0)),
                      pl.BlockSpec((kk, c), lambda i: (0, 0)),
                      pl.BlockSpec((1, c), lambda i: (0, 0))],
            out_specs=pl.BlockSpec((tile, c), lambda i: (i, 0))),
        compiler_params=pltpu.CompilerParams(
            dimension_semantics=("parallel",),
            vmem_limit_bytes=_VMEM_LIMIT),
        cost_estimate=pl.CostEstimate(
            flops=2 * mp * kk * c, transcendentals=mp * c,
            bytes_accessed=mp * kk * 2 + kk * c * 2 + mp * c * 4),
    )(patches.astype(_MXU_DTYPE), layer["w2d"].astype(_MXU_DTYPE), layer["bias"])
    return out[:m].reshape(n, ho, wo, c)


def resnet_generator_forward(x_nchw, params):
    """ResnetGenerator forward (BatchNorm in train mode, reflect padding, no dropout)."""
    h = jnp.transpose(x_nchw, (0, 2, 3, 1)).astype(jnp.float32)    # NCHW -> NHWC once
    h = _conv_bn_act(h, params["stem"], k=7, stride=1, pad=3, pad_mode="reflect", act="relu")
    for d in params["down"]:
        h = _conv_bn_act(h, d, k=3, stride=2, pad=1, pad_mode="constant", act="relu")
    for blk in params["blocks"]:
        res = h
        t = _conv_bn_act(h, blk["conv1"], k=3, stride=1, pad=1, pad_mode="reflect", act="relu")
        h = _conv_bn_act(t, blk["conv2"], k=3, stride=1, pad=1, pad_mode="reflect",
                         act="none", residual=res)
    for u in params["up"]:
        h = _convt_bn_relu(h, u)
    out = _final_conv_tanh(h, params["final"])
    return jnp.transpose(out, (0, 3, 1, 2))                        # NHWC -> NCHW once


# ---------------------- parameters (precomputed layouts) -------------------- #

def _conv_w2d(w_oihw):
    co, ci, kh, kw = w_oihw.shape
    return jnp.transpose(w_oihw, (2, 3, 1, 0)).reshape(kh * kw * ci, co).astype(_MXU_DTYPE)


def _convt_phase_weights(w_iokk):
    """PyTorch ConvT weight [Cin, Cout, 3, 3] -> 4 per-phase matmul weights."""
    out = []
    for (dy, dx) in _PHASES:
        taps = _phase_taps(dy, dx)
        w2d = jnp.concatenate([w_iokk[:, :, ky, kx] for (_, ky, _, kx) in taps], axis=0)
        out.append(w2d.astype(_MXU_DTYPE))
    return out


def init_raw_params(key, input_nc, output_nc, ngf, n_blocks):
    keys = iter(jax.random.split(key, 8 + 2 * n_blocks + 4))

    def conv_w(ci, co, k):
        return 0.1 * jax.random.normal(next(keys), (co, ci, k, k), jnp.float32)

    def convt_w(ci, co, k):
        return 0.1 * jax.random.normal(next(keys), (ci, co, k, k), jnp.float32)

    def bn_params(c):
        return jnp.ones((c,), jnp.float32), jnp.zeros((c,), jnp.float32)

    raw = {"stem_w": conv_w(input_nc, ngf, 7)}
    raw["stem_g"], raw["stem_b"] = bn_params(ngf)
    raw["down"] = []
    mult = 1
    for _ in range(2):
        g, b = bn_params(ngf * mult * 2)
        raw["down"].append({"w": conv_w(ngf * mult, ngf * mult * 2, 3), "g": g, "b": b})
        mult *= 2
    dim = ngf * mult
    raw["blocks"] = []
    for _ in range(n_blocks):
        g1, b1 = bn_params(dim)
        g2, b2 = bn_params(dim)
        raw["blocks"].append({"w1": conv_w(dim, dim, 3), "g1": g1, "b1": b1,
                              "w2": conv_w(dim, dim, 3), "g2": g2, "b2": b2})
    raw["up"] = []
    for _ in range(2):
        g, b = bn_params(ngf * mult // 2)
        raw["up"].append({"w": convt_w(ngf * mult, ngf * mult // 2, 3), "g": g, "b": b})
        mult //= 2
    raw["final_w"] = conv_w(ngf, output_nc, 7)
    raw["final_b"] = 0.1 * jax.random.normal(next(keys), (output_nc,), jnp.float32)
    return raw


def prepare_params(raw):
    def bn(g, b):
        return (g.reshape(1, -1).astype(jnp.float32), b.reshape(1, -1).astype(jnp.float32))

    p = {}
    g, b = bn(raw["stem_g"], raw["stem_b"])
    p["stem"] = {"w2d": _conv_w2d(raw["stem_w"]), "gamma": g, "beta": b}
    p["down"] = []
    for d in raw["down"]:
        g, b = bn(d["g"], d["b"])
        p["down"].append({"w2d": _conv_w2d(d["w"]), "gamma": g, "beta": b})
    p["blocks"] = []
    for blk in raw["blocks"]:
        g1, b1 = bn(blk["g1"], blk["b1"])
        g2, b2 = bn(blk["g2"], blk["b2"])
        p["blocks"].append({
            "conv1": {"w2d": _conv_w2d(blk["w1"]), "gamma": g1, "beta": b1},
            "conv2": {"w2d": _conv_w2d(blk["w2"]), "gamma": g2, "beta": b2}})
    p["up"] = []
    for u in raw["up"]:
        g, b = bn(u["g"], u["b"])
        p["up"].append({"w_phases": _convt_phase_weights(u["w"]), "gamma": g, "beta": b})
    p["final"] = {"w2d": _conv_w2d(raw["final_w"]),
                  "bias": raw["final_b"].reshape(1, -1).astype(jnp.float32)}
    return p


# ----------------------- pure-JAX reference (sanity) ------------------------ #

def ref_forward(x_nchw, raw):
    bf = jnp.bfloat16

    def conv(x, w, stride=1, pad=0):
        return lax.conv_general_dilated(
            x.astype(bf), w.astype(bf), window_strides=(stride, stride),
            padding=((pad, pad), (pad, pad)),
            dimension_numbers=("NCHW", "OIHW", "NCHW"),
            preferred_element_type=jnp.float32)

    def refl(x, p):
        return jnp.pad(x, ((0, 0), (0, 0), (p, p), (p, p)), mode="reflect")

    def bn(x, g, b, eps=_BN_EPS):
        mean = x.mean(axis=(0, 2, 3), keepdims=True)
        var = ((x - mean) ** 2).mean(axis=(0, 2, 3), keepdims=True)
        return (x - mean) * lax.rsqrt(var + eps) * g.reshape(1, -1, 1, 1) + b.reshape(1, -1, 1, 1)

    x = x_nchw.astype(jnp.float32)
    h = jax.nn.relu(bn(conv(refl(x, 3), raw["stem_w"]), raw["stem_g"], raw["stem_b"]))
    for d in raw["down"]:
        h = jax.nn.relu(bn(conv(h, d["w"], stride=2, pad=1), d["g"], d["b"]))
    for blk in raw["blocks"]:
        r = h
        t = jax.nn.relu(bn(conv(refl(h, 1), blk["w1"]), blk["g1"], blk["b1"]))
        t = bn(conv(refl(t, 1), blk["w2"]), blk["g2"], blk["b2"])
        h = r + t
    for u in raw["up"]:
        w_eq = jnp.flip(u["w"], (2, 3)).transpose(1, 0, 2, 3)
        t = lax.conv_general_dilated(
            h.astype(bf), w_eq.astype(bf), window_strides=(1, 1),
            padding=((1, 2), (1, 2)), lhs_dilation=(2, 2),
            dimension_numbers=("NCHW", "OIHW", "NCHW"),
            preferred_element_type=jnp.float32)
        h = jax.nn.relu(bn(t, u["g"], u["b"]))
    out = conv(refl(h, 3), raw["final_w"]) + raw["final_b"].reshape(1, -1, 1, 1)
    return jnp.tanh(out)


if __name__ == "__main__":
    # Small deterministic config: batch=2, input_nc=4, output_nc=3, ngf=8, 3 resnet
    # blocks, 16x16 spatial (4x4 at the bottleneck).
    N, INPUT_NC, OUTPUT_NC, NGF, N_BLOCKS, H, W = 2, 4, 3, 8, 3, 16, 16

    key = jax.random.PRNGKey(0)
    kx, kp = jax.random.split(key)
    x = jax.random.normal(kx, (N, INPUT_NC, H, W), dtype=jnp.float32)
    raw = init_raw_params(kp, INPUT_NC, OUTPUT_NC, NGF, N_BLOCKS)
    params = prepare_params(raw)

    fwd = jax.jit(resnet_generator_forward)
    out = jax.block_until_ready(fwd(x, params))
    assert out.shape == (N, OUTPUT_NC, H, W), out.shape
    assert bool(jnp.all(jnp.isfinite(out)))

    ref = jax.block_until_ready(jax.jit(ref_forward)(x, raw))
    # bf16 MXU inputs in both paths; residual divergence is accumulation-order noise.
    np.testing.assert_allclose(np.asarray(out), np.asarray(ref), atol=5e-2, rtol=5e-2)

    print("KERNEL_OK")
</pallas_src>

<mosaic_0001>
module attributes {stable_mosaic.version = 11 : i64} {
  func.func @_matmul_stats_kernel(%arg0: i32, %arg1: memref<512x196xbf16, #tpu.memory_space<vmem>>, %arg2: memref<196x8xbf16, #tpu.memory_space<vmem>>, %arg3: memref<512x8xf32, #tpu.memory_space<vmem>>, %arg4: memref<1x8xf32, #tpu.memory_space<vmem>>, %arg5: memref<1x8xf32, #tpu.memory_space<vmem>>) attributes {dimension_semantics = [#tpu.dimension_semantics<arbitrary>], iteration_bounds = array<i64: 1>, scalar_prefetch = 0 : i64, scratch_operands = 0 : i64, tpu.core_type = #tpu.core_type<tc>, window_params = [{transform_indices = @transform_0, window_bounds = array<i64: 512, 196>}, {pipeline_mode = #tpu.pipeline_mode<synchronous>, transform_indices = @transform_1, window_bounds = array<i64: 196, 8>}, {transform_indices = @transform_2, window_bounds = array<i64: 512, 8>}, {pipeline_mode = #tpu.pipeline_mode<synchronous>, transform_indices = @transform_3, window_bounds = array<i64: 1, 8>}, {pipeline_mode = #tpu.pipeline_mode<synchronous>, transform_indices = @transform_4, window_bounds = array<i64: 1, 8>}]} {
    %c0 = arith.constant 0 : index
    %c0_0 = arith.constant 0 : index
    %0 = vector.load %arg1[%c0, %c0_0] : memref<512x196xbf16, #tpu.memory_space<vmem>>, vector<512x196xbf16>
    %c0_1 = arith.constant 0 : index
    %c0_2 = arith.constant 0 : index
    %1 = vector.load %arg2[%c0_1, %c0_2] : memref<196x8xbf16, #tpu.memory_space<vmem>>, vector<196x8xbf16>
    %cst = arith.constant dense<0.000000e+00> : vector<512x8xf32>
    %2 = tpu.matmul %0, %1, %cst {dimension_numbers = #tpu.dot_dimension_numbers<[1], [0], [0], [1], [0, 0, 1, 1], [], []>} : vector<512x196xbf16>, vector<196x8xbf16>, vector<512x8xf32> -> vector<512x8xf32>
    %c0_3 = arith.constant 0 : index
    %c0_4 = arith.constant 0 : index
    %3 = vector.load %arg3[%c0_3, %c0_4] : memref<512x8xf32, #tpu.memory_space<vmem>>, vector<512x8xf32>
    tpu.vector_store %arg3[%c0_3, %c0_4], %2 {strides = array<i32>} : memref<512x8xf32, #tpu.memory_space<vmem>>, vector<512x8xf32>,
    %cst_5 = arith.constant dense<0.000000e+00> : vector<8xf32>
    %4 = vector.multi_reduction <add>, %2, %cst_5 [0] : vector<512x8xf32> to vector<8xf32>
    %5 = vector.shape_cast %4 : vector<8xf32> to vector<1x8xf32>
    %6 = arith.mulf %2, %2 : vector<512x8xf32>
    %cst_6 = arith.constant dense<0.000000e+00> : vector<8xf32>
    %7 = vector.multi_reduction <add>, %6, %cst_6 [0] : vector<512x8xf32> to vector<8xf32>
    %8 = vector.shape_cast %7 : vector<8xf32> to vector<1x8xf32>
    %c0_i32 = arith.constant 0 : i32
    %9 = arith.cmpi eq, %arg0, %c0_i32 : i32
    %10 = arith.extui %9 : i1 to i32
    %c0_i32_7 = arith.constant 0 : i32
    %11 = arith.cmpi ne, %10, %c0_i32_7 : i32
    scf.if %11 {
      %c0_10 = arith.constant 0 : index
      %c0_11 = arith.constant 0 : index
      %15 = vector.load %arg4[%c0_10, %c0_11] : memref<1x8xf32, #tpu.memory_space<vmem>>, vector<1x8xf32>
      tpu.vector_store %arg4[%c0_10, %c0_11], %5 {strides = array<i32>} : memref<1x8xf32, #tpu.memory_space<vmem>>, vector<1x8xf32>,
      %c0_12 = arith.constant 0 : index
      %c0_13 = arith.constant 0 : index
      %16 = vector.load %arg5[%c0_12, %c0_13] : memref<1x8xf32, #tpu.memory_space<vmem>>, vector<1x8xf32>
      tpu.vector_store %arg5[%c0_12, %c0_13], %8 {strides = array<i32>} : memref<1x8xf32, #tpu.memory_space<vmem>>, vector<1x8xf32>,
    } else {
    }
    %c0_i32_8 = arith.constant 0 : i32
    %12 = arith.cmpi ne, %arg0, %c0_i32_8 : i32
    %13 = arith.extui %12 : i1 to i32
    %c0_i32_9 = arith.constant 0 : i32
    %14 = arith.cmpi ne, %13, %c0_i32_9 : i32
    scf.if %14 {
      %c0_10 = arith.constant 0 : index
      %c0_11 = arith.constant 0 : index
      %15 = vector.load %arg4[%c0_10, %c0_11] : memref<1x8xf32, #tpu.memory_space<vmem>>, vector<1x8xf32>
      %16 = arith.addf %15, %5 : vector<1x8xf32>
      %c0_12 = arith.constant 0 : index
      %c0_13 = arith.constant 0 : index
      %17 = vector.load %arg4[%c0_12, %c0_13] : memref<1x8xf32, #tpu.memory_space<vmem>>, vector<1x8xf32>
      tpu.vector_store %arg4[%c0_12, %c0_13], %16 {strides = array<i32>} : memref<1x8xf32, #tpu.memory_space<vmem>>, vector<1x8xf32>,
      %c0_14 = arith.constant 0 : index
      %c0_15 = arith.constant 0 : index
      %18 = vector.load %arg5[%c0_14, %c0_15] : memref<1x8xf32, #tpu.memory_space<vmem>>, vector<1x8xf32>
      %19 = arith.addf %18, %8 : vector<1x8xf32>
      %c0_16 = arith.constant 0 : index
      %c0_17 = arith.constant 0 : index
      %20 = vector.load %arg5[%c0_16, %c0_17] : memref<1x8xf32, #tpu.memory_space<vmem>>, vector<1x8xf32>
      tpu.vector_store %arg5[%c0_16, %c0_17], %19 {strides = array<i32>} : memref<1x8xf32, #tpu.memory_space<vmem>>, vector<1x8xf32>,
    } else {
    }
    return
  }
  func.func @transform_0(%arg0: i32) -> (i32, i32) {
    %c0_i32 = arith.constant 0 : i32
    %c0_i32_0 = arith.constant 0 : i32
    return %arg0, %c0_i32 : i32, i32
  }
  func.func @transform_1(%arg0: i32) -> (i32, i32) {
    %c0_i32 = arith.constant 0 : i32
    %c0_i32_0 = arith.constant 0 : i32
    %c0_i32_1 = arith.constant 0 : i32
    return %c0_i32, %c0_i32_0 : i32, i32
  }
  func.func @transform_2(%arg0: i32) -> (i32, i32) {
    %c0_i32 = arith.constant 0 : i32
    %c0_i32_0 = arith.constant 0 : i32
    return %arg0, %c0_i32 : i32, i32
  }
  func.func @transform_3(%arg0: i32) -> (i32, i32) {
    %c0_i32 = arith.constant 0 : i32
    %c0_i32_0 = arith.constant 0 : i32
    %c0_i32_1 = arith.constant 0 : i32
    return %c0_i32, %c0_i32_0 : i32, i32
  }
  func.func @transform_4(%arg0: i32) -> (i32, i32) {
    %c0_i32 = arith.constant 0 : i32
    %c0_i32_0 = arith.constant 0 : i32
    %c0_i32_1 = arith.constant 0 : i32
    return %c0_i32, %c0_i32_0 : i32, i32
  }
}

module attributes {stable_mosaic.version = 11 : i64} {
  func.func @_bn_finalize_kernel(%arg0: i32, %arg1: memref<512x8xf32, #tpu.memory_space<vmem>>, %arg2: memref<1x8xf32, #tpu.memory_space<vmem>>, %arg3: memref<1x8xf32, #tpu.memory_space<vmem>>, %arg4: memref<1x8xf32, #tpu.memory_space<vmem>>, %arg5: memref<1x8xf32, #tpu.memory_space<vmem>>, %arg6: memref<512x8xf32, #tpu.memory_space<vmem>>) attributes {dimension_semantics = [#tpu.dimension_semantics<parallel>], iteration_bounds = array<i64: 1>, scalar_prefetch = 0 : i64, scratch_operands = 0 : i64, tpu.core_type = #tpu.core_type<tc>, window_params = [{transform_indices = @transform_0, window_bounds = array<i64: 512, 8>}, {pipeline_mode = #tpu.pipeline_mode<synchronous>, transform_indices = @transform_1, window_bounds = array<i64: 1, 8>}, {pipeline_mode = #tpu.pipeline_mode<synchronous>, transform_indices = @transform_2, window_bounds = array<i64: 1, 8>}, {pipeline_mode = #tpu.pipeline_mode<synchronous>, transform_indices = @transform_3, window_bounds = array<i64: 1, 8>}, {pipeline_mode = #tpu.pipeline_mode<synchronous>, transform_indices = @transform_4, window_bounds = array<i64: 1, 8>}, {transform_indices = @transform_5, window_bounds = array<i64: 512, 8>}]} {
    %c0 = arith.constant 0 : index
    %c0_0 = arith.constant 0 : index
    %0 = vector.load %arg2[%c0, %c0_0] : memref<1x8xf32, #tpu.memory_space<vmem>>, vector<1x8xf32>
    %cst = arith.constant 0.001953125 : f32
    %1 = vector.broadcast %cst : f32 to vector<1x8xf32>
    %2 = arith.mulf %0, %1 : vector<1x8xf32>
    %c0_1 = arith.constant 0 : index
    %c0_2 = arith.constant 0 : index
    %3 = vector.load %arg3[%c0_1, %c0_2] : memref<1x8xf32, #tpu.memory_space<vmem>>, vector<1x8xf32>
    %cst_3 = arith.constant 0.001953125 : f32
    %4 = vector.broadcast %cst_3 : f32 to vector<1x8xf32>
    %5 = arith.mulf %3, %4 : vector<1x8xf32>
    %6 = arith.mulf %2, %2 : vector<1x8xf32>
    %7 = arith.subf %5, %6 : vector<1x8xf32>
    %cst_4 = arith.constant 9.99999974E-6 : f32
    %8 = vector.broadcast %cst_4 : f32 to vector<1x8xf32>
    %9 = arith.addf %7, %8 : vector<1x8xf32>
    %10 = math.rsqrt %9 : vector<1x8xf32>
    %c0_5 = arith.constant 0 : index
    %c0_6 = arith.constant 0 : index
    %11 = vector.load %arg4[%c0_5, %c0_6] : memref<1x8xf32, #tpu.memory_space<vmem>>, vector<1x8xf32>
    %12 = arith.mulf %10, %11 : vector<1x8xf32>
    %c0_7 = arith.constant 0 : index
    %c0_8 = arith.constant 0 : index
    %13 = vector.load %arg5[%c0_7, %c0_8] : memref<1x8xf32, #tpu.memory_space<vmem>>, vector<1x8xf32>
    %14 = arith.mulf %2, %12 : vector<1x8xf32>
    %15 = arith.subf %13, %14 : vector<1x8xf32>
    %c0_9 = arith.constant 0 : index
    %c0_10 = arith.constant 0 : index
    %16 = vector.load %arg1[%c0_9, %c0_10] : memref<512x8xf32, #tpu.memory_space<vmem>>, vector<512x8xf32>
    %17 = vector.broadcast %12 : vector<1x8xf32> to vector<512x8xf32>
    %18 = arith.mulf %16, %17 : vector<512x8xf32>
    %19 = vector.broadcast %15 : vector<1x8xf32> to vector<512x8xf32>
    %20 = arith.addf %18, %19 : vector<512x8xf32>
    %cst_11 = arith.constant 0.000000e+00 : f32
    %21 = vector.broadcast %cst_11 : f32 to vector<512x8xf32>
    %22 = arith.maximumf %20, %21 : vector<512x8xf32>
    %c0_12 = arith.constant 0 : index
    %c0_13 = arith.constant 0 : index
    %23 = vector.load %arg6[%c0_12, %c0_13] : memref<512x8xf32, #tpu.memory_space<vmem>>, vector<512x8xf32>
    tpu.vector_store %arg6[%c0_12, %c0_13], %22 {strides = array<i32>} : memref<512x8xf32, #tpu.memory_space<vmem>>, vector<512x8xf32>,
    return
  }
  func.func @transform_0(%arg0: i32) -> (i32, i32) {
    %c0_i32 = arith.constant 0 : i32
    %c0_i32_0 = arith.constant 0 : i32
    return %arg0, %c0_i32 : i32, i32
  }
  func.func @transform_1(%arg0: i32) -> (i32, i32) {
    %c0_i32 = arith.constant 0 : i32
    %c0_i32_0 = arith.constant 0 : i32
    %c0_i32_1 = arith.constant 0 : i32
    return %c0_i32, %c0_i32_0 : i32, i32
  }
  func.func @transform_2(%arg0: i32) -> (i32, i32) {
    %c0_i32 = arith.constant 0 : i32
    %c0_i32_0 = arith.constant 0 : i32
    %c0_i32_1 = arith.constant 0 : i32
    return %c0_i32, %c0_i32_0 : i32, i32
  }
  func.func @transform_3(%arg0: i32) -> (i32, i32) {
    %c0_i32 = arith.constant 0 : i32
    %c0_i32_0 = arith.constant 0 : i32
    %c0_i32_1 = arith.constant 0 : i32
    return %c0_i32, %c0_i32_0 : i32, i32
  }
  func.func @transform_4(%arg0: i32) -> (i32, i32) {
    %c0_i32 = arith.constant 0 : i32
    %c0_i32_0 = arith.constant 0 : i32
    %c0_i32_1 = arith.constant 0 : i32
    return %c0_i32, %c0_i32_0 : i32, i32
  }
  func.func @transform_5(%arg0: i32) -> (i32, i32) {
    %c0_i32 = arith.constant 0 : i32
    %c0_i32_0 = arith.constant 0 : i32
    return %arg0, %c0_i32 : i32, i32
  }
}

module attributes {stable_mosaic.version = 11 : i64} {
  func.func @_matmul_stats_kernel(%arg0: i32, %arg1: memref<128x72xbf16, #tpu.memory_space<vmem>>, %arg2: memref<72x16xbf16, #tpu.memory_space<vmem>>, %arg3: memref<128x16xf32, #tpu.memory_space<vmem>>, %arg4: memref<1x16xf32, #tpu.memory_space<vmem>>, %arg5: memref<1x16xf32, #tpu.memory_space<vmem>>) attributes {dimension_semantics = [#tpu.dimension_semantics<arbitrary>], iteration_bounds = array<i64: 1>, scalar_prefetch = 0 : i64, scratch_operands = 0 : i64, tpu.core_type = #tpu.core_type<tc>, window_params = [{transform_indices = @transform_0, window_bounds = array<i64: 128, 72>}, {pipeline_mode = #tpu.pipeline_mode<synchronous>, transform_indices = @transform_1, window_bounds = array<i64: 72, 16>}, {transform_indices = @transform_2, window_bounds = array<i64: 128, 16>}, {pipeline_mode = #tpu.pipeline_mode<synchronous>, transform_indices = @transform_3, window_bounds = array<i64: 1, 16>}, {pipeline_mode = #tpu.pipeline_mode<synchronous>, transform_indices = @transform_4, window_bounds = array<i64: 1, 16>}]} {
    %c0 = arith.constant 0 : index
    %c0_0 = arith.constant 0 : index
    %0 = vector.load %arg1[%c0, %c0_0] : memref<128x72xbf16, #tpu.memory_space<vmem>>, vector<128x72xbf16>
    %c0_1 = arith.constant 0 : index
    %c0_2 = arith.constant 0 : index
    %1 = vector.load %arg2[%c0_1, %c0_2] : memref<72x16xbf16, #tpu.memory_space<vmem>>, vector<72x16xbf16>
    %cst = arith.constant dense<0.000000e+00> : vector<128x16xf32>
    %2 = tpu.matmul %0, %1, %cst {dimension_numbers = #tpu.dot_dimension_numbers<[1], [0], [0], [1], [0, 0, 1, 1], [], []>} : vector<128x72xbf16>, vector<72x16xbf16>, vector<128x16xf32> -> vector<128x16xf32>
    %c0_3 = arith.constant 0 : index
    %c0_4 = arith.constant 0 : index
    %3 = vector.load %arg3[%c0_3, %c0_4] : memref<128x16xf32, #tpu.memory_space<vmem>>, vector<128x16xf32>
    tpu.vector_store %arg3[%c0_3, %c0_4], %2 {strides = array<i32>} : memref<128x16xf32, #tpu.memory_space<vmem>>, vector<128x16xf32>,
    %cst_5 = arith.constant dense<0.000000e+00> : vector<16xf32>
    %4 = vector.multi_reduction <add>, %2, %cst_5 [0] : vector<128x16xf32> to vector<16xf32>
    %5 = vector.shape_cast %4 : vector<16xf32> to vector<1x16xf32>
    %6 = arith.mulf %2, %2 : vector<128x16xf32>
    %cst_6 = arith.constant dense<0.000000e+00> : vector<16xf32>
    %7 = vector.multi_reduction <add>, %6, %cst_6 [0] : vector<128x16xf32> to vector<16xf32>
    %8 = vector.shape_cast %7 : vector<16xf32> to vector<1x16xf32>
    %c0_i32 = arith.constant 0 : i32
    %9 = arith.cmpi eq, %arg0, %c0_i32 : i32
    %10 = arith.extui %9 : i1 to i32
    %c0_i32_7 = arith.constant 0 : i32
    %11 = arith.cmpi ne, %10, %c0_i32_7 : i32
    scf.if %11 {
      %c0_10 = arith.constant 0 : index
      %c0_11 = arith.constant 0 : index
      %15 = vector.load %arg4[%c0_10, %c0_11] : memref<1x16xf32, #tpu.memory_space<vmem>>, vector<1x16xf32>
      tpu.vector_store %arg4[%c0_10, %c0_11], %5 {strides = array<i32>} : memref<1x16xf32, #tpu.memory_space<vmem>>, vector<1x16xf32>,
      %c0_12 = arith.constant 0 : index
      %c0_13 = arith.constant 0 : index
      %16 = vector.load %arg5[%c0_12, %c0_13] : memref<1x16xf32, #tpu.memory_space<vmem>>, vector<1x16xf32>
      tpu.vector_store %arg5[%c0_12, %c0_13], %8 {strides = array<i32>} : memref<1x16xf32, #tpu.memory_space<vmem>>, vector<1x16xf32>,
    } else {
    }
    %c0_i32_8 = arith.constant 0 : i32
    %12 = arith.cmpi ne, %arg0, %c0_i32_8 : i32
    %13 = arith.extui %12 : i1 to i32
    %c0_i32_9 = arith.constant 0 : i32
    %14 = arith.cmpi ne, %13, %c0_i32_9 : i32
    scf.if %14 {
      %c0_10 = arith.constant 0 : index
      %c0_11 = arith.constant 0 : index
      %15 = vector.load %arg4[%c0_10, %c0_11] : memref<1x16xf32, #tpu.memory_space<vmem>>, vector<1x16xf32>
      %16 = arith.addf %15, %5 : vector<1x16xf32>
      %c0_12 = arith.constant 0 : index
      %c0_13 = arith.constant 0 : index
      %17 = vector.load %arg4[%c0_12, %c0_13] : memref<1x16xf32, #tpu.memory_space<vmem>>, vector<1x16xf32>
      tpu.vector_store %arg4[%c0_12, %c0_13], %16 {strides = array<i32>} : memref<1x16xf32, #tpu.memory_space<vmem>>, vector<1x16xf32>,
      %c0_14 = arith.constant 0 : index
      %c0_15 = arith.constant 0 : index
      %18 = vector.load %arg5[%c0_14, %c0_15] : memref<1x16xf32, #tpu.memory_space<vmem>>, vector<1x16xf32>
      %19 = arith.addf %18, %8 : vector<1x16xf32>
      %c0_16 = arith.constant 0 : index
      %c0_17 = arith.constant 0 : index
      %20 = vector.load %arg5[%c0_16, %c0_17] : memref<1x16xf32, #tpu.memory_space<vmem>>, vector<1x16xf32>
      tpu.vector_store %arg5[%c0_16, %c0_17], %19 {strides = array<i32>} : memref<1x16xf32, #tpu.memory_space<vmem>>, vector<1x16xf32>,
    } else {
    }
    return
  }
  func.func @transform_0(%arg0: i32) -> (i32, i32) {
    %c0_i32 = arith.constant 0 : i32
    %c0_i32_0 = arith.constant 0 : i32
    return %arg0, %c0_i32 : i32, i32
  }
  func.func @transform_1(%arg0: i32) -> (i32, i32) {
    %c0_i32 = arith.constant 0 : i32
    %c0_i32_0 = arith.constant 0 : i32
    %c0_i32_1 = arith.constant 0 : i32
    return %c0_i32, %c0_i32_0 : i32, i32
  }
  func.func @transform_2(%arg0: i32) -> (i32, i32) {
    %c0_i32 = arith.constant 0 : i32
    %c0_i32_0 = arith.constant 0 : i32
    return %arg0, %c0_i32 : i32, i32
  }
  func.func @transform_3(%arg0: i32) -> (i32, i32) {
    %c0_i32 = arith.constant 0 : i32
    %c0_i32_0 = arith.constant 0 : i32
    %c0_i32_1 = arith.constant 0 : i32
    return %c0_i32, %c0_i32_0 : i32, i32
  }
  func.func @transform_4(%arg0: i32) -> (i32, i32) {
    %c0_i32 = arith.constant 0 : i32
    %c0_i32_0 = arith.constant 0 : i32
    %c0_i32_1 = arith.constant 0 : i32
    return %c0_i32, %c0_i32_0 : i32, i32
  }
}

module attributes {stable_mosaic.version = 11 : i64} {
  func.func @_bn_finalize_kernel(%arg0: i32, %arg1: memref<128x16xf32, #tpu.memory_space<vmem>>, %arg2: memref<1x16xf32, #tpu.memory_space<vmem>>, %arg3: memref<1x16xf32, #tpu.memory_space<vmem>>, %arg4: memref<1x16xf32, #tpu.memory_space<vmem>>, %arg5: memref<1x16xf32, #tpu.memory_space<vmem>>, %arg6: memref<128x16xf32, #tpu.memory_space<vmem>>) attributes {dimension_semantics = [#tpu.dimension_semantics<parallel>], iteration_bounds = array<i64: 1>, scalar_prefetch = 0 : i64, scratch_operands = 0 : i64, tpu.core_type = #tpu.core_type<tc>, window_params = [{transform_indices = @transform_0, window_bounds = array<i64: 128, 16>}, {pipeline_mode = #tpu.pipeline_mode<synchronous>, transform_indices = @transform_1, window_bounds = array<i64: 1, 16>}, {pipeline_mode = #tpu.pipeline_mode<synchronous>, transform_indices = @transform_2, window_bounds = array<i64: 1, 16>}, {pipeline_mode = #tpu.pipeline_mode<synchronous>, transform_indices = @transform_3, window_bounds = array<i64: 1, 16>}, {pipeline_mode = #tpu.pipeline_mode<synchronous>, transform_indices = @transform_4, window_bounds = array<i64: 1, 16>}, {transform_indices = @transform_5, window_bounds = array<i64: 128, 16>}]} {
    %c0 = arith.constant 0 : index
    %c0_0 = arith.constant 0 : index
    %0 = vector.load %arg2[%c0, %c0_0] : memref<1x16xf32, #tpu.memory_space<vmem>>, vector<1x16xf32>
    %cst = arith.constant 7.812500e-03 : f32
    %1 = vector.broadcast %cst : f32 to vector<1x16xf32>
    %2 = arith.mulf %0, %1 : vector<1x16xf32>
    %c0_1 = arith.constant 0 : index
    %c0_2 = arith.constant 0 : index
    %3 = vector.load %arg3[%c0_1, %c0_2] : memref<1x16xf32, #tpu.memory_space<vmem>>, vector<1x16xf32>
    %cst_3 = arith.constant 7.812500e-03 : f32
    %4 = vector.broadcast %cst_3 : f32 to vector<1x16xf32>
    %5 = arith.mulf %3, %4 : vector<1x16xf32>
    %6 = arith.mulf %2, %2 : vector<1x16xf32>
    %7 = arith.subf %5, %6 : vector<1x16xf32>
    %cst_4 = arith.constant 9.99999974E-6 : f32
    %8 = vector.broadcast %cst_4 : f32 to vector<1x16xf32>
    %9 = arith.addf %7, %8 : vector<1x16xf32>
    %10 = math.rsqrt %9 : vector<1x16xf32>
    %c0_5 = arith.constant 0 : index
    %c0_6 = arith.constant 0 : index
    %11 = vector.load %arg4[%c0_5, %c0_6] : memref<1x16xf32, #tpu.memory_space<vmem>>, vector<1x16xf32>
    %12 = arith.mulf %10, %11 : vector<1x16xf32>
    %c0_7 = arith.constant 0 : index
    %c0_8 = arith.constant 0 : index
    %13 = vector.load %arg5[%c0_7, %c0_8] : memref<1x16xf32, #tpu.memory_space<vmem>>, vector<1x16xf32>
    %14 = arith.mulf %2, %12 : vector<1x16xf32>
    %15 = arith.subf %13, %14 : vector<1x16xf32>
    %c0_9 = arith.constant 0 : index
    %c0_10 = arith.constant 0 : index
    %16 = vector.load %arg1[%c0_9, %c0_10] : memref<128x16xf32, #tpu.memory_space<vmem>>, vector<128x16xf32>
    %17 = vector.broadcast %12 : vector<1x16xf32> to vector<128x16xf32>
    %18 = arith.mulf %16, %17 : vector<128x16xf32>
    %19 = vector.broadcast %15 : vector<1x16xf32> to vector<128x16xf32>
    %20 = arith.addf %18, %19 : vector<128x16xf32>
    %cst_11 = arith.constant 0.000000e+00 : f32
    %21 = vector.broadcast %cst_11 : f32 to vector<128x16xf32>
    %22 = arith.maximumf %20, %21 : vector<128x16xf32>
    %c0_12 = arith.constant 0 : index
    %c0_13 = arith.constant 0 : index
    %23 = vector.load %arg6[%c0_12, %c0_13] : memref<128x16xf32, #tpu.memory_space<vmem>>, vector<128x16xf32>
    tpu.vector_store %arg6[%c0_12, %c0_13], %22 {strides = array<i32>} : memref<128x16xf32, #tpu.memory_space<vmem>>, vector<128x16xf32>,
    return
  }
  func.func @transform_0(%arg0: i32) -> (i32, i32) {
    %c0_i32 = arith.constant 0 : i32
    %c0_i32_0 = arith.constant 0 : i32
    return %arg0, %c0_i32 : i32, i32
  }
  func.func @transform_1(%arg0: i32) -> (i32, i32) {
    %c0_i32 = arith.constant 0 : i32
    %c0_i32_0 = arith.constant 0 : i32
    %c0_i32_1 = arith.constant 0 : i32
    return %c0_i32, %c0_i32_0 : i32, i32
  }
  func.func @transform_2(%arg0: i32) -> (i32, i32) {
    %c0_i32 = arith.constant 0 : i32
    %c0_i32_0 = arith.constant 0 : i32
    %c0_i32_1 = arith.constant 0 : i32
    return %c0_i32, %c0_i32_0 : i32, i32
  }
  func.func @transform_3(%arg0: i32) -> (i32, i32) {
    %c0_i32 = arith.constant 0 : i32
    %c0_i32_0 = arith.constant 0 : i32
    %c0_i32_1 = arith.constant 0 : i32
    return %c0_i32, %c0_i32_0 : i32, i32
  }
  func.func @transform_4(%arg0: i32) -> (i32, i32) {
    %c0_i32 = arith.constant 0 : i32
    %c0_i32_0 = arith.constant 0 : i32
    %c0_i32_1 = arith.constant 0 : i32
    return %c0_i32, %c0_i32_0 : i32, i32
  }
  func.func @transform_5(%arg0: i32) -> (i32, i32) {
    %c0_i32 = arith.constant 0 : i32
    %c0_i32_0 = arith.constant 0 : i32
    return %arg0, %c0_i32 : i32, i32
  }
}

module attributes {stable_mosaic.version = 11 : i64} {
  func.func @_matmul_stats_kernel(%arg0: i32, %arg1: memref<32x144xbf16, #tpu.memory_space<vmem>>, %arg2: memref<144x32xbf16, #tpu.memory_space<vmem>>, %arg3: memref<32x32xf32, #tpu.memory_space<vmem>>, %arg4: memref<1x32xf32, #tpu.memory_space<vmem>>, %arg5: memref<1x32xf32, #tpu.memory_space<vmem>>) attributes {dimension_semantics = [#tpu.dimension_semantics<arbitrary>], iteration_bounds = array<i64: 1>, scalar_prefetch = 0 : i64, scratch_operands = 0 : i64, tpu.core_type = #tpu.core_type<tc>, window_params = [{transform_indices = @transform_0, window_bounds = array<i64: 32, 144>}, {pipeline_mode = #tpu.pipeline_mode<synchronous>, transform_indices = @transform_1, window_bounds = array<i64: 144, 32>}, {transform_indices = @transform_2, window_bounds = array<i64: 32, 32>}, {pipeline_mode = #tpu.pipeline_mode<synchronous>, transform_indices = @transform_3, window_bounds = array<i64: 1, 32>}, {pipeline_mode = #tpu.pipeline_mode<synchronous>, transform_indices = @transform_4, window_bounds = array<i64: 1, 32>}]} {
    %c0 = arith.constant 0 : index
    %c0_0 = arith.constant 0 : index
    %0 = vector.load %arg1[%c0, %c0_0] : memref<32x144xbf16, #tpu.memory_space<vmem>>, vector<32x144xbf16>
    %c0_1 = arith.constant 0 : index
    %c0_2 = arith.constant 0 : index
    %1 = vector.load %arg2[%c0_1, %c0_2] : memref<144x32xbf16, #tpu.memory_space<vmem>>, vector<144x32xbf16>
    %cst = arith.constant dense<0.000000e+00> : vector<32x32xf32>
    %2 = tpu.matmul %0, %1, %cst {dimension_numbers = #tpu.dot_dimension_numbers<[1], [0], [0], [1], [0, 0, 1, 1], [], []>} : vector<32x144xbf16>, vector<144x32xbf16>, vector<32x32xf32> -> vector<32x32xf32>
    %c0_3 = arith.constant 0 : index
    %c0_4 = arith.constant 0 : index
    %3 = vector.load %arg3[%c0_3, %c0_4] : memref<32x32xf32, #tpu.memory_space<vmem>>, vector<32x32xf32>
    tpu.vector_store %arg3[%c0_3, %c0_4], %2 {strides = array<i32>} : memref<32x32xf32, #tpu.memory_space<vmem>>, vector<32x32xf32>,
    %cst_5 = arith.constant dense<0.000000e+00> : vector<32xf32>
    %4 = vector.multi_reduction <add>, %2, %cst_5 [0] : vector<32x32xf32> to vector<32xf32>
    %5 = vector.shape_cast %4 : vector<32xf32> to vector<1x32xf32>
    %6 = arith.mulf %2, %2 : vector<32x32xf32>
    %cst_6 = arith.constant dense<0.000000e+00> : vector<32xf32>
    %7 = vector.multi_reduction <add>, %6, %cst_6 [0] : vector<32x32xf32> to vector<32xf32>
    %8 = vector.shape_cast %7 : vector<32xf32> to vector<1x32xf32>
    %c0_i32 = arith.constant 0 : i32
    %9 = arith.cmpi eq, %arg0, %c0_i32 : i32
    %10 = arith.extui %9 : i1 to i32
    %c0_i32_7 = arith.constant 0 : i32
    %11 = arith.cmpi ne, %10, %c0_i32_7 : i32
    scf.if %11 {
      %c0_10 = arith.constant 0 : index
      %c0_11 = arith.constant 0 : index
      %15 = vector.load %arg4[%c0_10, %c0_11] : memref<1x32xf32, #tpu.memory_space<vmem>>, vector<1x32xf32>
      tpu.vector_store %arg4[%c0_10, %c0_11], %5 {strides = array<i32>} : memref<1x32xf32, #tpu.memory_space<vmem>>, vector<1x32xf32>,
      %c0_12 = arith.constant 0 : index
      %c0_13 = arith.constant 0 : index
      %16 = vector.load %arg5[%c0_12, %c0_13] : memref<1x32xf32, #tpu.memory_space<vmem>>, vector<1x32xf32>
      tpu.vector_store %arg5[%c0_12, %c0_13], %8 {strides = array<i32>} : memref<1x32xf32, #tpu.memory_space<vmem>>, vector<1x32xf32>,
    } else {
    }
    %c0_i32_8 = arith.constant 0 : i32
    %12 = arith.cmpi ne, %arg0, %c0_i32_8 : i32
    %13 = arith.extui %12 : i1 to i32
    %c0_i32_9 = arith.constant 0 : i32
    %14 = arith.cmpi ne, %13, %c0_i32_9 : i32
    scf.if %14 {
      %c0_10 = arith.constant 0 : index
      %c0_11 = arith.constant 0 : index
      %15 = vector.load %arg4[%c0_10, %c0_11] : memref<1x32xf32, #tpu.memory_space<vmem>>, vector<1x32xf32>
      %16 = arith.addf %15, %5 : vector<1x32xf32>
      %c0_12 = arith.constant 0 : index
      %c0_13 = arith.constant 0 : index
      %17 = vector.load %arg4[%c0_12, %c0_13] : memref<1x32xf32, #tpu.memory_space<vmem>>, vector<1x32xf32>
      tpu.vector_store %arg4[%c0_12, %c0_13], %16 {strides = array<i32>} : memref<1x32xf32, #tpu.memory_space<vmem>>, vector<1x32xf32>,
      %c0_14 = arith.constant 0 : index
      %c0_15 = arith.constant 0 : index
      %18 = vector.load %arg5[%c0_14, %c0_15] : memref<1x32xf32, #tpu.memory_space<vmem>>, vector<1x32xf32>
      %19 = arith.addf %18, %8 : vector<1x32xf32>
      %c0_16 = arith.constant 0 : index
      %c0_17 = arith.constant 0 : index
      %20 = vector.load %arg5[%c0_16, %c0_17] : memref<1x32xf32, #tpu.memory_space<vmem>>, vector<1x32xf32>
      tpu.vector_store %arg5[%c0_16, %c0_17], %19 {strides = array<i32>} : memref<1x32xf32, #tpu.memory_space<vmem>>, vector<1x32xf32>,
    } else {
    }
    return
  }
  func.func @transform_0(%arg0: i32) -> (i32, i32) {
    %c0_i32 = arith.constant 0 : i32
    %c0_i32_0 = arith.constant 0 : i32
    return %arg0, %c0_i32 : i32, i32
  }
  func.func @transform_1(%arg0: i32) -> (i32, i32) {
    %c0_i32 = arith.constant 0 : i32
    %c0_i32_0 = arith.constant 0 : i32
    %c0_i32_1 = arith.constant 0 : i32
    return %c0_i32, %c0_i32_0 : i32, i32
  }
  func.func @transform_2(%arg0: i32) -> (i32, i32) {
    %c0_i32 = arith.constant 0 : i32
    %c0_i32_0 = arith.constant 0 : i32
    return %arg0, %c0_i32 : i32, i32
  }
  func.func @transform_3(%arg0: i32) -> (i32, i32) {
    %c0_i32 = arith.constant 0 : i32
    %c0_i32_0 = arith.constant 0 : i32
    %c0_i32_1 = arith.constant 0 : i32
    return %c0_i32, %c0_i32_0 : i32, i32
  }
  func.func @transform_4(%arg0: i32) -> (i32, i32) {
    %c0_i32 = arith.constant 0 : i32
    %c0_i32_0 = arith.constant 0 : i32
    %c0_i32_1 = arith.constant 0 : i32
    return %c0_i32, %c0_i32_0 : i32, i32
  }
}

module attributes {stable_mosaic.version = 11 : i64} {
  func.func @_bn_finalize_kernel(%arg0: i32, %arg1: memref<32x32xf32, #tpu.memory_space<vmem>>, %arg2: memref<1x32xf32, #tpu.memory_space<vmem>>, %arg3: memref<1x32xf32, #tpu.memory_space<vmem>>, %arg4: memref<1x32xf32, #tpu.memory_space<vmem>>, %arg5: memref<1x32xf32, #tpu.memory_space<vmem>>, %arg6: memref<32x32xf32, #tpu.memory_space<vmem>>) attributes {dimension_semantics = [#tpu.dimension_semantics<parallel>], iteration_bounds = array<i64: 1>, scalar_prefetch = 0 : i64, scratch_operands = 0 : i64, tpu.core_type = #tpu.core_type<tc>, window_params = [{transform_indices = @transform_0, window_bounds = array<i64: 32, 32>}, {pipeline_mode = #tpu.pipeline_mode<synchronous>, transform_indices = @transform_1, window_bounds = array<i64: 1, 32>}, {pipeline_mode = #tpu.pipeline_mode<synchronous>, transform_indices = @transform_2, window_bounds = array<i64: 1, 32>}, {pipeline_mode = #tpu.pipeline_mode<synchronous>, transform_indices = @transform_3, window_bounds = array<i64: 1, 32>}, {pipeline_mode = #tpu.pipeline_mode<synchronous>, transform_indices = @transform_4, window_bounds = array<i64: 1, 32>}, {transform_indices = @transform_5, window_bounds = array<i64: 32, 32>}]} {
    %c0 = arith.constant 0 : index
    %c0_0 = arith.constant 0 : index
    %0 = vector.load %arg2[%c0, %c0_0] : memref<1x32xf32, #tpu.memory_space<vmem>>, vector<1x32xf32>
    %cst = arith.constant 3.125000e-02 : f32
    %1 = vector.broadcast %cst : f32 to vector<1x32xf32>
    %2 = arith.mulf %0, %1 : vector<1x32xf32>
    %c0_1 = arith.constant 0 : index
    %c0_2 = arith.constant 0 : index
    %3 = vector.load %arg3[%c0_1, %c0_2] : memref<1x32xf32, #tpu.memory_space<vmem>>, vector<1x32xf32>
    %cst_3 = arith.constant 3.125000e-02 : f32
    %4 = vector.broadcast %cst_3 : f32 to vector<1x32xf32>
    %5 = arith.mulf %3, %4 : vector<1x32xf32>
    %6 = arith.mulf %2, %2 : vector<1x32xf32>
    %7 = arith.subf %5, %6 : vector<1x32xf32>
    %cst_4 = arith.constant 9.99999974E-6 : f32
    %8 = vector.broadcast %cst_4 : f32 to vector<1x32xf32>
    %9 = arith.addf %7, %8 : vector<1x32xf32>
    %10 = math.rsqrt %9 : vector<1x32xf32>
    %c0_5 = arith.constant 0 : index
    %c0_6 = arith.constant 0 : index
    %11 = vector.load %arg4[%c0_5, %c0_6] : memref<1x32xf32, #tpu.memory_space<vmem>>, vector<1x32xf32>
    %12 = arith.mulf %10, %11 : vector<1x32xf32>
    %c0_7 = arith.constant 0 : index
    %c0_8 = arith.constant 0 : index
    %13 = vector.load %arg5[%c0_7, %c0_8] : memref<1x32xf32, #tpu.memory_space<vmem>>, vector<1x32xf32>
    %14 = arith.mulf %2, %12 : vector<1x32xf32>
    %15 = arith.subf %13, %14 : vector<1x32xf32>
    %c0_9 = arith.constant 0 : index
    %c0_10 = arith.constant 0 : index
    %16 = vector.load %arg1[%c0_9, %c0_10] : memref<32x32xf32, #tpu.memory_space<vmem>>, vector<32x32xf32>
    %17 = vector.broadcast %12 : vector<1x32xf32> to vector<32x32xf32>
    %18 = arith.mulf %16, %17 : vector<32x32xf32>
    %19 = vector.broadcast %15 : vector<1x32xf32> to vector<32x32xf32>
    %20 = arith.addf %18, %19 : vector<32x32xf32>
    %cst_11 = arith.constant 0.000000e+00 : f32
    %21 = vector.broadcast %cst_11 : f32 to vector<32x32xf32>
    %22 = arith.maximumf %20, %21 : vector<32x32xf32>
    %c0_12 = arith.constant 0 : index
    %c0_13 = arith.constant 0 : index
    %23 = vector.load %arg6[%c0_12, %c0_13] : memref<32x32xf32, #tpu.memory_space<vmem>>, vector<32x32xf32>
    tpu.vector_store %arg6[%c0_12, %c0_13], %22 {strides = array<i32>} : memref<32x32xf32, #tpu.memory_space<vmem>>, vector<32x32xf32>,
    return
  }
  func.func @transform_0(%arg0: i32) -> (i32, i32) {
    %c0_i32 = arith.constant 0 : i32
    %c0_i32_0 = arith.constant 0 : i32
    return %arg0, %c0_i32 : i32, i32
  }
  func.func @transform_1(%arg0: i32) -> (i32, i32) {
    %c0_i32 = arith.constant 0 : i32
    %c0_i32_0 = arith.constant 0 : i32
    %c0_i32_1 = arith.constant 0 : i32
    return %c0_i32, %c0_i32_0 : i32, i32
  }
  func.func @transform_2(%arg0: i32) -> (i32, i32) {
    %c0_i32 = arith.constant 0 : i32
    %c0_i32_0 = arith.constant 0 : i32
    %c0_i32_1 = arith.constant 0 : i32
    return %c0_i32, %c0_i32_0 : i32, i32
  }
  func.func @transform_3(%arg0: i32) -> (i32, i32) {
    %c0_i32 = arith.constant 0 : i32
    %c0_i32_0 = arith.constant 0 : i32
    %c0_i32_1 = arith.constant 0 : i32
    return %c0_i32, %c0_i32_0 : i32, i32
  }
  func.func @transform_4(%arg0: i32) -> (i32, i32) {
    %c0_i32 = arith.constant 0 : i32
    %c0_i32_0 = arith.constant 0 : i32
    %c0_i32_1 = arith.constant 0 : i32
    return %c0_i32, %c0_i32_0 : i32, i32
  }
  func.func @transform_5(%arg0: i32) -> (i32, i32) {
    %c0_i32 = arith.constant 0 : i32
    %c0_i32_0 = arith.constant 0 : i32
    return %arg0, %c0_i32 : i32, i32
  }
}

module attributes {stable_mosaic.version = 11 : i64} {
  func.func @_matmul_stats_kernel(%arg0: i32, %arg1: memref<32x288xbf16, #tpu.memory_space<vmem>>, %arg2: memref<288x32xbf16, #tpu.memory_space<vmem>>, %arg3: memref<32x32xf32, #tpu.memory_space<vmem>>, %arg4: memref<1x32xf32, #tpu.memory_space<vmem>>, %arg5: memref<1x32xf32, #tpu.memory_space<vmem>>) attributes {dimension_semantics = [#tpu.dimension_semantics<arbitrary>], iteration_bounds = array<i64: 1>, scalar_prefetch = 0 : i64, scratch_operands = 0 : i64, tpu.core_type = #tpu.core_type<tc>, window_params = [{transform_indices = @transform_0, window_bounds = array<i64: 32, 288>}, {pipeline_mode = #tpu.pipeline_mode<synchronous>, transform_indices = @transform_1, window_bounds = array<i64: 288, 32>}, {transform_indices = @transform_2, window_bounds = array<i64: 32, 32>}, {pipeline_mode = #tpu.pipeline_mode<synchronous>, transform_indices = @transform_3, window_bounds = array<i64: 1, 32>}, {pipeline_mode = #tpu.pipeline_mode<synchronous>, transform_indices = @transform_4, window_bounds = array<i64: 1, 32>}]} {
    %c0 = arith.constant 0 : index
    %c0_0 = arith.constant 0 : index
    %0 = vector.load %arg1[%c0, %c0_0] : memref<32x288xbf16, #tpu.memory_space<vmem>>, vector<32x288xbf16>
    %c0_1 = arith.constant 0 : index
    %c0_2 = arith.constant 0 : index
    %1 = vector.load %arg2[%c0_1, %c0_2] : memref<288x32xbf16, #tpu.memory_space<vmem>>, vector<288x32xbf16>
    %cst = arith.constant dense<0.000000e+00> : vector<32x32xf32>
    %2 = tpu.matmul %0, %1, %cst {dimension_numbers = #tpu.dot_dimension_numbers<[1], [0], [0], [1], [0, 0, 1, 1], [], []>} : vector<32x288xbf16>, vector<288x32xbf16>, vector<32x32xf32> -> vector<32x32xf32>
    %c0_3 = arith.constant 0 : index
    %c0_4 = arith.constant 0 : index
    %3 = vector.load %arg3[%c0_3, %c0_4] : memref<32x32xf32, #tpu.memory_space<vmem>>, vector<32x32xf32>
    tpu.vector_store %arg3[%c0_3, %c0_4], %2 {strides = array<i32>} : memref<32x32xf32, #tpu.memory_space<vmem>>, vector<32x32xf32>,
    %cst_5 = arith.constant dense<0.000000e+00> : vector<32xf32>
    %4 = vector.multi_reduction <add>, %2, %cst_5 [0] : vector<32x32xf32> to vector<32xf32>
    %5 = vector.shape_cast %4 : vector<32xf32> to vector<1x32xf32>
    %6 = arith.mulf %2, %2 : vector<32x32xf32>
    %cst_6 = arith.constant dense<0.000000e+00> : vector<32xf32>
    %7 = vector.multi_reduction <add>, %6, %cst_6 [0] : vector<32x32xf32> to vector<32xf32>
    %8 = vector.shape_cast %7 : vector<32xf32> to vector<1x32xf32>
    %c0_i32 = arith.constant 0 : i32
    %9 = arith.cmpi eq, %arg0, %c0_i32 : i32
    %10 = arith.extui %9 : i1 to i32
    %c0_i32_7 = arith.constant 0 : i32
    %11 = arith.cmpi ne, %10, %c0_i32_7 : i32
    scf.if %11 {
      %c0_10 = arith.constant 0 : index
      %c0_11 = arith.constant 0 : index
      %15 = vector.load %arg4[%c0_10, %c0_11] : memref<1x32xf32, #tpu.memory_space<vmem>>, vector<1x32xf32>
      tpu.vector_store %arg4[%c0_10, %c0_11], %5 {strides = array<i32>} : memref<1x32xf32, #tpu.memory_space<vmem>>, vector<1x32xf32>,
      %c0_12 = arith.constant 0 : index
      %c0_13 = arith.constant 0 : index
      %16 = vector.load %arg5[%c0_12, %c0_13] : memref<1x32xf32, #tpu.memory_space<vmem>>, vector<1x32xf32>
      tpu.vector_store %arg5[%c0_12, %c0_13], %8 {strides = array<i32>} : memref<1x32xf32, #tpu.memory_space<vmem>>, vector<1x32xf32>,
    } else {
    }
    %c0_i32_8 = arith.constant 0 : i32
    %12 = arith.cmpi ne, %arg0, %c0_i32_8 : i32
    %13 = arith.extui %12 : i1 to i32
    %c0_i32_9 = arith.constant 0 : i32
    %14 = arith.cmpi ne, %13, %c0_i32_9 : i32
    scf.if %14 {
      %c0_10 = arith.constant 0 : index
      %c0_11 = arith.constant 0 : index
      %15 = vector.load %arg4[%c0_10, %c0_11] : memref<1x32xf32, #tpu.memory_space<vmem>>, vector<1x32xf32>
      %16 = arith.addf %15, %5 : vector<1x32xf32>
      %c0_12 = arith.constant 0 : index
      %c0_13 = arith.constant 0 : index
      %17 = vector.load %arg4[%c0_12, %c0_13] : memref<1x32xf32, #tpu.memory_space<vmem>>, vector<1x32xf32>
      tpu.vector_store %arg4[%c0_12, %c0_13], %16 {strides = array<i32>} : memref<1x32xf32, #tpu.memory_space<vmem>>, vector<1x32xf32>,
      %c0_14 = arith.constant 0 : index
      %c0_15 = arith.constant 0 : index
      %18 = vector.load %arg5[%c0_14, %c0_15] : memref<1x32xf32, #tpu.memory_space<vmem>>, vector<1x32xf32>
      %19 = arith.addf %18, %8 : vector<1x32xf32>
      %c0_16 = arith.constant 0 : index
      %c0_17 = arith.constant 0 : index
      %20 = vector.load %arg5[%c0_16, %c0_17] : memref<1x32xf32, #tpu.memory_space<vmem>>, vector<1x32xf32>
      tpu.vector_store %arg5[%c0_16, %c0_17], %19 {strides = array<i32>} : memref<1x32xf32, #tpu.memory_space<vmem>>, vector<1x32xf32>,
    } else {
    }
    return
  }
  func.func @transform_0(%arg0: i32) -> (i32, i32) {
    %c0_i32 = arith.constant 0 : i32
    %c0_i32_0 = arith.constant 0 : i32
    return %arg0, %c0_i32 : i32, i32
  }
  func.func @transform_1(%arg0: i32) -> (i32, i32) {
    %c0_i32 = arith.constant 0 : i32
    %c0_i32_0 = arith.constant 0 : i32
    %c0_i32_1 = arith.constant 0 : i32
    return %c0_i32, %c0_i32_0 : i32, i32
  }
  func.func @transform_2(%arg0: i32) -> (i32, i32) {
    %c0_i32 = arith.constant 0 : i32
    %c0_i32_0 = arith.constant 0 : i32
    return %arg0, %c0_i32 : i32, i32
  }
  func.func @transform_3(%arg0: i32) -> (i32, i32) {
    %c0_i32 = arith.constant 0 : i32
    %c0_i32_0 = arith.constant 0 : i32
    %c0_i32_1 = arith.constant 0 : i32
    return %c0_i32, %c0_i32_0 : i32, i32
  }
  func.func @transform_4(%arg0: i32) -> (i32, i32) {
    %c0_i32 = arith.constant 0 : i32
    %c0_i32_0 = arith.constant 0 : i32
    %c0_i32_1 = arith.constant 0 : i32
    return %c0_i32, %c0_i32_0 : i32, i32
  }
}

module attributes {stable_mosaic.version = 11 : i64} {
  func.func @_bn_finalize_kernel(%arg0: i32, %arg1: memref<32x32xf32, #tpu.memory_space<vmem>>, %arg2: memref<1x32xf32, #tpu.memory_space<vmem>>, %arg3: memref<1x32xf32, #tpu.memory_space<vmem>>, %arg4: memref<1x32xf32, #tpu.memory_space<vmem>>, %arg5: memref<1x32xf32, #tpu.memory_space<vmem>>, %arg6: memref<32x32xf32, #tpu.memory_space<vmem>>, %arg7: memref<32x32xf32, #tpu.memory_space<vmem>>) attributes {dimension_semantics = [#tpu.dimension_semantics<parallel>], iteration_bounds = array<i64: 1>, scalar_prefetch = 0 : i64, scratch_operands = 0 : i64, tpu.core_type = #tpu.core_type<tc>, window_params = [{transform_indices = @transform_0, window_bounds = array<i64: 32, 32>}, {pipeline_mode = #tpu.pipeline_mode<synchronous>, transform_indices = @transform_1, window_bounds = array<i64: 1, 32>}, {pipeline_mode = #tpu.pipeline_mode<synchronous>, transform_indices = @transform_2, window_bounds = array<i64: 1, 32>}, {pipeline_mode = #tpu.pipeline_mode<synchronous>, transform_indices = @transform_3, window_bounds = array<i64: 1, 32>}, {pipeline_mode = #tpu.pipeline_mode<synchronous>, transform_indices = @transform_4, window_bounds = array<i64: 1, 32>}, {transform_indices = @transform_5, window_bounds = array<i64: 32, 32>}, {transform_indices = @transform_6, window_bounds = array<i64: 32, 32>}]} {
    %c0 = arith.constant 0 : index
    %c0_0 = arith.constant 0 : index
    %0 = vector.load %arg2[%c0, %c0_0] : memref<1x32xf32, #tpu.memory_space<vmem>>, vector<1x32xf32>
    %cst = arith.constant 3.125000e-02 : f32
    %1 = vector.broadcast %cst : f32 to vector<1x32xf32>
    %2 = arith.mulf %0, %1 : vector<1x32xf32>
    %c0_1 = arith.constant 0 : index
    %c0_2 = arith.constant 0 : index
    %3 = vector.load %arg3[%c0_1, %c0_2] : memref<1x32xf32, #tpu.memory_space<vmem>>, vector<1x32xf32>
    %cst_3 = arith.constant 3.125000e-02 : f32
    %4 = vector.broadcast %cst_3 : f32 to vector<1x32xf32>
    %5 = arith.mulf %3, %4 : vector<1x32xf32>
    %6 = arith.mulf %2, %2 : vector<1x32xf32>
    %7 = arith.subf %5, %6 : vector<1x32xf32>
    %cst_4 = arith.constant 9.99999974E-6 : f32
    %8 = vector.broadcast %cst_4 : f32 to vector<1x32xf32>
    %9 = arith.addf %7, %8 : vector<1x32xf32>
    %10 = math.rsqrt %9 : vector<1x32xf32>
    %c0_5 = arith.constant 0 : index
    %c0_6 = arith.constant 0 : index
    %11 = vector.load %arg4[%c0_5, %c0_6] : memref<1x32xf32, #tpu.memory_space<vmem>>, vector<1x32xf32>
    %12 = arith.mulf %10, %11 : vector<1x32xf32>
    %c0_7 = arith.constant 0 : index
    %c0_8 = arith.constant 0 : index
    %13 = vector.load %arg5[%c0_7, %c0_8] : memref<1x32xf32, #tpu.memory_space<vmem>>, vector<1x32xf32>
    %14 = arith.mulf %2, %12 : vector<1x32xf32>
    %15 = arith.subf %13, %14 : vector<1x32xf32>
    %c0_9 = arith.constant 0 : index
    %c0_10 = arith.constant 0 : index
    %16 = vector.load %arg1[%c0_9, %c0_10] : memref<32x32xf32, #tpu.memory_space<vmem>>, vector<32x32xf32>
    %17 = vector.broadcast %12 : vector<1x32xf32> to vector<32x32xf32>
    %18 = arith.mulf %16, %17 : vector<32x32xf32>
    %19 = vector.broadcast %15 : vector<1x32xf32> to vector<32x32xf32>
    %20 = arith.addf %18, %19 : vector<32x32xf32>
    %c0_11 = arith.constant 0 : index
    %c0_12 = arith.constant 0 : index
    %21 = vector.load %arg6[%c0_11, %c0_12] : memref<32x32xf32, #tpu.memory_space<vmem>>, vector<32x32xf32>
    %22 = arith.addf %20, %21 : vector<32x32xf32>
    %c0_13 = arith.constant 0 : index
    %c0_14 = arith.constant 0 : index
    %23 = vector.load %arg7[%c0_13, %c0_14] : memref<32x32xf32, #tpu.memory_space<vmem>>, vector<32x32xf32>
    tpu.vector_store %arg7[%c0_13, %c0_14], %22 {strides = array<i32>} : memref<32x32xf32, #tpu.memory_space<vmem>>, vector<32x32xf32>,
    return
  }
  func.func @transform_0(%arg0: i32) -> (i32, i32) {
    %c0_i32 = arith.constant 0 : i32
    %c0_i32_0 = arith.constant 0 : i32
    return %arg0, %c0_i32 : i32, i32
  }
  func.func @transform_1(%arg0: i32) -> (i32, i32) {
    %c0_i32 = arith.constant 0 : i32
    %c0_i32_0 = arith.constant 0 : i32
    %c0_i32_1 = arith.constant 0 : i32
    return %c0_i32, %c0_i32_0 : i32, i32
  }
  func.func @transform_2(%arg0: i32) -> (i32, i32) {
    %c0_i32 = arith.constant 0 : i32
    %c0_i32_0 = arith.constant 0 : i32
    %c0_i32_1 = arith.constant 0 : i32
    return %c0_i32, %c0_i32_0 : i32, i32
  }
  func.func @transform_3(%arg0: i32) -> (i32, i32) {
    %c0_i32 = arith.constant 0 : i32
    %c0_i32_0 = arith.constant 0 : i32
    %c0_i32_1 = arith.constant 0 : i32
    return %c0_i32, %c0_i32_0 : i32, i32
  }
  func.func @transform_4(%arg0: i32) -> (i32, i32) {
    %c0_i32 = arith.constant 0 : i32
    %c0_i32_0 = arith.constant 0 : i32
    %c0_i32_1 = arith.constant 0 : i32
    return %c0_i32, %c0_i32_0 : i32, i32
  }
  func.func @transform_5(%arg0: i32) -> (i32, i32) {
    %c0_i32 = arith.constant 0 : i32
    %c0_i32_0 = arith.constant 0 : i32
    return %arg0, %c0_i32 : i32, i32
  }
  func.func @transform_6(%arg0: i32) -> (i32, i32) {
    %c0_i32 = arith.constant 0 : i32
    %c0_i32_0 = arith.constant 0 : i32
    return %arg0, %c0_i32 : i32, i32
  }
}

module attributes {stable_mosaic.version = 11 : i64} {
  func.func @_matmul_stats_kernel(%arg0: i32, %arg1: memref<32x32xbf16, #tpu.memory_space<vmem>>, %arg2: memref<32x16xbf16, #tpu.memory_space<vmem>>, %arg3: memref<32x16xf32, #tpu.memory_space<vmem>>, %arg4: memref<1x16xf32, #tpu.memory_space<vmem>>, %arg5: memref<1x16xf32, #tpu.memory_space<vmem>>) attributes {dimension_semantics = [#tpu.dimension_semantics<arbitrary>], iteration_bounds = array<i64: 1>, scalar_prefetch = 0 : i64, scratch_operands = 0 : i64, tpu.core_type = #tpu.core_type<tc>, window_params = [{transform_indices = @transform_0, window_bounds = array<i64: 32, 32>}, {pipeline_mode = #tpu.pipeline_mode<synchronous>, transform_indices = @transform_1, window_bounds = array<i64: 32, 16>}, {transform_indices = @transform_2, window_bounds = array<i64: 32, 16>}, {pipeline_mode = #tpu.pipeline_mode<synchronous>, transform_indices = @transform_3, window_bounds = array<i64: 1, 16>}, {pipeline_mode = #tpu.pipeline_mode<synchronous>, transform_indices = @transform_4, window_bounds = array<i64: 1, 16>}]} {
    %c0 = arith.constant 0 : index
    %c0_0 = arith.constant 0 : index
    %0 = vector.load %arg1[%c0, %c0_0] : memref<32x32xbf16, #tpu.memory_space<vmem>>, vector<32x32xbf16>
    %c0_1 = arith.constant 0 : index
    %c0_2 = arith.constant 0 : index
    %1 = vector.load %arg2[%c0_1, %c0_2] : memref<32x16xbf16, #tpu.memory_space<vmem>>, vector<32x16xbf16>
    %cst = arith.constant dense<0.000000e+00> : vector<32x16xf32>
    %2 = tpu.matmul %0, %1, %cst {dimension_numbers = #tpu.dot_dimension_numbers<[1], [0], [0], [1], [0, 0, 1, 1], [], []>} : vector<32x32xbf16>, vector<32x16xbf16>, vector<32x16xf32> -> vector<32x16xf32>
    %c0_3 = arith.constant 0 : index
    %c0_4 = arith.constant 0 : index
    %3 = vector.load %arg3[%c0_3, %c0_4] : memref<32x16xf32, #tpu.memory_space<vmem>>, vector<32x16xf32>
    tpu.vector_store %arg3[%c0_3, %c0_4], %2 {strides = array<i32>} : memref<32x16xf32, #tpu.memory_space<vmem>>, vector<32x16xf32>,
    %cst_5 = arith.constant dense<0.000000e+00> : vector<16xf32>
    %4 = vector.multi_reduction <add>, %2, %cst_5 [0] : vector<32x16xf32> to vector<16xf32>
    %5 = vector.shape_cast %4 : vector<16xf32> to vector<1x16xf32>
    %6 = arith.mulf %2, %2 : vector<32x16xf32>
    %cst_6 = arith.constant dense<0.000000e+00> : vector<16xf32>
    %7 = vector.multi_reduction <add>, %6, %cst_6 [0] : vector<32x16xf32> to vector<16xf32>
    %8 = vector.shape_cast %7 : vector<16xf32> to vector<1x16xf32>
    %c0_i32 = arith.constant 0 : i32
    %9 = arith.cmpi eq, %arg0, %c0_i32 : i32
    %10 = arith.extui %9 : i1 to i32
    %c0_i32_7 = arith.constant 0 : i32
    %11 = arith.cmpi ne, %10, %c0_i32_7 : i32
    scf.if %11 {
      %c0_10 = arith.constant 0 : index
      %c0_11 = arith.constant 0 : index
      %15 = vector.load %arg4[%c0_10, %c0_11] : memref<1x16xf32, #tpu.memory_space<vmem>>, vector<1x16xf32>
      tpu.vector_store %arg4[%c0_10, %c0_11], %5 {strides = array<i32>} : memref<1x16xf32, #tpu.memory_space<vmem>>, vector<1x16xf32>,
      %c0_12 = arith.constant 0 : index
      %c0_13 = arith.constant 0 : index
      %16 = vector.load %arg5[%c0_12, %c0_13] : memref<1x16xf32, #tpu.memory_space<vmem>>, vector<1x16xf32>
      tpu.vector_store %arg5[%c0_12, %c0_13], %8 {strides = array<i32>} : memref<1x16xf32, #tpu.memory_space<vmem>>, vector<1x16xf32>,
    } else {
    }
    %c0_i32_8 = arith.constant 0 : i32
    %12 = arith.cmpi ne, %arg0, %c0_i32_8 : i32
    %13 = arith.extui %12 : i1 to i32
    %c0_i32_9 = arith.constant 0 : i32
    %14 = arith.cmpi ne, %13, %c0_i32_9 : i32
    scf.if %14 {
      %c0_10 = arith.constant 0 : index
      %c0_11 = arith.constant 0 : index
      %15 = vector.load %arg4[%c0_10, %c0_11] : memref<1x16xf32, #tpu.memory_space<vmem>>, vector<1x16xf32>
      %16 = arith.addf %15, %5 : vector<1x16xf32>
      %c0_12 = arith.constant 0 : index
      %c0_13 = arith.constant 0 : index
      %17 = vector.load %arg4[%c0_12, %c0_13] : memref<1x16xf32, #tpu.memory_space<vmem>>, vector<1x16xf32>
      tpu.vector_store %arg4[%c0_12, %c0_13], %16 {strides = array<i32>} : memref<1x16xf32, #tpu.memory_space<vmem>>, vector<1x16xf32>,
      %c0_14 = arith.constant 0 : index
      %c0_15 = arith.constant 0 : index
      %18 = vector.load %arg5[%c0_14, %c0_15] : memref<1x16xf32, #tpu.memory_space<vmem>>, vector<1x16xf32>
      %19 = arith.addf %18, %8 : vector<1x16xf32>
      %c0_16 = arith.constant 0 : index
      %c0_17 = arith.constant 0 : index
      %20 = vector.load %arg5[%c0_16, %c0_17] : memref<1x16xf32, #tpu.memory_space<vmem>>, vector<1x16xf32>
      tpu.vector_store %arg5[%c0_16, %c0_17], %19 {strides = array<i32>} : memref<1x16xf32, #tpu.memory_space<vmem>>, vector<1x16xf32>,
    } else {
    }
    return
  }
  func.func @transform_0(%arg0: i32) -> (i32, i32) {
    %c0_i32 = arith.constant 0 : i32
    %c0_i32_0 = arith.constant 0 : i32
    return %arg0, %c0_i32 : i32, i32
  }
  func.func @transform_1(%arg0: i32) -> (i32, i32) {
    %c0_i32 = arith.constant 0 : i32
    %c0_i32_0 = arith.constant 0 : i32
    %c0_i32_1 = arith.constant 0 : i32
    return %c0_i32, %c0_i32_0 : i32, i32
  }
  func.func @transform_2(%arg0: i32) -> (i32, i32) {
    %c0_i32 = arith.constant 0 : i32
    %c0_i32_0 = arith.constant 0 : i32
    return %arg0, %c0_i32 : i32, i32
  }
  func.func @transform_3(%arg0: i32) -> (i32, i32) {
    %c0_i32 = arith.constant 0 : i32
    %c0_i32_0 = arith.constant 0 : i32
    %c0_i32_1 = arith.constant 0 : i32
    return %c0_i32, %c0_i32_0 : i32, i32
  }
  func.func @transform_4(%arg0: i32) -> (i32, i32) {
    %c0_i32 = arith.constant 0 : i32
    %c0_i32_0 = arith.constant 0 : i32
    %c0_i32_1 = arith.constant 0 : i32
    return %c0_i32, %c0_i32_0 : i32, i32
  }
}

module attributes {stable_mosaic.version = 11 : i64} {
  func.func @_matmul_stats_kernel(%arg0: i32, %arg1: memref<32x128xbf16, #tpu.memory_space<vmem>>, %arg2: memref<128x16xbf16, #tpu.memory_space<vmem>>, %arg3: memref<32x16xf32, #tpu.memory_space<vmem>>, %arg4: memref<1x16xf32, #tpu.memory_space<vmem>>, %arg5: memref<1x16xf32, #tpu.memory_space<vmem>>) attributes {dimension_semantics = [#tpu.dimension_semantics<arbitrary>], iteration_bounds = array<i64: 1>, scalar_prefetch = 0 : i64, scratch_operands = 0 : i64, tpu.core_type = #tpu.core_type<tc>, window_params = [{transform_indices = @transform_0, window_bounds = array<i64: 32, 128>}, {pipeline_mode = #tpu.pipeline_mode<synchronous>, transform_indices = @transform_1, window_bounds = array<i64: 128, 16>}, {transform_indices = @transform_2, window_bounds = array<i64: 32, 16>}, {pipeline_mode = #tpu.pipeline_mode<synchronous>, transform_indices = @transform_3, window_bounds = array<i64: 1, 16>}, {pipeline_mode = #tpu.pipeline_mode<synchronous>, transform_indices = @transform_4, window_bounds = array<i64: 1, 16>}]} {
    %c0 = arith.constant 0 : index
    %c0_0 = arith.constant 0 : index
    %0 = vector.load %arg1[%c0, %c0_0] : memref<32x128xbf16, #tpu.memory_space<vmem>>, vector<32x128xbf16>
    %c0_1 = arith.constant 0 : index
    %c0_2 = arith.constant 0 : index
    %1 = vector.load %arg2[%c0_1, %c0_2] : memref<128x16xbf16, #tpu.memory_space<vmem>>, vector<128x16xbf16>
    %cst = arith.constant dense<0.000000e+00> : vector<32x16xf32>
    %2 = tpu.matmul %0, %1, %cst {dimension_numbers = #tpu.dot_dimension_numbers<[1], [0], [0], [1], [0, 0, 1, 1], [], []>} : vector<32x128xbf16>, vector<128x16xbf16>, vector<32x16xf32> -> vector<32x16xf32>
    %c0_3 = arith.constant 0 : index
    %c0_4 = arith.constant 0 : index
    %3 = vector.load %arg3[%c0_3, %c0_4] : memref<32x16xf32, #tpu.memory_space<vmem>>, vector<32x16xf32>
    tpu.vector_store %arg3[%c0_3, %c0_4], %2 {strides = array<i32>} : memref<32x16xf32, #tpu.memory_space<vmem>>, vector<32x16xf32>,
    %cst_5 = arith.constant dense<0.000000e+00> : vector<16xf32>
    %4 = vector.multi_reduction <add>, %2, %cst_5 [0] : vector<32x16xf32> to vector<16xf32>
    %5 = vector.shape_cast %4 : vector<16xf32> to vector<1x16xf32>
    %6 = arith.mulf %2, %2 : vector<32x16xf32>
    %cst_6 = arith.constant dense<0.000000e+00> : vector<16xf32>
    %7 = vector.multi_reduction <add>, %6, %cst_6 [0] : vector<32x16xf32> to vector<16xf32>
    %8 = vector.shape_cast %7 : vector<16xf32> to vector<1x16xf32>
    %c0_i32 = arith.constant 0 : i32
    %9 = arith.cmpi eq, %arg0, %c0_i32 : i32
    %10 = arith.extui %9 : i1 to i32
    %c0_i32_7 = arith.constant 0 : i32
    %11 = arith.cmpi ne, %10, %c0_i32_7 : i32
    scf.if %11 {
      %c0_10 = arith.constant 0 : index
      %c0_11 = arith.constant 0 : index
      %15 = vector.load %arg4[%c0_10, %c0_11] : memref<1x16xf32, #tpu.memory_space<vmem>>, vector<1x16xf32>
      tpu.vector_store %arg4[%c0_10, %c0_11], %5 {strides = array<i32>} : memref<1x16xf32, #tpu.memory_space<vmem>>, vector<1x16xf32>,
      %c0_12 = arith.constant 0 : index
      %c0_13 = arith.constant 0 : index
      %16 = vector.load %arg5[%c0_12, %c0_13] : memref<1x16xf32, #tpu.memory_space<vmem>>, vector<1x16xf32>
      tpu.vector_store %arg5[%c0_12, %c0_13], %8 {strides = array<i32>} : memref<1x16xf32, #tpu.memory_space<vmem>>, vector<1x16xf32>,
    } else {
    }
    %c0_i32_8 = arith.constant 0 : i32
    %12 = arith.cmpi ne, %arg0, %c0_i32_8 : i32
    %13 = arith.extui %12 : i1 to i32
    %c0_i32_9 = arith.constant 0 : i32
    %14 = arith.cmpi ne, %13, %c0_i32_9 : i32
    scf.if %14 {
      %c0_10 = arith.constant 0 : index
      %c0_11 = arith.constant 0 : index
      %15 = vector.load %arg4[%c0_10, %c0_11] : memref<1x16xf32, #tpu.memory_space<vmem>>, vector<1x16xf32>
      %16 = arith.addf %15, %5 : vector<1x16xf32>
      %c0_12 = arith.constant 0 : index
      %c0_13 = arith.constant 0 : index
      %17 = vector.load %arg4[%c0_12, %c0_13] : memref<1x16xf32, #tpu.memory_space<vmem>>, vector<1x16xf32>
      tpu.vector_store %arg4[%c0_12, %c0_13], %16 {strides = array<i32>} : memref<1x16xf32, #tpu.memory_space<vmem>>, vector<1x16xf32>,
      %c0_14 = arith.constant 0 : index
      %c0_15 = arith.constant 0 : index
      %18 = vector.load %arg5[%c0_14, %c0_15] : memref<1x16xf32, #tpu.memory_space<vmem>>, vector<1x16xf32>
      %19 = arith.addf %18, %8 : vector<1x16xf32>
      %c0_16 = arith.constant 0 : index
      %c0_17 = arith.constant 0 : index
      %20 = vector.load %arg5[%c0_16, %c0_17] : memref<1x16xf32, #tpu.memory_space<vmem>>, vector<1x16xf32>
      tpu.vector_store %arg5[%c0_16, %c0_17], %19 {strides = array<i32>} : memref<1x16xf32, #tpu.memory_space<vmem>>, vector<1x16xf32>,
    } else {
    }
    return
  }
  func.func @transform_0(%arg0: i32) -> (i32, i32) {
    %c0_i32 = arith.constant 0 : i32
    %c0_i32_0 = arith.constant 0 : i32
    return %arg0, %c0_i32 : i32, i32
  }
  func.func @transform_1(%arg0: i32) -> (i32, i32) {
    %c0_i32 = arith.constant 0 : i32
    %c0_i32_0 = arith.constant 0 : i32
    %c0_i32_1 = arith.constant 0 : i32
    return %c0_i32, %c0_i32_0 : i32, i32
  }
  func.func @transform_2(%arg0: i32) -> (i32, i32) {
    %c0_i32 = arith.constant 0 : i32
    %c0_i32_0 = arith.constant 0 : i32
    return %arg0, %c0_i32 : i32, i32
  }
  func.func @transform_3(%arg0: i32) -> (i32, i32) {
    %c0_i32 = arith.constant 0 : i32
    %c0_i32_0 = arith.constant 0 : i32
    %c0_i32_1 = arith.constant 0 : i32
    return %c0_i32, %c0_i32_0 : i32, i32
  }
  func.func @transform_4(%arg0: i32) -> (i32, i32) {
    %c0_i32 = arith.constant 0 : i32
    %c0_i32_0 = arith.constant 0 : i32
    %c0_i32_1 = arith.constant 0 : i32
    return %c0_i32, %c0_i32_0 : i32, i32
  }
}

module attributes {stable_mosaic.version = 11 : i64} {
  func.func @_matmul_stats_kernel(%arg0: i32, %arg1: memref<32x64xbf16, #tpu.memory_space<vmem>>, %arg2: memref<64x16xbf16, #tpu.memory_space<vmem>>, %arg3: memref<32x16xf32, #tpu.memory_space<vmem>>, %arg4: memref<1x16xf32, #tpu.memory_space<vmem>>, %arg5: memref<1x16xf32, #tpu.memory_space<vmem>>) attributes {dimension_semantics = [#tpu.dimension_semantics<arbitrary>], iteration_bounds = array<i64: 1>, scalar_prefetch = 0 : i64, scratch_operands = 0 : i64, tpu.core_type = #tpu.core_type<tc>, window_params = [{transform_indices = @transform_0, window_bounds = array<i64: 32, 64>}, {pipeline_mode = #tpu.pipeline_mode<synchronous>, transform_indices = @transform_1, window_bounds = array<i64: 64, 16>}, {transform_indices = @transform_2, window_bounds = array<i64: 32, 16>}, {pipeline_mode = #tpu.pipeline_mode<synchronous>, transform_indices = @transform_3, window_bounds = array<i64: 1, 16>}, {pipeline_mode = #tpu.pipeline_mode<synchronous>, transform_indices = @transform_4, window_bounds = array<i64: 1, 16>}]} {
    %c0 = arith.constant 0 : index
    %c0_0 = arith.constant 0 : index
    %0 = vector.load %arg1[%c0, %c0_0] : memref<32x64xbf16, #tpu.memory_space<vmem>>, vector<32x64xbf16>
    %c0_1 = arith.constant 0 : index
    %c0_2 = arith.constant 0 : index
    %1 = vector.load %arg2[%c0_1, %c0_2] : memref<64x16xbf16, #tpu.memory_space<vmem>>, vector<64x16xbf16>
    %cst = arith.constant dense<0.000000e+00> : vector<32x16xf32>
    %2 = tpu.matmul %0, %1, %cst {dimension_numbers = #tpu.dot_dimension_numbers<[1], [0], [0], [1], [0, 0, 1, 1], [], []>} : vector<32x64xbf16>, vector<64x16xbf16>, vector<32x16xf32> -> vector<32x16xf32>
    %c0_3 = arith.constant 0 : index
    %c0_4 = arith.constant 0 : index
    %3 = vector.load %arg3[%c0_3, %c0_4] : memref<32x16xf32, #tpu.memory_space<vmem>>, vector<32x16xf32>
    tpu.vector_store %arg3[%c0_3, %c0_4], %2 {strides = array<i32>} : memref<32x16xf32, #tpu.memory_space<vmem>>, vector<32x16xf32>,
    %cst_5 = arith.constant dense<0.000000e+00> : vector<16xf32>
    %4 = vector.multi_reduction <add>, %2, %cst_5 [0] : vector<32x16xf32> to vector<16xf32>
    %5 = vector.shape_cast %4 : vector<16xf32> to vector<1x16xf32>
    %6 = arith.mulf %2, %2 : vector<32x16xf32>
    %cst_6 = arith.constant dense<0.000000e+00> : vector<16xf32>
    %7 = vector.multi_reduction <add>, %6, %cst_6 [0] : vector<32x16xf32> to vector<16xf32>
    %8 = vector.shape_cast %7 : vector<16xf32> to vector<1x16xf32>
    %c0_i32 = arith.constant 0 : i32
    %9 = arith.cmpi eq, %arg0, %c0_i32 : i32
    %10 = arith.extui %9 : i1 to i32
    %c0_i32_7 = arith.constant 0 : i32
    %11 = arith.cmpi ne, %10, %c0_i32_7 : i32
    scf.if %11 {
      %c0_10 = arith.constant 0 : index
      %c0_11 = arith.constant 0 : index
      %15 = vector.load %arg4[%c0_10, %c0_11] : memref<1x16xf32, #tpu.memory_space<vmem>>, vector<1x16xf32>
      tpu.vector_store %arg4[%c0_10, %c0_11], %5 {strides = array<i32>} : memref<1x16xf32, #tpu.memory_space<vmem>>, vector<1x16xf32>,
      %c0_12 = arith.constant 0 : index
      %c0_13 = arith.constant 0 : index
      %16 = vector.load %arg5[%c0_12, %c0_13] : memref<1x16xf32, #tpu.memory_space<vmem>>, vector<1x16xf32>
      tpu.vector_store %arg5[%c0_12, %c0_13], %8 {strides = array<i32>} : memref<1x16xf32, #tpu.memory_space<vmem>>, vector<1x16xf32>,
    } else {
    }
    %c0_i32_8 = arith.constant 0 : i32
    %12 = arith.cmpi ne, %arg0, %c0_i32_8 : i32
    %13 = arith.extui %12 : i1 to i32
    %c0_i32_9 = arith.constant 0 : i32
    %14 = arith.cmpi ne, %13, %c0_i32_9 : i32
    scf.if %14 {
      %c0_10 = arith.constant 0 : index
      %c0_11 = arith.constant 0 : index
      %15 = vector.load %arg4[%c0_10, %c0_11] : memref<1x16xf32, #tpu.memory_space<vmem>>, vector<1x16xf32>
      %16 = arith.addf %15, %5 : vector<1x16xf32>
      %c0_12 = arith.constant 0 : index
      %c0_13 = arith.constant 0 : index
      %17 = vector.load %arg4[%c0_12, %c0_13] : memref<1x16xf32, #tpu.memory_space<vmem>>, vector<1x16xf32>
      tpu.vector_store %arg4[%c0_12, %c0_13], %16 {strides = array<i32>} : memref<1x16xf32, #tpu.memory_space<vmem>>, vector<1x16xf32>,
      %c0_14 = arith.constant 0 : index
      %c0_15 = arith.constant 0 : index
      %18 = vector.load %arg5[%c0_14, %c0_15] : memref<1x16xf32, #tpu.memory_space<vmem>>, vector<1x16xf32>
      %19 = arith.addf %18, %8 : vector<1x16xf32>
      %c0_16 = arith.constant 0 : index
      %c0_17 = arith.constant 0 : index
      %20 = vector.load %arg5[%c0_16, %c0_17] : memref<1x16xf32, #tpu.memory_space<vmem>>, vector<1x16xf32>
      tpu.vector_store %arg5[%c0_16, %c0_17], %19 {strides = array<i32>} : memref<1x16xf32, #tpu.memory_space<vmem>>, vector<1x16xf32>,
    } else {
    }
    return
  }
  func.func @transform_0(%arg0: i32) -> (i32, i32) {
    %c0_i32 = arith.constant 0 : i32
    %c0_i32_0 = arith.constant 0 : i32
    return %arg0, %c0_i32 : i32, i32
  }
  func.func @transform_1(%arg0: i32) -> (i32, i32) {
    %c0_i32 = arith.constant 0 : i32
    %c0_i32_0 = arith.constant 0 : i32
    %c0_i32_1 = arith.constant 0 : i32
    return %c0_i32, %c0_i32_0 : i32, i32
  }
  func.func @transform_2(%arg0: i32) -> (i32, i32) {
    %c0_i32 = arith.constant 0 : i32
    %c0_i32_0 = arith.constant 0 : i32
    return %arg0, %c0_i32 : i32, i32
  }
  func.func @transform_3(%arg0: i32) -> (i32, i32) {
    %c0_i32 = arith.constant 0 : i32
    %c0_i32_0 = arith.constant 0 : i32
    %c0_i32_1 = arith.constant 0 : i32
    return %c0_i32, %c0_i32_0 : i32, i32
  }
  func.func @transform_4(%arg0: i32) -> (i32, i32) {
    %c0_i32 = arith.constant 0 : i32
    %c0_i32_0 = arith.constant 0 : i32
    %c0_i32_1 = arith.constant 0 : i32
    return %c0_i32, %c0_i32_0 : i32, i32
  }
}

module attributes {stable_mosaic.version = 11 : i64} {
  func.func @_matmul_stats_kernel(%arg0: i32, %arg1: memref<128x16xbf16, #tpu.memory_space<vmem>>, %arg2: memref<16x8xbf16, #tpu.memory_space<vmem>>, %arg3: memref<128x8xf32, #tpu.memory_space<vmem>>, %arg4: memref<1x8xf32, #tpu.memory_space<vmem>>, %arg5: memref<1x8xf32, #tpu.memory_space<vmem>>) attributes {dimension_semantics = [#tpu.dimension_semantics<arbitrary>], iteration_bounds = array<i64: 1>, scalar_prefetch = 0 : i64, scratch_operands = 0 : i64, tpu.core_type = #tpu.core_type<tc>, window_params = [{transform_indices = @transform_0, window_bounds = array<i64: 128, 16>}, {pipeline_mode = #tpu.pipeline_mode<synchronous>, transform_indices = @transform_1, window_bounds = array<i64: 16, 8>}, {transform_indices = @transform_2, window_bounds = array<i64: 128, 8>}, {pipeline_mode = #tpu.pipeline_mode<synchronous>, transform_indices = @transform_3, window_bounds = array<i64: 1, 8>}, {pipeline_mode = #tpu.pipeline_mode<synchronous>, transform_indices = @transform_4, window_bounds = array<i64: 1, 8>}]} {
    %c0 = arith.constant 0 : index
    %c0_0 = arith.constant 0 : index
    %0 = vector.load %arg1[%c0, %c0_0] : memref<128x16xbf16, #tpu.memory_space<vmem>>, vector<128x16xbf16>
    %c0_1 = arith.constant 0 : index
    %c0_2 = arith.constant 0 : index
    %1 = vector.load %arg2[%c0_1, %c0_2] : memref<16x8xbf16, #tpu.memory_space<vmem>>, vector<16x8xbf16>
    %cst = arith.constant dense<0.000000e+00> : vector<128x8xf32>
    %2 = tpu.matmul %0, %1, %cst {dimension_numbers = #tpu.dot_dimension_numbers<[1], [0], [0], [1], [0, 0, 1, 1], [], []>} : vector<128x16xbf16>, vector<16x8xbf16>, vector<128x8xf32> -> vector<128x8xf32>
    %c0_3 = arith.constant 0 : index
    %c0_4 = arith.constant 0 : index
    %3 = vector.load %arg3[%c0_3, %c0_4] : memref<128x8xf32, #tpu.memory_space<vmem>>, vector<128x8xf32>
    tpu.vector_store %arg3[%c0_3, %c0_4], %2 {strides = array<i32>} : memref<128x8xf32, #tpu.memory_space<vmem>>, vector<128x8xf32>,
    %cst_5 = arith.constant dense<0.000000e+00> : vector<8xf32>
    %4 = vector.multi_reduction <add>, %2, %cst_5 [0] : vector<128x8xf32> to vector<8xf32>
    %5 = vector.shape_cast %4 : vector<8xf32> to vector<1x8xf32>
    %6 = arith.mulf %2, %2 : vector<128x8xf32>
    %cst_6 = arith.constant dense<0.000000e+00> : vector<8xf32>
    %7 = vector.multi_reduction <add>, %6, %cst_6 [0] : vector<128x8xf32> to vector<8xf32>
    %8 = vector.shape_cast %7 : vector<8xf32> to vector<1x8xf32>
    %c0_i32 = arith.constant 0 : i32
    %9 = arith.cmpi eq, %arg0, %c0_i32 : i32
    %10 = arith.extui %9 : i1 to i32
    %c0_i32_7 = arith.constant 0 : i32
    %11 = arith.cmpi ne, %10, %c0_i32_7 : i32
    scf.if %11 {
      %c0_10 = arith.constant 0 : index
      %c0_11 = arith.constant 0 : index
      %15 = vector.load %arg4[%c0_10, %c0_11] : memref<1x8xf32, #tpu.memory_space<vmem>>, vector<1x8xf32>
      tpu.vector_store %arg4[%c0_10, %c0_11], %5 {strides = array<i32>} : memref<1x8xf32, #tpu.memory_space<vmem>>, vector<1x8xf32>,
      %c0_12 = arith.constant 0 : index
      %c0_13 = arith.constant 0 : index
      %16 = vector.load %arg5[%c0_12, %c0_13] : memref<1x8xf32, #tpu.memory_space<vmem>>, vector<1x8xf32>
      tpu.vector_store %arg5[%c0_12, %c0_13], %8 {strides = array<i32>} : memref<1x8xf32, #tpu.memory_space<vmem>>, vector<1x8xf32>,
    } else {
    }
    %c0_i32_8 = arith.constant 0 : i32
    %12 = arith.cmpi ne, %arg0, %c0_i32_8 : i32
    %13 = arith.extui %12 : i1 to i32
    %c0_i32_9 = arith.constant 0 : i32
    %14 = arith.cmpi ne, %13, %c0_i32_9 : i32
    scf.if %14 {
      %c0_10 = arith.constant 0 : index
      %c0_11 = arith.constant 0 : index
      %15 = vector.load %arg4[%c0_10, %c0_11] : memref<1x8xf32, #tpu.memory_space<vmem>>, vector<1x8xf32>
      %16 = arith.addf %15, %5 : vector<1x8xf32>
      %c0_12 = arith.constant 0 : index
      %c0_13 = arith.constant 0 : index
      %17 = vector.load %arg4[%c0_12, %c0_13] : memref<1x8xf32, #tpu.memory_space<vmem>>, vector<1x8xf32>
      tpu.vector_store %arg4[%c0_12, %c0_13], %16 {strides = array<i32>} : memref<1x8xf32, #tpu.memory_space<vmem>>, vector<1x8xf32>,
      %c0_14 = arith.constant 0 : index
      %c0_15 = arith.constant 0 : index
      %18 = vector.load %arg5[%c0_14, %c0_15] : memref<1x8xf32, #tpu.memory_space<vmem>>, vector<1x8xf32>
      %19 = arith.addf %18, %8 : vector<1x8xf32>
      %c0_16 = arith.constant 0 : index
      %c0_17 = arith.constant 0 : index
      %20 = vector.load %arg5[%c0_16, %c0_17] : memref<1x8xf32, #tpu.memory_space<vmem>>, vector<1x8xf32>
      tpu.vector_store %arg5[%c0_16, %c0_17], %19 {strides = array<i32>} : memref<1x8xf32, #tpu.memory_space<vmem>>, vector<1x8xf32>,
    } else {
    }
    return
  }
  func.func @transform_0(%arg0: i32) -> (i32, i32) {
    %c0_i32 = arith.constant 0 : i32
    %c0_i32_0 = arith.constant 0 : i32
    return %arg0, %c0_i32 : i32, i32
  }
  func.func @transform_1(%arg0: i32) -> (i32, i32) {
    %c0_i32 = arith.constant 0 : i32
    %c0_i32_0 = arith.constant 0 : i32
    %c0_i32_1 = arith.constant 0 : i32
    return %c0_i32, %c0_i32_0 : i32, i32
  }
  func.func @transform_2(%arg0: i32) -> (i32, i32) {
    %c0_i32 = arith.constant 0 : i32
    %c0_i32_0 = arith.constant 0 : i32
    return %arg0, %c0_i32 : i32, i32
  }
  func.func @transform_3(%arg0: i32) -> (i32, i32) {
    %c0_i32 = arith.constant 0 : i32
    %c0_i32_0 = arith.constant 0 : i32
    %c0_i32_1 = arith.constant 0 : i32
    return %c0_i32, %c0_i32_0 : i32, i32
  }
  func.func @transform_4(%arg0: i32) -> (i32, i32) {
    %c0_i32 = arith.constant 0 : i32
    %c0_i32_0 = arith.constant 0 : i32
    %c0_i32_1 = arith.constant 0 : i32
    return %c0_i32, %c0_i32_0 : i32, i32
  }
}

module attributes {stable_mosaic.version = 11 : i64} {
  func.func @_matmul_stats_kernel(%arg0: i32, %arg1: memref<128x64xbf16, #tpu.memory_space<vmem>>, %arg2: memref<64x8xbf16, #tpu.memory_space<vmem>>, %arg3: memref<128x8xf32, #tpu.memory_space<vmem>>, %arg4: memref<1x8xf32, #tpu.memory_space<vmem>>, %arg5: memref<1x8xf32, #tpu.memory_space<vmem>>) attributes {dimension_semantics = [#tpu.dimension_semantics<arbitrary>], iteration_bounds = array<i64: 1>, scalar_prefetch = 0 : i64, scratch_operands = 0 : i64, tpu.core_type = #tpu.core_type<tc>, window_params = [{transform_indices = @transform_0, window_bounds = array<i64: 128, 64>}, {pipeline_mode = #tpu.pipeline_mode<synchronous>, transform_indices = @transform_1, window_bounds = array<i64: 64, 8>}, {transform_indices = @transform_2, window_bounds = array<i64: 128, 8>}, {pipeline_mode = #tpu.pipeline_mode<synchronous>, transform_indices = @transform_3, window_bounds = array<i64: 1, 8>}, {pipeline_mode = #tpu.pipeline_mode<synchronous>, transform_indices = @transform_4, window_bounds = array<i64: 1, 8>}]} {
    %c0 = arith.constant 0 : index
    %c0_0 = arith.constant 0 : index
    %0 = vector.load %arg1[%c0, %c0_0] : memref<128x64xbf16, #tpu.memory_space<vmem>>, vector<128x64xbf16>
    %c0_1 = arith.constant 0 : index
    %c0_2 = arith.constant 0 : index
    %1 = vector.load %arg2[%c0_1, %c0_2] : memref<64x8xbf16, #tpu.memory_space<vmem>>, vector<64x8xbf16>
    %cst = arith.constant dense<0.000000e+00> : vector<128x8xf32>
    %2 = tpu.matmul %0, %1, %cst {dimension_numbers = #tpu.dot_dimension_numbers<[1], [0], [0], [1], [0, 0, 1, 1], [], []>} : vector<128x64xbf16>, vector<64x8xbf16>, vector<128x8xf32> -> vector<128x8xf32>
    %c0_3 = arith.constant 0 : index
    %c0_4 = arith.constant 0 : index
    %3 = vector.load %arg3[%c0_3, %c0_4] : memref<128x8xf32, #tpu.memory_space<vmem>>, vector<128x8xf32>
    tpu.vector_store %arg3[%c0_3, %c0_4], %2 {strides = array<i32>} : memref<128x8xf32, #tpu.memory_space<vmem>>, vector<128x8xf32>,
    %cst_5 = arith.constant dense<0.000000e+00> : vector<8xf32>
    %4 = vector.multi_reduction <add>, %2, %cst_5 [0] : vector<128x8xf32> to vector<8xf32>
    %5 = vector.shape_cast %4 : vector<8xf32> to vector<1x8xf32>
    %6 = arith.mulf %2, %2 : vector<128x8xf32>
    %cst_6 = arith.constant dense<0.000000e+00> : vector<8xf32>
    %7 = vector.multi_reduction <add>, %6, %cst_6 [0] : vector<128x8xf32> to vector<8xf32>
    %8 = vector.shape_cast %7 : vector<8xf32> to vector<1x8xf32>
    %c0_i32 = arith.constant 0 : i32
    %9 = arith.cmpi eq, %arg0, %c0_i32 : i32
    %10 = arith.extui %9 : i1 to i32
    %c0_i32_7 = arith.constant 0 : i32
    %11 = arith.cmpi ne, %10, %c0_i32_7 : i32
    scf.if %11 {
      %c0_10 = arith.constant 0 : index
      %c0_11 = arith.constant 0 : index
      %15 = vector.load %arg4[%c0_10, %c0_11] : memref<1x8xf32, #tpu.memory_space<vmem>>, vector<1x8xf32>
      tpu.vector_store %arg4[%c0_10, %c0_11], %5 {strides = array<i32>} : memref<1x8xf32, #tpu.memory_space<vmem>>, vector<1x8xf32>,
      %c0_12 = arith.constant 0 : index
      %c0_13 = arith.constant 0 : index
      %16 = vector.load %arg5[%c0_12, %c0_13] : memref<1x8xf32, #tpu.memory_space<vmem>>, vector<1x8xf32>
      tpu.vector_store %arg5[%c0_12, %c0_13], %8 {strides = array<i32>} : memref<1x8xf32, #tpu.memory_space<vmem>>, vector<1x8xf32>,
    } else {
    }
    %c0_i32_8 = arith.constant 0 : i32
    %12 = arith.cmpi ne, %arg0, %c0_i32_8 : i32
    %13 = arith.extui %12 : i1 to i32
    %c0_i32_9 = arith.constant 0 : i32
    %14 = arith.cmpi ne, %13, %c0_i32_9 : i32
    scf.if %14 {
      %c0_10 = arith.constant 0 : index
      %c0_11 = arith.constant 0 : index
      %15 = vector.load %arg4[%c0_10, %c0_11] : memref<1x8xf32, #tpu.memory_space<vmem>>, vector<1x8xf32>
      %16 = arith.addf %15, %5 : vector<1x8xf32>
      %c0_12 = arith.constant 0 : index
      %c0_13 = arith.constant 0 : index
      %17 = vector.load %arg4[%c0_12, %c0_13] : memref<1x8xf32, #tpu.memory_space<vmem>>, vector<1x8xf32>
      tpu.vector_store %arg4[%c0_12, %c0_13], %16 {strides = array<i32>} : memref<1x8xf32, #tpu.memory_space<vmem>>, vector<1x8xf32>,
      %c0_14 = arith.constant 0 : index
      %c0_15 = arith.constant 0 : index
      %18 = vector.load %arg5[%c0_14, %c0_15] : memref<1x8xf32, #tpu.memory_space<vmem>>, vector<1x8xf32>
      %19 = arith.addf %18, %8 : vector<1x8xf32>
      %c0_16 = arith.constant 0 : index
      %c0_17 = arith.constant 0 : index
      %20 = vector.load %arg5[%c0_16, %c0_17] : memref<1x8xf32, #tpu.memory_space<vmem>>, vector<1x8xf32>
      tpu.vector_store %arg5[%c0_16, %c0_17], %19 {strides = array<i32>} : memref<1x8xf32, #tpu.memory_space<vmem>>, vector<1x8xf32>,
    } else {
    }
    return
  }
  func.func @transform_0(%arg0: i32) -> (i32, i32) {
    %c0_i32 = arith.constant 0 : i32
    %c0_i32_0 = arith.constant 0 : i32
    return %arg0, %c0_i32 : i32, i32
  }
  func.func @transform_1(%arg0: i32) -> (i32, i32) {
    %c0_i32 = arith.constant 0 : i32
    %c0_i32_0 = arith.constant 0 : i32
    %c0_i32_1 = arith.constant 0 : i32
    return %c0_i32, %c0_i32_0 : i32, i32
  }
  func.func @transform_2(%arg0: i32) -> (i32, i32) {
    %c0_i32 = arith.constant 0 : i32
    %c0_i32_0 = arith.constant 0 : i32
    return %arg0, %c0_i32 : i32, i32
  }
  func.func @transform_3(%arg0: i32) -> (i32, i32) {
    %c0_i32 = arith.constant 0 : i32
    %c0_i32_0 = arith.constant 0 : i32
    %c0_i32_1 = arith.constant 0 : i32
    return %c0_i32, %c0_i32_0 : i32, i32
  }
  func.func @transform_4(%arg0: i32) -> (i32, i32) {
    %c0_i32 = arith.constant 0 : i32
    %c0_i32_0 = arith.constant 0 : i32
    %c0_i32_1 = arith.constant 0 : i32
    return %c0_i32, %c0_i32_0 : i32, i32
  }
}

module attributes {stable_mosaic.version = 11 : i64} {
  func.func @_matmul_stats_kernel(%arg0: i32, %arg1: memref<128x32xbf16, #tpu.memory_space<vmem>>, %arg2: memref<32x8xbf16, #tpu.memory_space<vmem>>, %arg3: memref<128x8xf32, #tpu.memory_space<vmem>>, %arg4: memref<1x8xf32, #tpu.memory_space<vmem>>, %arg5: memref<1x8xf32, #tpu.memory_space<vmem>>) attributes {dimension_semantics = [#tpu.dimension_semantics<arbitrary>], iteration_bounds = array<i64: 1>, scalar_prefetch = 0 : i64, scratch_operands = 0 : i64, tpu.core_type = #tpu.core_type<tc>, window_params = [{transform_indices = @transform_0, window_bounds = array<i64: 128, 32>}, {pipeline_mode = #tpu.pipeline_mode<synchronous>, transform_indices = @transform_1, window_bounds = array<i64: 32, 8>}, {transform_indices = @transform_2, window_bounds = array<i64: 128, 8>}, {pipeline_mode = #tpu.pipeline_mode<synchronous>, transform_indices = @transform_3, window_bounds = array<i64: 1, 8>}, {pipeline_mode = #tpu.pipeline_mode<synchronous>, transform_indices = @transform_4, window_bounds = array<i64: 1, 8>}]} {
    %c0 = arith.constant 0 : index
    %c0_0 = arith.constant 0 : index
    %0 = vector.load %arg1[%c0, %c0_0] : memref<128x32xbf16, #tpu.memory_space<vmem>>, vector<128x32xbf16>
    %c0_1 = arith.constant 0 : index
    %c0_2 = arith.constant 0 : index
    %1 = vector.load %arg2[%c0_1, %c0_2] : memref<32x8xbf16, #tpu.memory_space<vmem>>, vector<32x8xbf16>
    %cst = arith.constant dense<0.000000e+00> : vector<128x8xf32>
    %2 = tpu.matmul %0, %1, %cst {dimension_numbers = #tpu.dot_dimension_numbers<[1], [0], [0], [1], [0, 0, 1, 1], [], []>} : vector<128x32xbf16>, vector<32x8xbf16>, vector<128x8xf32> -> vector<128x8xf32>
    %c0_3 = arith.constant 0 : index
    %c0_4 = arith.constant 0 : index
    %3 = vector.load %arg3[%c0_3, %c0_4] : memref<128x8xf32, #tpu.memory_space<vmem>>, vector<128x8xf32>
    tpu.vector_store %arg3[%c0_3, %c0_4], %2 {strides = array<i32>} : memref<128x8xf32, #tpu.memory_space<vmem>>, vector<128x8xf32>,
    %cst_5 = arith.constant dense<0.000000e+00> : vector<8xf32>
    %4 = vector.multi_reduction <add>, %2, %cst_5 [0] : vector<128x8xf32> to vector<8xf32>
    %5 = vector.shape_cast %4 : vector<8xf32> to vector<1x8xf32>
    %6 = arith.mulf %2, %2 : vector<128x8xf32>
    %cst_6 = arith.constant dense<0.000000e+00> : vector<8xf32>
    %7 = vector.multi_reduction <add>, %6, %cst_6 [0] : vector<128x8xf32> to vector<8xf32>
    %8 = vector.shape_cast %7 : vector<8xf32> to vector<1x8xf32>
    %c0_i32 = arith.constant 0 : i32
    %9 = arith.cmpi eq, %arg0, %c0_i32 : i32
    %10 = arith.extui %9 : i1 to i32
    %c0_i32_7 = arith.constant 0 : i32
    %11 = arith.cmpi ne, %10, %c0_i32_7 : i32
    scf.if %11 {
      %c0_10 = arith.constant 0 : index
      %c0_11 = arith.constant 0 : index
      %15 = vector.load %arg4[%c0_10, %c0_11] : memref<1x8xf32, #tpu.memory_space<vmem>>, vector<1x8xf32>
      tpu.vector_store %arg4[%c0_10, %c0_11], %5 {strides = array<i32>} : memref<1x8xf32, #tpu.memory_space<vmem>>, vector<1x8xf32>,
      %c0_12 = arith.constant 0 : index
      %c0_13 = arith.constant 0 : index
      %16 = vector.load %arg5[%c0_12, %c0_13] : memref<1x8xf32, #tpu.memory_space<vmem>>, vector<1x8xf32>
      tpu.vector_store %arg5[%c0_12, %c0_13], %8 {strides = array<i32>} : memref<1x8xf32, #tpu.memory_space<vmem>>, vector<1x8xf32>,
    } else {
    }
    %c0_i32_8 = arith.constant 0 : i32
    %12 = arith.cmpi ne, %arg0, %c0_i32_8 : i32
    %13 = arith.extui %12 : i1 to i32
    %c0_i32_9 = arith.constant 0 : i32
    %14 = arith.cmpi ne, %13, %c0_i32_9 : i32
    scf.if %14 {
      %c0_10 = arith.constant 0 : index
      %c0_11 = arith.constant 0 : index
      %15 = vector.load %arg4[%c0_10, %c0_11] : memref<1x8xf32, #tpu.memory_space<vmem>>, vector<1x8xf32>
      %16 = arith.addf %15, %5 : vector<1x8xf32>
      %c0_12 = arith.constant 0 : index
      %c0_13 = arith.constant 0 : index
      %17 = vector.load %arg4[%c0_12, %c0_13] : memref<1x8xf32, #tpu.memory_space<vmem>>, vector<1x8xf32>
      tpu.vector_store %arg4[%c0_12, %c0_13], %16 {strides = array<i32>} : memref<1x8xf32, #tpu.memory_space<vmem>>, vector<1x8xf32>,
      %c0_14 = arith.constant 0 : index
      %c0_15 = arith.constant 0 : index
      %18 = vector.load %arg5[%c0_14, %c0_15] : memref<1x8xf32, #tpu.memory_space<vmem>>, vector<1x8xf32>
      %19 = arith.addf %18, %8 : vector<1x8xf32>
      %c0_16 = arith.constant 0 : index
      %c0_17 = arith.constant 0 : index
      %20 = vector.load %arg5[%c0_16, %c0_17] : memref<1x8xf32, #tpu.memory_space<vmem>>, vector<1x8xf32>
      tpu.vector_store %arg5[%c0_16, %c0_17], %19 {strides = array<i32>} : memref<1x8xf32, #tpu.memory_space<vmem>>, vector<1x8xf32>,
    } else {
    }
    return
  }
  func.func @transform_0(%arg0: i32) -> (i32, i32) {
    %c0_i32 = arith.constant 0 : i32
    %c0_i32_0 = arith.constant 0 : i32
    return %arg0, %c0_i32 : i32, i32
  }
  func.func @transform_1(%arg0: i32) -> (i32, i32) {
    %c0_i32 = arith.constant 0 : i32
    %c0_i32_0 = arith.constant 0 : i32
    %c0_i32_1 = arith.constant 0 : i32
    return %c0_i32, %c0_i32_0 : i32, i32
  }
  func.func @transform_2(%arg0: i32) -> (i32, i32) {
    %c0_i32 = arith.constant 0 : i32
    %c0_i32_0 = arith.constant 0 : i32
    return %arg0, %c0_i32 : i32, i32
  }
  func.func @transform_3(%arg0: i32) -> (i32, i32) {
    %c0_i32 = arith.constant 0 : i32
    %c0_i32_0 = arith.constant 0 : i32
    %c0_i32_1 = arith.constant 0 : i32
    return %c0_i32, %c0_i32_0 : i32, i32
  }
  func.func @transform_4(%arg0: i32) -> (i32, i32) {
    %c0_i32 = arith.constant 0 : i32
    %c0_i32_0 = arith.constant 0 : i32
    %c0_i32_1 = arith.constant 0 : i32
    return %c0_i32, %c0_i32_0 : i32, i32
  }
}

module attributes {stable_mosaic.version = 11 : i64} {
  func.func @_matmul_bias_tanh_kernel(%arg0: i32, %arg1: memref<512x392xbf16, #tpu.memory_space<vmem>>, %arg2: memref<392x3xbf16, #tpu.memory_space<vmem>>, %arg3: memref<1x3xf32, #tpu.memory_space<vmem>>, %arg4: memref<512x3xf32, #tpu.memory_space<vmem>>) attributes {dimension_semantics = [#tpu.dimension_semantics<parallel>], iteration_bounds = array<i64: 1>, scalar_prefetch = 0 : i64, scratch_operands = 0 : i64, tpu.core_type = #tpu.core_type<tc>, window_params = [{transform_indices = @transform_0, window_bounds = array<i64: 512, 392>}, {pipeline_mode = #tpu.pipeline_mode<synchronous>, transform_indices = @transform_1, window_bounds = array<i64: 392, 3>}, {pipeline_mode = #tpu.pipeline_mode<synchronous>, transform_indices = @transform_2, window_bounds = array<i64: 1, 3>}, {transform_indices = @transform_3, window_bounds = array<i64: 512, 3>}]} {
    %c0 = arith.constant 0 : index
    %c0_0 = arith.constant 0 : index
    %0 = vector.load %arg1[%c0, %c0_0] : memref<512x392xbf16, #tpu.memory_space<vmem>>, vector<512x392xbf16>
    %c0_1 = arith.constant 0 : index
    %c0_2 = arith.constant 0 : index
    %1 = vector.load %arg2[%c0_1, %c0_2] : memref<392x3xbf16, #tpu.memory_space<vmem>>, vector<392x3xbf16>
    %cst = arith.constant dense<0.000000e+00> : vector<512x3xf32>
    %2 = tpu.matmul %0, %1, %cst {dimension_numbers = #tpu.dot_dimension_numbers<[1], [0], [0], [1], [0, 0, 1, 1], [], []>} : vector<512x392xbf16>, vector<392x3xbf16>, vector<512x3xf32> -> vector<512x3xf32>
    %c0_3 = arith.constant 0 : index
    %c0_4 = arith.constant 0 : index
    %3 = vector.load %arg3[%c0_3, %c0_4] : memref<1x3xf32, #tpu.memory_space<vmem>>, vector<1x3xf32>
    %4 = vector.broadcast %3 : vector<1x3xf32> to vector<512x3xf32>
    %5 = arith.addf %2, %4 : vector<512x3xf32>
    %6 = math.tanh %5 : vector<512x3xf32>
    %c0_5 = arith.constant 0 : index
    %c0_6 = arith.constant 0 : index
    %7 = vector.load %arg4[%c0_5, %c0_6] : memref<512x3xf32, #tpu.memory_space<vmem>>, vector<512x3xf32>
    tpu.vector_store %arg4[%c0_5, %c0_6], %6 {strides = array<i32>} : memref<512x3xf32, #tpu.memory_space<vmem>>, vector<512x3xf32>,
    return
  }
  func.func @transform_0(%arg0: i32) -> (i32, i32) {
    %c0_i32 = arith.constant 0 : i32
    %c0_i32_0 = arith.constant 0 : i32
    return %arg0, %c0_i32 : i32, i32
  }
  func.func @transform_1(%arg0: i32) -> (i32, i32) {
    %c0_i32 = arith.constant 0 : i32
    %c0_i32_0 = arith.constant 0 : i32
    %c0_i32_1 = arith.constant 0 : i32
    return %c0_i32, %c0_i32_0 : i32, i32
  }
  func.func @transform_2(%arg0: i32) -> (i32, i32) {
    %c0_i32 = arith.constant 0 : i32
    %c0_i32_0 = arith.constant 0 : i32
    %c0_i32_1 = arith.constant 0 : i32
    return %c0_i32, %c0_i32_0 : i32, i32
  }
  func.func @transform_3(%arg0: i32) -> (i32, i32) {
    %c0_i32 = arith.constant 0 : i32
    %c0_i32_0 = arith.constant 0 : i32
    return %arg0, %c0_i32 : i32, i32
  }
}

</mosaic_0001>

<llo_original>
// kernel: resnet_generator_forward.30
$region0: #{resnet_generator_forward.30}
  #allocation0 [shape = 'u32[]', space=smem, size = 0x4, offset = 0x4, fixed_abs, tag = 'smem constant byte address 0x4 - core index']
  #allocation1 [shape = 'u32[144,128]{1,0:T(1,128)}', space=vmem, size = 0x12000, scoped, tag = 'internal scratch']
  %s0 = inlined_call_operand.vmem [shape: f32[512,8], index: 0, kind: input, shape index: {}]
  %s1 = inlined_call_operand.vmem [shape: f32[1,8], index: 1, kind: input, shape index: {}]
  %s2 = inlined_call_operand.vmem [shape: f32[1,8], index: 2, kind: input, shape index: {}]
  %s3 = inlined_call_operand.vmem [shape: f32[1,8], index: 3, kind: input, shape index: {}]
  %s4 = inlined_call_operand.vmem [shape: f32[1,8], index: 4, kind: input, shape index: {}]
  %s5 = inlined_call_operand.vmem [shape: f32[512,8], index: 5, kind: output, shape index: {}]
  %s6 = sld [smem:[#allocation0]]
  $region30: #{resnet_generator_forward.30} parent=0
    _
  %s8 = ssub.s32 1, %s6
  %s9 = scalar_select 0, %s8, %s6
  // Predicated region
  $region2: #{resnet_generator_forward.30} parent=0 // pred_check
    _
  $region3: #{resnet_generator_forward.30} parent=0 // pred_check_branch
    %11 = sbr.rel (0) target = $region5
  $region4: #{resnet_generator_forward.30} parent=0 // pred_region
    _
  $region5: #{resnet_generator_forward.30} parent=0 // pred_fallthru
    _
  // Predicated region
  $region6: #{resnet_generator_forward.30} parent=0 // pred_check
    _
  $region7: #{resnet_generator_forward.30} parent=0 // pred_check_branch
    %13 = sbr.rel (0) target = $region9
  $region8: #{resnet_generator_forward.30} parent=0 // pred_region
    _
  $region9: #{resnet_generator_forward.30} parent=0 // pred_fallthru
    _
  // Predicated region
  $region10: #{resnet_generator_forward.30} parent=0 // pred_check
    _
  $region11: #{resnet_generator_forward.30} parent=0 // pred_check_branch
    %15 = sbr.rel (0) target = $region13
  $region12: #{resnet_generator_forward.30} parent=0 // pred_region
    _
  $region13: #{resnet_generator_forward.30} parent=0 // pred_fallthru
    _
  // Predicated region
  $region14: #{resnet_generator_forward.30} parent=0 // pred_check
    _
  $region15: #{resnet_generator_forward.30} parent=0 // pred_check_branch
    %17 = sbr.rel (0) target = $region17
  $region16: #{resnet_generator_forward.30} parent=0 // pred_region
    _
  $region17: #{resnet_generator_forward.30} parent=0 // pred_fallthru
    _
  // Predicated region
  $region18: #{resnet_generator_forward.30} parent=0 // pred_check
    _
  $region19: #{resnet_generator_forward.30} parent=0 // pred_check_branch
    %19 = sbr.rel (0) target = $region21
  $region20: #{resnet_generator_forward.30} parent=0 // pred_region
    _
  $region21: #{resnet_generator_forward.30} parent=0 // pred_fallthru
    _
  %v20 = vld [vmem:[%s1] sm:$0x1]
  %v21 = vmul.f32 %v20, 0.001953125
  %v22 = vld [vmem:[%s2] sm:$0x1]
  %v23 = vmul.f32 %v22, 0.001953125
  %v24 = vmul.f32 %v21, %v21
  %v25 = vsub.f32 %v23, %v24
  %v26 = vadd.f32 %v25, 1e-05
  %v27 = vrsqrt.pop %v26
  %v28 = vld [vmem:[%s3] sm:$0x1]
  %v29 = vmul.f32 %v27, %v28
  %v30 = vld [vmem:[%s4] sm:$0x1]
  %v31 = vmul.f32 %v21, %v29
  %v32 = vsub.f32 %v30, %v31
  %v33 = vld [vmem:[%s0] sm:$0xff]
  %v34 = vld [vmem:[%s0 + $0x8] sm:$0xff]
  %v35 = vld [vmem:[%s0 + $0x10] sm:$0xff]
  %v36 = vld [vmem:[%s0 + $0x18] sm:$0xff]
  %v37 = vld [vmem:[%s0 + $0x20] sm:$0xff]
  %v38 = vld [vmem:[%s0 + $0x28] sm:$0xff]
  %v39 = vld [vmem:[%s0 + $0x30] sm:$0xff]
  %v40 = vld [vmem:[%s0 + $0x38] sm:$0xff]
  %v41 = vld [vmem:[%s0 + $0x40] sm:$0xff]
  %v42 = vld [vmem:[%s0 + $0x48] sm:$0xff]
  %v43 = vld [vmem:[%s0 + $0x50] sm:$0xff]
  %v44 = vld [vmem:[%s0 + $0x58] sm:$0xff]
  %v45 = vld [vmem:[%s0 + $0x60] sm:$0xff]
  %v46 = vld [vmem:[%s0 + $0x68] sm:$0xff]
  %v47 = vld [vmem:[%s0 + $0x70] sm:$0xff]
  %v48 = vld [vmem:[%s0 + $0x78] sm:$0xff]
  %v49 = vld [vmem:[%s0 + $0x80] sm:$0xff]
  %v50 = vld [vmem:[%s0 + $0x88] sm:$0xff]
  %v51 = vld [vmem:[%s0 + $0x90] sm:$0xff]
  %v52 = vld [vmem:[%s0 + $0x98] sm:$0xff]
  %v53 = vld [vmem:[%s0 + $0xa0] sm:$0xff]
  %v54 = vld [vmem:[%s0 + $0xa8] sm:$0xff]
  %v55 = vld [vmem:[%s0 + $0xb0] sm:$0xff]
  %v56 = vld [vmem:[%s0 + $0xb8] sm:$0xff]
  %v57 = vld [vmem:[%s0 + $0xc0] sm:$0xff]
  %v58 = vld [vmem:[%s0 + $0xc8] sm:$0xff]
  %v59 = vld [vmem:[%s0 + $0xd0] sm:$0xff]
  %v60 = vld [vmem:[%s0 + $0xd8] sm:$0xff]
  %v61 = vld [vmem:[%s0 + $0xe0] sm:$0xff]
  %v62 = vld [vmem:[%s0 + $0xe8] sm:$0xff]
  %v63 = vld [vmem:[%s0 + $0xf0] sm:$0xff]
  %v64 = vld [vmem:[%s0 + $0xf8] sm:$0xff]
  %v65 = vld [vmem:[%s0 + $0x100] sm:$0xff]
  %v66 = vld [vmem:[%s0 + $0x108] sm:$0xff]
  %v67 = vld [vmem:[%s0 + $0x110] sm:$0xff]
  %v68 = vld [vmem:[%s0 + $0x118] sm:$0xff]
  %v69 = vld [vmem:[%s0 + $0x120] sm:$0xff]
  %v70 = vld [vmem:[%s0 + $0x128] sm:$0xff]
  %v71 = vld [vmem:[%s0 + $0x130] sm:$0xff]
  %v72 = vld [vmem:[%s0 + $0x138] sm:$0xff]
  %v73 = vld [vmem:[%s0 + $0x140] sm:$0xff]
  %v74 = vld [vmem:[%s0 + $0x148] sm:$0xff]
  %v75 = vld [vmem:[%s0 + $0x150] sm:$0xff]
  %v76 = vld [vmem:[%s0 + $0x158] sm:$0xff]
  %v77 = vld [vmem:[%s0 + $0x160] sm:$0xff]
  %v78 = vld [vmem:[%s0 + $0x168] sm:$0xff]
  %v79 = vld [vmem:[%s0 + $0x170] sm:$0xff]
  %v80 = vld [vmem:[%s0 + $0x178] sm:$0xff]
  %v81 = vld [vmem:[%s0 + $0x180] sm:$0xff]
  %v82 = vld [vmem:[%s0 + $0x188] sm:$0xff]
  %v83 = vld [vmem:[%s0 + $0x190] sm:$0xff]
  %v84 = vld [vmem:[%s0 + $0x198] sm:$0xff]
  %v85 = vld [vmem:[%s0 + $0x1a0] sm:$0xff]
  %v86 = vld [vmem:[%s0 + $0x1a8] sm:$0xff]
  %v87 = vld [vmem:[%s0 + $0x1b0] sm:$0xff]
  %v88 = vld [vmem:[%s0 + $0x1b8] sm:$0xff]
  %v89 = vld [vmem:[%s0 + $0x1c0] sm:$0xff]
  %v90 = vld [vmem:[%s0 + $0x1c8] sm:$0xff]
  %v91 = vld [vmem:[%s0 + $0x1d0] sm:$0xff]
  %v92 = vld [vmem:[%s0 + $0x1d8] sm:$0xff]
  %v93 = vld [vmem:[%s0 + $0x1e0] sm:$0xff]
  %v94 = vld [vmem:[%s0 + $0x1e8] sm:$0xff]
  %v95 = vld [vmem:[%s0 + $0x1f0] sm:$0xff]
  %v96 = vld [vmem:[%s0 + $0x1f8] sm:$0xff]
  %v98 = vlaneseq
  %v99 = vshrl.u32 %v98, 7
  %v100 = vsub.s32 0, %v99
  %v101 = vrot.slane %v29, %v100
  %v103 = vmul.f32 %v33, %v101
  %v104 = vmul.f32 %v34, %v101
  %v105 = vmul.f32 %v35, %v101
  %v106 = vmul.f32 %v36, %v101
  %v107 = vmul.f32 %v37, %v101
  %v108 = vmul.f32 %v38, %v101
  %v109 = vmul.f32 %v39, %v101
  %v110 = vmul.f32 %v40, %v101
  %v111 = vmul.f32 %v41, %v101
  %v112 = vmul.f32 %v42, %v101
  %v113 = vmul.f32 %v43, %v101
  %v114 = vmul.f32 %v44, %v101
  %v115 = vmul.f32 %v45, %v101
  %v116 = vmul.f32 %v46, %v101
  %v117 = vmul.f32 %v47, %v101
  %v118 = vmul.f32 %v48, %v101
  %v119 = vmul.f32 %v49, %v101
  %v120 = vmul.f32 %v50, %v101
  %v121 = vmul.f32 %v51, %v101
  %v122 = vmul.f32 %v52, %v101
  %v123 = vmul.f32 %v53, %v101
  %v124 = vmul.f32 %v54, %v101
  %v125 = vmul.f32 %v55, %v101
  %v126 = vmul.f32 %v56, %v101
  %v127 = vmul.f32 %v57, %v101
  %v128 = vmul.f32 %v58, %v101
  %v129 = vmul.f32 %v59, %v101
  %v130 = vmul.f32 %v60, %v101
  %v131 = vmul.f32 %v61, %v101
  %v132 = vmul.f32 %v62, %v101
  %v133 = vmul.f32 %v63, %v101
  %v134 = vmul.f32 %v64, %v101
  %v135 = vmul.f32 %v65, %v101
  %v136 = vmul.f32 %v66, %v101
  %v137 = vmul.f32 %v67, %v101
  %v138 = vmul.f32 %v68, %v101
  %v139 = vmul.f32 %v69, %v101
  %v140 = vmul.f32 %v70, %v101
  %v141 = vmul.f32 %v71, %v101
  %v142 = vmul.f32 %v72, %v101
  %v143 = vmul.f32 %v73, %v101
  %v144 = vmul.f32 %v74, %v101
  %v145 = vmul.f32 %v75, %v101
  %v146 = vmul.f32 %v76, %v101
  %v147 = vmul.f32 %v77, %v101
  %v148 = vmul.f32 %v78, %v101
  %v149 = vmul.f32 %v79, %v101
  %v150 = vmul.f32 %v80, %v101
  %v151 = vmul.f32 %v81, %v101
  %v152 = vmul.f32 %v82, %v101
  %v153 = vmul.f32 %v83, %v101
  %v154 = vmul.f32 %v84, %v101
  %v155 = vmul.f32 %v85, %v101
  %v156 = vmul.f32 %v86, %v101
  %v157 = vmul.f32 %v87, %v101
  %v158 = vmul.f32 %v88, %v101
  %v159 = vmul.f32 %v89, %v101
  %v160 = vmul.f32 %v90, %v101
  %v161 = vmul.f32 %v91, %v101
  %v162 = vmul.f32 %v92, %v101
  %v163 = vmul.f32 %v93, %v101
  %v164 = vmul.f32 %v94, %v101
  %v165 = vmul.f32 %v95, %v101
  %v166 = vmul.f32 %v96, %v101
  %v168 = vlaneseq
  %v169 = vshrl.u32 %v168, 7
  %v170 = vsub.s32 0, %v169
  %v171 = vrot.slane %v32, %v170
  %v173 = vadd.f32 %v103, %v171
  %v174 = vadd.f32 %v104, %v171
  %v175 = vadd.f32 %v105, %v171
  %v176 = vadd.f32 %v106, %v171
  %v177 = vadd.f32 %v107, %v171
  %v178 = vadd.f32 %v108, %v171
  %v179 = vadd.f32 %v109, %v171
  %v180 = vadd.f32 %v110, %v171
  %v181 = vadd.f32 %v111, %v171
  %v182 = vadd.f32 %v112, %v171
  %v183 = vadd.f32 %v113, %v171
  %v184 = vadd.f32 %v114, %v171
  %v185 = vadd.f32 %v115, %v171
  %v186 = vadd.f32 %v116, %v171
  %v187 = vadd.f32 %v117, %v171
  %v188 = vadd.f32 %v118, %v171
  %v189 = vadd.f32 %v119, %v171
  %v190 = vadd.f32 %v120, %v171
  %v191 = vadd.f32 %v121, %v171
  %v192 = vadd.f32 %v122, %v171
  %v193 = vadd.f32 %v123, %v171
  %v194 = vadd.f32 %v124, %v171
  %v195 = vadd.f32 %v125, %v171
  %v196 = vadd.f32 %v126, %v171
  %v197 = vadd.f32 %v127, %v171
  %v198 = vadd.f32 %v128, %v171
  %v199 = vadd.f32 %v129, %v171
  %v200 = vadd.f32 %v130, %v171
  %v201 = vadd.f32 %v131, %v171
  %v202 = vadd.f32 %v132, %v171
  %v203 = vadd.f32 %v133, %v171
  %v204 = vadd.f32 %v134, %v171
  %v205 = vadd.f32 %v135, %v171
  %v206 = vadd.f32 %v136, %v171
  %v207 = vadd.f32 %v137, %v171
  %v208 = vadd.f32 %v138, %v171
  %v209 = vadd.f32 %v139, %v171
  %v210 = vadd.f32 %v140, %v171
  %v211 = vadd.f32 %v141, %v171
  %v212 = vadd.f32 %v142, %v171
  %v213 = vadd.f32 %v143, %v171
  %v214 = vadd.f32 %v144, %v171
  %v215 = vadd.f32 %v145, %v171
  %v216 = vadd.f32 %v146, %v171
  %v217 = vadd.f32 %v147, %v171
  %v218 = vadd.f32 %v148, %v171
  %v219 = vadd.f32 %v149, %v171
  %v220 = vadd.f32 %v150, %v171
  %v221 = vadd.f32 %v151, %v171
  %v222 = vadd.f32 %v152, %v171
  %v223 = vadd.f32 %v153, %v171
  %v224 = vadd.f32 %v154, %v171
  %v225 = vadd.f32 %v155, %v171
  %v226 = vadd.f32 %v156, %v171
  %v227 = vadd.f32 %v157, %v171
  %v228 = vadd.f32 %v158, %v171
  %v229 = vadd.f32 %v159, %v171
  %v230 = vadd.f32 %v160, %v171
  %v231 = vadd.f32 %v161, %v171
  %v232 = vadd.f32 %v162, %v171
  %v233 = vadd.f32 %v163, %v171
  %v234 = vadd.f32 %v164, %v171
  %v235 = vadd.f32 %v165, %v171
  %v236 = vadd.f32 %v166, %v171
  %v237 = vmax.f32 %v173, 0.0
  %v238 = vmax.f32 %v174, 0.0
  %v239 = vmax.f32 %v175, 0.0
  %v240 = vmax.f32 %v176, 0.0
  %v241 = vmax.f32 %v177, 0.0
  %v242 = vmax.f32 %v178, 0.0
  %v243 = vmax.f32 %v179, 0.0
  %v244 = vmax.f32 %v180, 0.0
  %v245 = vmax.f32 %v181, 0.0
  %v246 = vmax.f32 %v182, 0.0
  %v247 = vmax.f32 %v183, 0.0
  %v248 = vmax.f32 %v184, 0.0
  %v249 = vmax.f32 %v185, 0.0
  %v250 = vmax.f32 %v186, 0.0
  %v251 = vmax.f32 %v187, 0.0
  %v252 = vmax.f32 %v188, 0.0
  %v253 = vmax.f32 %v189, 0.0
  %v254 = vmax.f32 %v190, 0.0
  %v255 = vmax.f32 %v191, 0.0
  %v256 = vmax.f32 %v192, 0.0
  %v257 = vmax.f32 %v193, 0.0
  %v258 = vmax.f32 %v194, 0.0
  %v259 = vmax.f32 %v195, 0.0
  %v260 = vmax.f32 %v196, 0.0
  %v261 = vmax.f32 %v197, 0.0
  %v262 = vmax.f32 %v198, 0.0
  %v263 = vmax.f32 %v199, 0.0
  %v264 = vmax.f32 %v200, 0.0
  %v265 = vmax.f32 %v201, 0.0
  %v266 = vmax.f32 %v202, 0.0
  %v267 = vmax.f32 %v203, 0.0
  %v268 = vmax.f32 %v204, 0.0
  %v269 = vmax.f32 %v205, 0.0
  %v270 = vmax.f32 %v206, 0.0
  %v271 = vmax.f32 %v207, 0.0
  %v272 = vmax.f32 %v208, 0.0
  %v273 = vmax.f32 %v209, 0.0
  %v274 = vmax.f32 %v210, 0.0
  %v275 = vmax.f32 %v211, 0.0
  %v276 = vmax.f32 %v212, 0.0
  %v277 = vmax.f32 %v213, 0.0
  %v278 = vmax.f32 %v214, 0.0
  %v279 = vmax.f32 %v215, 0.0
  %v280 = vmax.f32 %v216, 0.0
  %v281 = vmax.f32 %v217, 0.0
  %v282 = vmax.f32 %v218, 0.0
  %v283 = vmax.f32 %v219, 0.0
  %v284 = vmax.f32 %v220, 0.0
  %v285 = vmax.f32 %v221, 0.0
  %v286 = vmax.f32 %v222, 0.0
  %v287 = vmax.f32 %v223, 0.0
  %v288 = vmax.f32 %v224, 0.0
  %v289 = vmax.f32 %v225, 0.0
  %v290 = vmax.f32 %v226, 0.0
  %v291 = vmax.f32 %v227, 0.0
  %v292 = vmax.f32 %v228, 0.0
  %v293 = vmax.f32 %v229, 0.0
  %v294 = vmax.f32 %v230, 0.0
  %v295 = vmax.f32 %v231, 0.0
  %v296 = vmax.f32 %v232, 0.0
  %v297 = vmax.f32 %v233, 0.0
  %v298 = vmax.f32 %v234, 0.0
  %v299 = vmax.f32 %v235, 0.0
  %v300 = vmax.f32 %v236, 0.0
  %vm301 = vcmask 64512
  %302 = vst.msk [vmem:[%s5] sm:$0xff] %vm301, %v237
  %303 = vst.msk [vmem:[%s5 + $0x8] sm:$0xff] %vm301, %v238
  %304 = vst.msk [vmem:[%s5 + $0x10] sm:$0xff] %vm301, %v239
  %305 = vst.msk [vmem:[%s5 + $0x18] sm:$0xff] %vm301, %v240
  %306 = vst.msk [vmem:[%s5 + $0x20] sm:$0xff] %vm301, %v241
  %307 = vst.msk [vmem:[%s5 + $0x28] sm:$0xff] %vm301, %v242
  %308 = vst.msk [vmem:[%s5 + $0x30] sm:$0xff] %vm301, %v243
  %309 = vst.msk [vmem:[%s5 + $0x38] sm:$0xff] %vm301, %v244
  %310 = vst.msk [vmem:[%s5 + $0x40] sm:$0xff] %vm301, %v245
  %311 = vst.msk [vmem:[%s5 + $0x48] sm:$0xff] %vm301, %v246
  %312 = vst.msk [vmem:[%s5 + $0x50] sm:$0xff] %vm301, %v247
  %313 = vst.msk [vmem:[%s5 + $0x58] sm:$0xff] %vm301, %v248
  %314 = vst.msk [vmem:[%s5 + $0x60] sm:$0xff] %vm301, %v249
  %315 = vst.msk [vmem:[%s5 + $0x68] sm:$0xff] %vm301, %v250
  %316 = vst.msk [vmem:[%s5 + $0x70] sm:$0xff] %vm301, %v251
  %317 = vst.msk [vmem:[%s5 + $0x78] sm:$0xff] %vm301, %v252
  %318 = vst.msk [vmem:[%s5 + $0x80] sm:$0xff] %vm301, %v253
  %319 = vst.msk [vmem:[%s5 + $0x88] sm:$0xff] %vm301, %v254
  %320 = vst.msk [vmem:[%s5 + $0x90] sm:$0xff] %vm301, %v255
  %321 = vst.msk [vmem:[%s5 + $0x98] sm:$0xff] %vm301, %v256
  %322 = vst.msk [vmem:[%s5 + $0xa0] sm:$0xff] %vm301, %v257
  %323 = vst.msk [vmem:[%s5 + $0xa8] sm:$0xff] %vm301, %v258
  %324 = vst.msk [vmem:[%s5 + $0xb0] sm:$0xff] %vm301, %v259
  %325 = vst.msk [vmem:[%s5 + $0xb8] sm:$0xff] %vm301, %v260
  %326 = vst.msk [vmem:[%s5 + $0xc0] sm:$0xff] %vm301, %v261
  %327 = vst.msk [vmem:[%s5 + $0xc8] sm:$0xff] %vm301, %v262
  %328 = vst.msk [vmem:[%s5 + $0xd0] sm:$0xff] %vm301, %v263
  %329 = vst.msk [vmem:[%s5 + $0xd8] sm:$0xff] %vm301, %v264
  %330 = vst.msk [vmem:[%s5 + $0xe0] sm:$0xff] %vm301, %v265
  %331 = vst.msk [vmem:[%s5 + $0xe8] sm:$0xff] %vm301, %v266
  %332 = vst.msk [vmem:[%s5 + $0xf0] sm:$0xff] %vm301, %v267
  %333 = vst.msk [vmem:[%s5 + $0xf8] sm:$0xff] %vm301, %v268
  %334 = vst.msk [vmem:[%s5 + $0x100] sm:$0xff] %vm301, %v269
  %335 = vst.msk [vmem:[%s5 + $0x108] sm:$0xff] %vm301, %v270
  %336 = vst.msk [vmem:[%s5 + $0x110] sm:$0xff] %vm301, %v271
  %337 = vst.msk [vmem:[%s5 + $0x118] sm:$0xff] %vm301, %v272
  %338 = vst.msk [vmem:[%s5 + $0x120] sm:$0xff] %vm301, %v273
  %339 = vst.msk [vmem:[%s5 + $0x128] sm:$0xff] %vm301, %v274
  %340 = vst.msk [vmem:[%s5 + $0x130] sm:$0xff] %vm301, %v275
  %341 = vst.msk [vmem:[%s5 + $0x138] sm:$0xff] %vm301, %v276
  %342 = vst.msk [vmem:[%s5 + $0x140] sm:$0xff] %vm301, %v277
  %343 = vst.msk [vmem:[%s5 + $0x148] sm:$0xff] %vm301, %v278
  %344 = vst.msk [vmem:[%s5 + $0x150] sm:$0xff] %vm301, %v279
  %345 = vst.msk [vmem:[%s5 + $0x158] sm:$0xff] %vm301, %v280
  %346 = vst.msk [vmem:[%s5 + $0x160] sm:$0xff] %vm301, %v281
  %347 = vst.msk [vmem:[%s5 + $0x168] sm:$0xff] %vm301, %v282
  %348 = vst.msk [vmem:[%s5 + $0x170] sm:$0xff] %vm301, %v283
  %349 = vst.msk [vmem:[%s5 + $0x178] sm:$0xff] %vm301, %v284
  %350 = vst.msk [vmem:[%s5 + $0x180] sm:$0xff] %vm301, %v285
  %351 = vst.msk [vmem:[%s5 + $0x188] sm:$0xff] %vm301, %v286
  %352 = vst.msk [vmem:[%s5 + $0x190] sm:$0xff] %vm301, %v287
  %353 = vst.msk [vmem:[%s5 + $0x198] sm:$0xff] %vm301, %v288
  %354 = vst.msk [vmem:[%s5 + $0x1a0] sm:$0xff] %vm301, %v289
  %355 = vst.msk [vmem:[%s5 + $0x1a8] sm:$0xff] %vm301, %v290
  %356 = vst.msk [vmem:[%s5 + $0x1b0] sm:$0xff] %vm301, %v291
  %357 = vst.msk [vmem:[%s5 + $0x1b8] sm:$0xff] %vm301, %v292
  %358 = vst.msk [vmem:[%s5 + $0x1c0] sm:$0xff] %vm301, %v293
  %359 = vst.msk [vmem:[%s5 + $0x1c8] sm:$0xff] %vm301, %v294
  %360 = vst.msk [vmem:[%s5 + $0x1d0] sm:$0xff] %vm301, %v295
  %361 = vst.msk [vmem:[%s5 + $0x1d8] sm:$0xff] %vm301, %v296
  %362 = vst.msk [vmem:[%s5 + $0x1e0] sm:$0xff] %vm301, %v297
  %363 = vst.msk [vmem:[%s5 + $0x1e8] sm:$0xff] %vm301, %v298
  %364 = vst.msk [vmem:[%s5 + $0x1f0] sm:$0xff] %vm301, %v299
  %365 = vst.msk [vmem:[%s5 + $0x1f8] sm:$0xff] %vm301, %v300
  // Predicated region
  $region22: #{resnet_generator_forward.30} parent=0 // pred_check
    _
  $region23: #{resnet_generator_forward.30} parent=0 // pred_check_branch
    %367 = sbr.rel (0) target = $region25
  $region24: #{resnet_generator_forward.30} parent=0 // pred_region
    _
  $region25: #{resnet_generator_forward.30} parent=0 // pred_fallthru
    _
  // Predicated region
  $region26: #{resnet_generator_forward.30} parent=0 // pred_check
    _
  $region27: #{resnet_generator_forward.30} parent=0 // pred_check_branch
    %369 = sbr.rel (0) target = $region29
  $region28: #{resnet_generator_forward.30} parent=0 // pred_region
    _
  $region29: #{resnet_generator_forward.30} parent=0 // pred_fallthru
    _

// kernel: resnet_generator_forward.29
$region0: #{resnet_generator_forward.29}
  #allocation0 [shape = 'u32[]', space=smem, size = 0x4, offset = 0x4, fixed_abs, tag = 'smem constant byte address 0x4 - core index']
  #allocation1 [shape = 'u32[144,128]{1,0:T(1,128)}', space=vmem, size = 0x12000, scoped, tag = 'internal scratch']
  %s0 = inlined_call_operand.vmem [shape: bf16[512,196], index: 0, kind: input, shape index: {}]
  %s1 = inlined_call_operand.vmem [shape: bf16[196,8], index: 1, kind: input, shape index: {}]
  %s2 = inlined_call_operand.vmem [shape: f32[512,8], index: 2, kind: output, shape index: {0}]
  %s3 = inlined_call_operand.vmem [shape: f32[1,8], index: 3, kind: output, shape index: {1}]
  %s4 = inlined_call_operand.vmem [shape: f32[1,8], index: 4, kind: output, shape index: {2}]
  %5 = xla_tuple %s2, %s3, %s4
  %s6 = sld [smem:[#allocation0]]
  $region42: #{resnet_generator_forward.29} parent=0
    _
  %s8 = ssub.s32 1, %s6
  %s9 = scalar_select 0, %s8, %s6
  // Predicated region
  $region2: #{resnet_generator_forward.29} parent=0 // pred_check
    _
  $region3: #{resnet_generator_forward.29} parent=0 // pred_check_branch
    %11 = sbr.rel (0) target = $region5
  $region4: #{resnet_generator_forward.29} parent=0 // pred_region
    _
  $region5: #{resnet_generator_forward.29} parent=0 // pred_fallthru
    _
  // Predicated region
  $region6: #{resnet_generator_forward.29} parent=0 // pred_check
    _
  $region7: #{resnet_generator_forward.29} parent=0 // pred_check_branch
    %13 = sbr.rel (0) target = $region9
  $region8: #{resnet_generator_forward.29} parent=0 // pred_region
    _
  $region9: #{resnet_generator_forward.29} parent=0 // pred_fallthru
    _
  %v15 = vld [vmem:[%s0] sm:$0xff]
  %v16 = vld [vmem:[%s0 + $0x8] sm:$0xff]
  %v17 = vld [vmem:[%s0 + $0x10] sm:$0xff]
  %v18 = vld [vmem:[%s0 + $0x18] sm:$0xff]
  %v19 = vld [vmem:[%s0 + $0x20] sm:$0xff]
  %v20 = vld [vmem:[%s0 + $0x28] sm:$0xff]
  %v21 = vld [vmem:[%s0 + $0x30] sm:$0xff]
  %v22 = vld [vmem:[%s0 + $0x38] sm:$0xff]
  %v23 = vld [vmem:[%s0 + $0x40] sm:$0xff]
  %v24 = vld [vmem:[%s0 + $0x48] sm:$0xff]
  %v25 = vld [vmem:[%s0 + $0x50] sm:$0xff]
  %v26 = vld [vmem:[%s0 + $0x58] sm:$0xff]
  %v27 = vld [vmem:[%s0 + $0x60] sm:$0xff]
  %v28 = vld [vmem:[%s0 + $0x68] sm:$0xff]
  %v29 = vld [vmem:[%s0 + $0x70] sm:$0xff]
  %v30 = vld [vmem:[%s0 + $0x78] sm:$0xff]
  %v31 = vld [vmem:[%s0 + $0x80] sm:$0xff]
  %v32 = vld [vmem:[%s0 + $0x88] sm:$0xff]
  %v33 = vld [vmem:[%s0 + $0x90] sm:$0xff]
  %v34 = vld [vmem:[%s0 + $0x98] sm:$0xff]
  %v35 = vld [vmem:[%s0 + $0xa0] sm:$0xff]
  %v36 = vld [vmem:[%s0 + $0xa8] sm:$0xff]
  %v37 = vld [vmem:[%s0 + $0xb0] sm:$0xff]
  %v38 = vld [vmem:[%s0 + $0xb8] sm:$0xff]
  %v39 = vld [vmem:[%s0 + $0xc0] sm:$0xff]
  %v40 = vld [vmem:[%s0 + $0xc8] sm:$0xff]
  %v41 = vld [vmem:[%s0 + $0xd0] sm:$0xff]
  %v42 = vld [vmem:[%s0 + $0xd8] sm:$0xff]
  %v43 = vld [vmem:[%s0 + $0xe0] sm:$0xff]
  %v44 = vld [vmem:[%s0 + $0xe8] sm:$0xff]
  %v45 = vld [vmem:[%s0 + $0xf0] sm:$0xff]
  %v46 = vld [vmem:[%s0 + $0xf8] sm:$0xff]
  %v47 = vld [vmem:[%s0 + $0x100] sm:$0xff]
  %v48 = vld [vmem:[%s0 + $0x108] sm:$0xff]
  %v49 = vld [vmem:[%s0 + $0x110] sm:$0xff]
  %v50 = vld [vmem:[%s0 + $0x118] sm:$0xff]
  %v51 = vld [vmem:[%s0 + $0x120] sm:$0xff]
  %v52 = vld [vmem:[%s0 + $0x128] sm:$0xff]
  %v53 = vld [vmem:[%s0 + $0x130] sm:$0xff]
  %v54 = vld [vmem:[%s0 + $0x138] sm:$0xff]
  %v55 = vld [vmem:[%s0 + $0x140] sm:$0xff]
  %v56 = vld [vmem:[%s0 + $0x148] sm:$0xff]
  %v57 = vld [vmem:[%s0 + $0x150] sm:$0xff]
  %v58 = vld [vmem:[%s0 + $0x158] sm:$0xff]
  %v59 = vld [vmem:[%s0 + $0x160] sm:$0xff]
  %v60 = vld [vmem:[%s0 + $0x168] sm:$0xff]
  %v61 = vld [vmem:[%s0 + $0x170] sm:$0xff]
  %v62 = vld [vmem:[%s0 + $0x178] sm:$0xff]
  %v63 = vld [vmem:[%s0 + $0x180] sm:$0xff]
  %v64 = vld [vmem:[%s0 + $0x188] sm:$0xff]
  %v65 = vld [vmem:[%s0 + $0x190] sm:$0xff]
  %v66 = vld [vmem:[%s0 + $0x198] sm:$0xff]
  %v67 = vld [vmem:[%s0 + $0x1a0] sm:$0xff]
  %v68 = vld [vmem:[%s0 + $0x1a8] sm:$0xff]
  %v69 = vld [vmem:[%s0 + $0x1b0] sm:$0xff]
  %v70 = vld [vmem:[%s0 + $0x1b8] sm:$0xff]
  %v71 = vld [vmem:[%s0 + $0x1c0] sm:$0xff]
  %v72 = vld [vmem:[%s0 + $0x1c8] sm:$0xff]
  %v73 = vld [vmem:[%s0 + $0x1d0] sm:$0xff]
  %v74 = vld [vmem:[%s0 + $0x1d8] sm:$0xff]
  %v75 = vld [vmem:[%s0 + $0x1e0] sm:$0xff]
  %v76 = vld [vmem:[%s0 + $0x1e8] sm:$0xff]
  %v77 = vld [vmem:[%s0 + $0x1f0] sm:$0xff]
  %v78 = vld [vmem:[%s0 + $0x1f8] sm:$0xff]
  %v79 = vld [vmem:[%s1] sm:$0xf]
  %v80 = vld [vmem:[%s1 + $0x4] sm:$0xf]
  %v81 = vld [vmem:[%s1 + $0x8] sm:$0xf]
  %v82 = vld [vmem:[%s1 + $0xc] sm:$0xf]
  %v83 = vld [vmem:[%s1 + $0x10] sm:$0xf]
  %v84 = vld [vmem:[%s1 + $0x14] sm:$0xf]
  %v85 = vld [vmem:[%s1 + $0x18] sm:$0xf]
  %v86 = vld [vmem:[%s1 + $0x1c] sm:$0xf]
  %v87 = vld [vmem:[%s1 + $0x20] sm:$0xf]
  %v88 = vld [vmem:[%s1 + $0x24] sm:$0xf]
  %v89 = vld [vmem:[%s1 + $0x28] sm:$0xf]
  %v90 = vld [vmem:[%s1 + $0x2c] sm:$0xf]
  %v91 = vld [vmem:[%s1 + $0x30] sm:$0xf]
  %v92 = vld [vmem:[%s1 + $0x34] sm:$0xf]
  %v93 = vld [vmem:[%s1 + $0x38] sm:$0xf]
  %v94 = vld [vmem:[%s1 + $0x3c] sm:$0xf]
  %v95 = vld [vmem:[%s1 + $0x40] sm:$0xf]
  %v96 = vld [vmem:[%s1 + $0x44] sm:$0xf]
  %v97 = vld [vmem:[%s1 + $0x48] sm:$0xf]
  %v98 = vld [vmem:[%s1 + $0x4c] sm:$0xf]
  %v99 = vld [vmem:[%s1 + $0x50] sm:$0xf]
  %v100 = vld [vmem:[%s1 + $0x54] sm:$0xf]
  %v101 = vld [vmem:[%s1 + $0x58] sm:$0xf]
  %v102 = vld [vmem:[%s1 + $0x5c] sm:$0xf]
  %v103 = vld [vmem:[%s1 + $0x60] sm:$0x3]
  %v168 = vunpack.c.l.b16 %v15
  %v169 = vunpack.c.h.b16 %v15
  %v170 = vunpack.c.l.b16 %v16
  %v171 = vunpack.c.h.b16 %v16
  %v172 = vunpack.c.l.b16 %v17
  %v173 = vunpack.c.h.b16 %v17
  %v174 = vunpack.c.l.b16 %v18
  %v175 = vunpack.c.h.b16 %v18
  %v176 = vunpack.c.l.b16 %v19
  %v177 = vunpack.c.h.b16 %v19
  %v178 = vunpack.c.l.b16 %v20
  %v179 = vunpack.c.h.b16 %v20
  %v180 = vunpack.c.l.b16 %v21
  %v181 = vunpack.c.h.b16 %v21
  %v182 = vunpack.c.l.b16 %v22
  %v183 = vunpack.c.h.b16 %v22
  %v184 = vunpack.c.l.b16 %v23
  %v185 = vunpack.c.h.b16 %v23
  %v186 = vunpack.c.l.b16 %v24
  %v187 = vunpack.c.h.b16 %v24
  %v188 = vunpack.c.l.b16 %v25
  %v189 = vunpack.c.h.b16 %v25
  %v190 = vunpack.c.l.b16 %v26
  %v191 = vunpack.c.h.b16 %v26
  %v192 = vunpack.c.l.b16 %v27
  %v193 = vunpack.c.h.b16 %v27
  %v194 = vunpack.c.l.b16 %v28
  %v195 = vunpack.c.h.b16 %v28
  %v196 = vunpack.c.l.b16 %v29
  %v197 = vunpack.c.h.b16 %v29
  %v198 = vunpack.c.l.b16 %v30
  %v199 = vunpack.c.h.b16 %v30
  %v200 = vunpack.c.l.b16 %v31
  %v201 = vunpack.c.h.b16 %v31
  %v202 = vunpack.c.l.b16 %v32
  %v203 = vunpack.c.h.b16 %v32
  %v204 = vunpack.c.l.b16 %v33
  %v205 = vunpack.c.h.b16 %v33
  %v206 = vunpack.c.l.b16 %v34
  %v207 = vunpack.c.h.b16 %v34
  %v208 = vunpack.c.l.b16 %v35
  %v209 = vunpack.c.h.b16 %v35
  %v210 = vunpack.c.l.b16 %v36
  %v211 = vunpack.c.h.b16 %v36
  %v212 = vunpack.c.l.b16 %v37
  %v213 = vunpack.c.h.b16 %v37
  %v214 = vunpack.c.l.b16 %v38
  %v215 = vunpack.c.h.b16 %v38
  %v216 = vunpack.c.l.b16 %v39
  %v217 = vunpack.c.h.b16 %v39
  %v218 = vunpack.c.l.b16 %v40
  %v219 = vunpack.c.h.b16 %v40
  %v220 = vunpack.c.l.b16 %v41
  %v221 = vunpack.c.h.b16 %v41
  %v222 = vunpack.c.l.b16 %v42
  %v223 = vunpack.c.h.b16 %v42
  %v224 = vunpack.c.l.b16 %v43
  %v225 = vunpack.c.h.b16 %v43
  %v226 = vunpack.c.l.b16 %v44
  %v227 = vunpack.c.h.b16 %v44
  %v228 = vunpack.c.l.b16 %v45
  %v229 = vunpack.c.h.b16 %v45
  %v230 = vunpack.c.l.b16 %v46
  %v231 = vunpack.c.h.b16 %v46
  %v232 = vunpack.c.l.b16 %v47
  %v233 = vunpack.c.h.b16 %v47
  %v234 = vunpack.c.l.b16 %v48
  %v235 = vunpack.c.h.b16 %v48
  %v236 = vunpack.c.l.b16 %v49
  %v237 = vunpack.c.h.b16 %v49
  %v238 = vunpack.c.l.b16 %v50
  %v239 = vunpack.c.h.b16 %v50
  %v240 = vunpack.c.l.b16 %v51
  %v241 = vunpack.c.h.b16 %v51
  %v242 = vunpack.c.l.b16 %v52
  %v243 = vunpack.c.h.b16 %v52
  %v244 = vunpack.c.l.b16 %v53
  %v245 = vunpack.c.h.b16 %v53
  %v246 = vunpack.c.l.b16 %v54
  %v247 = vunpack.c.h.b16 %v54
  %v248 = vunpack.c.l.b16 %v55
  %v249 = vunpack.c.h.b16 %v55
  %v250 = vunpack.c.l.b16 %v56
  %v251 = vunpack.c.h.b16 %v56
  %v252 = vunpack.c.l.b16 %v57
  %v253 = vunpack.c.h.b16 %v57
  %v254 = vunpack.c.l.b16 %v58
  %v255 = vunpack.c.h.b16 %v58
  %v256 = vunpack.c.l.b16 %v59
  %v257 = vunpack.c.h.b16 %v59
  %v258 = vunpack.c.l.b16 %v60
  %v259 = vunpack.c.h.b16 %v60
  %v260 = vunpack.c.l.b16 %v61
  %v261 = vunpack.c.h.b16 %v61
  %v262 = vunpack.c.l.b16 %v62
  %v263 = vunpack.c.h.b16 %v62
  %v264 = vunpack.c.l.b16 %v63
  %v265 = vunpack.c.h.b16 %v63
  %v266 = vunpack.c.l.b16 %v64
  %v267 = vunpack.c.h.b16 %v64
  %v268 = vunpack.c.l.b16 %v65
  %v269 = vunpack.c.h.b16 %v65
  %v270 = vunpack.c.l.b16 %v66
  %v271 = vunpack.c.h.b16 %v66
  %v272 = vunpack.c.l.b16 %v67
  %v273 = vunpack.c.h.b16 %v67
  %v274 = vunpack.c.l.b16 %v68
  %v275 = vunpack.c.h.b16 %v68
  %v276 = vunpack.c.l.b16 %v69
  %v277 = vunpack.c.h.b16 %v69
  %v278 = vunpack.c.l.b16 %v70
  %v279 = vunpack.c.h.b16 %v70
  %v280 = vunpack.c.l.b16 %v71
  %v281 = vunpack.c.h.b16 %v71
  %v282 = vunpack.c.l.b16 %v72
  %v283 = vunpack.c.h.b16 %v72
  %v284 = vunpack.c.l.b16 %v73
  %v285 = vunpack.c.h.b16 %v73
  %v286 = vunpack.c.l.b16 %v74
  %v287 = vunpack.c.h.b16 %v74
  %v288 = vunpack.c.l.b16 %v75
  %v289 = vunpack.c.h.b16 %v75
  %v290 = vunpack.c.l.b16 %v76
  %v291 = vunpack.c.h.b16 %v76
  %v292 = vunpack.c.l.b16 %v77
  %v293 = vunpack.c.h.b16 %v77
  %v294 = vunpack.c.l.b16 %v78
  %v295 = vunpack.c.h.b16 %v78
  %v296 = vpack.c.b16 %v170, %v168
  %v297 = vpack.c.b16 %v171, %v169
  %v298 = vpack.c.b16 %v174, %v172
  %v299 = vpack.c.b16 %v175, %v173
  %v300 = vpack.c.b16 %v178, %v176
  %v301 = vpack.c.b16 %v179, %v177
  %v302 = vpack.c.b16 %v182, %v180
  %v303 = vpack.c.b16 %v183, %v181
  %v304 = vpack.c.b16 %v186, %v184
  %v305 = vpack.c.b16 %v187, %v185
  %v306 = vpack.c.b16 %v190, %v188
  %v307 = vpack.c.b16 %v191, %v189
  %v308 = vpack.c.b16 %v194, %v192
  %v309 = vpack.c.b16 %v195, %v193
  %v310 = vpack.c.b16 %v198, %v196
  %v311 = vpack.c.b16 %v199, %v197
  %v312 = vpack.c.b16 %v202, %v200
  %v313 = vpack.c.b16 %v203, %v201
  %v314 = vpack.c.b16 %v206, %v204
  %v315 = vpack.c.b16 %v207, %v205
  %v316 = vpack.c.b16 %v210, %v208
  %v317 = vpack.c.b16 %v211, %v209
  %v318 = vpack.c.b16 %v214, %v212
  %v319 = vpack.c.b16 %v215, %v213
  %v320 = vpack.c.b16 %v218, %v216
  %v321 = vpack.c.b16 %v219, %v217
  %v322 = vpack.c.b16 %v222, %v220
  %v323 = vpack.c.b16 %v223, %v221
  %v324 = vpack.c.b16 %v226, %v224
  %v325 = vpack.c.b16 %v227, %v225
  %v326 = vpack.c.b16 %v230, %v228
  %v327 = vpack.c.b16 %v231, %v229
  %v328 = vpack.c.b16 %v234, %v232
  %v329 = vpack.c.b16 %v235, %v233
  %v330 = vpack.c.b16 %v238, %v236
  %v331 = vpack.c.b16 %v239, %v237
  %v332 = vpack.c.b16 %v242, %v240
  %v333 = vpack.c.b16 %v243, %v241
  %v334 = vpack.c.b16 %v246, %v244
  %v335 = vpack.c.b16 %v247, %v245
  %v336 = vpack.c.b16 %v250, %v248
  %v337 = vpack.c.b16 %v251, %v249
  %v338 = vpack.c.b16 %v254, %v252
  %v339 = vpack.c.b16 %v255, %v253
  %v340 = vpack.c.b16 %v258, %v256
  %v341 = vpack.c.b16 %v259, %v257
  %v342 = vpack.c.b16 %v262, %v260
  %v343 = vpack.c.b16 %v263, %v261
  %v344 = vpack.c.b16 %v266, %v264
  %v345 = vpack.c.b16 %v267, %v265
  %v346 = vpack.c.b16 %v270, %v268
  %v347 = vpack.c.b16 %v271, %v269
  %v348 = vpack.c.b16 %v274, %v272
  %v349 = vpack.c.b16 %v275, %v273
  %v350 = vpack.c.b16 %v278, %v276
  %v351 = vpack.c.b16 %v279, %v277
  %v352 = vpack.c.b16 %v282, %v280
  %v353 = vpack.c.b16 %v283, %v281
  %v354 = vpack.c.b16 %v286, %v284
  %v355 = vpack.c.b16 %v287, %v285
  %v356 = vpack.c.b16 %v290, %v288
  %v357 = vpack.c.b16 %v291, %v289
  %v358 = vpack.c.b16 %v294, %v292
  %v359 = vpack.c.b16 %v295, %v293
  %v417 = vunpack.c.l.b16 %v79
  %v418 = vunpack.c.l.b16 %v80
  %v419 = vunpack.c.l.b16 %v81
  %v420 = vunpack.c.l.b16 %v82
  %v421 = vunpack.c.l.b16 %v83
  %v422 = vunpack.c.l.b16 %v84
  %v423 = vunpack.c.l.b16 %v85
  %v424 = vunpack.c.l.b16 %v86
  %v425 = vunpack.c.l.b16 %v87
  %v426 = vunpack.c.l.b16 %v88
  %v427 = vunpack.c.l.b16 %v89
  %v428 = vunpack.c.l.b16 %v90
  %v429 = vunpack.c.l.b16 %v91
  %v430 = vunpack.c.l.b16 %v92
  %v431 = vunpack.c.l.b16 %v93
  %v432 = vunpack.c.l.b16 %v94
  %v433 = vunpack.c.l.b16 %v95
  %v434 = vunpack.c.l.b16 %v96
  %v435 = vunpack.c.l.b16 %v97
  %v436 = vunpack.c.l.b16 %v98
  %v437 = vunpack.c.l.b16 %v99
  %v438 = vunpack.c.l.b16 %v100
  %v439 = vunpack.c.l.b16 %v101
  %v440 = vunpack.c.l.b16 %v102
  %v441 = vunpack.c.l.b16 %v103
  %v442 = vpack.c.b16 %v418, %v417
  %v443 = vpack.c.b16 %v420, %v419
  %v444 = vpack.c.b16 %v422, %v421
  %v445 = vpack.c.b16 %v424, %v423
  %v446 = vpack.c.b16 %v426, %v425
  %v447 = vpack.c.b16 %v428, %v427
  %v448 = vpack.c.b16 %v430, %v429
  %v449 = vpack.c.b16 %v432, %v431
  %v450 = vpack.c.b16 %v434, %v433
  %v451 = vpack.c.b16 %v436, %v435
  %v452 = vpack.c.b16 %v438, %v437
  %v453 = vpack.c.b16 %v440, %v439
  %v454 = vpack.c.b16 %v441, %v441
  %vm467 = vcmask 556032
  %v469 = vsel %vm467, %v297, 0
  %v472 = vsel %vm467, %v299, 0
  %v475 = vsel %vm467, %v301, 0
  %v478 = vsel %vm467, %v303, 0
  %v481 = vsel %vm467, %v305, 0
  %v484 = vsel %vm467, %v307, 0
  %v487 = vsel %vm467, %v309, 0
  %v490 = vsel %vm467, %v311, 0
  %v493 = vsel %vm467, %v313, 0
  %v496 = vsel %vm467, %v315, 0
  %v499 = vsel %vm467, %v317, 0
  %v502 = vsel %vm467, %v319, 0
  %v505 = vsel %vm467, %v321, 0
  %v508 = vsel %vm467, %v323, 0
  %v511 = vsel %vm467, %v325, 0
  %v514 = vsel %vm467, %v327, 0
  %v517 = vsel %vm467, %v329, 0
  %v520 = vsel %vm467, %v331, 0
  %v523 = vsel %vm467, %v333, 0
  %v526 = vsel %vm467, %v335, 0
  %v529 = vsel %vm467, %v337, 0
  %v532 = vsel %vm467, %v339, 0
  %v535 = vsel %vm467, %v341, 0
  %v538 = vsel %vm467, %v343, 0
  %v541 = vsel %vm467, %v345, 0
  %v544 = vsel %vm467, %v347, 0
  %v547 = vsel %vm467, %v349, 0
  %v550 = vsel %vm467, %v351, 0
  %v553 = vsel %vm467, %v353, 0
  %v556 = vsel %vm467, %v355, 0
  %v559 = vsel %vm467, %v357, 0
  %v562 = vsel %vm467, %v359, 0
  %vm564 = vcmask 1041408
  %v566 = vsel %vm564, %v454, 0
  %568 = vmatprep.subr.bf16.mxu0 0
  %569 = vmatpush1.bf16.msra.mxu0 %v442
  %570 = vmatprep.subr.bf16.mxu0 0
  %571 = vmatpush1.bf16.msra.mxu0 %v443
  %572 = vmatprep.subr.bf16.mxu0 0
  %573 = vmatpush1.bf16.msra.mxu0 %v444
  %574 = vmatprep.subr.bf16.mxu0 0
  %575 = vmatpush1.bf16.msra.mxu0 %v445
  %576 = vmatprep.subr.bf16.mxu0 0
  %577 = vmatpush1.bf16.msra.mxu0 %v446
  %578 = vmatprep.subr.bf16.mxu0 0
  %579 = vmatpush1.bf16.msra.mxu0 %v447
  %580 = vmatprep.subr.bf16.mxu0 0
  %581 = vmatpush1.bf16.msra.mxu0 %v448
  %582 = vmatprep.subr.bf16.mxu0 0
  %583 = vmatpush1.bf16.msra.mxu0 %v449
  %584 = vmatprep.subr.bf16.mxu0 0
  %585 = vmatpush1.bf16.msra.mxu0 %v450
  %586 = vmatprep.subr.bf16.mxu0 0
  %587 = vmatpush1.bf16.msra.mxu0 %v451
  %588 = vmatprep.subr.bf16.mxu0 0
  %589 = vmatpush1.bf16.msra.mxu0 %v452
  %590 = vmatprep.subr.bf16.mxu0 0
  %591 = vmatpush1.bf16.msra.mxu0 %v453
  %592 = vmatprep.subr.bf16.mxu0 0
  %593 = vmatpush1.bf16.msra.mxu0 %v566
  %594 = vmatprep.subr.bf16.mxu0 0
  %595 = vmatpush1.bf16.msra.mxu0 0
  %596 = vmatprep.subr.bf16.mxu0 0
  %597 = vmatpush1.bf16.msra.mxu0 0
  %598 = vmatprep.subr.bf16.mxu0 0
  %599 = vmatpush1.bf16.msra.mxu0 0
  %600 = vmatprep.mubr.bf16.mxu0 %v469
  %601 = vmatmul.mubr.bf16.gmra.mrb[0].mxu0 %v296
  %v602 = vpop.f32.mrb[0].mxu0
  %v603 = vadd.f32 0.0, %v602
  %v604 = vpop.f32.mrb[0].mxu0
  %v605 = vpop.f32.mrb[0].mxu0
  %v606 = vadd.f32 0.0, %v605
  %v607 = vpop.f32.mrb[0].mxu0
  %608 = vmatprep.mubr.bf16.mxu0 %v472
  %609 = vmatmul.mubr.bf16.gmra.mrb[0].mxu0 %v298
  %v610 = vpop.f32.mrb[0].mxu0
  %v611 = vadd.f32 0.0, %v610
  %v612 = vpop.f32.mrb[0].mxu0
  %v613 = vpop.f32.mrb[0].mxu0
  %v614 = vadd.f32 0.0, %v613
  %v615 = vpop.f32.mrb[0].mxu0
  %616 = vmatprep.mubr.bf16.mxu0 %v475
  %617 = vmatmul.mubr.bf16.gmra.mrb[0].mxu0 %v300
  %v618 = vpop.f32.mrb[0].mxu0
  %v619 = vadd.f32 0.0, %v618
  %v620 = vpop.f32.mrb[0].mxu0
  %v621 = vpop.f32.mrb[0].mxu0
  %v622 = vadd.f32 0.0, %v621
  %v623 = vpop.f32.mrb[0].mxu0
  %624 = vmatprep.mubr.bf16.mxu0 %v478
  %625 = vmatmul.mubr.bf16.gmra.mrb[0].mxu0 %v302
  %v626 = vpop.f32.mrb[0].mxu0
  %v627 = vadd.f32 0.0, %v626
  %v628 = vpop.f32.mrb[0].mxu0
  %v629 = vpop.f32.mrb[0].mxu0
  %v630 = vadd.f32 0.0, %v629
  %v631 = vpop.f32.mrb[0].mxu0
  %632 = vmatprep.mubr.bf16.mxu0 %v481
  %633 = vmatmul.mubr.bf16.gmra.mrb[0].mxu0 %v304
  %v634 = vpop.f32.mrb[0].mxu0
  %v635 = vadd.f32 0.0, %v634
  %v636 = vpop.f32.mrb[0].mxu0
  %v637 = vpop.f32.mrb[0].mxu0
  %v638 = vadd.f32 0.0, %v637
  %v639 = vpop.f32.mrb[0].mxu0
  %640 = vmatprep.mubr.bf16.mxu0 %v484
  %641 = vmatmul.mubr.bf16.gmra.mrb[0].mxu0 %v306
  %v642 = vpop.f32.mrb[0].mxu0
  %v643 = vadd.f32 0.0, %v642
  %v644 = vpop.f32.mrb[0].mxu0
  %v645 = vpop.f32.mrb[0].mxu0
  %v646 = vadd.f32 0.0, %v645
  %v647 = vpop.f32.mrb[0].mxu0
  %648 = vmatprep.mubr.bf16.mxu0 %v487
  %649 = vmatmul.mubr.bf16.gmra.mrb[0].mxu0 %v308
  %v650 = vpop.f32.mrb[0].mxu0
  %v651 = vadd.f32 0.0, %v650
  %v652 = vpop.f32.mrb[0].mxu0
  %v653 = vpop.f32.mrb[0].mxu0
  %v654 = vadd.f32 0.0, %v653
  %v655 = vpop.f32.mrb[0].mxu0
  %656 = vmatprep.mubr.bf16.mxu0 %v490
  %657 = vmatmul.mubr.bf16.gmra.mrb[0].mxu0 %v310
  %v658 = vpop.f32.mrb[0].mxu0
  %v659 = vadd.f32 0.0, %v658
  %v660 = vpop.f32.mrb[0].mxu0
  %v661 = vpop.f32.mrb[0].mxu0
  %v662 = vadd.f32 0.0, %v661
  %v663 = vpop.f32.mrb[0].mxu0
  %664 = vmatprep.mubr.bf16.mxu0 %v493
  %665 = vmatmul.mubr.bf16.gmra.mrb[0].mxu0 %v312
  %v666 = vpop.f32.mrb[0].mxu0
  %v667 = vadd.f32 0.0, %v666
  %v668 = vpop.f32.mrb[0].mxu0
  %v669 = vpop.f32.mrb[0].mxu0
  %v670 = vadd.f32 0.0, %v669
  %v671 = vpop.f32.mrb[0].mxu0
  %672 = vmatprep.mubr.bf16.mxu0 %v496
  %673 = vmatmul.mubr.bf16.gmra.mrb[0].mxu0 %v314
  %v674 = vpop.f32.mrb[0].mxu0
  %v675 = vadd.f32 0.0, %v674
  %v676 = vpop.f32.mrb[0].mxu0
  %v677 = vpop.f32.mrb[0].mxu0
  %v678 = vadd.f32 0.0, %v677
  %v679 = vpop.f32.mrb[0].mxu0
  %680 = vmatprep.mubr.bf16.mxu0 %v499
  %681 = vmatmul.mubr.bf16.gmra.mrb[0].mxu0 %v316
  %v682 = vpop.f32.mrb[0].mxu0
  %v683 = vadd.f32 0.0, %v682
  %v684 = vpop.f32.mrb[0].mxu0
  %v685 = vpop.f32.mrb[0].mxu0
  %v686 = vadd.f32 0.0, %v685
  %v687 = vpop.f32.mrb[0].mxu0
  %688 = vmatprep.mubr.bf16.mxu0 %v502
  %689 = vmatmul.mubr.bf16.gmra.mrb[0].mxu0 %v318
  %v690 = vpop.f32.mrb[0].mxu0
  %v691 = vadd.f32 0.0, %v690
  %v692 = vpop.f32.mrb[0].mxu0
  %v693 = vpop.f32.mrb[0].mxu0
  %v694 = vadd.f32 0.0, %v693
  %v695 = vpop.f32.mrb[0].mxu0
  %696 = vmatprep.mubr.bf16.mxu0 %v505
  %697 = vmatmul.mubr.bf16.gmra.mrb[0].mxu0 %v320
  %v698 = vpop.f32.mrb[0].mxu0
  %v699 = vadd.f32 0.0, %v698
  %v700 = vpop.f32.mrb[0].mxu0
  %v701 = vpop.f32.mrb[0].mxu0
  %v702 = vadd.f32 0.0, %v701
  %v703 = vpop.f32.mrb[0].mxu0
  %704 = vmatprep.mubr.bf16.mxu0 %v508
  %705 = vmatmul.mubr.bf16.gmra.mrb[0].mxu0 %v322
  %v706 = vpop.f32.mrb[0].mxu0
  %v707 = vadd.f32 0.0, %v706
  %v708 = vpop.f32.mrb[0].mxu0
  %v709 = vpop.f32.mrb[0].mxu0
  %v710 = vadd.f32 0.0, %v709
  %v711 = vpop.f32.mrb[0].mxu0
  %712 = vmatprep.mubr.bf16.mxu0 %v511
  %713 = vmatmul.mubr.bf16.gmra.mrb[0].mxu0 %v324
  %v714 = vpop.f32.mrb[0].mxu0
  %v715 = vadd.f32 0.0, %v714
  %v716 = vpop.f32.mrb[0].mxu0
  %v717 = vpop.f32.mrb[0].mxu0
  %v718 = vadd.f32 0.0, %v717
  %v719 = vpop.f32.mrb[0].mxu0
  %720 = vmatprep.mubr.bf16.mxu0 %v514
  %721 = vmatmul.mubr.bf16.gmra.mrb[0].mxu0 %v326
  %v722 = vpop.f32.mrb[0].mxu0
  %v723 = vadd.f32 0.0, %v722
  %v724 = vpop.f32.mrb[0].mxu0
  %v725 = vpop.f32.mrb[0].mxu0
  %v726 = vadd.f32 0.0, %v725
  %v727 = vpop.f32.mrb[0].mxu0
  %728 = vmatprep.mubr.bf16.mxu0 %v517
  %729 = vmatmul.mubr.bf16.gmra.mrb[0].mxu0 %v328
  %v730 = vpop.f32.mrb[0].mxu0
  %v731 = vadd.f32 0.0, %v730
  %v732 = vpop.f32.mrb[0].mxu0
  %v733 = vpop.f32.mrb[0].mxu0
  %v734 = vadd.f32 0.0, %v733
  %v735 = vpop.f32.mrb[0].mxu0
  %736 = vmatprep.mubr.bf16.mxu0 %v520
  %737 = vmatmul.mubr.bf16.gmra.mrb[0].mxu0 %v330
  %v738 = vpop.f32.mrb[0].mxu0
  %v739 = vadd.f32 0.0, %v738
  %v740 = vpop.f32.mrb[0].mxu0
  %v741 = vpop.f32.mrb[0].mxu0
  %v742 = vadd.f32 0.0, %v741
  %v743 = vpop.f32.mrb[0].mxu0
  %744 = vmatprep.mubr.bf16.mxu0 %v523
  %745 = vmatmul.mubr.bf16.gmra.mrb[0].mxu0 %v332
  %v746 = vpop.f32.mrb[0].mxu0
  %v747 = vadd.f32 0.0, %v746
  %v748 = vpop.f32.mrb[0].mxu0
  %v749 = vpop.f32.mrb[0].mxu0
  %v750 = vadd.f32 0.0, %v749
  %v751 = vpop.f32.mrb[0].mxu0
  %752 = vmatprep.mubr.bf16.mxu0 %v526
  %753 = vmatmul.mubr.bf16.gmra.mrb[0].mxu0 %v334
  %v754 = vpop.f32.mrb[0].mxu0
  %v755 = vadd.f32 0.0, %v754
  %v756 = vpop.f32.mrb[0].mxu0
  %v757 = vpop.f32.mrb[0].mxu0
  %v758 = vadd.f32 0.0, %v757
  %v759 = vpop.f32.mrb[0].mxu0
  %760 = vmatprep.mubr.bf16.mxu0 %v529
  %761 = vmatmul.mubr.bf16.gmra.mrb[0].mxu0 %v336
  %v762 = vpop.f32.mrb[0].mxu0
  %v763 = vadd.f32 0.0, %v762
  %v764 = vpop.f32.mrb[0].mxu0
  %v765 = vpop.f32.mrb[0].mxu0
  %v766 = vadd.f32 0.0, %v765
  %v767 = vpop.f32.mrb[0].mxu0
  %768 = vmatprep.mubr.bf16.mxu0 %v532
  %769 = vmatmul.mubr.bf16.gmra.mrb[0].mxu0 %v338
  %v770 = vpop.f32.mrb[0].mxu0
  %v771 = vadd.f32 0.0, %v770
  %v772 = vpop.f32.mrb[0].mxu0
  %v773 = vpop.f32.mrb[0].mxu0
  %v774 = vadd.f32 0.0, %v773
  %v775 = vpop.f32.mrb[0].mxu0
  %776 = vmatprep.mubr.bf16.mxu0 %v535
  %777 = vmatmul.mubr.bf16.gmra.mrb[0].mxu0 %v340
  %v778 = vpop.f32.mrb[0].mxu0
  %v779 = vadd.f32 0.0, %v778
  %v780 = vpop.f32.mrb[0].mxu0
  %v781 = vpop.f32.mrb[0].mxu0
  %v782 = vadd.f32 0.0, %v781
  %v783 = vpop.f32.mrb[0].mxu0
  %784 = vmatprep.mubr.bf16.mxu0 %v538
  %785 = vmatmul.mubr.bf16.gmra.mrb[0].mxu0 %v342
  %v786 = vpop.f32.mrb[0].mxu0
  %v787 = vadd.f32 0.0, %v786
  %v788 = vpop.f32.mrb[0].mxu0
  %v789 = vpop.f32.mrb[0].mxu0
  %v790 = vadd.f32 0.0, %v789
  %v791 = vpop.f32.mrb[0].mxu0
  %792 = vmatprep.mubr.bf16.mxu0 %v541
  %793 = vmatmul.mubr.bf16.gmra.mrb[0].mxu0 %v344
  %v794 = vpop.f32.mrb[0].mxu0
  %v795 = vadd.f32 0.0, %v794
  %v796 = vpop.f32.mrb[0].mxu0
  %v797 = vpop.f32.mrb[0].mxu0
  %v798 = vadd.f32 0.0, %v797
  %v799 = vpop.f32.mrb[0].mxu0
  %800 = vmatprep.mubr.bf16.mxu0 %v544
  %801 = vmatmul.mubr.bf16.gmra.mrb[0].mxu0 %v346
  %v802 = vpop.f32.mrb[0].mxu0
  %v803 = vadd.f32 0.0, %v802
  %v804 = vpop.f32.mrb[0].mxu0
  %v805 = vpop.f32.mrb[0].mxu0
  %v806 = vadd.f32 0.0, %v805
  %v807 = vpop.f32.mrb[0].mxu0
  %808 = vmatprep.mubr.bf16.mxu0 %v547
  %809 = vmatmul.mubr.bf16.gmra.mrb[0].mxu0 %v348
  %v810 = vpop.f32.mrb[0].mxu0
  %v811 = vadd.f32 0.0, %v810
  %v812 = vpop.f32.mrb[0].mxu0
  %v813 = vpop.f32.mrb[0].mxu0
  %v814 = vadd.f32 0.0, %v813
  %v815 = vpop.f32.mrb[0].mxu0
  %816 = vmatprep.mubr.bf16.mxu0 %v550
  %817 = vmatmul.mubr.bf16.gmra.mrb[0].mxu0 %v350
  %v818 = vpop.f32.mrb[0].mxu0
  %v819 = vadd.f32 0.0, %v818
  %v820 = vpop.f32.mrb[0].mxu0
  %v821 = vpop.f32.mrb[0].mxu0
  %v822 = vadd.f32 0.0, %v821
  %v823 = vpop.f32.mrb[0].mxu0
  %824 = vmatprep.mubr.bf16.mxu0 %v553
  %825 = vmatmul.mubr.bf16.gmra.mrb[0].mxu0 %v352
  %v826 = vpop.f32.mrb[0].mxu0
  %v827 = vadd.f32 0.0, %v826
  %v828 = vpop.f32.mrb[0].mxu0
  %v829 = vpop.f32.mrb[0].mxu0
  %v830 = vadd.f32 0.0, %v829
  %v831 = vpop.f32.mrb[0].mxu0
  %832 = vmatprep.mubr.bf16.mxu0 %v556
  %833 = vmatmul.mubr.bf16.gmra.mrb[0].mxu0 %v354
  %v834 = vpop.f32.mrb[0].mxu0
  %v835 = vadd.f32 0.0, %v834
  %v836 = vpop.f32.mrb[0].mxu0
  %v837 = vpop.f32.mrb[0].mxu0
  %v838 = vadd.f32 0.0, %v837
  %v839 = vpop.f32.mrb[0].mxu0
  %840 = vmatprep.mubr.bf16.mxu0 %v559
  %841 = vmatmul.mubr.bf16.gmra.mrb[0].mxu0 %v356
  %v842 = vpop.f32.mrb[0].mxu0
  %v843 = vadd.f32 0.0, %v842
  %v844 = vpop.f32.mrb[0].mxu0
  %v845 = vpop.f32.mrb[0].mxu0
  %v846 = vadd.f32 0.0, %v845
  %v847 = vpop.f32.mrb[0].mxu0
  %848 = vmatprep.mubr.bf16.mxu0 %v562
  %849 = vmatmul.mubr.bf16.gmra.mrb[0].mxu0 %v358
  %v850 = vpop.f32.mrb[0].mxu0
  %v851 = vadd.f32 0.0, %v850
  %v852 = vpop.f32.mrb[0].mxu0
  %v853 = vpop.f32.mrb[0].mxu0
  %v854 = vadd.f32 0.0, %v853
  %v855 = vpop.f32.mrb[0].mxu0
  %856 = vdwg.mxu0
  %vm857 = vcmask 64512
  %858 = vst.msk [vmem:[%s2] sm:$0xff] %vm857, %v603
  %859 = vst.msk [vmem:[%s2 + $0x8] sm:$0xff] %vm857, %v606
  %860 = vst.msk [vmem:[%s2 + $0x10] sm:$0xff] %vm857, %v611
  %861 = vst.msk [vmem:[%s2 + $0x18] sm:$0xff] %vm857, %v614
  %862 = vst.msk [vmem:[%s2 + $0x20] sm:$0xff] %vm857, %v619
  %863 = vst.msk [vmem:[%s2 + $0x28] sm:$0xff] %vm857, %v622
  %864 = vst.msk [vmem:[%s2 + $0x30] sm:$0xff] %vm857, %v627
  %865 = vst.msk [vmem:[%s2 + $0x38] sm:$0xff] %vm857, %v630
  %866 = vst.msk [vmem:[%s2 + $0x40] sm:$0xff] %vm857, %v635
  %867 = vst.msk [vmem:[%s2 + $0x48] sm:$0xff] %vm857, %v638
  %868 = vst.msk [vmem:[%s2 + $0x50] sm:$0xff] %vm857, %v643
  %869 = vst.msk [vmem:[%s2 + $0x58] sm:$0xff] %vm857, %v646
  %870 = vst.msk [vmem:[%s2 + $0x60] sm:$0xff] %vm857, %v651
  %871 = vst.msk [vmem:[%s2 + $0x68] sm:$0xff] %vm857, %v654
  %872 = vst.msk [vmem:[%s2 + $0x70] sm:$0xff] %vm857, %v659
  %873 = vst.msk [vmem:[%s2 + $0x78] sm:$0xff] %vm857, %v662
  %874 = vst.msk [vmem:[%s2 + $0x80] sm:$0xff] %vm857, %v667
  %875 = vst.msk [vmem:[%s2 + $0x88] sm:$0xff] %vm857, %v670
  %876 = vst.msk [vmem:[%s2 + $0x90] sm:$0xff] %vm857, %v675
  %877 = vst.msk [vmem:[%s2 + $0x98] sm:$0xff] %vm857, %v678
  %878 = vst.msk [vmem:[%s2 + $0xa0] sm:$0xff] %vm857, %v683
  %879 = vst.msk [vmem:[%s2 + $0xa8] sm:$0xff] %vm857, %v686
  %880 = vst.msk [vmem:[%s2 + $0xb0] sm:$0xff] %vm857, %v691
  %881 = vst.msk [vmem:[%s2 + $0xb8] sm:$0xff] %vm857, %v694
  %882 = vst.msk [vmem:[%s2 + $0xc0] sm:$0xff] %vm857, %v699
  %883 = vst.msk [vmem:[%s2 + $0xc8] sm:$0xff] %vm857, %v702
  %884 = vst.msk [vmem:[%s2 + $0xd0] sm:$0xff] %vm857, %v707
  %885 = vst.msk [vmem:[%s2 + $0xd8] sm:$0xff] %vm857, %v710
  %886 = vst.msk [vmem:[%s2 + $0xe0] sm:$0xff] %vm857, %v715
  %887 = vst.msk [vmem:[%s2 + $0xe8] sm:$0xff] %vm857, %v718
  %888 = vst.msk [vmem:[%s2 + $0xf0] sm:$0xff] %vm857, %v723
  %889 = vst.msk [vmem:[%s2 + $0xf8] sm:$0xff] %vm857, %v726
  %890 = vst.msk [vmem:[%s2 + $0x100] sm:$0xff] %vm857, %v731
  %891 = vst.msk [vmem:[%s2 + $0x108] sm:$0xff] %vm857, %v734
  %892 = vst.msk [vmem:[%s2 + $0x110] sm:$0xff] %vm857, %v739
  %893 = vst.msk [vmem:[%s2 + $0x118] sm:$0xff] %vm857, %v742
  %894 = vst.msk [vmem:[%s2 + $0x120] sm:$0xff] %vm857, %v747
  %895 = vst.msk [vmem:[%s2 + $0x128] sm:$0xff] %vm857, %v750
  %896 = vst.msk [vmem:[%s2 + $0x130] sm:$0xff] %vm857, %v755
  %897 = vst.msk [vmem:[%s2 + $0x138] sm:$0xff] %vm857, %v758
  %898 = vst.msk [vmem:[%s2 + $0x140] sm:$0xff] %vm857, %v763
  %899 = vst.msk [vmem:[%s2 + $0x148] sm:$0xff] %vm857, %v766
  %900 = vst.msk [vmem:[%s2 + $0x150] sm:$0xff] %vm857, %v771
  %901 = vst.msk [vmem:[%s2 + $0x158] sm:$0xff] %vm857, %v774
  %902 = vst.msk [vmem:[%s2 + $0x160] sm:$0xff] %vm857, %v779
  %903 = vst.msk [vmem:[%s2 + $0x168] sm:$0xff] %vm857, %v782
  %904 = vst.msk [vmem:[%s2 + $0x170] sm:$0xff] %vm857, %v787
  %905 = vst.msk [vmem:[%s2 + $0x178] sm:$0xff] %vm857, %v790
  %906 = vst.msk [vmem:[%s2 + $0x180] sm:$0xff] %vm857, %v795
  %907 = vst.msk [vmem:[%s2 + $0x188] sm:$0xff] %vm857, %v798
  %908 = vst.msk [vmem:[%s2 + $0x190] sm:$0xff] %vm857, %v803
  %909 = vst.msk [vmem:[%s2 + $0x198] sm:$0xff] %vm857, %v806
  %910 = vst.msk [vmem:[%s2 + $0x1a0] sm:$0xff] %vm857, %v811
  %911 = vst.msk [vmem:[%s2 + $0x1a8] sm:$0xff] %vm857, %v814
  %912 = vst.msk [vmem:[%s2 + $0x1b0] sm:$0xff] %vm857, %v819
  %913 = vst.msk [vmem:[%s2 + $0x1b8] sm:$0xff] %vm857, %v822
  %914 = vst.msk [vmem:[%s2 + $0x1c0] sm:$0xff] %vm857, %v827
  %915 = vst.msk [vmem:[%s2 + $0x1c8] sm:$0xff] %vm857, %v830
  %916 = vst.msk [vmem:[%s2 + $0x1d0] sm:$0xff] %vm857, %v835
  %917 = vst.msk [vmem:[%s2 + $0x1d8] sm:$0xff] %vm857, %v838
  %918 = vst.msk [vmem:[%s2 + $0x1e0] sm:$0xff] %vm857, %v843
  %919 = vst.msk [vmem:[%s2 + $0x1e8] sm:$0xff] %vm857, %v846
  %920 = vst.msk [vmem:[%s2 + $0x1f0] sm:$0xff] %vm857, %v851
  %921 = vst.msk [vmem:[%s2 + $0x1f8] sm:$0xff] %vm857, %v854
  %v922 = vsel %vm857, %v603, 0.0
  %v923 = vsel %vm857, %v606, 0.0
  %v924 = vadd.f32 %v922, %v923
  %v925 = vsel %vm857, %v611, 0.0
  %v926 = vadd.f32 %v924, %v925
  %v927 = vsel %vm857, %v614, 0.0
  %v928 = vadd.f32 %v926, %v927
  %v929 = vsel %vm857, %v619, 0.0
  %v930 = vadd.f32 %v928, %v929
  %v931 = vsel %vm857, %v622, 0.0
  %v932 = vadd.f32 %v930, %v931
  %v933 = vsel %vm857, %v627, 0.0
  %v934 = vadd.f32 %v932, %v933
  %v935 = vsel %vm857, %v630, 0.0
  %v936 = vadd.f32 %v934, %v935
  %v937 = vsel %vm857, %v635, 0.0
  %v938 = vadd.f32 %v936, %v937
  %v939 = vsel %vm857, %v638, 0.0
  %v940 = vadd.f32 %v938, %v939
  %v941 = vsel %vm857, %v643, 0.0
  %v942 = vadd.f32 %v940, %v941
  %v943 = vsel %vm857, %v646, 0.0
  %v944 = vadd.f32 %v942, %v943
  %v945 = vsel %vm857, %v651, 0.0
  %v946 = vadd.f32 %v944, %v945
  %v947 = vsel %vm857, %v654, 0.0
  %v948 = vadd.f32 %v946, %v947
  %v949 = vsel %vm857, %v659, 0.0
  %v950 = vadd.f32 %v948, %v949
  %v951 = vsel %vm857, %v662, 0.0
  %v952 = vadd.f32 %v950, %v951
  %v953 = vsel %vm857, %v667, 0.0
  %v954 = vadd.f32 %v952, %v953
  %v955 = vsel %vm857, %v670, 0.0
  %v956 = vadd.f32 %v954, %v955
  %v957 = vsel %vm857, %v675, 0.0
  %v958 = vadd.f32 %v956, %v957
  %v959 = vsel %vm857, %v678, 0.0
  %v960 = vadd.f32 %v958, %v959
  %v961 = vsel %vm857, %v683, 0.0
  %v962 = vadd.f32 %v960, %v961
  %v963 = vsel %vm857, %v686, 0.0
  %v964 = vadd.f32 %v962, %v963
  %v965 = vsel %vm857, %v691, 0.0
  %v966 = vadd.f32 %v964, %v965
  %v967 = vsel %vm857, %v694, 0.0
  %v968 = vadd.f32 %v966, %v967
  %v969 = vsel %vm857, %v699, 0.0
  %v970 = vadd.f32 %v968, %v969
  %v971 = vsel %vm857, %v702, 0.0
  %v972 = vadd.f32 %v970, %v971
  %v973 = vsel %vm857, %v707, 0.0
  %v974 = vadd.f32 %v972, %v973
  %v975 = vsel %vm857, %v710, 0.0
  %v976 = vadd.f32 %v974, %v975
  %v977 = vsel %vm857, %v715, 0.0
  %v978 = vadd.f32 %v976, %v977
  %v979 = vsel %vm857, %v718, 0.0
  %v980 = vadd.f32 %v978, %v979
  %v981 = vsel %vm857, %v723, 0.0
  %v982 = vadd.f32 %v980, %v981
  %v983 = vsel %vm857, %v726, 0.0
  %v984 = vadd.f32 %v982, %v983
  %v985 = vsel %vm857, %v731, 0.0
  %v986 = vadd.f32 %v984, %v985
  %v987 = vsel %vm857, %v734, 0.0
  %v988 = vadd.f32 %v986, %v987
  %v989 = vsel %vm857, %v739, 0.0
  %v990 = vadd.f32 %v988, %v989
  %v991 = vsel %vm857, %v742, 0.0
  %v992 = vadd.f32 %v990, %v991
  %v993 = vsel %vm857, %v747, 0.0
  %v994 = vadd.f32 %v992, %v993
  %v995 = vsel %vm857, %v750, 0.0
  %v996 = vadd.f32 %v994, %v995
  %v997 = vsel %vm857, %v755, 0.0
  %v998 = vadd.f32 %v996, %v997
  %v999 = vsel %vm857, %v758, 0.0
  %v1000 = vadd.f32 %v998, %v999
  %v1001 = vsel %vm857, %v763, 0.0
  %v1002 = vadd.f32 %v1000, %v1001
  %v1003 = vsel %vm857, %v766, 0.0
  %v1004 = vadd.f32 %v1002, %v1003
  %v1005 = vsel %vm857, %v771, 0.0
  %v1006 = vadd.f32 %v1004, %v1005
  %v1007 = vsel %vm857, %v774, 0.0
  %v1008 = vadd.f32 %v1006, %v1007
  %v1009 = vsel %vm857, %v779, 0.0
  %v1010 = vadd.f32 %v1008, %v1009
  %v1011 = vsel %vm857, %v782, 0.0
  %v1012 = vadd.f32 %v1010, %v1011
  %v1013 = vsel %vm857, %v787, 0.0
  %v1014 = vadd.f32 %v1012, %v1013
  %v1015 = vsel %vm857, %v790, 0.0
  %v1016 = vadd.f32 %v1014, %v1015
  %v1017 = vsel %vm857, %v795, 0.0
  %v1018 = vadd.f32 %v1016, %v1017
  %v1019 = vsel %vm857, %v798, 0.0
  %v1020 = vadd.f32 %v1018, %v1019
  %v1021 = vsel %vm857, %v803, 0.0
  %v1022 = vadd.f32 %v1020, %v1021
  %v1023 = vsel %vm857, %v806, 0.0
  %v1024 = vadd.f32 %v1022, %v1023
  %v1025 = vsel %vm857, %v811, 0.0
  %v1026 = vadd.f32 %v1024, %v1025
  %v1027 = vsel %vm857, %v814, 0.0
  %v1028 = vadd.f32 %v1026, %v1027
  %v1029 = vsel %vm857, %v819, 0.0
  %v1030 = vadd.f32 %v1028, %v1029
  %v1031 = vsel %vm857, %v822, 0.0
  %v1032 = vadd.f32 %v1030, %v1031
  %v1033 = vsel %vm857, %v827, 0.0
  %v1034 = vadd.f32 %v1032, %v1033
  %v1035 = vsel %vm857, %v830, 0.0
  %v1036 = vadd.f32 %v1034, %v1035
  %v1037 = vsel %vm857, %v835, 0.0
  %v1038 = vadd.f32 %v1036, %v1037
  %v1039 = vsel %vm857, %v838, 0.0
  %v1040 = vadd.f32 %v1038, %v1039
  %v1041 = vsel %vm857, %v843, 0.0
  %v1042 = vadd.f32 %v1040, %v1041
  %v1043 = vsel %vm857, %v846, 0.0
  %v1044 = vadd.f32 %v1042, %v1043
  %v1045 = vsel %vm857, %v851, 0.0
  %v1046 = vadd.f32 %v1044, %v1045
  %v1047 = vsel %vm857, %v854, 0.0
  %v1048 = vadd.f32 %v1046, %v1047
  %v1049 = vrot.slane %v1048, 4
  %v1050 = vadd.f32 %v1048, %v1049
  %v1051 = vrot.slane %v1050, 2
  %v1052 = vadd.f32 %v1050, %v1051
  %v1053 = vrot.slane %v1052, 1
  %v1054 = vadd.f32 %v1052, %v1053
  %v1055 = vmul.f32 %v603, %v603
  %v1056 = vmul.f32 %v606, %v606
  %v1057 = vmul.f32 %v611, %v611
  %v1058 = vmul.f32 %v614, %v614
  %v1059 = vmul.f32 %v619, %v619
  %v1060 = vmul.f32 %v622, %v622
  %v1061 = vmul.f32 %v627, %v627
  %v1062 = vmul.f32 %v630, %v630
  %v1063 = vmul.f32 %v635, %v635
  %v1064 = vmul.f32 %v638, %v638
  %v1065 = vmul.f32 %v643, %v643
  %v1066 = vmul.f32 %v646, %v646
  %v1067 = vmul.f32 %v651, %v651
  %v1068 = vmul.f32 %v654, %v654
  %v1069 = vmul.f32 %v659, %v659
  %v1070 = vmul.f32 %v662, %v662
  %v1071 = vmul.f32 %v667, %v667
  %v1072 = vmul.f32 %v670, %v670
  %v1073 = vmul.f32 %v675, %v675
  %v1074 = vmul.f32 %v678, %v678
  %v1075 = vmul.f32 %v683, %v683
  %v1076 = vmul.f32 %v686, %v686
  %v1077 = vmul.f32 %v691, %v691
  %v1078 = vmul.f32 %v694, %v694
  %v1079 = vmul.f32 %v699, %v699
  %v1080 = vmul.f32 %v702, %v702
  %v1081 = vmul.f32 %v707, %v707
  %v1082 = vmul.f32 %v710, %v710
  %v1083 = vmul.f32 %v715, %v715
  %v1084 = vmul.f32 %v718, %v718
  %v1085 = vmul.f32 %v723, %v723
  %v1086 = vmul.f32 %v726, %v726
  %v1087 = vmul.f32 %v731, %v731
  %v1088 = vmul.f32 %v734, %v734
  %v1089 = vmul.f32 %v739, %v739
  %v1090 = vmul.f32 %v742, %v742
  %v1091 = vmul.f32 %v747, %v747
  %v1092 = vmul.f32 %v750, %v750
  %v1093 = vmul.f32 %v755, %v755
  %v1094 = vmul.f32 %v758, %v758
  %v1095 = vmul.f32 %v763, %v763
  %v1096 = vmul.f32 %v766, %v766
  %v1097 = vmul.f32 %v771, %v771
  %v1098 = vmul.f32 %v774, %v774
  %v1099 = vmul.f32 %v779, %v779
  %v1100 = vmul.f32 %v782, %v782
  %v1101 = vmul.f32 %v787, %v787
  %v1102 = vmul.f32 %v790, %v790
  %v1103 = vmul.f32 %v795, %v795
  %v1104 = vmul.f32 %v798, %v798
  %v1105 = vmul.f32 %v803, %v803
  %v1106 = vmul.f32 %v806, %v806
  %v1107 = vmul.f32 %v811, %v811
  %v1108 = vmul.f32 %v814, %v814
  %v1109 = vmul.f32 %v819, %v819
  %v1110 = vmul.f32 %v822, %v822
  %v1111 = vmul.f32 %v827, %v827
  %v1112 = vmul.f32 %v830, %v830
  %v1113 = vmul.f32 %v835, %v835
  %v1114 = vmul.f32 %v838, %v838
  %v1115 = vmul.f32 %v843, %v843
  %v1116 = vmul.f32 %v846, %v846
  %v1117 = vmul.f32 %v851, %v851
  %v1118 = vmul.f32 %v854, %v854
  %v1119 = vsel %vm857, %v1055, 0.0
  %v1120 = vsel %vm857, %v1056, 0.0
  %v1121 = vadd.f32 %v1119, %v1120
  %v1122 = vsel %vm857, %v1057, 0.0
  %v1123 = vadd.f32 %v1121, %v1122
  %v1124 = vsel %vm857, %v1058, 0.0
  %v1125 = vadd.f32 %v1123, %v1124
  %v1126 = vsel %vm857, %v1059, 0.0
  %v1127 = vadd.f32 %v1125, %v1126
  %v1128 = vsel %vm857, %v1060, 0.0
  %v1129 = vadd.f32 %v1127, %v1128
  %v1130 = vsel %vm857, %v1061, 0.0
  %v1131 = vadd.f32 %v1129, %v1130
  %v1132 = vsel %vm857, %v1062, 0.0
  %v1133 = vadd.f32 %v1131, %v1132
  %v1134 = vsel %vm857, %v1063, 0.0
  %v1135 = vadd.f32 %v1133, %v1134
  %v1136 = vsel %vm857, %v1064, 0.0
  %v1137 = vadd.f32 %v1135, %v1136
  %v1138 = vsel %vm857, %v1065, 0.0
  %v1139 = vadd.f32 %v1137, %v1138
  %v1140 = vsel %vm857, %v1066, 0.0
  %v1141 = vadd.f32 %v1139, %v1140
  %v1142 = vsel %vm857, %v1067, 0.0
  %v1143 = vadd.f32 %v1141, %v1142
  %v1144 = vsel %vm857, %v1068, 0.0
  %v1145 = vadd.f32 %v1143, %v1144
  %v1146 = vsel %vm857, %v1069, 0.0
  %v1147 = vadd.f32 %v1145, %v1146
  %v1148 = vsel %vm857, %v1070, 0.0
  %v1149 = vadd.f32 %v1147, %v1148
  %v1150 = vsel %vm857, %v1071, 0.0
  %v1151 = vadd.f32 %v1149, %v1150
  %v1152 = vsel %vm857, %v1072, 0.0
  %v1153 = vadd.f32 %v1151, %v1152
  %v1154 = vsel %vm857, %v1073, 0.0
  %v1155 = vadd.f32 %v1153, %v1154
  %v1156 = vsel %vm857, %v1074, 0.0
  %v1157 = vadd.f32 %v1155, %v1156
  %v1158 = vsel %vm857, %v1075, 0.0
  %v1159 = vadd.f32 %v1157, %v1158
  %v1160 = vsel %vm857, %v1076, 0.0
  %v1161 = vadd.f32 %v1159, %v1160
  %v1162 = vsel %vm857, %v1077, 0.0
  %v1163 = vadd.f32 %v1161, %v1162
  %v1164 = vsel %vm857, %v1078, 0.0
  %v1165 = vadd.f32 %v1163, %v1164
  %v1166 = vsel %vm857, %v1079, 0.0
  %v1167 = vadd.f32 %v1165, %v1166
  %v1168 = vsel %vm857, %v1080, 0.0
  %v1169 = vadd.f32 %v1167, %v1168
  %v1170 = vsel %vm857, %v1081, 0.0
  %v1171 = vadd.f32 %v1169, %v1170
  %v1172 = vsel %vm857, %v1082, 0.0
  %v1173 = vadd.f32 %v1171, %v1172
  %v1174 = vsel %vm857, %v1083, 0.0
  %v1175 = vadd.f32 %v1173, %v1174
  %v1176 = vsel %vm857, %v1084, 0.0
  %v1177 = vadd.f32 %v1175, %v1176
  %v1178 = vsel %vm857, %v1085, 0.0
  %v1179 = vadd.f32 %v1177, %v1178
  %v1180 = vsel %vm857, %v1086, 0.0
  %v1181 = vadd.f32 %v1179, %v1180
  %v1182 = vsel %vm857, %v1087, 0.0
  %v1183 = vadd.f32 %v1181, %v1182
  %v1184 = vsel %vm857, %v1088, 0.0
  %v1185 = vadd.f32 %v1183, %v1184
  %v1186 = vsel %vm857, %v1089, 0.0
  %v1187 = vadd.f32 %v1185, %v1186
  %v1188 = vsel %vm857, %v1090, 0.0
  %v1189 = vadd.f32 %v1187, %v1188
  %v1190 = vsel %vm857, %v1091, 0.0
  %v1191 = vadd.f32 %v1189, %v1190
  %v1192 = vsel %vm857, %v1092, 0.0
  %v1193 = vadd.f32 %v1191, %v1192
  %v1194 = vsel %vm857, %v1093, 0.0
  %v1195 = vadd.f32 %v1193, %v1194
  %v1196 = vsel %vm857, %v1094, 0.0
  %v1197 = vadd.f32 %v1195, %v1196
  %v1198 = vsel %vm857, %v1095, 0.0
  %v1199 = vadd.f32 %v1197, %v1198
  %v1200 = vsel %vm857, %v1096, 0.0
  %v1201 = vadd.f32 %v1199, %v1200
  %v1202 = vsel %vm857, %v1097, 0.0
  %v1203 = vadd.f32 %v1201, %v1202
  %v1204 = vsel %vm857, %v1098, 0.0
  %v1205 = vadd.f32 %v1203, %v1204
  %v1206 = vsel %vm857, %v1099, 0.0
  %v1207 = vadd.f32 %v1205, %v1206
  %v1208 = vsel %vm857, %v1100, 0.0
  %v1209 = vadd.f32 %v1207, %v1208
  %v1210 = vsel %vm857, %v1101, 0.0
  %v1211 = vadd.f32 %v1209, %v1210
  %v1212 = vsel %vm857, %v1102, 0.0
  %v1213 = vadd.f32 %v1211, %v1212
  %v1214 = vsel %vm857, %v1103, 0.0
  %v1215 = vadd.f32 %v1213, %v1214
  %v1216 = vsel %vm857, %v1104, 0.0
  %v1217 = vadd.f32 %v1215, %v1216
  %v1218 = vsel %vm857, %v1105, 0.0
  %v1219 = vadd.f32 %v1217, %v1218
  %v1220 = vsel %vm857, %v1106, 0.0
  %v1221 = vadd.f32 %v1219, %v1220
  %v1222 = vsel %vm857, %v1107, 0.0
  %v1223 = vadd.f32 %v1221, %v1222
  %v1224 = vsel %vm857, %v1108, 0.0
  %v1225 = vadd.f32 %v1223, %v1224
  %v1226 = vsel %vm857, %v1109, 0.0
  %v1227 = vadd.f32 %v1225, %v1226
  %v1228 = vsel %vm857, %v1110, 0.0
  %v1229 = vadd.f32 %v1227, %v1228
  %v1230 = vsel %vm857, %v1111, 0.0
  %v1231 = vadd.f32 %v1229, %v1230
  %v1232 = vsel %vm857, %v1112, 0.0
  %v1233 = vadd.f32 %v1231, %v1232
  %v1234 = vsel %vm857, %v1113, 0.0
  %v1235 = vadd.f32 %v1233, %v1234
  %v1236 = vsel %vm857, %v1114, 0.0
  %v1237 = vadd.f32 %v1235, %v1236
  %v1238 = vsel %vm857, %v1115, 0.0
  %v1239 = vadd.f32 %v1237, %v1238
  %v1240 = vsel %vm857, %v1116, 0.0
  %v1241 = vadd.f32 %v1239, %v1240
  %v1242 = vsel %vm857, %v1117, 0.0
  %v1243 = vadd.f32 %v1241, %v1242
  %v1244 = vsel %vm857, %v1118, 0.0
  %v1245 = vadd.f32 %v1243, %v1244
  %v1246 = vrot.slane %v1245, 4
  %v1247 = vadd.f32 %v1245, %v1246
  %v1248 = vrot.slane %v1247, 2
  %v1249 = vadd.f32 %v1247, %v1248
  %v1250 = vrot.slane %v1249, 1
  %v1251 = vadd.f32 %v1249, %v1250
  %p1252 = scmp.eq.s32.totalorder 0, 0
  // Predicated region
  $region10: #{resnet_generator_forward.29} parent=0 // pred_check
    %p1253 = pneg %p1252
  $region11: #{resnet_generator_forward.29} parent=0 // pred_check_branch
    %1255 = sbr.rel (%p1253) target = $region13
  $region12: #{resnet_generator_forward.29} parent=0 // pred_region
    %vm1256 = vcmask 57344
    %1257 = vst.msk [vmem:[%s3] sm:$0x1] %vm1256, %v1054
    %1258 = vst.msk [vmem:[%s4] sm:$0x1] %vm1256, %v1251
  $region13: #{resnet_generator_forward.29} parent=0 // pred_fallthru
    _
  %p1259 = scmp.ne.s32.totalorder 0, 0
  // Predicated region
  $region14: #{resnet_generator_forward.29} parent=0 // pred_check
    %p1260 = pneg %p1259
  $region15: #{resnet_generator_forward.29} parent=0 // pred_check_branch
    %1262 = sbr.rel (%p1260) target = $region17
  $region16: #{resnet_generator_forward.29} parent=0 // pred_region
    %v1263 = vld [vmem:[%s3] sm:$0x1]
    %v1264 = vadd.f32 %v1263, %v1054
    %vm1265 = vcmask 57344
    %1266 = vst.msk [vmem:[%s3] sm:$0x1] %vm1265, %v1264
    %v1267 = vld [vmem:[%s4] sm:$0x1]
    %v1268 = vadd.f32 %v1267, %v1251
    %1269 = vst.msk [vmem:[%s4] sm:$0x1] %vm1265, %v1268
  $region17: #{resnet_generator_forward.29} parent=0 // pred_fallthru
    _
  // Predicated region
  $region18: #{resnet_generator_forward.29} parent=0 // pred_check
    _
  $region19: #{resnet_generator_forward.29} parent=0 // pred_check_branch
    %1271 = sbr.rel (0) target = $region21
  $region20: #{resnet_generator_forward.29} parent=0 // pred_region
    _
  $region21: #{resnet_generator_forward.29} parent=0 // pred_fallthru
    _
  // Predicated region
  $region22: #{resnet_generator_forward.29} parent=0 // pred_check
    _
  $region23: #{resnet_generator_forward.29} parent=0 // pred_check_branch
    %1273 = sbr.rel (0) target = $region25
  $region24: #{resnet_generator_forward.29} parent=0 // pred_region
    _
  $region25: #{resnet_generator_forward.29} parent=0 // pred_fallthru
    _
  // Predicated region
  $region26: #{resnet_generator_forward.29} parent=0 // pred_check
    _
  $region27: #{resnet_generator_forward.29} parent=0 // pred_check_branch
    %1275 = sbr.rel (0) target = $region29
  $region28: #{resnet_generator_forward.29} parent=0 // pred_region
    _
  $region29: #{resnet_generator_forward.29} parent=0 // pred_fallthru
    _
  // Predicated region
  $region30: #{resnet_generator_forward.29} parent=0 // pred_check
    _
  $region31: #{resnet_generator_forward.29} parent=0 // pred_check_branch
    %1277 = sbr.rel (0) target = $region33
  $region32: #{resnet_generator_forward.29} parent=0 // pred_region
    _
  $region33: #{resnet_generator_forward.29} parent=0 // pred_fallthru
    _
  // Predicated region
  $region34: #{resnet_generator_forward.29} parent=0 // pred_check
    _
  $region35: #{resnet_generator_forward.29} parent=0 // pred_check_branch
    %1279 = sbr.rel (0) target = $region37
  $region36: #{resnet_generator_forward.29} parent=0 // pred_region
    _
  $region37: #{resnet_generator_forward.29} parent=0 // pred_fallthru
    _
  // Predicated region
  $region38: #{resnet_generator_forward.29} parent=0 // pred_check
    _
  $region39: #{resnet_generator_forward.29} parent=0 // pred_check_branch
    %1281 = sbr.rel (0) target = $region41
  $region40: #{resnet_generator_forward.29} parent=0 // pred_region
    _
  $region41: #{resnet_generator_forward.29} parent=0 // pred_fallthru
    _

// kernel: resnet_generator_forward.31
$region0: #{resnet_generator_forward.31}
  #allocation0 [shape = 'u32[]', space=smem, size = 0x4, offset = 0x4, fixed_abs, tag = 'smem constant byte address 0x4 - core index']
  #allocation1 [shape = 'u32[144,128]{1,0:T(1,128)}', space=vmem, size = 0x12000, scoped, tag = 'internal scratch']
  %s0 = inlined_call_operand.vmem [shape: bf16[128,72], index: 0, kind: input, shape index: {}]
  %s1 = inlined_call_operand.vmem [shape: bf16[72,16], index: 1, kind: input, shape index: {}]
  %s2 = inlined_call_operand.vmem [shape: f32[128,16], index: 2, kind: output, shape index: {0}]
  %s3 = inlined_call_operand.vmem [shape: f32[1,16], index: 3, kind: output, shape index: {1}]
  %s4 = inlined_call_operand.vmem [shape: f32[1,16], index: 4, kind: output, shape index: {2}]
  %5 = xla_tuple %s2, %s3, %s4
  %s6 = sld [smem:[#allocation0]]
  $region42: #{resnet_generator_forward.31} parent=0
    _
  %s8 = ssub.s32 1, %s6
  %s9 = scalar_select 0, %s8, %s6
  // Predicated region
  $region2: #{resnet_generator_forward.31} parent=0 // pred_check
    _
  $region3: #{resnet_generator_forward.31} parent=0 // pred_check_branch
    %11 = sbr.rel (0) target = $region5
  $region4: #{resnet_generator_forward.31} parent=0 // pred_region
    _
  $region5: #{resnet_generator_forward.31} parent=0 // pred_fallthru
    _
  // Predicated region
  $region6: #{resnet_generator_forward.31} parent=0 // pred_check
    _
  $region7: #{resnet_generator_forward.31} parent=0 // pred_check_branch
    %13 = sbr.rel (0) target = $region9
  $region8: #{resnet_generator_forward.31} parent=0 // pred_region
    _
  $region9: #{resnet_generator_forward.31} parent=0 // pred_fallthru
    _
  %v15 = vld [vmem:[%s0] sm:$0xf]
  %v16 = vld [vmem:[%s0 + $0x4] sm:$0xf]
  %v17 = vld [vmem:[%s0 + $0x8] sm:$0xf]
  %v18 = vld [vmem:[%s0 + $0xc] sm:$0xf]
  %v19 = vld [vmem:[%s0 + $0x10] sm:$0xf]
  %v20 = vld [vmem:[%s0 + $0x14] sm:$0xf]
  %v21 = vld [vmem:[%s0 + $0x18] sm:$0xf]
  %v22 = vld [vmem:[%s0 + $0x1c] sm:$0xf]
  %v23 = vld [vmem:[%s0 + $0x20] sm:$0xf]
  %v24 = vld [vmem:[%s0 + $0x24] sm:$0xf]
  %v25 = vld [vmem:[%s0 + $0x28] sm:$0xf]
  %v26 = vld [vmem:[%s0 + $0x2c] sm:$0xf]
  %v27 = vld [vmem:[%s0 + $0x30] sm:$0xf]
  %v28 = vld [vmem:[%s0 + $0x34] sm:$0xf]
  %v29 = vld [vmem:[%s0 + $0x38] sm:$0xf]
  %v30 = vld [vmem:[%s0 + $0x3c] sm:$0xf]
  %v31 = vld [vmem:[%s1] sm:$0xf]
  %v32 = vld [vmem:[%s1 + $0x4] sm:$0xf]
  %v33 = vld [vmem:[%s1 + $0x8] sm:$0xf]
  %v34 = vld [vmem:[%s1 + $0xc] sm:$0xf]
  %v35 = vld [vmem:[%s1 + $0x10] sm:$0xf]
  %v36 = vld [vmem:[%s1 + $0x14] sm:$0xf]
  %v37 = vld [vmem:[%s1 + $0x18] sm:$0xf]
  %v38 = vld [vmem:[%s1 + $0x1c] sm:$0xf]
  %v39 = vld [vmem:[%s1 + $0x20] sm:$0xf]
  %v56 = vunpack.c.l.b16 %v15
  %v57 = vunpack.c.l.b16 %v16
  %v58 = vunpack.c.l.b16 %v17
  %v59 = vunpack.c.l.b16 %v18
  %v60 = vunpack.c.l.b16 %v19
  %v61 = vunpack.c.l.b16 %v20
  %v62 = vunpack.c.l.b16 %v21
  %v63 = vunpack.c.l.b16 %v22
  %v64 = vunpack.c.l.b16 %v23
  %v65 = vunpack.c.l.b16 %v24
  %v66 = vunpack.c.l.b16 %v25
  %v67 = vunpack.c.l.b16 %v26
  %v68 = vunpack.c.l.b16 %v27
  %v69 = vunpack.c.l.b16 %v28
  %v70 = vunpack.c.l.b16 %v29
  %v71 = vunpack.c.l.b16 %v30
  %v72 = vpack.c.b16 %v57, %v56
  %v73 = vpack.c.b16 %v59, %v58
  %v74 = vpack.c.b16 %v61, %v60
  %v75 = vpack.c.b16 %v63, %v62
  %v76 = vpack.c.b16 %v65, %v64
  %v77 = vpack.c.b16 %v67, %v66
  %v78 = vpack.c.b16 %v69, %v68
  %v79 = vpack.c.b16 %v71, %v70
  %v89 = vunpack.c.l.b16 %v31
  %v90 = vunpack.c.l.b16 %v32
  %v91 = vunpack.c.l.b16 %v33
  %v92 = vunpack.c.l.b16 %v34
  %v93 = vunpack.c.l.b16 %v35
  %v94 = vunpack.c.l.b16 %v36
  %v95 = vunpack.c.l.b16 %v37
  %v96 = vunpack.c.l.b16 %v38
  %v97 = vunpack.c.l.b16 %v39
  %v98 = vpack.c.b16 %v90, %v89
  %v99 = vpack.c.b16 %v92, %v91
  %v100 = vpack.c.b16 %v94, %v93
  %v101 = vpack.c.b16 %v96, %v95
  %v102 = vpack.c.b16 %v97, %v97
  %vm107 = vcmask 588800
  %v109 = vsel %vm107, %v72, 0
  %v112 = vsel %vm107, %v73, 0
  %v115 = vsel %vm107, %v74, 0
  %v118 = vsel %vm107, %v75, 0
  %v121 = vsel %vm107, %v76, 0
  %v124 = vsel %vm107, %v77, 0
  %v127 = vsel %vm107, %v78, 0
  %v130 = vsel %vm107, %v79, 0
  %vm132 = vcmask 1043456
  %v134 = vsel %vm132, %v102, 0
  %136 = vmatprep.subr.bf16.mxu0 0
  %137 = vmatpush1.bf16.msra.mxu0 %v98
  %138 = vmatprep.subr.bf16.mxu0 0
  %139 = vmatpush1.bf16.msra.mxu0 %v99
  %140 = vmatprep.subr.bf16.mxu0 0
  %141 = vmatpush1.bf16.msra.mxu0 %v100
  %142 = vmatprep.subr.bf16.mxu0 0
  %143 = vmatpush1.bf16.msra.mxu0 %v101
  %144 = vmatprep.subr.bf16.mxu0 0
  %145 = vmatpush1.bf16.msra.mxu0 %v134
  %146 = vmatprep.subr.bf16.mxu0 0
  %147 = vmatpush1.bf16.msra.mxu0 0
  %148 = vmatprep.subr.bf16.mxu0 0
  %149 = vmatpush1.bf16.msra.mxu0 0
  %150 = vmatprep.subr.bf16.mxu0 0
  %151 = vmatpush1.bf16.msra.mxu0 0
  %152 = vmatprep.subr.bf16.mxu0 0
  %153 = vmatpush1.bf16.msra.mxu0 0
  %154 = vmatprep.subr.bf16.mxu0 0
  %155 = vmatpush1.bf16.msra.mxu0 0
  %156 = vmatprep.subr.bf16.mxu0 0
  %157 = vmatpush1.bf16.msra.mxu0 0
  %158 = vmatprep.subr.bf16.mxu0 0
  %159 = vmatpush1.bf16.msra.mxu0 0
  %160 = vmatprep.subr.bf16.mxu0 0
  %161 = vmatpush1.bf16.msra.mxu0 0
  %162 = vmatprep.subr.bf16.mxu0 0
  %163 = vmatpush1.bf16.msra.mxu0 0
  %164 = vmatprep.subr.bf16.mxu0 0
  %165 = vmatpush1.bf16.msra.mxu0 0
  %166 = vmatprep.subr.bf16.mxu0 0
  %167 = vmatpush1.bf16.msra.mxu0 0
  %168 = vmatprep.mubr.bf16.mxu0 0
  %169 = vmatmul.mubr.bf16.gmra.mrb[0].mxu0 %v109
  %v170 = vpop.f32.mrb[0].mxu0
  %v171 = vadd.f32 0.0, %v170
  %v172 = vpop.f32.mrb[0].mxu0
  %v173 = vpop.f32.mrb[0].mxu0
  %v174 = vadd.f32 0.0, %v173
  %v175 = vpop.f32.mrb[0].mxu0
  %176 = vmatprep.mubr.bf16.mxu0 0
  %177 = vmatmul.mubr.bf16.gmra.mrb[0].mxu0 %v112
  %v178 = vpop.f32.mrb[0].mxu0
  %v179 = vadd.f32 0.0, %v178
  %v180 = vpop.f32.mrb[0].mxu0
  %v181 = vpop.f32.mrb[0].mxu0
  %v182 = vadd.f32 0.0, %v181
  %v183 = vpop.f32.mrb[0].mxu0
  %184 = vmatprep.mubr.bf16.mxu0 0
  %185 = vmatmul.mubr.bf16.gmra.mrb[0].mxu0 %v115
  %v186 = vpop.f32.mrb[0].mxu0
  %v187 = vadd.f32 0.0, %v186
  %v188 = vpop.f32.mrb[0].mxu0
  %v189 = vpop.f32.mrb[0].mxu0
  %v190 = vadd.f32 0.0, %v189
  %v191 = vpop.f32.mrb[0].mxu0
  %192 = vmatprep.mubr.bf16.mxu0 0
  %193 = vmatmul.mubr.bf16.gmra.mrb[0].mxu0 %v118
  %v194 = vpop.f32.mrb[0].mxu0
  %v195 = vadd.f32 0.0, %v194
  %v196 = vpop.f32.mrb[0].mxu0
  %v197 = vpop.f32.mrb[0].mxu0
  %v198 = vadd.f32 0.0, %v197
  %v199 = vpop.f32.mrb[0].mxu0
  %200 = vmatprep.mubr.bf16.mxu0 0
  %201 = vmatmul.mubr.bf16.gmra.mrb[0].mxu0 %v121
  %v202 = vpop.f32.mrb[0].mxu0
  %v203 = vadd.f32 0.0, %v202
  %v204 = vpop.f32.mrb[0].mxu0
  %v205 = vpop.f32.mrb[0].mxu0
  %v206 = vadd.f32 0.0, %v205
  %v207 = vpop.f32.mrb[0].mxu0
  %208 = vmatprep.mubr.bf16.mxu0 0
  %209 = vmatmul.mubr.bf16.gmra.mrb[0].mxu0 %v124
  %v210 = vpop.f32.mrb[0].mxu0
  %v211 = vadd.f32 0.0, %v210
  %v212 = vpop.f32.mrb[0].mxu0
  %v213 = vpop.f32.mrb[0].mxu0
  %v214 = vadd.f32 0.0, %v213
  %v215 = vpop.f32.mrb[0].mxu0
  %216 = vmatprep.mubr.bf16.mxu0 0
  %217 = vmatmul.mubr.bf16.gmra.mrb[0].mxu0 %v127
  %v218 = vpop.f32.mrb[0].mxu0
  %v219 = vadd.f32 0.0, %v218
  %v220 = vpop.f32.mrb[0].mxu0
  %v221 = vpop.f32.mrb[0].mxu0
  %v222 = vadd.f32 0.0, %v221
  %v223 = vpop.f32.mrb[0].mxu0
  %224 = vmatprep.mubr.bf16.mxu0 0
  %225 = vmatmul.mubr.bf16.gmra.mrb[0].mxu0 %v130
  %v226 = vpop.f32.mrb[0].mxu0
  %v227 = vadd.f32 0.0, %v226
  %v228 = vpop.f32.mrb[0].mxu0
  %v229 = vpop.f32.mrb[0].mxu0
  %v230 = vadd.f32 0.0, %v229
  %v231 = vpop.f32.mrb[0].mxu0
  %232 = vdwg.mxu0
  %vm233 = vcmask 130048
  %234 = vst.msk [vmem:[%s2] sm:$0xff] %vm233, %v171
  %235 = vst.msk [vmem:[%s2 + $0x8] sm:$0xff] %vm233, %v174
  %236 = vst.msk [vmem:[%s2 + $0x10] sm:$0xff] %vm233, %v179
  %237 = vst.msk [vmem:[%s2 + $0x18] sm:$0xff] %vm233, %v182
  %238 = vst.msk [vmem:[%s2 + $0x20] sm:$0xff] %vm233, %v187
  %239 = vst.msk [vmem:[%s2 + $0x28] sm:$0xff] %vm233, %v190
  %240 = vst.msk [vmem:[%s2 + $0x30] sm:$0xff] %vm233, %v195
  %241 = vst.msk [vmem:[%s2 + $0x38] sm:$0xff] %vm233, %v198
  %242 = vst.msk [vmem:[%s2 + $0x40] sm:$0xff] %vm233, %v203
  %243 = vst.msk [vmem:[%s2 + $0x48] sm:$0xff] %vm233, %v206
  %244 = vst.msk [vmem:[%s2 + $0x50] sm:$0xff] %vm233, %v211
  %245 = vst.msk [vmem:[%s2 + $0x58] sm:$0xff] %vm233, %v214
  %246 = vst.msk [vmem:[%s2 + $0x60] sm:$0xff] %vm233, %v219
  %247 = vst.msk [vmem:[%s2 + $0x68] sm:$0xff] %vm233, %v222
  %248 = vst.msk [vmem:[%s2 + $0x70] sm:$0xff] %vm233, %v227
  %249 = vst.msk [vmem:[%s2 + $0x78] sm:$0xff] %vm233, %v230
  %v250 = vsel %vm233, %v171, 0.0
  %v251 = vsel %vm233, %v174, 0.0
  %v252 = vadd.f32 %v250, %v251
  %v253 = vsel %vm233, %v179, 0.0
  %v254 = vadd.f32 %v252, %v253
  %v255 = vsel %vm233, %v182, 0.0
  %v256 = vadd.f32 %v254, %v255
  %v257 = vsel %vm233, %v187, 0.0
  %v258 = vadd.f32 %v256, %v257
  %v259 = vsel %vm233, %v190, 0.0
  %v260 = vadd.f32 %v258, %v259
  %v261 = vsel %vm233, %v195, 0.0
  %v262 = vadd.f32 %v260, %v261
  %v263 = vsel %vm233, %v198, 0.0
  %v264 = vadd.f32 %v262, %v263
  %v265 = vsel %vm233, %v203, 0.0
  %v266 = vadd.f32 %v264, %v265
  %v267 = vsel %vm233, %v206, 0.0
  %v268 = vadd.f32 %v266, %v267
  %v269 = vsel %vm233, %v211, 0.0
  %v270 = vadd.f32 %v268, %v269
  %v271 = vsel %vm233, %v214, 0.0
  %v272 = vadd.f32 %v270, %v271
  %v273 = vsel %vm233, %v219, 0.0
  %v274 = vadd.f32 %v272, %v273
  %v275 = vsel %vm233, %v222, 0.0
  %v276 = vadd.f32 %v274, %v275
  %v277 = vsel %vm233, %v227, 0.0
  %v278 = vadd.f32 %v276, %v277
  %v279 = vsel %vm233, %v230, 0.0
  %v280 = vadd.f32 %v278, %v279
  %v281 = vrot.slane %v280, 4
  %v282 = vadd.f32 %v280, %v281
  %v283 = vrot.slane %v282, 2
  %v284 = vadd.f32 %v282, %v283
  %v285 = vrot.slane %v284, 1
  %v286 = vadd.f32 %v284, %v285
  %v287 = vmul.f32 %v171, %v171
  %v288 = vmul.f32 %v174, %v174
  %v289 = vmul.f32 %v179, %v179
  %v290 = vmul.f32 %v182, %v182
  %v291 = vmul.f32 %v187, %v187
  %v292 = vmul.f32 %v190, %v190
  %v293 = vmul.f32 %v195, %v195
  %v294 = vmul.f32 %v198, %v198
  %v295 = vmul.f32 %v203, %v203
  %v296 = vmul.f32 %v206, %v206
  %v297 = vmul.f32 %v211, %v211
  %v298 = vmul.f32 %v214, %v214
  %v299 = vmul.f32 %v219, %v219
  %v300 = vmul.f32 %v222, %v222
  %v301 = vmul.f32 %v227, %v227
  %v302 = vmul.f32 %v230, %v230
  %v303 = vsel %vm233, %v287, 0.0
  %v304 = vsel %vm233, %v288, 0.0
  %v305 = vadd.f32 %v303, %v304
  %v306 = vsel %vm233, %v289, 0.0
  %v307 = vadd.f32 %v305, %v306
  %v308 = vsel %vm233, %v290, 0.0
  %v309 = vadd.f32 %v307, %v308
  %v310 = vsel %vm233, %v291, 0.0
  %v311 = vadd.f32 %v309, %v310
  %v312 = vsel %vm233, %v292, 0.0
  %v313 = vadd.f32 %v311, %v312
  %v314 = vsel %vm233, %v293, 0.0
  %v315 = vadd.f32 %v313, %v314
  %v316 = vsel %vm233, %v294, 0.0
  %v317 = vadd.f32 %v315, %v316
  %v318 = vsel %vm233, %v295, 0.0
  %v319 = vadd.f32 %v317, %v318
  %v320 = vsel %vm233, %v296, 0.0
  %v321 = vadd.f32 %v319, %v320
  %v322 = vsel %vm233, %v297, 0.0
  %v323 = vadd.f32 %v321, %v322
  %v324 = vsel %vm233, %v298, 0.0
  %v325 = vadd.f32 %v323, %v324
  %v326 = vsel %vm233, %v299, 0.0
  %v327 = vadd.f32 %v325, %v326
  %v328 = vsel %vm233, %v300, 0.0
  %v329 = vadd.f32 %v327, %v328
  %v330 = vsel %vm233, %v301, 0.0
  %v331 = vadd.f32 %v329, %v330
  %v332 = vsel %vm233, %v302, 0.0
  %v333 = vadd.f32 %v331, %v332
  %v334 = vrot.slane %v333, 4
  %v335 = vadd.f32 %v333, %v334
  %v336 = vrot.slane %v335, 2
  %v337 = vadd.f32 %v335, %v336
  %v338 = vrot.slane %v337, 1
  %v339 = vadd.f32 %v337, %v338
  %p340 = scmp.eq.s32.totalorder 0, 0
  // Predicated region
  $region10: #{resnet_generator_forward.31} parent=0 // pred_check
    %p341 = pneg %p340
  $region11: #{resnet_generator_forward.31} parent=0 // pred_check_branch
    %343 = sbr.rel (%p341) target = $region13
  $region12: #{resnet_generator_forward.31} parent=0 // pred_region
    %vm344 = vcmask 122880
    %345 = vst.msk [vmem:[%s3] sm:$0x1] %vm344, %v286
    %346 = vst.msk [vmem:[%s4] sm:$0x1] %vm344, %v339
  $region13: #{resnet_generator_forward.31} parent=0 // pred_fallthru
    _
  %p347 = scmp.ne.s32.totalorder 0, 0
  // Predicated region
  $region14: #{resnet_generator_forward.31} parent=0 // pred_check
    %p348 = pneg %p347
  $region15: #{resnet_generator_forward.31} parent=0 // pred_check_branch
    %350 = sbr.rel (%p348) target = $region17
  $region16: #{resnet_generator_forward.31} parent=0 // pred_region
    %v351 = vld [vmem:[%s3] sm:$0x1]
    %v352 = vadd.f32 %v351, %v286
    %vm353 = vcmask 122880
    %354 = vst.msk [vmem:[%s3] sm:$0x1] %vm353, %v352
    %v355 = vld [vmem:[%s4] sm:$0x1]
    %v356 = vadd.f32 %v355, %v339
    %357 = vst.msk [vmem:[%s4] sm:$0x1] %vm353, %v356
  $region17: #{resnet_generator_forward.31} parent=0 // pred_fallthru
    _
  // Predicated region
  $region18: #{resnet_generator_forward.31} parent=0 // pred_check
    _
  $region19: #{resnet_generator_forward.31} parent=0 // pred_check_branch
    %359 = sbr.rel (0) target = $region21
  $region20: #{resnet_generator_forward.31} parent=0 // pred_region
    _
  $region21: #{resnet_generator_forward.31} parent=0 // pred_fallthru
    _
  // Predicated region
  $region22: #{resnet_generator_forward.31} parent=0 // pred_check
    _
  $region23: #{resnet_generator_forward.31} parent=0 // pred_check_branch
    %361 = sbr.rel (0) target = $region25
  $region24: #{resnet_generator_forward.31} parent=0 // pred_region
    _
  $region25: #{resnet_generator_forward.31} parent=0 // pred_fallthru
    _
  // Predicated region
  $region26: #{resnet_generator_forward.31} parent=0 // pred_check
    _
  $region27: #{resnet_generator_forward.31} parent=0 // pred_check_branch
    %363 = sbr.rel (0) target = $region29
  $region28: #{resnet_generator_forward.31} parent=0 // pred_region
    _
  $region29: #{resnet_generator_forward.31} parent=0 // pred_fallthru
    _
  // Predicated region
  $region30: #{resnet_generator_forward.31} parent=0 // pred_check
    _
  $region31: #{resnet_generator_forward.31} parent=0 // pred_check_branch
    %365 = sbr.rel (0) target = $region33
  $region32: #{resnet_generator_forward.31} parent=0 // pred_region
    _
  $region33: #{resnet_generator_forward.31} parent=0 // pred_fallthru
    _
  // Predicated region
  $region34: #{resnet_generator_forward.31} parent=0 // pred_check
    _
  $region35: #{resnet_generator_forward.31} parent=0 // pred_check_branch
    %367 = sbr.rel (0) target = $region37
  $region36: #{resnet_generator_forward.31} parent=0 // pred_region
    _
  $region37: #{resnet_generator_forward.31} parent=0 // pred_fallthru
    _
  // Predicated region
  $region38: #{resnet_generator_forward.31} parent=0 // pred_check
    _
  $region39: #{resnet_generator_forward.31} parent=0 // pred_check_branch
    %369 = sbr.rel (0) target = $region41
  $region40: #{resnet_generator_forward.31} parent=0 // pred_region
    _
  $region41: #{resnet_generator_forward.31} parent=0 // pred_fallthru
    _

// kernel: resnet_generator_forward.32
$region0: #{resnet_generator_forward.32}
  #allocation0 [shape = 'u32[]', space=smem, size = 0x4, offset = 0x4, fixed_abs, tag = 'smem constant byte address 0x4 - core index']
  #allocation1 [shape = 'u32[144,128]{1,0:T(1,128)}', space=vmem, size = 0x12000, scoped, tag = 'internal scratch']
  %s0 = inlined_call_operand.vmem [shape: f32[128,16], index: 0, kind: input, shape index: {}]
  %s1 = inlined_call_operand.vmem [shape: f32[1,16], index: 1, kind: input, shape index: {}]
  %s2 = inlined_call_operand.vmem [shape: f32[1,16], index: 2, kind: input, shape index: {}]
  %s3 = inlined_call_operand.vmem [shape: f32[1,16], index: 3, kind: input, shape index: {}]
  %s4 = inlined_call_operand.vmem [shape: f32[1,16], index: 4, kind: input, shape index: {}]
  %s5 = inlined_call_operand.vmem [shape: f32[128,16], index: 5, kind: output, shape index: {}]
  %s6 = sld [smem:[#allocation0]]
  $region30: #{resnet_generator_forward.32} parent=0
    _
  %s8 = ssub.s32 1, %s6
  %s9 = scalar_select 0, %s8, %s6
  // Predicated region
  $region2: #{resnet_generator_forward.32} parent=0 // pred_check
    _
  $region3: #{resnet_generator_forward.32} parent=0 // pred_check_branch
    %11 = sbr.rel (0) target = $region5
  $region4: #{resnet_generator_forward.32} parent=0 // pred_region
    _
  $region5: #{resnet_generator_forward.32} parent=0 // pred_fallthru
    _
  // Predicated region
  $region6: #{resnet_generator_forward.32} parent=0 // pred_check
    _
  $region7: #{resnet_generator_forward.32} parent=0 // pred_check_branch
    %13 = sbr.rel (0) target = $region9
  $region8: #{resnet_generator_forward.32} parent=0 // pred_region
    _
  $region9: #{resnet_generator_forward.32} parent=0 // pred_fallthru
    _
  // Predicated region
  $region10: #{resnet_generator_forward.32} parent=0 // pred_check
    _
  $region11: #{resnet_generator_forward.32} parent=0 // pred_check_branch
    %15 = sbr.rel (0) target = $region13
  $region12: #{resnet_generator_forward.32} parent=0 // pred_region
    _
  $region13: #{resnet_generator_forward.32} parent=0 // pred_fallthru
    _
  // Predicated region
  $region14: #{resnet_generator_forward.32} parent=0 // pred_check
    _
  $region15: #{resnet_generator_forward.32} parent=0 // pred_check_branch
    %17 = sbr.rel (0) target = $region17
  $region16: #{resnet_generator_forward.32} parent=0 // pred_region
    _
  $region17: #{resnet_generator_forward.32} parent=0 // pred_fallthru
    _
  // Predicated region
  $region18: #{resnet_generator_forward.32} parent=0 // pred_check
    _
  $region19: #{resnet_generator_forward.32} parent=0 // pred_check_branch
    %19 = sbr.rel (0) target = $region21
  $region20: #{resnet_generator_forward.32} parent=0 // pred_region
    _
  $region21: #{resnet_generator_forward.32} parent=0 // pred_fallthru
    _
  %v20 = vld [vmem:[%s1] sm:$0x1]
  %v21 = vmul.f32 %v20, 0.0078125
  %v22 = vld [vmem:[%s2] sm:$0x1]
  %v23 = vmul.f32 %v22, 0.0078125
  %v24 = vmul.f32 %v21, %v21
  %v25 = vsub.f32 %v23, %v24
  %v26 = vadd.f32 %v25, 1e-05
  %v27 = vrsqrt.pop %v26
  %v28 = vld [vmem:[%s3] sm:$0x1]
  %v29 = vmul.f32 %v27, %v28
  %v30 = vld [vmem:[%s4] sm:$0x1]
  %v31 = vmul.f32 %v21, %v29
  %v32 = vsub.f32 %v30, %v31
  %v33 = vld [vmem:[%s0] sm:$0xff]
  %v34 = vld [vmem:[%s0 + $0x8] sm:$0xff]
  %v35 = vld [vmem:[%s0 + $0x10] sm:$0xff]
  %v36 = vld [vmem:[%s0 + $0x18] sm:$0xff]
  %v37 = vld [vmem:[%s0 + $0x20] sm:$0xff]
  %v38 = vld [vmem:[%s0 + $0x28] sm:$0xff]
  %v39 = vld [vmem:[%s0 + $0x30] sm:$0xff]
  %v40 = vld [vmem:[%s0 + $0x38] sm:$0xff]
  %v41 = vld [vmem:[%s0 + $0x40] sm:$0xff]
  %v42 = vld [vmem:[%s0 + $0x48] sm:$0xff]
  %v43 = vld [vmem:[%s0 + $0x50] sm:$0xff]
  %v44 = vld [vmem:[%s0 + $0x58] sm:$0xff]
  %v45 = vld [vmem:[%s0 + $0x60] sm:$0xff]
  %v46 = vld [vmem:[%s0 + $0x68] sm:$0xff]
  %v47 = vld [vmem:[%s0 + $0x70] sm:$0xff]
  %v48 = vld [vmem:[%s0 + $0x78] sm:$0xff]
  %v50 = vlaneseq
  %v51 = vshrl.u32 %v50, 7
  %v52 = vsub.s32 0, %v51
  %v53 = vrot.slane %v29, %v52
  %v55 = vmul.f32 %v33, %v53
  %v56 = vmul.f32 %v34, %v53
  %v57 = vmul.f32 %v35, %v53
  %v58 = vmul.f32 %v36, %v53
  %v59 = vmul.f32 %v37, %v53
  %v60 = vmul.f32 %v38, %v53
  %v61 = vmul.f32 %v39, %v53
  %v62 = vmul.f32 %v40, %v53
  %v63 = vmul.f32 %v41, %v53
  %v64 = vmul.f32 %v42, %v53
  %v65 = vmul.f32 %v43, %v53
  %v66 = vmul.f32 %v44, %v53
  %v67 = vmul.f32 %v45, %v53
  %v68 = vmul.f32 %v46, %v53
  %v69 = vmul.f32 %v47, %v53
  %v70 = vmul.f32 %v48, %v53
  %v72 = vlaneseq
  %v73 = vshrl.u32 %v72, 7
  %v74 = vsub.s32 0, %v73
  %v75 = vrot.slane %v32, %v74
  %v77 = vadd.f32 %v55, %v75
  %v78 = vadd.f32 %v56, %v75
  %v79 = vadd.f32 %v57, %v75
  %v80 = vadd.f32 %v58, %v75
  %v81 = vadd.f32 %v59, %v75
  %v82 = vadd.f32 %v60, %v75
  %v83 = vadd.f32 %v61, %v75
  %v84 = vadd.f32 %v62, %v75
  %v85 = vadd.f32 %v63, %v75
  %v86 = vadd.f32 %v64, %v75
  %v87 = vadd.f32 %v65, %v75
  %v88 = vadd.f32 %v66, %v75
  %v89 = vadd.f32 %v67, %v75
  %v90 = vadd.f32 %v68, %v75
  %v91 = vadd.f32 %v69, %v75
  %v92 = vadd.f32 %v70, %v75
  %v93 = vmax.f32 %v77, 0.0
  %v94 = vmax.f32 %v78, 0.0
  %v95 = vmax.f32 %v79, 0.0
  %v96 = vmax.f32 %v80, 0.0
  %v97 = vmax.f32 %v81, 0.0
  %v98 = vmax.f32 %v82, 0.0
  %v99 = vmax.f32 %v83, 0.0
  %v100 = vmax.f32 %v84, 0.0
  %v101 = vmax.f32 %v85, 0.0
  %v102 = vmax.f32 %v86, 0.0
  %v103 = vmax.f32 %v87, 0.0
  %v104 = vmax.f32 %v88, 0.0
  %v105 = vmax.f32 %v89, 0.0
  %v106 = vmax.f32 %v90, 0.0
  %v107 = vmax.f32 %v91, 0.0
  %v108 = vmax.f32 %v92, 0.0
  %vm109 = vcmask 130048
  %110 = vst.msk [vmem:[%s5] sm:$0xff] %vm109, %v93
  %111 = vst.msk [vmem:[%s5 + $0x8] sm:$0xff] %vm109, %v94
  %112 = vst.msk [vmem:[%s5 + $0x10] sm:$0xff] %vm109, %v95
  %113 = vst.msk [vmem:[%s5 + $0x18] sm:$0xff] %vm109, %v96
  %114 = vst.msk [vmem:[%s5 + $0x20] sm:$0xff] %vm109, %v97
  %115 = vst.msk [vmem:[%s5 + $0x28] sm:$0xff] %vm109, %v98
  %116 = vst.msk [vmem:[%s5 + $0x30] sm:$0xff] %vm109, %v99
  %117 = vst.msk [vmem:[%s5 + $0x38] sm:$0xff] %vm109, %v100
  %118 = vst.msk [vmem:[%s5 + $0x40] sm:$0xff] %vm109, %v101
  %119 = vst.msk [vmem:[%s5 + $0x48] sm:$0xff] %vm109, %v102
  %120 = vst.msk [vmem:[%s5 + $0x50] sm:$0xff] %vm109, %v103
  %121 = vst.msk [vmem:[%s5 + $0x58] sm:$0xff] %vm109, %v104
  %122 = vst.msk [vmem:[%s5 + $0x60] sm:$0xff] %vm109, %v105
  %123 = vst.msk [vmem:[%s5 + $0x68] sm:$0xff] %vm109, %v106
  %124 = vst.msk [vmem:[%s5 + $0x70] sm:$0xff] %vm109, %v107
  %125 = vst.msk [vmem:[%s5 + $0x78] sm:$0xff] %vm109, %v108
  // Predicated region
  $region22: #{resnet_generator_forward.32} parent=0 // pred_check
    _
  $region23: #{resnet_generator_forward.32} parent=0 // pred_check_branch
    %127 = sbr.rel (0) target = $region25
  $region24: #{resnet_generator_forward.32} parent=0 // pred_region
    _
  $region25: #{resnet_generator_forward.32} parent=0 // pred_fallthru
    _
  // Predicated region
  $region26: #{resnet_generator_forward.32} parent=0 // pred_check
    _
  $region27: #{resnet_generator_forward.32} parent=0 // pred_check_branch
    %129 = sbr.rel (0) target = $region29
  $region28: #{resnet_generator_forward.32} parent=0 // pred_region
    _
  $region29: #{resnet_generator_forward.32} parent=0 // pred_fallthru
    _

// kernel: resnet_generator_forward.33
$region0: #{resnet_generator_forward.33}
  #allocation0 [shape = 'u32[]', space=smem, size = 0x4, offset = 0x4, fixed_abs, tag = 'smem constant byte address 0x4 - core index']
  #allocation1 [shape = 'u32[144,128]{1,0:T(1,128)}', space=vmem, size = 0x12000, scoped, tag = 'internal scratch']
  %s0 = inlined_call_operand.vmem [shape: bf16[32,144], index: 0, kind: input, shape index: {}]
  %s1 = inlined_call_operand.vmem [shape: bf16[144,32], index: 1, kind: input, shape index: {}]
  %s2 = inlined_call_operand.vmem [shape: f32[32,32], index: 2, kind: output, shape index: {0}]
  %s3 = inlined_call_operand.vmem [shape: f32[1,32], index: 3, kind: output, shape index: {1}]
  %s4 = inlined_call_operand.vmem [shape: f32[1,32], index: 4, kind: output, shape index: {2}]
  %5 = xla_tuple %s2, %s3, %s4
  %s6 = sld [smem:[#allocation0]]
  $region42: #{resnet_generator_forward.33} parent=0
    _
  %s8 = ssub.s32 1, %s6
  %s9 = scalar_select 0, %s8, %s6
  // Predicated region
  $region2: #{resnet_generator_forward.33} parent=0 // pred_check
    _
  $region3: #{resnet_generator_forward.33} parent=0 // pred_check_branch
    %11 = sbr.rel (0) target = $region5
  $region4: #{resnet_generator_forward.33} parent=0 // pred_region
    _
  $region5: #{resnet_generator_forward.33} parent=0 // pred_fallthru
    _
  // Predicated region
  $region6: #{resnet_generator_forward.33} parent=0 // pred_check
    _
  $region7: #{resnet_generator_forward.33} parent=0 // pred_check_branch
    %13 = sbr.rel (0) target = $region9
  $region8: #{resnet_generator_forward.33} parent=0 // pred_region
    _
  $region9: #{resnet_generator_forward.33} parent=0 // pred_fallthru
    _
  %v15 = vld [vmem:[%s0] sm:$0xff]
  %v16 = vld [vmem:[%s0 + $0x8] sm:$0xff]
  %v17 = vld [vmem:[%s0 + $0x10] sm:$0xff]
  %v18 = vld [vmem:[%s0 + $0x18] sm:$0xff]
  %v19 = vld [vmem:[%s1] sm:$0xf]
  %v20 = vld [vmem:[%s1 + $0x4] sm:$0xf]
  %v21 = vld [vmem:[%s1 + $0x8] sm:$0xf]
  %v22 = vld [vmem:[%s1 + $0xc] sm:$0xf]
  %v23 = vld [vmem:[%s1 + $0x10] sm:$0xf]
  %v24 = vld [vmem:[%s1 + $0x14] sm:$0xf]
  %v25 = vld [vmem:[%s1 + $0x18] sm:$0xf]
  %v26 = vld [vmem:[%s1 + $0x1c] sm:$0xf]
  %v27 = vld [vmem:[%s1 + $0x20] sm:$0xf]
  %v28 = vld [vmem:[%s1 + $0x24] sm:$0xf]
  %v29 = vld [vmem:[%s1 + $0x28] sm:$0xf]
  %v30 = vld [vmem:[%s1 + $0x2c] sm:$0xf]
  %v31 = vld [vmem:[%s1 + $0x30] sm:$0xf]
  %v32 = vld [vmem:[%s1 + $0x34] sm:$0xf]
  %v33 = vld [vmem:[%s1 + $0x38] sm:$0xf]
  %v34 = vld [vmem:[%s1 + $0x3c] sm:$0xf]
  %v35 = vld [vmem:[%s1 + $0x40] sm:$0xf]
  %v36 = vld [vmem:[%s1 + $0x44] sm:$0xf]
  %v41 = vunpack.c.l.b16 %v15
  %v42 = vunpack.c.h.b16 %v15
  %v43 = vunpack.c.l.b16 %v16
  %v44 = vunpack.c.h.b16 %v16
  %v45 = vunpack.c.l.b16 %v17
  %v46 = vunpack.c.h.b16 %v17
  %v47 = vunpack.c.l.b16 %v18
  %v48 = vunpack.c.h.b16 %v18
  %v49 = vpack.c.b16 %v43, %v41
  %v50 = vpack.c.b16 %v44, %v42
  %v51 = vpack.c.b16 %v47, %v45
  %v52 = vpack.c.b16 %v48, %v46
  %v73 = vunpack.c.l.b16 %v19
  %v74 = vunpack.c.l.b16 %v20
  %v75 = vunpack.c.l.b16 %v21
  %v76 = vunpack.c.l.b16 %v22
  %v77 = vunpack.c.l.b16 %v23
  %v78 = vunpack.c.l.b16 %v24
  %v79 = vunpack.c.l.b16 %v25
  %v80 = vunpack.c.l.b16 %v26
  %v81 = vunpack.c.l.b16 %v27
  %v82 = vunpack.c.l.b16 %v28
  %v83 = vunpack.c.l.b16 %v29
  %v84 = vunpack.c.l.b16 %v30
  %v85 = vunpack.c.l.b16 %v31
  %v86 = vunpack.c.l.b16 %v32
  %v87 = vunpack.c.l.b16 %v33
  %v88 = vunpack.c.l.b16 %v34
  %v89 = vunpack.c.l.b16 %v35
  %v90 = vunpack.c.l.b16 %v36
  %v91 = vpack.c.b16 %v74, %v73
  %v92 = vpack.c.b16 %v76, %v75
  %v93 = vpack.c.b16 %v78, %v77
  %v94 = vpack.c.b16 %v80, %v79
  %v95 = vpack.c.b16 %v82, %v81
  %v96 = vpack.c.b16 %v84, %v83
  %v97 = vpack.c.b16 %v86, %v85
  %v98 = vpack.c.b16 %v88, %v87
  %v99 = vpack.c.b16 %v90, %v89
  %vm109 = vcmask 130048
  %v111 = vsel %vm109, %v50, 0
  %v114 = vsel %vm109, %v52, 0
  %116 = vmatprep.subr.bf16.mxu0 0
  %117 = vmatpush1.bf16.msra.mxu0 %v91
  %118 = vmatprep.subr.bf16.mxu0 0
  %119 = vmatpush1.bf16.msra.mxu0 %v92
  %120 = vmatprep.subr.bf16.mxu0 0
  %121 = vmatpush1.bf16.msra.mxu0 %v93
  %122 = vmatprep.subr.bf16.mxu0 0
  %123 = vmatpush1.bf16.msra.mxu0 %v94
  %124 = vmatprep.subr.bf16.mxu0 0
  %125 = vmatpush1.bf16.msra.mxu0 %v95
  %126 = vmatprep.subr.bf16.mxu0 0
  %127 = vmatpush1.bf16.msra.mxu0 %v96
  %128 = vmatprep.subr.bf16.mxu0 0
  %129 = vmatpush1.bf16.msra.mxu0 %v97
  %130 = vmatprep.subr.bf16.mxu0 0
  %131 = vmatpush1.bf16.msra.mxu0 %v98
  %132 = vmatprep.subr.bf16.mxu0 0
  %133 = vmatpush1.bf16.msra.mxu0 %v99
  %134 = vmatprep.subr.bf16.mxu0 0
  %135 = vmatpush1.bf16.msra.mxu0 0
  %136 = vmatprep.subr.bf16.mxu0 0
  %137 = vmatpush1.bf16.msra.mxu0 0
  %138 = vmatprep.subr.bf16.mxu0 0
  %139 = vmatpush1.bf16.msra.mxu0 0
  %140 = vmatprep.subr.bf16.mxu0 0
  %141 = vmatpush1.bf16.msra.mxu0 0
  %142 = vmatprep.subr.bf16.mxu0 0
  %143 = vmatpush1.bf16.msra.mxu0 0
  %144 = vmatprep.subr.bf16.mxu0 0
  %145 = vmatpush1.bf16.msra.mxu0 0
  %146 = vmatprep.subr.bf16.mxu0 0
  %147 = vmatpush1.bf16.msra.mxu0 0
  %148 = vmatprep.mubr.bf16.mxu0 %v111
  %149 = vmatmul.mubr.bf16.gmra.mrb[0].mxu0 %v49
  %v150 = vpop.f32.mrb[0].mxu0
  %v151 = vadd.f32 0.0, %v150
  %v152 = vpop.f32.mrb[0].mxu0
  %v153 = vpop.f32.mrb[0].mxu0
  %v154 = vadd.f32 0.0, %v153
  %v155 = vpop.f32.mrb[0].mxu0
  %156 = vmatprep.mubr.bf16.mxu0 %v114
  %157 = vmatmul.mubr.bf16.gmra.mrb[0].mxu0 %v51
  %v158 = vpop.f32.mrb[0].mxu0
  %v159 = vadd.f32 0.0, %v158
  %v160 = vpop.f32.mrb[0].mxu0
  %v161 = vpop.f32.mrb[0].mxu0
  %v162 = vadd.f32 0.0, %v161
  %v163 = vpop.f32.mrb[0].mxu0
  %164 = vdwg.mxu0
  %vm165 = vcmask 261120
  %166 = vst.msk [vmem:[%s2] sm:$0xff] %vm165, %v151
  %167 = vst.msk [vmem:[%s2 + $0x8] sm:$0xff] %vm165, %v154
  %168 = vst.msk [vmem:[%s2 + $0x10] sm:$0xff] %vm165, %v159
  %169 = vst.msk [vmem:[%s2 + $0x18] sm:$0xff] %vm165, %v162
  %v170 = vsel %vm165, %v151, 0.0
  %v171 = vsel %vm165, %v154, 0.0
  %v172 = vadd.f32 %v170, %v171
  %v173 = vsel %vm165, %v159, 0.0
  %v174 = vadd.f32 %v172, %v173
  %v175 = vsel %vm165, %v162, 0.0
  %v176 = vadd.f32 %v174, %v175
  %v177 = vrot.slane %v176, 4
  %v178 = vadd.f32 %v176, %v177
  %v179 = vrot.slane %v178, 2
  %v180 = vadd.f32 %v178, %v179
  %v181 = vrot.slane %v180, 1
  %v182 = vadd.f32 %v180, %v181
  %v183 = vmul.f32 %v151, %v151
  %v184 = vmul.f32 %v154, %v154
  %v185 = vmul.f32 %v159, %v159
  %v186 = vmul.f32 %v162, %v162
  %v187 = vsel %vm165, %v183, 0.0
  %v188 = vsel %vm165, %v184, 0.0
  %v189 = vadd.f32 %v187, %v188
  %v190 = vsel %vm165, %v185, 0.0
  %v191 = vadd.f32 %v189, %v190
  %v192 = vsel %vm165, %v186, 0.0
  %v193 = vadd.f32 %v191, %v192
  %v194 = vrot.slane %v193, 4
  %v195 = vadd.f32 %v193, %v194
  %v196 = vrot.slane %v195, 2
  %v197 = vadd.f32 %v195, %v196
  %v198 = vrot.slane %v197, 1
  %v199 = vadd.f32 %v197, %v198
  %p200 = scmp.eq.s32.totalorder 0, 0
  // Predicated region
  $region10: #{resnet_generator_forward.33} parent=0 // pred_check
    %p201 = pneg %p200
  $region11: #{resnet_generator_forward.33} parent=0 // pred_check_branch
    %203 = sbr.rel (%p201) target = $region13
  $region12: #{resnet_generator_forward.33} parent=0 // pred_region
    %vm204 = vcmask 253952
    %205 = vst.msk [vmem:[%s3] sm:$0x1] %vm204, %v182
    %206 = vst.msk [vmem:[%s4] sm:$0x1] %vm204, %v199
  $region13: #{resnet_generator_forward.33} parent=0 // pred_fallthru
    _
  %p207 = scmp.ne.s32.totalorder 0, 0
  // Predicated region
  $region14: #{resnet_generator_forward.33} parent=0 // pred_check
    %p208 = pneg %p207
  $region15: #{resnet_generator_forward.33} parent=0 // pred_check_branch
    %210 = sbr.rel (%p208) target = $region17
  $region16: #{resnet_generator_forward.33} parent=0 // pred_region
    %v211 = vld [vmem:[%s3] sm:$0x1]
    %v212 = vadd.f32 %v211, %v182
    %vm213 = vcmask 253952
    %214 = vst.msk [vmem:[%s3] sm:$0x1] %vm213, %v212
    %v215 = vld [vmem:[%s4] sm:$0x1]
    %v216 = vadd.f32 %v215, %v199
    %217 = vst.msk [vmem:[%s4] sm:$0x1] %vm213, %v216
  $region17: #{resnet_generator_forward.33} parent=0 // pred_fallthru
    _
  // Predicated region
  $region18: #{resnet_generator_forward.33} parent=0 // pred_check
    _
  $region19: #{resnet_generator_forward.33} parent=0 // pred_check_branch
    %219 = sbr.rel (0) target = $region21
  $region20: #{resnet_generator_forward.33} parent=0 // pred_region
    _
  $region21: #{resnet_generator_forward.33} parent=0 // pred_fallthru
    _
  // Predicated region
  $region22: #{resnet_generator_forward.33} parent=0 // pred_check
    _
  $region23: #{resnet_generator_forward.33} parent=0 // pred_check_branch
    %221 = sbr.rel (0) target = $region25
  $region24: #{resnet_generator_forward.33} parent=0 // pred_region
    _
  $region25: #{resnet_generator_forward.33} parent=0 // pred_fallthru
    _
  // Predicated region
  $region26: #{resnet_generator_forward.33} parent=0 // pred_check
    _
  $region27: #{resnet_generator_forward.33} parent=0 // pred_check_branch
    %223 = sbr.rel (0) target = $region29
  $region28: #{resnet_generator_forward.33} parent=0 // pred_region
    _
  $region29: #{resnet_generator_forward.33} parent=0 // pred_fallthru
    _
  // Predicated region
  $region30: #{resnet_generator_forward.33} parent=0 // pred_check
    _
  $region31: #{resnet_generator_forward.33} parent=0 // pred_check_branch
    %225 = sbr.rel (0) target = $region33
  $region32: #{resnet_generator_forward.33} parent=0 // pred_region
    _
  $region33: #{resnet_generator_forward.33} parent=0 // pred_fallthru
    _
  // Predicated region
  $region34: #{resnet_generator_forward.33} parent=0 // pred_check
    _
  $region35: #{resnet_generator_forward.33} parent=0 // pred_check_branch
    %227 = sbr.rel (0) target = $region37
  $region36: #{resnet_generator_forward.33} parent=0 // pred_region
    _
  $region37: #{resnet_generator_forward.33} parent=0 // pred_fallthru
    _
  // Predicated region
  $region38: #{resnet_generator_forward.33} parent=0 // pred_check
    _
  $region39: #{resnet_generator_forward.33} parent=0 // pred_check_branch
    %229 = sbr.rel (0) target = $region41
  $region40: #{resnet_generator_forward.33} parent=0 // pred_region
    _
  $region41: #{resnet_generator_forward.33} parent=0 // pred_fallthru
    _

// kernel: resnet_generator_forward.34
$region0: #{resnet_generator_forward.34}
  #allocation0 [shape = 'u32[]', space=smem, size = 0x4, offset = 0x4, fixed_abs, tag = 'smem constant byte address 0x4 - core index']
  #allocation1 [shape = 'u32[144,128]{1,0:T(1,128)}', space=vmem, size = 0x12000, scoped, tag = 'internal scratch']
  %s0 = inlined_call_operand.vmem [shape: f32[32,32], index: 0, kind: input, shape index: {}]
  %s1 = inlined_call_operand.vmem [shape: f32[1,32], index: 1, kind: input, shape index: {}]
  %s2 = inlined_call_operand.vmem [shape: f32[1,32], index: 2, kind: input, shape index: {}]
  %s3 = inlined_call_operand.vmem [shape: f32[1,32], index: 3, kind: input, shape index: {}]
  %s4 = inlined_call_operand.vmem [shape: f32[1,32], index: 4, kind: input, shape index: {}]
  %s5 = inlined_call_operand.vmem [shape: f32[32,32], index: 5, kind: output, shape index: {}]
  %s6 = sld [smem:[#allocation0]]
  $region30: #{resnet_generator_forward.34} parent=0
    _
  %s8 = ssub.s32 1, %s6
  %s9 = scalar_select 0, %s8, %s6
  // Predicated region
  $region2: #{resnet_generator_forward.34} parent=0 // pred_check
    _
  $region3: #{resnet_generator_forward.34} parent=0 // pred_check_branch
    %11 = sbr.rel (0) target = $region5
  $region4: #{resnet_generator_forward.34} parent=0 // pred_region
    _
  $region5: #{resnet_generator_forward.34} parent=0 // pred_fallthru
    _
  // Predicated region
  $region6: #{resnet_generator_forward.34} parent=0 // pred_check
    _
  $region7: #{resnet_generator_forward.34} parent=0 // pred_check_branch
    %13 = sbr.rel (0) target = $region9
  $region8: #{resnet_generator_forward.34} parent=0 // pred_region
    _
  $region9: #{resnet_generator_forward.34} parent=0 // pred_fallthru
    _
  // Predicated region
  $region10: #{resnet_generator_forward.34} parent=0 // pred_check
    _
  $region11: #{resnet_generator_forward.34} parent=0 // pred_check_branch
    %15 = sbr.rel (0) target = $region13
  $region12: #{resnet_generator_forward.34} parent=0 // pred_region
    _
  $region13: #{resnet_generator_forward.34} parent=0 // pred_fallthru
    _
  // Predicated region
  $region14: #{resnet_generator_forward.34} parent=0 // pred_check
    _
  $region15: #{resnet_generator_forward.34} parent=0 // pred_check_branch
    %17 = sbr.rel (0) target = $region17
  $region16: #{resnet_generator_forward.34} parent=0 // pred_region
    _
  $region17: #{resnet_generator_forward.34} parent=0 // pred_fallthru
    _
  // Predicated region
  $region18: #{resnet_generator_forward.34} parent=0 // pred_check
    _
  $region19: #{resnet_generator_forward.34} parent=0 // pred_check_branch
    %19 = sbr.rel (0) target = $region21
  $region20: #{resnet_generator_forward.34} parent=0 // pred_region
    _
  $region21: #{resnet_generator_forward.34} parent=0 // pred_fallthru
    _
  %v20 = vld [vmem:[%s1] sm:$0x1]
  %v21 = vmul.f32 %v20, 0.03125
  %v22 = vld [vmem:[%s2] sm:$0x1]
  %v23 = vmul.f32 %v22, 0.03125
  %v24 = vmul.f32 %v21, %v21
  %v25 = vsub.f32 %v23, %v24
  %v26 = vadd.f32 %v25, 1e-05
  %v27 = vrsqrt.pop %v26
  %v28 = vld [vmem:[%s3] sm:$0x1]
  %v29 = vmul.f32 %v27, %v28
  %v30 = vld [vmem:[%s4] sm:$0x1]
  %v31 = vmul.f32 %v21, %v29
  %v32 = vsub.f32 %v30, %v31
  %v33 = vld [vmem:[%s0] sm:$0xff]
  %v34 = vld [vmem:[%s0 + $0x8] sm:$0xff]
  %v35 = vld [vmem:[%s0 + $0x10] sm:$0xff]
  %v36 = vld [vmem:[%s0 + $0x18] sm:$0xff]
  %v38 = vlaneseq
  %v39 = vshrl.u32 %v38, 7
  %v40 = vsub.s32 0, %v39
  %v41 = vrot.slane %v29, %v40
  %v43 = vmul.f32 %v33, %v41
  %v44 = vmul.f32 %v34, %v41
  %v45 = vmul.f32 %v35, %v41
  %v46 = vmul.f32 %v36, %v41
  %v48 = vlaneseq
  %v49 = vshrl.u32 %v48, 7
  %v50 = vsub.s32 0, %v49
  %v51 = vrot.slane %v32, %v50
  %v53 = vadd.f32 %v43, %v51
  %v54 = vadd.f32 %v44, %v51
  %v55 = vadd.f32 %v45, %v51
  %v56 = vadd.f32 %v46, %v51
  %v57 = vmax.f32 %v53, 0.0
  %v58 = vmax.f32 %v54, 0.0
  %v59 = vmax.f32 %v55, 0.0
  %v60 = vmax.f32 %v56, 0.0
  %vm61 = vcmask 261120
  %62 = vst.msk [vmem:[%s5] sm:$0xff] %vm61, %v57
  %63 = vst.msk [vmem:[%s5 + $0x8] sm:$0xff] %vm61, %v58
  %64 = vst.msk [vmem:[%s5 + $0x10] sm:$0xff] %vm61, %v59
  %65 = vst.msk [vmem:[%s5 + $0x18] sm:$0xff] %vm61, %v60
  // Predicated region
  $region22: #{resnet_generator_forward.34} parent=0 // pred_check
    _
  $region23: #{resnet_generator_forward.34} parent=0 // pred_check_branch
    %67 = sbr.rel (0) target = $region25
  $region24: #{resnet_generator_forward.34} parent=0 // pred_region
    _
  $region25: #{resnet_generator_forward.34} parent=0 // pred_fallthru
    _
  // Predicated region
  $region26: #{resnet_generator_forward.34} parent=0 // pred_check
    _
  $region27: #{resnet_generator_forward.34} parent=0 // pred_check_branch
    %69 = sbr.rel (0) target = $region29
  $region28: #{resnet_generator_forward.34} parent=0 // pred_region
    _
  $region29: #{resnet_generator_forward.34} parent=0 // pred_fallthru
    _

// kernel: resnet_generator_forward.38
$region0: #{resnet_generator_forward.38}
  #allocation0 [shape = 'u32[]', space=smem, size = 0x4, offset = 0x4, fixed_abs, tag = 'smem constant byte address 0x4 - core index']
  #allocation1 [shape = 'u32[144,128]{1,0:T(1,128)}', space=vmem, size = 0x12000, scoped, tag = 'internal scratch']
  %s0 = inlined_call_operand.vmem [shape: f32[32,32], index: 0, kind: input, shape index: {}]
  %s1 = inlined_call_operand.vmem [shape: f32[1,32], index: 1, kind: input, shape index: {}]
  %s2 = inlined_call_operand.vmem [shape: f32[1,32], index: 2, kind: input, shape index: {}]
  %s3 = inlined_call_operand.vmem [shape: f32[1,32], index: 3, kind: input, shape index: {}]
  %s4 = inlined_call_operand.vmem [shape: f32[1,32], index: 4, kind: input, shape index: {}]
  %s5 = inlined_call_operand.vmem [shape: f32[32,32], index: 5, kind: input, shape index: {}]
  %s6 = inlined_call_operand.vmem [shape: f32[32,32], index: 6, kind: output, shape index: {}]
  %s7 = sld [smem:[#allocation0]]
  $region34: #{resnet_generator_forward.38} parent=0
    _
  %s9 = ssub.s32 1, %s7
  %s10 = scalar_select 0, %s9, %s7
  // Predicated region
  $region2: #{resnet_generator_forward.38} parent=0 // pred_check
    _
  $region3: #{resnet_generator_forward.38} parent=0 // pred_check_branch
    %12 = sbr.rel (0) target = $region5
  $region4: #{resnet_generator_forward.38} parent=0 // pred_region
    _
  $region5: #{resnet_generator_forward.38} parent=0 // pred_fallthru
    _
  // Predicated region
  $region6: #{resnet_generator_forward.38} parent=0 // pred_check
    _
  $region7: #{resnet_generator_forward.38} parent=0 // pred_check_branch
    %14 = sbr.rel (0) target = $region9
  $region8: #{resnet_generator_forward.38} parent=0 // pred_region
    _
  $region9: #{resnet_generator_forward.38} parent=0 // pred_fallthru
    _
  // Predicated region
  $region10: #{resnet_generator_forward.38} parent=0 // pred_check
    _
  $region11: #{resnet_generator_forward.38} parent=0 // pred_check_branch
    %16 = sbr.rel (0) target = $region13
  $region12: #{resnet_generator_forward.38} parent=0 // pred_region
    _
  $region13: #{resnet_generator_forward.38} parent=0 // pred_fallthru
    _
  // Predicated region
  $region14: #{resnet_generator_forward.38} parent=0 // pred_check
    _
  $region15: #{resnet_generator_forward.38} parent=0 // pred_check_branch
    %18 = sbr.rel (0) target = $region17
  $region16: #{resnet_generator_forward.38} parent=0 // pred_region
    _
  $region17: #{resnet_generator_forward.38} parent=0 // pred_fallthru
    _
  // Predicated region
  $region18: #{resnet_generator_forward.38} parent=0 // pred_check
    _
  $region19: #{resnet_generator_forward.38} parent=0 // pred_check_branch
    %20 = sbr.rel (0) target = $region21
  $region20: #{resnet_generator_forward.38} parent=0 // pred_region
    _
  $region21: #{resnet_generator_forward.38} parent=0 // pred_fallthru
    _
  // Predicated region
  $region22: #{resnet_generator_forward.38} parent=0 // pred_check
    _
  $region23: #{resnet_generator_forward.38} parent=0 // pred_check_branch
    %22 = sbr.rel (0) target = $region25
  $region24: #{resnet_generator_forward.38} parent=0 // pred_region
    _
  $region25: #{resnet_generator_forward.38} parent=0 // pred_fallthru
    _
  %v23 = vld [vmem:[%s1] sm:$0x1]
  %v24 = vmul.f32 %v23, 0.03125
  %v25 = vld [vmem:[%s2] sm:$0x1]
  %v26 = vmul.f32 %v25, 0.03125
  %v27 = vmul.f32 %v24, %v24
  %v28 = vsub.f32 %v26, %v27
  %v29 = vadd.f32 %v28, 1e-05
  %v30 = vrsqrt.pop %v29
  %v31 = vld [vmem:[%s3] sm:$0x1]
  %v32 = vmul.f32 %v30, %v31
  %v33 = vld [vmem:[%s4] sm:$0x1]
  %v34 = vmul.f32 %v24, %v32
  %v35 = vsub.f32 %v33, %v34
  %v36 = vld [vmem:[%s0] sm:$0xff]
  %v37 = vld [vmem:[%s0 + $0x8] sm:$0xff]
  %v38 = vld [vmem:[%s0 + $0x10] sm:$0xff]
  %v39 = vld [vmem:[%s0 + $0x18] sm:$0xff]
  %v41 = vlaneseq
  %v42 = vshrl.u32 %v41, 7
  %v43 = vsub.s32 0, %v42
  %v44 = vrot.slane %v32, %v43
  %v46 = vmul.f32 %v36, %v44
  %v47 = vmul.f32 %v37, %v44
  %v48 = vmul.f32 %v38, %v44
  %v49 = vmul.f32 %v39, %v44
  %v51 = vlaneseq
  %v52 = vshrl.u32 %v51, 7
  %v53 = vsub.s32 0, %v52
  %v54 = vrot.slane %v35, %v53
  %v56 = vadd.f32 %v46, %v54
  %v57 = vadd.f32 %v47, %v54
  %v58 = vadd.f32 %v48, %v54
  %v59 = vadd.f32 %v49, %v54
  %v60 = vld [vmem:[%s5] sm:$0xff]
  %v61 = vld [vmem:[%s5 + $0x8] sm:$0xff]
  %v62 = vld [vmem:[%s5 + $0x10] sm:$0xff]
  %v63 = vld [vmem:[%s5 + $0x18] sm:$0xff]
  %v64 = vadd.f32 %v56, %v60
  %v65 = vadd.f32 %v57, %v61
  %v66 = vadd.f32 %v58, %v62
  %v67 = vadd.f32 %v59, %v63
  %vm68 = vcmask 261120
  %69 = vst.msk [vmem:[%s6] sm:$0xff] %vm68, %v64
  %70 = vst.msk [vmem:[%s6 + $0x8] sm:$0xff] %vm68, %v65
  %71 = vst.msk [vmem:[%s6 + $0x10] sm:$0xff] %vm68, %v66
  %72 = vst.msk [vmem:[%s6 + $0x18] sm:$0xff] %vm68, %v67
  // Predicated region
  $region26: #{resnet_generator_forward.38} parent=0 // pred_check
    _
  $region27: #{resnet_generator_forward.38} parent=0 // pred_check_branch
    %74 = sbr.rel (0) target = $region29
  $region28: #{resnet_generator_forward.38} parent=0 // pred_region
    _
  $region29: #{resnet_generator_forward.38} parent=0 // pred_fallthru
    _
  // Predicated region
  $region30: #{resnet_generator_forward.38} parent=0 // pred_check
    _
  $region31: #{resnet_generator_forward.38} parent=0 // pred_check_branch
    %76 = sbr.rel (0) target = $region33
  $region32: #{resnet_generator_forward.38} parent=0 // pred_region
    _
  $region33: #{resnet_generator_forward.38} parent=0 // pred_fallthru
    _

// kernel: resnet_generator_forward.35
$region0: #{resnet_generator_forward.35}
  #allocation0 [shape = 'u32[]', space=smem, size = 0x4, offset = 0x4, fixed_abs, tag = 'smem constant byte address 0x4 - core index']
  #allocation1 [shape = 'u32[144,128]{1,0:T(1,128)}', space=vmem, size = 0x12000, scoped, tag = 'internal scratch']
  %s0 = inlined_call_operand.vmem [shape: bf16[32,288], index: 0, kind: input, shape index: {}]
  %s1 = inlined_call_operand.vmem [shape: bf16[288,32], index: 1, kind: input, shape index: {}]
  %s2 = inlined_call_operand.vmem [shape: f32[32,32], index: 2, kind: output, shape index: {0}]
  %s3 = inlined_call_operand.vmem [shape: f32[1,32], index: 3, kind: output, shape index: {1}]
  %s4 = inlined_call_operand.vmem [shape: f32[1,32], index: 4, kind: output, shape index: {2}]
  %5 = xla_tuple %s2, %s3, %s4
  %s6 = sld [smem:[#allocation0]]
  $region42: #{resnet_generator_forward.35} parent=0
    _
  %s8 = ssub.s32 1, %s6
  %s9 = scalar_select 0, %s8, %s6
  // Predicated region
  $region2: #{resnet_generator_forward.35} parent=0 // pred_check
    _
  $region3: #{resnet_generator_forward.35} parent=0 // pred_check_branch
    %11 = sbr.rel (0) target = $region5
  $region4: #{resnet_generator_forward.35} parent=0 // pred_region
    _
  $region5: #{resnet_generator_forward.35} parent=0 // pred_fallthru
    _
  // Predicated region
  $region6: #{resnet_generator_forward.35} parent=0 // pred_check
    _
  $region7: #{resnet_generator_forward.35} parent=0 // pred_check_branch
    %13 = sbr.rel (0) target = $region9
  $region8: #{resnet_generator_forward.35} parent=0 // pred_region
    _
  $region9: #{resnet_generator_forward.35} parent=0 // pred_fallthru
    _
  %v15 = vld [vmem:[%s0] sm:$0xff]
  %v16 = vld [vmem:[%s0 + $0x8] sm:$0xf]
  %v17 = vld [vmem:[%s0 + $0xc] sm:$0xff]
  %v18 = vld [vmem:[%s0 + $0x14] sm:$0xf]
  %v19 = vld [vmem:[%s0 + $0x18] sm:$0xff]
  %v20 = vld [vmem:[%s0 + $0x20] sm:$0xf]
  %v21 = vld [vmem:[%s0 + $0x24] sm:$0xff]
  %v22 = vld [vmem:[%s0 + $0x2c] sm:$0xf]
  %v23 = vld [vmem:[%s1] sm:$0xf]
  %v24 = vld [vmem:[%s1 + $0x4] sm:$0xf]
  %v25 = vld [vmem:[%s1 + $0x8] sm:$0xf]
  %v26 = vld [vmem:[%s1 + $0xc] sm:$0xf]
  %v27 = vld [vmem:[%s1 + $0x10] sm:$0xf]
  %v28 = vld [vmem:[%s1 + $0x14] sm:$0xf]
  %v29 = vld [vmem:[%s1 + $0x18] sm:$0xf]
  %v30 = vld [vmem:[%s1 + $0x1c] sm:$0xf]
  %v31 = vld [vmem:[%s1 + $0x20] sm:$0xf]
  %v32 = vld [vmem:[%s1 + $0x24] sm:$0xf]
  %v33 = vld [vmem:[%s1 + $0x28] sm:$0xf]
  %v34 = vld [vmem:[%s1 + $0x2c] sm:$0xf]
  %v35 = vld [vmem:[%s1 + $0x30] sm:$0xf]
  %v36 = vld [vmem:[%s1 + $0x34] sm:$0xf]
  %v37 = vld [vmem:[%s1 + $0x38] sm:$0xf]
  %v38 = vld [vmem:[%s1 + $0x3c] sm:$0xf]
  %v39 = vld [vmem:[%s1 + $0x40] sm:$0xf]
  %v40 = vld [vmem:[%s1 + $0x44] sm:$0xf]
  %v41 = vld [vmem:[%s1 + $0x48] sm:$0xf]
  %v42 = vld [vmem:[%s1 + $0x4c] sm:$0xf]
  %v43 = vld [vmem:[%s1 + $0x50] sm:$0xf]
  %v44 = vld [vmem:[%s1 + $0x54] sm:$0xf]
  %v45 = vld [vmem:[%s1 + $0x58] sm:$0xf]
  %v46 = vld [vmem:[%s1 + $0x5c] sm:$0xf]
  %v47 = vld [vmem:[%s1 + $0x60] sm:$0xf]
  %v48 = vld [vmem:[%s1 + $0x64] sm:$0xf]
  %v49 = vld [vmem:[%s1 + $0x68] sm:$0xf]
  %v50 = vld [vmem:[%s1 + $0x6c] sm:$0xf]
  %v51 = vld [vmem:[%s1 + $0x70] sm:$0xf]
  %v52 = vld [vmem:[%s1 + $0x74] sm:$0xf]
  %v53 = vld [vmem:[%s1 + $0x78] sm:$0xf]
  %v54 = vld [vmem:[%s1 + $0x7c] sm:$0xf]
  %v55 = vld [vmem:[%s1 + $0x80] sm:$0xf]
  %v56 = vld [vmem:[%s1 + $0x84] sm:$0xf]
  %v57 = vld [vmem:[%s1 + $0x88] sm:$0xf]
  %v58 = vld [vmem:[%s1 + $0x8c] sm:$0xf]
  %v67 = vunpack.c.l.b16 %v15
  %v68 = vunpack.c.h.b16 %v15
  %v69 = vunpack.c.l.b16 %v16
  %v70 = vunpack.c.l.b16 %v17
  %v71 = vunpack.c.h.b16 %v17
  %v72 = vunpack.c.l.b16 %v18
  %v73 = vunpack.c.l.b16 %v19
  %v74 = vunpack.c.h.b16 %v19
  %v75 = vunpack.c.l.b16 %v20
  %v76 = vunpack.c.l.b16 %v21
  %v77 = vunpack.c.h.b16 %v21
  %v78 = vunpack.c.l.b16 %v22
  %v79 = vpack.c.b16 %v70, %v67
  %v80 = vpack.c.b16 %v71, %v68
  %v81 = vpack.c.b16 %v72, %v69
  %v82 = vpack.c.b16 %v76, %v73
  %v83 = vpack.c.b16 %v77, %v74
  %v84 = vpack.c.b16 %v78, %v75
  %v125 = vunpack.c.l.b16 %v23
  %v126 = vunpack.c.l.b16 %v24
  %v127 = vunpack.c.l.b16 %v25
  %v128 = vunpack.c.l.b16 %v26
  %v129 = vunpack.c.l.b16 %v27
  %v130 = vunpack.c.l.b16 %v28
  %v131 = vunpack.c.l.b16 %v29
  %v132 = vunpack.c.l.b16 %v30
  %v133 = vunpack.c.l.b16 %v31
  %v134 = vunpack.c.l.b16 %v32
  %v135 = vunpack.c.l.b16 %v33
  %v136 = vunpack.c.l.b16 %v34
  %v137 = vunpack.c.l.b16 %v35
  %v138 = vunpack.c.l.b16 %v36
  %v139 = vunpack.c.l.b16 %v37
  %v140 = vunpack.c.l.b16 %v38
  %v141 = vunpack.c.l.b16 %v39
  %v142 = vunpack.c.l.b16 %v40
  %v143 = vunpack.c.l.b16 %v41
  %v144 = vunpack.c.l.b16 %v42
  %v145 = vunpack.c.l.b16 %v43
  %v146 = vunpack.c.l.b16 %v44
  %v147 = vunpack.c.l.b16 %v45
  %v148 = vunpack.c.l.b16 %v46
  %v149 = vunpack.c.l.b16 %v47
  %v150 = vunpack.c.l.b16 %v48
  %v151 = vunpack.c.l.b16 %v49
  %v152 = vunpack.c.l.b16 %v50
  %v153 = vunpack.c.l.b16 %v51
  %v154 = vunpack.c.l.b16 %v52
  %v155 = vunpack.c.l.b16 %v53
  %v156 = vunpack.c.l.b16 %v54
  %v157 = vunpack.c.l.b16 %v55
  %v158 = vunpack.c.l.b16 %v56
  %v159 = vunpack.c.l.b16 %v57
  %v160 = vunpack.c.l.b16 %v58
  %v161 = vpack.c.b16 %v126, %v125
  %v162 = vpack.c.b16 %v128, %v127
  %v163 = vpack.c.b16 %v130, %v129
  %v164 = vpack.c.b16 %v132, %v131
  %v165 = vpack.c.b16 %v134, %v133
  %v166 = vpack.c.b16 %v136, %v135
  %v167 = vpack.c.b16 %v138, %v137
  %v168 = vpack.c.b16 %v140, %v139
  %v169 = vpack.c.b16 %v142, %v141
  %v170 = vpack.c.b16 %v144, %v143
  %v171 = vpack.c.b16 %v146, %v145
  %v172 = vpack.c.b16 %v148, %v147
  %v173 = vpack.c.b16 %v150, %v149
  %v174 = vpack.c.b16 %v152, %v151
  %v175 = vpack.c.b16 %v154, %v153
  %v176 = vpack.c.b16 %v156, %v155
  %v177 = vpack.c.b16 %v158, %v157
  %v178 = vpack.c.b16 %v160, %v159
  %vm197 = vcmask 261120
  %v199 = vsel %vm197, %v81, 0
  %v202 = vsel %vm197, %v84, 0
  %204 = vmatprep.subr.bf16.mxu0 0
  %205 = vmatpush1.bf16.msra.mxu0 %v161
  %206 = vmatprep.subr.bf16.mxu0 0
  %207 = vmatpush1.bf16.msra.mxu0 %v162
  %208 = vmatprep.subr.bf16.mxu0 0
  %209 = vmatpush1.bf16.msra.mxu0 %v163
  %210 = vmatprep.subr.bf16.mxu0 0
  %211 = vmatpush1.bf16.msra.mxu0 %v164
  %212 = vmatprep.subr.bf16.mxu0 0
  %213 = vmatpush1.bf16.msra.mxu0 %v165
  %214 = vmatprep.subr.bf16.mxu0 0
  %215 = vmatpush1.bf16.msra.mxu0 %v166
  %216 = vmatprep.subr.bf16.mxu0 0
  %217 = vmatpush1.bf16.msra.mxu0 %v167
  %218 = vmatprep.subr.bf16.mxu0 0
  %219 = vmatpush1.bf16.msra.mxu0 %v168
  %220 = vmatprep.subr.bf16.mxu0 0
  %221 = vmatpush1.bf16.msra.mxu0 %v169
  %222 = vmatprep.subr.bf16.mxu0 0
  %223 = vmatpush1.bf16.msra.mxu0 %v170
  %224 = vmatprep.subr.bf16.mxu0 0
  %225 = vmatpush1.bf16.msra.mxu0 %v171
  %226 = vmatprep.subr.bf16.mxu0 0
  %227 = vmatpush1.bf16.msra.mxu0 %v172
  %228 = vmatprep.subr.bf16.mxu0 0
  %229 = vmatpush1.bf16.msra.mxu0 %v173
  %230 = vmatprep.subr.bf16.mxu0 0
  %231 = vmatpush1.bf16.msra.mxu0 %v174
  %232 = vmatprep.subr.bf16.mxu0 0
  %233 = vmatpush1.bf16.msra.mxu0 %v175
  %234 = vmatprep.subr.bf16.mxu0 0
  %235 = vmatpush1.bf16.msra.mxu0 %v176
  %236 = vmatprep.mubr.bf16.mxu0 %v80
  %237 = vmatmul.mubr.bf16.gmra.mrb[0].mxu0 %v79
  %v238 = vpop.f32.mrb[0].mxu0
  %v239 = vadd.f32 0.0, %v238
  %v240 = vpop.f32.mrb[0].mxu0
  %v241 = vpop.f32.mrb[0].mxu0
  %v242 = vadd.f32 0.0, %v241
  %v243 = vpop.f32.mrb[0].mxu0
  %244 = vmatprep.mubr.bf16.mxu0 %v83
  %245 = vmatmul.mubr.bf16.gmra.mrb[0].mxu0 %v82
  %v246 = vpop.f32.mrb[0].mxu0
  %v247 = vadd.f32 0.0, %v246
  %v248 = vpop.f32.mrb[0].mxu0
  %v249 = vpop.f32.mrb[0].mxu0
  %v250 = vadd.f32 0.0, %v249
  %v251 = vpop.f32.mrb[0].mxu0
  %252 = vdwg.mxu0
  %253 = vmatprep.subr.bf16.mxu0 0
  %254 = vmatpush1.bf16.msra.mxu0 %v177
  %255 = vmatprep.subr.bf16.mxu0 0
  %256 = vmatpush1.bf16.msra.mxu0 %v178
  %257 = vmatprep.subr.bf16.mxu0 0
  %258 = vmatpush1.bf16.msra.mxu0 0
  %259 = vmatprep.subr.bf16.mxu0 0
  %260 = vmatpush1.bf16.msra.mxu0 0
  %261 = vmatprep.subr.bf16.mxu0 0
  %262 = vmatpush1.bf16.msra.mxu0 0
  %263 = vmatprep.subr.bf16.mxu0 0
  %264 = vmatpush1.bf16.msra.mxu0 0
  %265 = vmatprep.subr.bf16.mxu0 0
  %266 = vmatpush1.bf16.msra.mxu0 0
  %267 = vmatprep.subr.bf16.mxu0 0
  %268 = vmatpush1.bf16.msra.mxu0 0
  %269 = vmatprep.subr.bf16.mxu0 0
  %270 = vmatpush1.bf16.msra.mxu0 0
  %271 = vmatprep.subr.bf16.mxu0 0
  %272 = vmatpush1.bf16.msra.mxu0 0
  %273 = vmatprep.subr.bf16.mxu0 0
  %274 = vmatpush1.bf16.msra.mxu0 0
  %275 = vmatprep.subr.bf16.mxu0 0
  %276 = vmatpush1.bf16.msra.mxu0 0
  %277 = vmatprep.subr.bf16.mxu0 0
  %278 = vmatpush1.bf16.msra.mxu0 0
  %279 = vmatprep.subr.bf16.mxu0 0
  %280 = vmatpush1.bf16.msra.mxu0 0
  %281 = vmatprep.subr.bf16.mxu0 0
  %282 = vmatpush1.bf16.msra.mxu0 0
  %283 = vmatprep.subr.bf16.mxu0 0
  %284 = vmatpush1.bf16.msra.mxu0 0
  %285 = vmatprep.mubr.bf16.mxu0 0
  %286 = vmatmul.mubr.bf16.gmra.mrb[0].mxu0 %v199
  %v287 = vpop.f32.mrb[0].mxu0
  %v288 = vadd.f32 %v239, %v287
  %v289 = vpop.f32.mrb[0].mxu0
  %v290 = vpop.f32.mrb[0].mxu0
  %v291 = vadd.f32 %v242, %v290
  %v292 = vpop.f32.mrb[0].mxu0
  %293 = vmatprep.mubr.bf16.mxu0 0
  %294 = vmatmul.mubr.bf16.gmra.mrb[0].mxu0 %v202
  %v295 = vpop.f32.mrb[0].mxu0
  %v296 = vadd.f32 %v247, %v295
  %v297 = vpop.f32.mrb[0].mxu0
  %v298 = vpop.f32.mrb[0].mxu0
  %v299 = vadd.f32 %v250, %v298
  %v300 = vpop.f32.mrb[0].mxu0
  %301 = vdwg.mxu0
  %302 = vst.msk [vmem:[%s2] sm:$0xff] %vm197, %v288
  %303 = vst.msk [vmem:[%s2 + $0x8] sm:$0xff] %vm197, %v291
  %304 = vst.msk [vmem:[%s2 + $0x10] sm:$0xff] %vm197, %v296
  %305 = vst.msk [vmem:[%s2 + $0x18] sm:$0xff] %vm197, %v299
  %v306 = vsel %vm197, %v288, 0.0
  %v307 = vsel %vm197, %v291, 0.0
  %v308 = vadd.f32 %v306, %v307
  %v309 = vsel %vm197, %v296, 0.0
  %v310 = vadd.f32 %v308, %v309
  %v311 = vsel %vm197, %v299, 0.0
  %v312 = vadd.f32 %v310, %v311
  %v313 = vrot.slane %v312, 4
  %v314 = vadd.f32 %v312, %v313
  %v315 = vrot.slane %v314, 2
  %v316 = vadd.f32 %v314, %v315
  %v317 = vrot.slane %v316, 1
  %v318 = vadd.f32 %v316, %v317
  %v319 = vmul.f32 %v288, %v288
  %v320 = vmul.f32 %v291, %v291
  %v321 = vmul.f32 %v296, %v296
  %v322 = vmul.f32 %v299, %v299
  %v323 = vsel %vm197, %v319, 0.0
  %v324 = vsel %vm197, %v320, 0.0
  %v325 = vadd.f32 %v323, %v324
  %v326 = vsel %vm197, %v321, 0.0
  %v327 = vadd.f32 %v325, %v326
  %v328 = vsel %vm197, %v322, 0.0
  %v329 = vadd.f32 %v327, %v328
  %v330 = vrot.slane %v329, 4
  %v331 = vadd.f32 %v329, %v330
  %v332 = vrot.slane %v331, 2
  %v333 = vadd.f32 %v331, %v332
  %v334 = vrot.slane %v333, 1
  %v335 = vadd.f32 %v333, %v334
  %p336 = scmp.eq.s32.totalorder 0, 0
  // Predicated region
  $region10: #{resnet_generator_forward.35} parent=0 // pred_check
    %p337 = pneg %p336
  $region11: #{resnet_generator_forward.35} parent=0 // pred_check_branch
    %339 = sbr.rel (%p337) target = $region13
  $region12: #{resnet_generator_forward.35} parent=0 // pred_region
    %vm340 = vcmask 253952
    %341 = vst.msk [vmem:[%s3] sm:$0x1] %vm340, %v318
    %342 = vst.msk [vmem:[%s4] sm:$0x1] %vm340, %v335
  $region13: #{resnet_generator_forward.35} parent=0 // pred_fallthru
    _
  %p343 = scmp.ne.s32.totalorder 0, 0
  // Predicated region
  $region14: #{resnet_generator_forward.35} parent=0 // pred_check
    %p344 = pneg %p343
  $region15: #{resnet_generator_forward.35} parent=0 // pred_check_branch
    %346 = sbr.rel (%p344) target = $region17
  $region16: #{resnet_generator_forward.35} parent=0 // pred_region
    %v347 = vld [vmem:[%s3] sm:$0x1]
    %v348 = vadd.f32 %v347, %v318
    %vm349 = vcmask 253952
    %350 = vst.msk [vmem:[%s3] sm:$0x1] %vm349, %v348
    %v351 = vld [vmem:[%s4] sm:$0x1]
    %v352 = vadd.f32 %v351, %v335
    %353 = vst.msk [vmem:[%s4] sm:$0x1] %vm349, %v352
  $region17: #{resnet_generator_forward.35} parent=0 // pred_fallthru
    _
  // Predicated region
  $region18: #{resnet_generator_forward.35} parent=0 // pred_check
    _
  $region19: #{resnet_generator_forward.35} parent=0 // pred_check_branch
    %355 = sbr.rel (0) target = $region21
  $region20: #{resnet_generator_forward.35} parent=0 // pred_region
    _
  $region21: #{resnet_generator_forward.35} parent=0 // pred_fallthru
    _
  // Predicated region
  $region22: #{resnet_generator_forward.35} parent=0 // pred_check
    _
  $region23: #{resnet_generator_forward.35} parent=0 // pred_check_branch
    %357 = sbr.rel (0) target = $region25
  $region24: #{resnet_generator_forward.35} parent=0 // pred_region
    _
  $region25: #{resnet_generator_forward.35} parent=0 // pred_fallthru
    _
  // Predicated region
  $region26: #{resnet_generator_forward.35} parent=0 // pred_check
    _
  $region27: #{resnet_generator_forward.35} parent=0 // pred_check_branch
    %359 = sbr.rel (0) target = $region29
  $region28: #{resnet_generator_forward.35} parent=0 // pred_region
    _
  $region29: #{resnet_generator_forward.35} parent=0 // pred_fallthru
    _
  // Predicated region
  $region30: #{resnet_generator_forward.35} parent=0 // pred_check
    _
  $region31: #{resnet_generator_forward.35} parent=0 // pred_check_branch
    %361 = sbr.rel (0) target = $region33
  $region32: #{resnet_generator_forward.35} parent=0 // pred_region
    _
  $region33: #{resnet_generator_forward.35} parent=0 // pred_fallthru
    _
  // Predicated region
  $region34: #{resnet_generator_forward.35} parent=0 // pred_check
    _
  $region35: #{resnet_generator_forward.35} parent=0 // pred_check_branch
    %363 = sbr.rel (0) target = $region37
  $region36: #{resnet_generator_forward.35} parent=0 // pred_region
    _
  $region37: #{resnet_generator_forward.35} parent=0 // pred_fallthru
    _
  // Predicated region
  $region38: #{resnet_generator_forward.35} parent=0 // pred_check
    _
  $region39: #{resnet_generator_forward.35} parent=0 // pred_check_branch
    %365 = sbr.rel (0) target = $region41
  $region40: #{resnet_generator_forward.35} parent=0 // pred_region
    _
  $region41: #{resnet_generator_forward.35} parent=0 // pred_fallthru
    _

// kernel: resnet_generator_forward.47
$region0: #{resnet_generator_forward.47}
  #allocation0 [shape = 'u32[]', space=smem, size = 0x4, offset = 0x4, fixed_abs, tag = 'smem constant byte address 0x4 - core index']
  #allocation1 [shape = 'u32[144,128]{1,0:T(1,128)}', space=vmem, size = 0x12000, scoped, tag = 'internal scratch']
  %s0 = inlined_call_operand.vmem [shape: bf16[32,32], index: 0, kind: input, shape index: {}]
  %s1 = inlined_call_operand.vmem [shape: bf16[32,16], index: 1, kind: input, shape index: {}]
  %s2 = inlined_call_operand.vmem [shape: f32[32,16], index: 2, kind: output, shape index: {0}]
  %s3 = inlined_call_operand.vmem [shape: f32[1,16], index: 3, kind: output, shape index: {1}]
  %s4 = inlined_call_operand.vmem [shape: f32[1,16], index: 4, kind: output, shape index: {2}]
  %5 = xla_tuple %s2, %s3, %s4
  %s6 = sld [smem:[#allocation0]]
  $region42: #{resnet_generator_forward.47} parent=0
    _
  %s8 = ssub.s32 1, %s6
  %s9 = scalar_select 0, %s8, %s6
  // Predicated region
  $region2: #{resnet_generator_forward.47} parent=0 // pred_check
    _
  $region3: #{resnet_generator_forward.47} parent=0 // pred_check_branch
    %11 = sbr.rel (0) target = $region5
  $region4: #{resnet_generator_forward.47} parent=0 // pred_region
    _
  $region5: #{resnet_generator_forward.47} parent=0 // pred_fallthru
    _
  // Predicated region
  $region6: #{resnet_generator_forward.47} parent=0 // pred_check
    _
  $region7: #{resnet_generator_forward.47} parent=0 // pred_check_branch
    %13 = sbr.rel (0) target = $region9
  $region8: #{resnet_generator_forward.47} parent=0 // pred_region
    _
  $region9: #{resnet_generator_forward.47} parent=0 // pred_fallthru
    _
  %v15 = vld [vmem:[%s0] sm:$0xf]
  %v16 = vld [vmem:[%s0 + $0x4] sm:$0xf]
  %v17 = vld [vmem:[%s0 + $0x8] sm:$0xf]
  %v18 = vld [vmem:[%s0 + $0xc] sm:$0xf]
  %v19 = vld [vmem:[%s1] sm:$0xf]
  %v20 = vld [vmem:[%s1 + $0x4] sm:$0xf]
  %v21 = vld [vmem:[%s1 + $0x8] sm:$0xf]
  %v22 = vld [vmem:[%s1 + $0xc] sm:$0xf]
  %v27 = vunpack.c.l.b16 %v15
  %v28 = vunpack.c.l.b16 %v16
  %v29 = vunpack.c.l.b16 %v17
  %v30 = vunpack.c.l.b16 %v18
  %v31 = vpack.c.b16 %v28, %v27
  %v32 = vpack.c.b16 %v30, %v29
  %v37 = vunpack.c.l.b16 %v19
  %v38 = vunpack.c.l.b16 %v20
  %v39 = vunpack.c.l.b16 %v21
  %v40 = vunpack.c.l.b16 %v22
  %v41 = vpack.c.b16 %v38, %v37
  %v42 = vpack.c.b16 %v40, %v39
  %vm45 = vcmask 261120
  %v47 = vsel %vm45, %v31, 0
  %v50 = vsel %vm45, %v32, 0
  %52 = vmatprep.subr.bf16.mxu0 0
  %53 = vmatpush1.bf16.msra.mxu0 %v41
  %54 = vmatprep.subr.bf16.mxu0 0
  %55 = vmatpush1.bf16.msra.mxu0 %v42
  %56 = vmatprep.subr.bf16.mxu0 0
  %57 = vmatpush1.bf16.msra.mxu0 0
  %58 = vmatprep.subr.bf16.mxu0 0
  %59 = vmatpush1.bf16.msra.mxu0 0
  %60 = vmatprep.subr.bf16.mxu0 0
  %61 = vmatpush1.bf16.msra.mxu0 0
  %62 = vmatprep.subr.bf16.mxu0 0
  %63 = vmatpush1.bf16.msra.mxu0 0
  %64 = vmatprep.subr.bf16.mxu0 0
  %65 = vmatpush1.bf16.msra.mxu0 0
  %66 = vmatprep.subr.bf16.mxu0 0
  %67 = vmatpush1.bf16.msra.mxu0 0
  %68 = vmatprep.subr.bf16.mxu0 0
  %69 = vmatpush1.bf16.msra.mxu0 0
  %70 = vmatprep.subr.bf16.mxu0 0
  %71 = vmatpush1.bf16.msra.mxu0 0
  %72 = vmatprep.subr.bf16.mxu0 0
  %73 = vmatpush1.bf16.msra.mxu0 0
  %74 = vmatprep.subr.bf16.mxu0 0
  %75 = vmatpush1.bf16.msra.mxu0 0
  %76 = vmatprep.subr.bf16.mxu0 0
  %77 = vmatpush1.bf16.msra.mxu0 0
  %78 = vmatprep.subr.bf16.mxu0 0
  %79 = vmatpush1.bf16.msra.mxu0 0
  %80 = vmatprep.subr.bf16.mxu0 0
  %81 = vmatpush1.bf16.msra.mxu0 0
  %82 = vmatprep.subr.bf16.mxu0 0
  %83 = vmatpush1.bf16.msra.mxu0 0
  %84 = vmatprep.mubr.bf16.mxu0 0
  %85 = vmatmul.mubr.bf16.gmra.mrb[0].mxu0 %v47
  %v86 = vpop.f32.mrb[0].mxu0
  %v87 = vadd.f32 0.0, %v86
  %v88 = vpop.f32.mrb[0].mxu0
  %v89 = vpop.f32.mrb[0].mxu0
  %v90 = vadd.f32 0.0, %v89
  %v91 = vpop.f32.mrb[0].mxu0
  %92 = vmatprep.mubr.bf16.mxu0 0
  %93 = vmatmul.mubr.bf16.gmra.mrb[0].mxu0 %v50
  %v94 = vpop.f32.mrb[0].mxu0
  %v95 = vadd.f32 0.0, %v94
  %v96 = vpop.f32.mrb[0].mxu0
  %v97 = vpop.f32.mrb[0].mxu0
  %v98 = vadd.f32 0.0, %v97
  %v99 = vpop.f32.mrb[0].mxu0
  %100 = vdwg.mxu0
  %vm101 = vcmask 130048
  %102 = vst.msk [vmem:[%s2] sm:$0xff] %vm101, %v87
  %103 = vst.msk [vmem:[%s2 + $0x8] sm:$0xff] %vm101, %v90
  %104 = vst.msk [vmem:[%s2 + $0x10] sm:$0xff] %vm101, %v95
  %105 = vst.msk [vmem:[%s2 + $0x18] sm:$0xff] %vm101, %v98
  %v106 = vsel %vm101, %v87, 0.0
  %v107 = vsel %vm101, %v90, 0.0
  %v108 = vadd.f32 %v106, %v107
  %v109 = vsel %vm101, %v95, 0.0
  %v110 = vadd.f32 %v108, %v109
  %v111 = vsel %vm101, %v98, 0.0
  %v112 = vadd.f32 %v110, %v111
  %v113 = vrot.slane %v112, 4
  %v114 = vadd.f32 %v112, %v113
  %v115 = vrot.slane %v114, 2
  %v116 = vadd.f32 %v114, %v115
  %v117 = vrot.slane %v116, 1
  %v118 = vadd.f32 %v116, %v117
  %v119 = vmul.f32 %v87, %v87
  %v120 = vmul.f32 %v90, %v90
  %v121 = vmul.f32 %v95, %v95
  %v122 = vmul.f32 %v98, %v98
  %v123 = vsel %vm101, %v119, 0.0
  %v124 = vsel %vm101, %v120, 0.0
  %v125 = vadd.f32 %v123, %v124
  %v126 = vsel %vm101, %v121, 0.0
  %v127 = vadd.f32 %v125, %v126
  %v128 = vsel %vm101, %v122, 0.0
  %v129 = vadd.f32 %v127, %v128
  %v130 = vrot.slane %v129, 4
  %v131 = vadd.f32 %v129, %v130
  %v132 = vrot.slane %v131, 2
  %v133 = vadd.f32 %v131, %v132
  %v134 = vrot.slane %v133, 1
  %v135 = vadd.f32 %v133, %v134
  %p136 = scmp.eq.s32.totalorder 0, 0
  // Predicated region
  $region10: #{resnet_generator_forward.47} parent=0 // pred_check
    %p137 = pneg %p136
  $region11: #{resnet_generator_forward.47} parent=0 // pred_check_branch
    %139 = sbr.rel (%p137) target = $region13
  $region12: #{resnet_generator_forward.47} parent=0 // pred_region
    %vm140 = vcmask 122880
    %141 = vst.msk [vmem:[%s3] sm:$0x1] %vm140, %v118
    %142 = vst.msk [vmem:[%s4] sm:$0x1] %vm140, %v135
  $region13: #{resnet_generator_forward.47} parent=0 // pred_fallthru
    _
  %p143 = scmp.ne.s32.totalorder 0, 0
  // Predicated region
  $region14: #{resnet_generator_forward.47} parent=0 // pred_check
    %p144 = pneg %p143
  $region15: #{resnet_generator_forward.47} parent=0 // pred_check_branch
    %146 = sbr.rel (%p144) target = $region17
  $region16: #{resnet_generator_forward.47} parent=0 // pred_region
    %v147 = vld [vmem:[%s3] sm:$0x1]
    %v148 = vadd.f32 %v147, %v118
    %vm149 = vcmask 122880
    %150 = vst.msk [vmem:[%s3] sm:$0x1] %vm149, %v148
    %v151 = vld [vmem:[%s4] sm:$0x1]
    %v152 = vadd.f32 %v151, %v135
    %153 = vst.msk [vmem:[%s4] sm:$0x1] %vm149, %v152
  $region17: #{resnet_generator_forward.47} parent=0 // pred_fallthru
    _
  // Predicated region
  $region18: #{resnet_generator_forward.47} parent=0 // pred_check
    _
  $region19: #{resnet_generator_forward.47} parent=0 // pred_check_branch
    %155 = sbr.rel (0) target = $region21
  $region20: #{resnet_generator_forward.47} parent=0 // pred_region
    _
  $region21: #{resnet_generator_forward.47} parent=0 // pred_fallthru
    _
  // Predicated region
  $region22: #{resnet_generator_forward.47} parent=0 // pred_check
    _
  $region23: #{resnet_generator_forward.47} parent=0 // pred_check_branch
    %157 = sbr.rel (0) target = $region25
  $region24: #{resnet_generator_forward.47} parent=0 // pred_region
    _
  $region25: #{resnet_generator_forward.47} parent=0 // pred_fallthru
    _
  // Predicated region
  $region26: #{resnet_generator_forward.47} parent=0 // pred_check
    _
  $region27: #{resnet_generator_forward.47} parent=0 // pred_check_branch
    %159 = sbr.rel (0) target = $region29
  $region28: #{resnet_generator_forward.47} parent=0 // pred_region
    _
  $region29: #{resnet_generator_forward.47} parent=0 // pred_fallthru
    _
  // Predicated region
  $region30: #{resnet_generator_forward.47} parent=0 // pred_check
    _
  $region31: #{resnet_generator_forward.47} parent=0 // pred_check_branch
    %161 = sbr.rel (0) target = $region33
  $region32: #{resnet_generator_forward.47} parent=0 // pred_region
    _
  $region33: #{resnet_generator_forward.47} parent=0 // pred_fallthru
    _
  // Predicated region
  $region34: #{resnet_generator_forward.47} parent=0 // pred_check
    _
  $region35: #{resnet_generator_forward.47} parent=0 // pred_check_branch
    %163 = sbr.rel (0) target = $region37
  $region36: #{resnet_generator_forward.47} parent=0 // pred_region
    _
  $region37: #{resnet_generator_forward.47} parent=0 // pred_fallthru
    _
  // Predicated region
  $region38: #{resnet_generator_forward.47} parent=0 // pred_check
    _
  $region39: #{resnet_generator_forward.47} parent=0 // pred_check_branch
    %165 = sbr.rel (0) target = $region41
  $region40: #{resnet_generator_forward.47} parent=0 // pred_region
    _
  $region41: #{resnet_generator_forward.47} parent=0 // pred_fallthru
    _

// kernel: resnet_generator_forward.50
$region0: #{resnet_generator_forward.50}
  #allocation0 [shape = 'u32[]', space=smem, size = 0x4, offset = 0x4, fixed_abs, tag = 'smem constant byte address 0x4 - core index']
  #allocation1 [shape = 'u32[144,128]{1,0:T(1,128)}', space=vmem, size = 0x12000, scoped, tag = 'internal scratch']
  %s0 = inlined_call_operand.vmem [shape: bf16[32,128], index: 0, kind: input, shape index: {}]
  %s1 = inlined_call_operand.vmem [shape: bf16[128,16], index: 1, kind: input, shape index: {}]
  %s2 = inlined_call_operand.vmem [shape: f32[32,16], index: 2, kind: output, shape index: {0}]
  %s3 = inlined_call_operand.vmem [shape: f32[1,16], index: 3, kind: output, shape index: {1}]
  %s4 = inlined_call_operand.vmem [shape: f32[1,16], index: 4, kind: output, shape index: {2}]
  %5 = xla_tuple %s2, %s3, %s4
  %s6 = sld [smem:[#allocation0]]
  $region42: #{resnet_generator_forward.50} parent=0
    _
  %s8 = ssub.s32 1, %s6
  %s9 = scalar_select 0, %s8, %s6
  // Predicated region
  $region2: #{resnet_generator_forward.50} parent=0 // pred_check
    _
  $region3: #{resnet_generator_forward.50} parent=0 // pred_check_branch
    %11 = sbr.rel (0) target = $region5
  $region4: #{resnet_generator_forward.50} parent=0 // pred_region
    _
  $region5: #{resnet_generator_forward.50} parent=0 // pred_fallthru
    _
  // Predicated region
  $region6: #{resnet_generator_forward.50} parent=0 // pred_check
    _
  $region7: #{resnet_generator_forward.50} parent=0 // pred_check_branch
    %13 = sbr.rel (0) target = $region9
  $region8: #{resnet_generator_forward.50} parent=0 // pred_region
    _
  $region9: #{resnet_generator_forward.50} parent=0 // pred_fallthru
    _
  %v15 = vld [vmem:[%s0] sm:$0xf]
  %v16 = vld [vmem:[%s0 + $0x4] sm:$0xf]
  %v17 = vld [vmem:[%s0 + $0x8] sm:$0xf]
  %v18 = vld [vmem:[%s0 + $0xc] sm:$0xf]
  %v19 = vld [vmem:[%s1] sm:$0xf]
  %v20 = vld [vmem:[%s1 + $0x4] sm:$0xf]
  %v21 = vld [vmem:[%s1 + $0x8] sm:$0xf]
  %v22 = vld [vmem:[%s1 + $0xc] sm:$0xf]
  %v23 = vld [vmem:[%s1 + $0x10] sm:$0xf]
  %v24 = vld [vmem:[%s1 + $0x14] sm:$0xf]
  %v25 = vld [vmem:[%s1 + $0x18] sm:$0xf]
  %v26 = vld [vmem:[%s1 + $0x1c] sm:$0xf]
  %v27 = vld [vmem:[%s1 + $0x20] sm:$0xf]
  %v28 = vld [vmem:[%s1 + $0x24] sm:$0xf]
  %v29 = vld [vmem:[%s1 + $0x28] sm:$0xf]
  %v30 = vld [vmem:[%s1 + $0x2c] sm:$0xf]
  %v31 = vld [vmem:[%s1 + $0x30] sm:$0xf]
  %v32 = vld [vmem:[%s1 + $0x34] sm:$0xf]
  %v33 = vld [vmem:[%s1 + $0x38] sm:$0xf]
  %v34 = vld [vmem:[%s1 + $0x3c] sm:$0xf]
  %v39 = vunpack.c.l.b16 %v15
  %v40 = vunpack.c.l.b16 %v16
  %v41 = vunpack.c.l.b16 %v17
  %v42 = vunpack.c.l.b16 %v18
  %v43 = vpack.c.b16 %v40, %v39
  %v44 = vpack.c.b16 %v42, %v41
  %v63 = vunpack.c.l.b16 %v19
  %v64 = vunpack.c.l.b16 %v20
  %v65 = vunpack.c.l.b16 %v21
  %v66 = vunpack.c.l.b16 %v22
  %v67 = vunpack.c.l.b16 %v23
  %v68 = vunpack.c.l.b16 %v24
  %v69 = vunpack.c.l.b16 %v25
  %v70 = vunpack.c.l.b16 %v26
  %v71 = vunpack.c.l.b16 %v27
  %v72 = vunpack.c.l.b16 %v28
  %v73 = vunpack.c.l.b16 %v29
  %v74 = vunpack.c.l.b16 %v30
  %v75 = vunpack.c.l.b16 %v31
  %v76 = vunpack.c.l.b16 %v32
  %v77 = vunpack.c.l.b16 %v33
  %v78 = vunpack.c.l.b16 %v34
  %v79 = vpack.c.b16 %v64, %v63
  %v80 = vpack.c.b16 %v66, %v65
  %v81 = vpack.c.b16 %v68, %v67
  %v82 = vpack.c.b16 %v70, %v69
  %v83 = vpack.c.b16 %v72, %v71
  %v84 = vpack.c.b16 %v74, %v73
  %v85 = vpack.c.b16 %v76, %v75
  %v86 = vpack.c.b16 %v78, %v77
  %95 = vmatprep.subr.bf16.mxu0 0
  %96 = vmatpush1.bf16.msra.mxu0 %v79
  %97 = vmatprep.subr.bf16.mxu0 0
  %98 = vmatpush1.bf16.msra.mxu0 %v80
  %99 = vmatprep.subr.bf16.mxu0 0
  %100 = vmatpush1.bf16.msra.mxu0 %v81
  %101 = vmatprep.subr.bf16.mxu0 0
  %102 = vmatpush1.bf16.msra.mxu0 %v82
  %103 = vmatprep.subr.bf16.mxu0 0
  %104 = vmatpush1.bf16.msra.mxu0 %v83
  %105 = vmatprep.subr.bf16.mxu0 0
  %106 = vmatpush1.bf16.msra.mxu0 %v84
  %107 = vmatprep.subr.bf16.mxu0 0
  %108 = vmatpush1.bf16.msra.mxu0 %v85
  %109 = vmatprep.subr.bf16.mxu0 0
  %110 = vmatpush1.bf16.msra.mxu0 %v86
  %111 = vmatprep.subr.bf16.mxu0 0
  %112 = vmatpush1.bf16.msra.mxu0 0
  %113 = vmatprep.subr.bf16.mxu0 0
  %114 = vmatpush1.bf16.msra.mxu0 0
  %115 = vmatprep.subr.bf16.mxu0 0
  %116 = vmatpush1.bf16.msra.mxu0 0
  %117 = vmatprep.subr.bf16.mxu0 0
  %118 = vmatpush1.bf16.msra.mxu0 0
  %119 = vmatprep.subr.bf16.mxu0 0
  %120 = vmatpush1.bf16.msra.mxu0 0
  %121 = vmatprep.subr.bf16.mxu0 0
  %122 = vmatpush1.bf16.msra.mxu0 0
  %123 = vmatprep.subr.bf16.mxu0 0
  %124 = vmatpush1.bf16.msra.mxu0 0
  %125 = vmatprep.subr.bf16.mxu0 0
  %126 = vmatpush1.bf16.msra.mxu0 0
  %127 = vmatprep.mubr.bf16.mxu0 0
  %128 = vmatmul.mubr.bf16.gmra.mrb[0].mxu0 %v43
  %v129 = vpop.f32.mrb[0].mxu0
  %v130 = vadd.f32 0.0, %v129
  %v131 = vpop.f32.mrb[0].mxu0
  %v132 = vpop.f32.mrb[0].mxu0
  %v133 = vadd.f32 0.0, %v132
  %v134 = vpop.f32.mrb[0].mxu0
  %135 = vmatprep.mubr.bf16.mxu0 0
  %136 = vmatmul.mubr.bf16.gmra.mrb[0].mxu0 %v44
  %v137 = vpop.f32.mrb[0].mxu0
  %v138 = vadd.f32 0.0, %v137
  %v139 = vpop.f32.mrb[0].mxu0
  %v140 = vpop.f32.mrb[0].mxu0
  %v141 = vadd.f32 0.0, %v140
  %v142 = vpop.f32.mrb[0].mxu0
  %143 = vdwg.mxu0
  %vm144 = vcmask 130048
  %145 = vst.msk [vmem:[%s2] sm:$0xff] %vm144, %v130
  %146 = vst.msk [vmem:[%s2 + $0x8] sm:$0xff] %vm144, %v133
  %147 = vst.msk [vmem:[%s2 + $0x10] sm:$0xff] %vm144, %v138
  %148 = vst.msk [vmem:[%s2 + $0x18] sm:$0xff] %vm144, %v141
  %v149 = vsel %vm144, %v130, 0.0
  %v150 = vsel %vm144, %v133, 0.0
  %v151 = vadd.f32 %v149, %v150
  %v152 = vsel %vm144, %v138, 0.0
  %v153 = vadd.f32 %v151, %v152
  %v154 = vsel %vm144, %v141, 0.0
  %v155 = vadd.f32 %v153, %v154
  %v156 = vrot.slane %v155, 4
  %v157 = vadd.f32 %v155, %v156
  %v158 = vrot.slane %v157, 2
  %v159 = vadd.f32 %v157, %v158
  %v160 = vrot.slane %v159, 1
  %v161 = vadd.f32 %v159, %v160
  %v162 = vmul.f32 %v130, %v130
  %v163 = vmul.f32 %v133, %v133
  %v164 = vmul.f32 %v138, %v138
  %v165 = vmul.f32 %v141, %v141
  %v166 = vsel %vm144, %v162, 0.0
  %v167 = vsel %vm144, %v163, 0.0
  %v168 = vadd.f32 %v166, %v167
  %v169 = vsel %vm144, %v164, 0.0
  %v170 = vadd.f32 %v168, %v169
  %v171 = vsel %vm144, %v165, 0.0
  %v172 = vadd.f32 %v170, %v171
  %v173 = vrot.slane %v172, 4
  %v174 = vadd.f32 %v172, %v173
  %v175 = vrot.slane %v174, 2
  %v176 = vadd.f32 %v174, %v175
  %v177 = vrot.slane %v176, 1
  %v178 = vadd.f32 %v176, %v177
  %p179 = scmp.eq.s32.totalorder 0, 0
  // Predicated region
  $region10: #{resnet_generator_forward.50} parent=0 // pred_check
    %p180 = pneg %p179
  $region11: #{resnet_generator_forward.50} parent=0 // pred_check_branch
    %182 = sbr.rel (%p180) target = $region13
  $region12: #{resnet_generator_forward.50} parent=0 // pred_region
    %vm183 = vcmask 122880
    %184 = vst.msk [vmem:[%s3] sm:$0x1] %vm183, %v161
    %185 = vst.msk [vmem:[%s4] sm:$0x1] %vm183, %v178
  $region13: #{resnet_generator_forward.50} parent=0 // pred_fallthru
    _
  %p186 = scmp.ne.s32.totalorder 0, 0
  // Predicated region
  $region14: #{resnet_generator_forward.50} parent=0 // pred_check
    %p187 = pneg %p186
  $region15: #{resnet_generator_forward.50} parent=0 // pred_check_branch
    %189 = sbr.rel (%p187) target = $region17
  $region16: #{resnet_generator_forward.50} parent=0 // pred_region
    %v190 = vld [vmem:[%s3] sm:$0x1]
    %v191 = vadd.f32 %v190, %v161
    %vm192 = vcmask 122880
    %193 = vst.msk [vmem:[%s3] sm:$0x1] %vm192, %v191
    %v194 = vld [vmem:[%s4] sm:$0x1]
    %v195 = vadd.f32 %v194, %v178
    %196 = vst.msk [vmem:[%s4] sm:$0x1] %vm192, %v195
  $region17: #{resnet_generator_forward.50} parent=0 // pred_fallthru
    _
  // Predicated region
  $region18: #{resnet_generator_forward.50} parent=0 // pred_check
    _
  $region19: #{resnet_generator_forward.50} parent=0 // pred_check_branch
    %198 = sbr.rel (0) target = $region21
  $region20: #{resnet_generator_forward.50} parent=0 // pred_region
    _
  $region21: #{resnet_generator_forward.50} parent=0 // pred_fallthru
    _
  // Predicated region
  $region22: #{resnet_generator_forward.50} parent=0 // pred_check
    _
  $region23: #{resnet_generator_forward.50} parent=0 // pred_check_branch
    %200 = sbr.rel (0) target = $region25
  $region24: #{resnet_generator_forward.50} parent=0 // pred_region
    _
  $region25: #{resnet_generator_forward.50} parent=0 // pred_fallthru
    _
  // Predicated region
  $region26: #{resnet_generator_forward.50} parent=0 // pred_check
    _
  $region27: #{resnet_generator_forward.50} parent=0 // pred_check_branch
    %202 = sbr.rel (0) target = $region29
  $region28: #{resnet_generator_forward.50} parent=0 // pred_region
    _
  $region29: #{resnet_generator_forward.50} parent=0 // pred_fallthru
    _
  // Predicated region
  $region30: #{resnet_generator_forward.50} parent=0 // pred_check
    _
  $region31: #{resnet_generator_forward.50} parent=0 // pred_check_branch
    %204 = sbr.rel (0) target = $region33
  $region32: #{resnet_generator_forward.50} parent=0 // pred_region
    _
  $region33: #{resnet_generator_forward.50} parent=0 // pred_fallthru
    _
  // Predicated region
  $region34: #{resnet_generator_forward.50} parent=0 // pred_check
    _
  $region35: #{resnet_generator_forward.50} parent=0 // pred_check_branch
    %206 = sbr.rel (0) target = $region37
  $region36: #{resnet_generator_forward.50} parent=0 // pred_region
    _
  $region37: #{resnet_generator_forward.50} parent=0 // pred_fallthru
    _
  // Predicated region
  $region38: #{resnet_generator_forward.50} parent=0 // pred_check
    _
  $region39: #{resnet_generator_forward.50} parent=0 // pred_check_branch
    %208 = sbr.rel (0) target = $region41
  $region40: #{resnet_generator_forward.50} parent=0 // pred_region
    _
  $region41: #{resnet_generator_forward.50} parent=0 // pred_fallthru
    _

// kernel: resnet_generator_forward.48
$region0: #{resnet_generator_forward.48}
  #allocation0 [shape = 'u32[]', space=smem, size = 0x4, offset = 0x4, fixed_abs, tag = 'smem constant byte address 0x4 - core index']
  #allocation1 [shape = 'u32[144,128]{1,0:T(1,128)}', space=vmem, size = 0x12000, scoped, tag = 'internal scratch']
  %s0 = inlined_call_operand.vmem [shape: bf16[32,64], index: 0, kind: input, shape index: {}]
  %s1 = inlined_call_operand.vmem [shape: bf16[64,16], index: 1, kind: input, shape index: {}]
  %s2 = inlined_call_operand.vmem [shape: f32[32,16], index: 2, kind: output, shape index: {0}]
  %s3 = inlined_call_operand.vmem [shape: f32[1,16], index: 3, kind: output, shape index: {1}]
  %s4 = inlined_call_operand.vmem [shape: f32[1,16], index: 4, kind: output, shape index: {2}]
  %5 = xla_tuple %s2, %s3, %s4
  %s6 = sld [smem:[#allocation0]]
  $region42: #{resnet_generator_forward.48} parent=0
    _
  %s8 = ssub.s32 1, %s6
  %s9 = scalar_select 0, %s8, %s6
  // Predicated region
  $region2: #{resnet_generator_forward.48} parent=0 // pred_check
    _
  $region3: #{resnet_generator_forward.48} parent=0 // pred_check_branch
    %11 = sbr.rel (0) target = $region5
  $region4: #{resnet_generator_forward.48} parent=0 // pred_region
    _
  $region5: #{resnet_generator_forward.48} parent=0 // pred_fallthru
    _
  // Predicated region
  $region6: #{resnet_generator_forward.48} parent=0 // pred_check
    _
  $region7: #{resnet_generator_forward.48} parent=0 // pred_check_branch
    %13 = sbr.rel (0) target = $region9
  $region8: #{resnet_generator_forward.48} parent=0 // pred_region
    _
  $region9: #{resnet_generator_forward.48} parent=0 // pred_fallthru
    _
  %v15 = vld [vmem:[%s0] sm:$0xf]
  %v16 = vld [vmem:[%s0 + $0x4] sm:$0xf]
  %v17 = vld [vmem:[%s0 + $0x8] sm:$0xf]
  %v18 = vld [vmem:[%s0 + $0xc] sm:$0xf]
  %v19 = vld [vmem:[%s1] sm:$0xf]
  %v20 = vld [vmem:[%s1 + $0x4] sm:$0xf]
  %v21 = vld [vmem:[%s1 + $0x8] sm:$0xf]
  %v22 = vld [vmem:[%s1 + $0xc] sm:$0xf]
  %v23 = vld [vmem:[%s1 + $0x10] sm:$0xf]
  %v24 = vld [vmem:[%s1 + $0x14] sm:$0xf]
  %v25 = vld [vmem:[%s1 + $0x18] sm:$0xf]
  %v26 = vld [vmem:[%s1 + $0x1c] sm:$0xf]
  %v31 = vunpack.c.l.b16 %v15
  %v32 = vunpack.c.l.b16 %v16
  %v33 = vunpack.c.l.b16 %v17
  %v34 = vunpack.c.l.b16 %v18
  %v35 = vpack.c.b16 %v32, %v31
  %v36 = vpack.c.b16 %v34, %v33
  %v45 = vunpack.c.l.b16 %v19
  %v46 = vunpack.c.l.b16 %v20
  %v47 = vunpack.c.l.b16 %v21
  %v48 = vunpack.c.l.b16 %v22
  %v49 = vunpack.c.l.b16 %v23
  %v50 = vunpack.c.l.b16 %v24
  %v51 = vunpack.c.l.b16 %v25
  %v52 = vunpack.c.l.b16 %v26
  %v53 = vpack.c.b16 %v46, %v45
  %v54 = vpack.c.b16 %v48, %v47
  %v55 = vpack.c.b16 %v50, %v49
  %v56 = vpack.c.b16 %v52, %v51
  %vm61 = vcmask 523264
  %v63 = vsel %vm61, %v35, 0
  %v66 = vsel %vm61, %v36, 0
  %68 = vmatprep.subr.bf16.mxu0 0
  %69 = vmatpush1.bf16.msra.mxu0 %v53
  %70 = vmatprep.subr.bf16.mxu0 0
  %71 = vmatpush1.bf16.msra.mxu0 %v54
  %72 = vmatprep.subr.bf16.mxu0 0
  %73 = vmatpush1.bf16.msra.mxu0 %v55
  %74 = vmatprep.subr.bf16.mxu0 0
  %75 = vmatpush1.bf16.msra.mxu0 %v56
  %76 = vmatprep.subr.bf16.mxu0 0
  %77 = vmatpush1.bf16.msra.mxu0 0
  %78 = vmatprep.subr.bf16.mxu0 0
  %79 = vmatpush1.bf16.msra.mxu0 0
  %80 = vmatprep.subr.bf16.mxu0 0
  %81 = vmatpush1.bf16.msra.mxu0 0
  %82 = vmatprep.subr.bf16.mxu0 0
  %83 = vmatpush1.bf16.msra.mxu0 0
  %84 = vmatprep.subr.bf16.mxu0 0
  %85 = vmatpush1.bf16.msra.mxu0 0
  %86 = vmatprep.subr.bf16.mxu0 0
  %87 = vmatpush1.bf16.msra.mxu0 0
  %88 = vmatprep.subr.bf16.mxu0 0
  %89 = vmatpush1.bf16.msra.mxu0 0
  %90 = vmatprep.subr.bf16.mxu0 0
  %91 = vmatpush1.bf16.msra.mxu0 0
  %92 = vmatprep.subr.bf16.mxu0 0
  %93 = vmatpush1.bf16.msra.mxu0 0
  %94 = vmatprep.subr.bf16.mxu0 0
  %95 = vmatpush1.bf16.msra.mxu0 0
  %96 = vmatprep.subr.bf16.mxu0 0
  %97 = vmatpush1.bf16.msra.mxu0 0
  %98 = vmatprep.subr.bf16.mxu0 0
  %99 = vmatpush1.bf16.msra.mxu0 0
  %100 = vmatprep.mubr.bf16.mxu0 0
  %101 = vmatmul.mubr.bf16.gmra.mrb[0].mxu0 %v63
  %v102 = vpop.f32.mrb[0].mxu0
  %v103 = vadd.f32 0.0, %v102
  %v104 = vpop.f32.mrb[0].mxu0
  %v105 = vpop.f32.mrb[0].mxu0
  %v106 = vadd.f32 0.0, %v105
  %v107 = vpop.f32.mrb[0].mxu0
  %108 = vmatprep.mubr.bf16.mxu0 0
  %109 = vmatmul.mubr.bf16.gmra.mrb[0].mxu0 %v66
  %v110 = vpop.f32.mrb[0].mxu0
  %v111 = vadd.f32 0.0, %v110
  %v112 = vpop.f32.mrb[0].mxu0
  %v113 = vpop.f32.mrb[0].mxu0
  %v114 = vadd.f32 0.0, %v113
  %v115 = vpop.f32.mrb[0].mxu0
  %116 = vdwg.mxu0
  %vm117 = vcmask 130048
  %118 = vst.msk [vmem:[%s2] sm:$0xff] %vm117, %v103
  %119 = vst.msk [vmem:[%s2 + $0x8] sm:$0xff] %vm117, %v106
  %120 = vst.msk [vmem:[%s2 + $0x10] sm:$0xff] %vm117, %v111
  %121 = vst.msk [vmem:[%s2 + $0x18] sm:$0xff] %vm117, %v114
  %v122 = vsel %vm117, %v103, 0.0
  %v123 = vsel %vm117, %v106, 0.0
  %v124 = vadd.f32 %v122, %v123
  %v125 = vsel %vm117, %v111, 0.0
  %v126 = vadd.f32 %v124, %v125
  %v127 = vsel %vm117, %v114, 0.0
  %v128 = vadd.f32 %v126, %v127
  %v129 = vrot.slane %v128, 4
  %v130 = vadd.f32 %v128, %v129
  %v131 = vrot.slane %v130, 2
  %v132 = vadd.f32 %v130, %v131
  %v133 = vrot.slane %v132, 1
  %v134 = vadd.f32 %v132, %v133
  %v135 = vmul.f32 %v103, %v103
  %v136 = vmul.f32 %v106, %v106
  %v137 = vmul.f32 %v111, %v111
  %v138 = vmul.f32 %v114, %v114
  %v139 = vsel %vm117, %v135, 0.0
  %v140 = vsel %vm117, %v136, 0.0
  %v141 = vadd.f32 %v139, %v140
  %v142 = vsel %vm117, %v137, 0.0
  %v143 = vadd.f32 %v141, %v142
  %v144 = vsel %vm117, %v138, 0.0
  %v145 = vadd.f32 %v143, %v144
  %v146 = vrot.slane %v145, 4
  %v147 = vadd.f32 %v145, %v146
  %v148 = vrot.slane %v147, 2
  %v149 = vadd.f32 %v147, %v148
  %v150 = vrot.slane %v149, 1
  %v151 = vadd.f32 %v149, %v150
  %p152 = scmp.eq.s32.totalorder 0, 0
  // Predicated region
  $region10: #{resnet_generator_forward.48} parent=0 // pred_check
    %p153 = pneg %p152
  $region11: #{resnet_generator_forward.48} parent=0 // pred_check_branch
    %155 = sbr.rel (%p153) target = $region13
  $region12: #{resnet_generator_forward.48} parent=0 // pred_region
    %vm156 = vcmask 122880
    %157 = vst.msk [vmem:[%s3] sm:$0x1] %vm156, %v134
    %158 = vst.msk [vmem:[%s4] sm:$0x1] %vm156, %v151
  $region13: #{resnet_generator_forward.48} parent=0 // pred_fallthru
    _
  %p159 = scmp.ne.s32.totalorder 0, 0
  // Predicated region
  $region14: #{resnet_generator_forward.48} parent=0 // pred_check
    %p160 = pneg %p159
  $region15: #{resnet_generator_forward.48} parent=0 // pred_check_branch
    %162 = sbr.rel (%p160) target = $region17
  $region16: #{resnet_generator_forward.48} parent=0 // pred_region
    %v163 = vld [vmem:[%s3] sm:$0x1]
    %v164 = vadd.f32 %v163, %v134
    %vm165 = vcmask 122880
    %166 = vst.msk [vmem:[%s3] sm:$0x1] %vm165, %v164
    %v167 = vld [vmem:[%s4] sm:$0x1]
    %v168 = vadd.f32 %v167, %v151
    %169 = vst.msk [vmem:[%s4] sm:$0x1] %vm165, %v168
  $region17: #{resnet_generator_forward.48} parent=0 // pred_fallthru
    _
  // Predicated region
  $region18: #{resnet_generator_forward.48} parent=0 // pred_check
    _
  $region19: #{resnet_generator_forward.48} parent=0 // pred_check_branch
    %171 = sbr.rel (0) target = $region21
  $region20: #{resnet_generator_forward.48} parent=0 // pred_region
    _
  $region21: #{resnet_generator_forward.48} parent=0 // pred_fallthru
    _
  // Predicated region
  $region22: #{resnet_generator_forward.48} parent=0 // pred_check
    _
  $region23: #{resnet_generator_forward.48} parent=0 // pred_check_branch
    %173 = sbr.rel (0) target = $region25
  $region24: #{resnet_generator_forward.48} parent=0 // pred_region
    _
  $region25: #{resnet_generator_forward.48} parent=0 // pred_fallthru
    _
  // Predicated region
  $region26: #{resnet_generator_forward.48} parent=0 // pred_check
    _
  $region27: #{resnet_generator_forward.48} parent=0 // pred_check_branch
    %175 = sbr.rel (0) target = $region29
  $region28: #{resnet_generator_forward.48} parent=0 // pred_region
    _
  $region29: #{resnet_generator_forward.48} parent=0 // pred_fallthru
    _
  // Predicated region
  $region30: #{resnet_generator_forward.48} parent=0 // pred_check
    _
  $region31: #{resnet_generator_forward.48} parent=0 // pred_check_branch
    %177 = sbr.rel (0) target = $region33
  $region32: #{resnet_generator_forward.48} parent=0 // pred_region
    _
  $region33: #{resnet_generator_forward.48} parent=0 // pred_fallthru
    _
  // Predicated region
  $region34: #{resnet_generator_forward.48} parent=0 // pred_check
    _
  $region35: #{resnet_generator_forward.48} parent=0 // pred_check_branch
    %179 = sbr.rel (0) target = $region37
  $region36: #{resnet_generator_forward.48} parent=0 // pred_region
    _
  $region37: #{resnet_generator_forward.48} parent=0 // pred_fallthru
    _
  // Predicated region
  $region38: #{resnet_generator_forward.48} parent=0 // pred_check
    _
  $region39: #{resnet_generator_forward.48} parent=0 // pred_check_branch
    %181 = sbr.rel (0) target = $region41
  $region40: #{resnet_generator_forward.48} parent=0 // pred_region
    _
  $region41: #{resnet_generator_forward.48} parent=0 // pred_fallthru
    _

// kernel: resnet_generator_forward.52
$region0: #{resnet_generator_forward.52}
  #allocation0 [shape = 'u32[]', space=smem, size = 0x4, offset = 0x4, fixed_abs, tag = 'smem constant byte address 0x4 - core index']
  #allocation1 [shape = 'u32[144,128]{1,0:T(1,128)}', space=vmem, size = 0x12000, scoped, tag = 'internal scratch']
  %s0 = inlined_call_operand.vmem [shape: bf16[128,16], index: 0, kind: input, shape index: {}]
  %s1 = inlined_call_operand.vmem [shape: bf16[16,8], index: 1, kind: input, shape index: {}]
  %s2 = inlined_call_operand.vmem [shape: f32[128,8], index: 2, kind: output, shape index: {0}]
  %s3 = inlined_call_operand.vmem [shape: f32[1,8], index: 3, kind: output, shape index: {1}]
  %s4 = inlined_call_operand.vmem [shape: f32[1,8], index: 4, kind: output, shape index: {2}]
  %5 = xla_tuple %s2, %s3, %s4
  %s6 = sld [smem:[#allocation0]]
  $region42: #{resnet_generator_forward.52} parent=0
    _
  %s8 = ssub.s32 1, %s6
  %s9 = scalar_select 0, %s8, %s6
  // Predicated region
  $region2: #{resnet_generator_forward.52} parent=0 // pred_check
    _
  $region3: #{resnet_generator_forward.52} parent=0 // pred_check_branch
    %11 = sbr.rel (0) target = $region5
  $region4: #{resnet_generator_forward.52} parent=0 // pred_region
    _
  $region5: #{resnet_generator_forward.52} parent=0 // pred_fallthru
    _
  // Predicated region
  $region6: #{resnet_generator_forward.52} parent=0 // pred_check
    _
  $region7: #{resnet_generator_forward.52} parent=0 // pred_check_branch
    %13 = sbr.rel (0) target = $region9
  $region8: #{resnet_generator_forward.52} parent=0 // pred_region
    _
  $region9: #{resnet_generator_forward.52} parent=0 // pred_fallthru
    _
  %v15 = vld [vmem:[%s0] sm:$0xf]
  %v16 = vld [vmem:[%s0 + $0x4] sm:$0xf]
  %v17 = vld [vmem:[%s0 + $0x8] sm:$0xf]
  %v18 = vld [vmem:[%s0 + $0xc] sm:$0xf]
  %v19 = vld [vmem:[%s0 + $0x10] sm:$0xf]
  %v20 = vld [vmem:[%s0 + $0x14] sm:$0xf]
  %v21 = vld [vmem:[%s0 + $0x18] sm:$0xf]
  %v22 = vld [vmem:[%s0 + $0x1c] sm:$0xf]
  %v23 = vld [vmem:[%s0 + $0x20] sm:$0xf]
  %v24 = vld [vmem:[%s0 + $0x24] sm:$0xf]
  %v25 = vld [vmem:[%s0 + $0x28] sm:$0xf]
  %v26 = vld [vmem:[%s0 + $0x2c] sm:$0xf]
  %v27 = vld [vmem:[%s0 + $0x30] sm:$0xf]
  %v28 = vld [vmem:[%s0 + $0x34] sm:$0xf]
  %v29 = vld [vmem:[%s0 + $0x38] sm:$0xf]
  %v30 = vld [vmem:[%s0 + $0x3c] sm:$0xf]
  %v31 = vld [vmem:[%s1] sm:$0xf]
  %v32 = vld [vmem:[%s1 + $0x4] sm:$0xf]
  %v49 = vunpack.c.l.b16 %v15
  %v50 = vunpack.c.l.b16 %v16
  %v51 = vunpack.c.l.b16 %v17
  %v52 = vunpack.c.l.b16 %v18
  %v53 = vunpack.c.l.b16 %v19
  %v54 = vunpack.c.l.b16 %v20
  %v55 = vunpack.c.l.b16 %v21
  %v56 = vunpack.c.l.b16 %v22
  %v57 = vunpack.c.l.b16 %v23
  %v58 = vunpack.c.l.b16 %v24
  %v59 = vunpack.c.l.b16 %v25
  %v60 = vunpack.c.l.b16 %v26
  %v61 = vunpack.c.l.b16 %v27
  %v62 = vunpack.c.l.b16 %v28
  %v63 = vunpack.c.l.b16 %v29
  %v64 = vunpack.c.l.b16 %v30
  %v65 = vpack.c.b16 %v50, %v49
  %v66 = vpack.c.b16 %v52, %v51
  %v67 = vpack.c.b16 %v54, %v53
  %v68 = vpack.c.b16 %v56, %v55
  %v69 = vpack.c.b16 %v58, %v57
  %v70 = vpack.c.b16 %v60, %v59
  %v71 = vpack.c.b16 %v62, %v61
  %v72 = vpack.c.b16 %v64, %v63
  %v75 = vunpack.c.l.b16 %v31
  %v76 = vunpack.c.l.b16 %v32
  %v77 = vpack.c.b16 %v76, %v75
  %vm79 = vcmask 130048
  %v81 = vsel %vm79, %v65, 0
  %v84 = vsel %vm79, %v66, 0
  %v87 = vsel %vm79, %v67, 0
  %v90 = vsel %vm79, %v68, 0
  %v93 = vsel %vm79, %v69, 0
  %v96 = vsel %vm79, %v70, 0
  %v99 = vsel %vm79, %v71, 0
  %v102 = vsel %vm79, %v72, 0
  %104 = vmatprep.subr.bf16.mxu0 0
  %105 = vmatpush1.bf16.msra.mxu0 %v77
  %106 = vmatprep.subr.bf16.mxu0 0
  %107 = vmatpush1.bf16.msra.mxu0 0
  %108 = vmatprep.subr.bf16.mxu0 0
  %109 = vmatpush1.bf16.msra.mxu0 0
  %110 = vmatprep.subr.bf16.mxu0 0
  %111 = vmatpush1.bf16.msra.mxu0 0
  %112 = vmatprep.subr.bf16.mxu0 0
  %113 = vmatpush1.bf16.msra.mxu0 0
  %114 = vmatprep.subr.bf16.mxu0 0
  %115 = vmatpush1.bf16.msra.mxu0 0
  %116 = vmatprep.subr.bf16.mxu0 0
  %117 = vmatpush1.bf16.msra.mxu0 0
  %118 = vmatprep.subr.bf16.mxu0 0
  %119 = vmatpush1.bf16.msra.mxu0 0
  %120 = vmatprep.subr.bf16.mxu0 0
  %121 = vmatpush1.bf16.msra.mxu0 0
  %122 = vmatprep.subr.bf16.mxu0 0
  %123 = vmatpush1.bf16.msra.mxu0 0
  %124 = vmatprep.subr.bf16.mxu0 0
  %125 = vmatpush1.bf16.msra.mxu0 0
  %126 = vmatprep.subr.bf16.mxu0 0
  %127 = vmatpush1.bf16.msra.mxu0 0
  %128 = vmatprep.subr.bf16.mxu0 0
  %129 = vmatpush1.bf16.msra.mxu0 0
  %130 = vmatprep.subr.bf16.mxu0 0
  %131 = vmatpush1.bf16.msra.mxu0 0
  %132 = vmatprep.subr.bf16.mxu0 0
  %133 = vmatpush1.bf16.msra.mxu0 0
  %134 = vmatprep.subr.bf16.mxu0 0
  %135 = vmatpush1.bf16.msra.mxu0 0
  %136 = vmatprep.mubr.bf16.mxu0 0
  %137 = vmatmul.mubr.bf16.gmra.mrb[0].mxu0 %v81
  %v138 = vpop.f32.mrb[0].mxu0
  %v139 = vadd.f32 0.0, %v138
  %v140 = vpop.f32.mrb[0].mxu0
  %v141 = vpop.f32.mrb[0].mxu0
  %v142 = vadd.f32 0.0, %v141
  %v143 = vpop.f32.mrb[0].mxu0
  %144 = vmatprep.mubr.bf16.mxu0 0
  %145 = vmatmul.mubr.bf16.gmra.mrb[0].mxu0 %v84
  %v146 = vpop.f32.mrb[0].mxu0
  %v147 = vadd.f32 0.0, %v146
  %v148 = vpop.f32.mrb[0].mxu0
  %v149 = vpop.f32.mrb[0].mxu0
  %v150 = vadd.f32 0.0, %v149
  %v151 = vpop.f32.mrb[0].mxu0
  %152 = vmatprep.mubr.bf16.mxu0 0
  %153 = vmatmul.mubr.bf16.gmra.mrb[0].mxu0 %v87
  %v154 = vpop.f32.mrb[0].mxu0
  %v155 = vadd.f32 0.0, %v154
  %v156 = vpop.f32.mrb[0].mxu0
  %v157 = vpop.f32.mrb[0].mxu0
  %v158 = vadd.f32 0.0, %v157
  %v159 = vpop.f32.mrb[0].mxu0
  %160 = vmatprep.mubr.bf16.mxu0 0
  %161 = vmatmul.mubr.bf16.gmra.mrb[0].mxu0 %v90
  %v162 = vpop.f32.mrb[0].mxu0
  %v163 = vadd.f32 0.0, %v162
  %v164 = vpop.f32.mrb[0].mxu0
  %v165 = vpop.f32.mrb[0].mxu0
  %v166 = vadd.f32 0.0, %v165
  %v167 = vpop.f32.mrb[0].mxu0
  %168 = vmatprep.mubr.bf16.mxu0 0
  %169 = vmatmul.mubr.bf16.gmra.mrb[0].mxu0 %v93
  %v170 = vpop.f32.mrb[0].mxu0
  %v171 = vadd.f32 0.0, %v170
  %v172 = vpop.f32.mrb[0].mxu0
  %v173 = vpop.f32.mrb[0].mxu0
  %v174 = vadd.f32 0.0, %v173
  %v175 = vpop.f32.mrb[0].mxu0
  %176 = vmatprep.mubr.bf16.mxu0 0
  %177 = vmatmul.mubr.bf16.gmra.mrb[0].mxu0 %v96
  %v178 = vpop.f32.mrb[0].mxu0
  %v179 = vadd.f32 0.0, %v178
  %v180 = vpop.f32.mrb[0].mxu0
  %v181 = vpop.f32.mrb[0].mxu0
  %v182 = vadd.f32 0.0, %v181
  %v183 = vpop.f32.mrb[0].mxu0
  %184 = vmatprep.mubr.bf16.mxu0 0
  %185 = vmatmul.mubr.bf16.gmra.mrb[0].mxu0 %v99
  %v186 = vpop.f32.mrb[0].mxu0
  %v187 = vadd.f32 0.0, %v186
  %v188 = vpop.f32.mrb[0].mxu0
  %v189 = vpop.f32.mrb[0].mxu0
  %v190 = vadd.f32 0.0, %v189
  %v191 = vpop.f32.mrb[0].mxu0
  %192 = vmatprep.mubr.bf16.mxu0 0
  %193 = vmatmul.mubr.bf16.gmra.mrb[0].mxu0 %v102
  %v194 = vpop.f32.mrb[0].mxu0
  %v195 = vadd.f32 0.0, %v194
  %v196 = vpop.f32.mrb[0].mxu0
  %v197 = vpop.f32.mrb[0].mxu0
  %v198 = vadd.f32 0.0, %v197
  %v199 = vpop.f32.mrb[0].mxu0
  %200 = vdwg.mxu0
  %vm201 = vcmask 64512
  %202 = vst.msk [vmem:[%s2] sm:$0xff] %vm201, %v139
  %203 = vst.msk [vmem:[%s2 + $0x8] sm:$0xff] %vm201, %v142
  %204 = vst.msk [vmem:[%s2 + $0x10] sm:$0xff] %vm201, %v147
  %205 = vst.msk [vmem:[%s2 + $0x18] sm:$0xff] %vm201, %v150
  %206 = vst.msk [vmem:[%s2 + $0x20] sm:$0xff] %vm201, %v155
  %207 = vst.msk [vmem:[%s2 + $0x28] sm:$0xff] %vm201, %v158
  %208 = vst.msk [vmem:[%s2 + $0x30] sm:$0xff] %vm201, %v163
  %209 = vst.msk [vmem:[%s2 + $0x38] sm:$0xff] %vm201, %v166
  %210 = vst.msk [vmem:[%s2 + $0x40] sm:$0xff] %vm201, %v171
  %211 = vst.msk [vmem:[%s2 + $0x48] sm:$0xff] %vm201, %v174
  %212 = vst.msk [vmem:[%s2 + $0x50] sm:$0xff] %vm201, %v179
  %213 = vst.msk [vmem:[%s2 + $0x58] sm:$0xff] %vm201, %v182
  %214 = vst.msk [vmem:[%s2 + $0x60] sm:$0xff] %vm201, %v187
  %215 = vst.msk [vmem:[%s2 + $0x68] sm:$0xff] %vm201, %v190
  %216 = vst.msk [vmem:[%s2 + $0x70] sm:$0xff] %vm201, %v195
  %217 = vst.msk [vmem:[%s2 + $0x78] sm:$0xff] %vm201, %v198
  %v218 = vsel %vm201, %v139, 0.0
  %v219 = vsel %vm201, %v142, 0.0
  %v220 = vadd.f32 %v218, %v219
  %v221 = vsel %vm201, %v147, 0.0
  %v222 = vadd.f32 %v220, %v221
  %v223 = vsel %vm201, %v150, 0.0
  %v224 = vadd.f32 %v222, %v223
  %v225 = vsel %vm201, %v155, 0.0
  %v226 = vadd.f32 %v224, %v225
  %v227 = vsel %vm201, %v158, 0.0
  %v228 = vadd.f32 %v226, %v227
  %v229 = vsel %vm201, %v163, 0.0
  %v230 = vadd.f32 %v228, %v229
  %v231 = vsel %vm201, %v166, 0.0
  %v232 = vadd.f32 %v230, %v231
  %v233 = vsel %vm201, %v171, 0.0
  %v234 = vadd.f32 %v232, %v233
  %v235 = vsel %vm201, %v174, 0.0
  %v236 = vadd.f32 %v234, %v235
  %v237 = vsel %vm201, %v179, 0.0
  %v238 = vadd.f32 %v236, %v237
  %v239 = vsel %vm201, %v182, 0.0
  %v240 = vadd.f32 %v238, %v239
  %v241 = vsel %vm201, %v187, 0.0
  %v242 = vadd.f32 %v240, %v241
  %v243 = vsel %vm201, %v190, 0.0
  %v244 = vadd.f32 %v242, %v243
  %v245 = vsel %vm201, %v195, 0.0
  %v246 = vadd.f32 %v244, %v245
  %v247 = vsel %vm201, %v198, 0.0
  %v248 = vadd.f32 %v246, %v247
  %v249 = vrot.slane %v248, 4
  %v250 = vadd.f32 %v248, %v249
  %v251 = vrot.slane %v250, 2
  %v252 = vadd.f32 %v250, %v251
  %v253 = vrot.slane %v252, 1
  %v254 = vadd.f32 %v252, %v253
  %v255 = vmul.f32 %v139, %v139
  %v256 = vmul.f32 %v142, %v142
  %v257 = vmul.f32 %v147, %v147
  %v258 = vmul.f32 %v150, %v150
  %v259 = vmul.f32 %v155, %v155
  %v260 = vmul.f32 %v158, %v158
  %v261 = vmul.f32 %v163, %v163
  %v262 = vmul.f32 %v166, %v166
  %v263 = vmul.f32 %v171, %v171
  %v264 = vmul.f32 %v174, %v174
  %v265 = vmul.f32 %v179, %v179
  %v266 = vmul.f32 %v182, %v182
  %v267 = vmul.f32 %v187, %v187
  %v268 = vmul.f32 %v190, %v190
  %v269 = vmul.f32 %v195, %v195
  %v270 = vmul.f32 %v198, %v198
  %v271 = vsel %vm201, %v255, 0.0
  %v272 = vsel %vm201, %v256, 0.0
  %v273 = vadd.f32 %v271, %v272
  %v274 = vsel %vm201, %v257, 0.0
  %v275 = vadd.f32 %v273, %v274
  %v276 = vsel %vm201, %v258, 0.0
  %v277 = vadd.f32 %v275, %v276
  %v278 = vsel %vm201, %v259, 0.0
  %v279 = vadd.f32 %v277, %v278
  %v280 = vsel %vm201, %v260, 0.0
  %v281 = vadd.f32 %v279, %v280
  %v282 = vsel %vm201, %v261, 0.0
  %v283 = vadd.f32 %v281, %v282
  %v284 = vsel %vm201, %v262, 0.0
  %v285 = vadd.f32 %v283, %v284
  %v286 = vsel %vm201, %v263, 0.0
  %v287 = vadd.f32 %v285, %v286
  %v288 = vsel %vm201, %v264, 0.0
  %v289 = vadd.f32 %v287, %v288
  %v290 = vsel %vm201, %v265, 0.0
  %v291 = vadd.f32 %v289, %v290
  %v292 = vsel %vm201, %v266, 0.0
  %v293 = vadd.f32 %v291, %v292
  %v294 = vsel %vm201, %v267, 0.0
  %v295 = vadd.f32 %v293, %v294
  %v296 = vsel %vm201, %v268, 0.0
  %v297 = vadd.f32 %v295, %v296
  %v298 = vsel %vm201, %v269, 0.0
  %v299 = vadd.f32 %v297, %v298
  %v300 = vsel %vm201, %v270, 0.0
  %v301 = vadd.f32 %v299, %v300
  %v302 = vrot.slane %v301, 4
  %v303 = vadd.f32 %v301, %v302
  %v304 = vrot.slane %v303, 2
  %v305 = vadd.f32 %v303, %v304
  %v306 = vrot.slane %v305, 1
  %v307 = vadd.f32 %v305, %v306
  %p308 = scmp.eq.s32.totalorder 0, 0
  // Predicated region
  $region10: #{resnet_generator_forward.52} parent=0 // pred_check
    %p309 = pneg %p308
  $region11: #{resnet_generator_forward.52} parent=0 // pred_check_branch
    %311 = sbr.rel (%p309) target = $region13
  $region12: #{resnet_generator_forward.52} parent=0 // pred_region
    %vm312 = vcmask 57344
    %313 = vst.msk [vmem:[%s3] sm:$0x1] %vm312, %v254
    %314 = vst.msk [vmem:[%s4] sm:$0x1] %vm312, %v307
  $region13: #{resnet_generator_forward.52} parent=0 // pred_fallthru
    _
  %p315 = scmp.ne.s32.totalorder 0, 0
  // Predicated region
  $region14: #{resnet_generator_forward.52} parent=0 // pred_check
    %p316 = pneg %p315
  $region15: #{resnet_generator_forward.52} parent=0 // pred_check_branch
    %318 = sbr.rel (%p316) target = $region17
  $region16: #{resnet_generator_forward.52} parent=0 // pred_region
    %v319 = vld [vmem:[%s3] sm:$0x1]
    %v320 = vadd.f32 %v319, %v254
    %vm321 = vcmask 57344
    %322 = vst.msk [vmem:[%s3] sm:$0x1] %vm321, %v320
    %v323 = vld [vmem:[%s4] sm:$0x1]
    %v324 = vadd.f32 %v323, %v307
    %325 = vst.msk [vmem:[%s4] sm:$0x1] %vm321, %v324
  $region17: #{resnet_generator_forward.52} parent=0 // pred_fallthru
    _
  // Predicated region
  $region18: #{resnet_generator_forward.52} parent=0 // pred_check
    _
  $region19: #{resnet_generator_forward.52} parent=0 // pred_check_branch
    %327 = sbr.rel (0) target = $region21
  $region20: #{resnet_generator_forward.52} parent=0 // pred_region
    _
  $region21: #{resnet_generator_forward.52} parent=0 // pred_fallthru
    _
  // Predicated region
  $region22: #{resnet_generator_forward.52} parent=0 // pred_check
    _
  $region23: #{resnet_generator_forward.52} parent=0 // pred_check_branch
    %329 = sbr.rel (0) target = $region25
  $region24: #{resnet_generator_forward.52} parent=0 // pred_region
    _
  $region25: #{resnet_generator_forward.52} parent=0 // pred_fallthru
    _
  // Predicated region
  $region26: #{resnet_generator_forward.52} parent=0 // pred_check
    _
  $region27: #{resnet_generator_forward.52} parent=0 // pred_check_branch
    %331 = sbr.rel (0) target = $region29
  $region28: #{resnet_generator_forward.52} parent=0 // pred_region
    _
  $region29: #{resnet_generator_forward.52} parent=0 // pred_fallthru
    _
  // Predicated region
  $region30: #{resnet_generator_forward.52} parent=0 // pred_check
    _
  $region31: #{resnet_generator_forward.52} parent=0 // pred_check_branch
    %333 = sbr.rel (0) target = $region33
  $region32: #{resnet_generator_forward.52} parent=0 // pred_region
    _
  $region33: #{resnet_generator_forward.52} parent=0 // pred_fallthru
    _
  // Predicated region
  $region34: #{resnet_generator_forward.52} parent=0 // pred_check
    _
  $region35: #{resnet_generator_forward.52} parent=0 // pred_check_branch
    %335 = sbr.rel (0) target = $region37
  $region36: #{resnet_generator_forward.52} parent=0 // pred_region
    _
  $region37: #{resnet_generator_forward.52} parent=0 // pred_fallthru
    _
  // Predicated region
  $region38: #{resnet_generator_forward.52} parent=0 // pred_check
    _
  $region39: #{resnet_generator_forward.52} parent=0 // pred_check_branch
    %337 = sbr.rel (0) target = $region41
  $region40: #{resnet_generator_forward.52} parent=0 // pred_region
    _
  $region41: #{resnet_generator_forward.52} parent=0 // pred_fallthru
    _

// kernel: resnet_generator_forward.55
$region0: #{resnet_generator_forward.55}
  #allocation0 [shape = 'u32[]', space=smem, size = 0x4, offset = 0x4, fixed_abs, tag = 'smem constant byte address 0x4 - core index']
  #allocation1 [shape = 'u32[144,128]{1,0:T(1,128)}', space=vmem, size = 0x12000, scoped, tag = 'internal scratch']
  %s0 = inlined_call_operand.vmem [shape: bf16[128,64], index: 0, kind: input, shape index: {}]
  %s1 = inlined_call_operand.vmem [shape: bf16[64,8], index: 1, kind: input, shape index: {}]
  %s2 = inlined_call_operand.vmem [shape: f32[128,8], index: 2, kind: output, shape index: {0}]
  %s3 = inlined_call_operand.vmem [shape: f32[1,8], index: 3, kind: output, shape index: {1}]
  %s4 = inlined_call_operand.vmem [shape: f32[1,8], index: 4, kind: output, shape index: {2}]
  %5 = xla_tuple %s2, %s3, %s4
  %s6 = sld [smem:[#allocation0]]
  $region42: #{resnet_generator_forward.55} parent=0
    _
  %s8 = ssub.s32 1, %s6
  %s9 = scalar_select 0, %s8, %s6
  // Predicated region
  $region2: #{resnet_generator_forward.55} parent=0 // pred_check
    _
  $region3: #{resnet_generator_forward.55} parent=0 // pred_check_branch
    %11 = sbr.rel (0) target = $region5
  $region4: #{resnet_generator_forward.55} parent=0 // pred_region
    _
  $region5: #{resnet_generator_forward.55} parent=0 // pred_fallthru
    _
  // Predicated region
  $region6: #{resnet_generator_forward.55} parent=0 // pred_check
    _
  $region7: #{resnet_generator_forward.55} parent=0 // pred_check_branch
    %13 = sbr.rel (0) target = $region9
  $region8: #{resnet_generator_forward.55} parent=0 // pred_region
    _
  $region9: #{resnet_generator_forward.55} parent=0 // pred_fallthru
    _
  %v15 = vld [vmem:[%s0] sm:$0xf]
  %v16 = vld [vmem:[%s0 + $0x4] sm:$0xf]
  %v17 = vld [vmem:[%s0 + $0x8] sm:$0xf]
  %v18 = vld [vmem:[%s0 + $0xc] sm:$0xf]
  %v19 = vld [vmem:[%s0 + $0x10] sm:$0xf]
  %v20 = vld [vmem:[%s0 + $0x14] sm:$0xf]
  %v21 = vld [vmem:[%s0 + $0x18] sm:$0xf]
  %v22 = vld [vmem:[%s0 + $0x1c] sm:$0xf]
  %v23 = vld [vmem:[%s0 + $0x20] sm:$0xf]
  %v24 = vld [vmem:[%s0 + $0x24] sm:$0xf]
  %v25 = vld [vmem:[%s0 + $0x28] sm:$0xf]
  %v26 = vld [vmem:[%s0 + $0x2c] sm:$0xf]
  %v27 = vld [vmem:[%s0 + $0x30] sm:$0xf]
  %v28 = vld [vmem:[%s0 + $0x34] sm:$0xf]
  %v29 = vld [vmem:[%s0 + $0x38] sm:$0xf]
  %v30 = vld [vmem:[%s0 + $0x3c] sm:$0xf]
  %v31 = vld [vmem:[%s1] sm:$0xf]
  %v32 = vld [vmem:[%s1 + $0x4] sm:$0xf]
  %v33 = vld [vmem:[%s1 + $0x8] sm:$0xf]
  %v34 = vld [vmem:[%s1 + $0xc] sm:$0xf]
  %v35 = vld [vmem:[%s1 + $0x10] sm:$0xf]
  %v36 = vld [vmem:[%s1 + $0x14] sm:$0xf]
  %v37 = vld [vmem:[%s1 + $0x18] sm:$0xf]
  %v38 = vld [vmem:[%s1 + $0x1c] sm:$0xf]
  %v55 = vunpack.c.l.b16 %v15
  %v56 = vunpack.c.l.b16 %v16
  %v57 = vunpack.c.l.b16 %v17
  %v58 = vunpack.c.l.b16 %v18
  %v59 = vunpack.c.l.b16 %v19
  %v60 = vunpack.c.l.b16 %v20
  %v61 = vunpack.c.l.b16 %v21
  %v62 = vunpack.c.l.b16 %v22
  %v63 = vunpack.c.l.b16 %v23
  %v64 = vunpack.c.l.b16 %v24
  %v65 = vunpack.c.l.b16 %v25
  %v66 = vunpack.c.l.b16 %v26
  %v67 = vunpack.c.l.b16 %v27
  %v68 = vunpack.c.l.b16 %v28
  %v69 = vunpack.c.l.b16 %v29
  %v70 = vunpack.c.l.b16 %v30
  %v71 = vpack.c.b16 %v56, %v55
  %v72 = vpack.c.b16 %v58, %v57
  %v73 = vpack.c.b16 %v60, %v59
  %v74 = vpack.c.b16 %v62, %v61
  %v75 = vpack.c.b16 %v64, %v63
  %v76 = vpack.c.b16 %v66, %v65
  %v77 = vpack.c.b16 %v68, %v67
  %v78 = vpack.c.b16 %v70, %v69
  %v87 = vunpack.c.l.b16 %v31
  %v88 = vunpack.c.l.b16 %v32
  %v89 = vunpack.c.l.b16 %v33
  %v90 = vunpack.c.l.b16 %v34
  %v91 = vunpack.c.l.b16 %v35
  %v92 = vunpack.c.l.b16 %v36
  %v93 = vunpack.c.l.b16 %v37
  %v94 = vunpack.c.l.b16 %v38
  %v95 = vpack.c.b16 %v88, %v87
  %v96 = vpack.c.b16 %v90, %v89
  %v97 = vpack.c.b16 %v92, %v91
  %v98 = vpack.c.b16 %v94, %v93
  %vm103 = vcmask 523264
  %v105 = vsel %vm103, %v71, 0
  %v108 = vsel %vm103, %v72, 0
  %v111 = vsel %vm103, %v73, 0
  %v114 = vsel %vm103, %v74, 0
  %v117 = vsel %vm103, %v75, 0
  %v120 = vsel %vm103, %v76, 0
  %v123 = vsel %vm103, %v77, 0
  %v126 = vsel %vm103, %v78, 0
  %128 = vmatprep.subr.bf16.mxu0 0
  %129 = vmatpush1.bf16.msra.mxu0 %v95
  %130 = vmatprep.subr.bf16.mxu0 0
  %131 = vmatpush1.bf16.msra.mxu0 %v96
  %132 = vmatprep.subr.bf16.mxu0 0
  %133 = vmatpush1.bf16.msra.mxu0 %v97
  %134 = vmatprep.subr.bf16.mxu0 0
  %135 = vmatpush1.bf16.msra.mxu0 %v98
  %136 = vmatprep.subr.bf16.mxu0 0
  %137 = vmatpush1.bf16.msra.mxu0 0
  %138 = vmatprep.subr.bf16.mxu0 0
  %139 = vmatpush1.bf16.msra.mxu0 0
  %140 = vmatprep.subr.bf16.mxu0 0
  %141 = vmatpush1.bf16.msra.mxu0 0
  %142 = vmatprep.subr.bf16.mxu0 0
  %143 = vmatpush1.bf16.msra.mxu0 0
  %144 = vmatprep.subr.bf16.mxu0 0
  %145 = vmatpush1.bf16.msra.mxu0 0
  %146 = vmatprep.subr.bf16.mxu0 0
  %147 = vmatpush1.bf16.msra.mxu0 0
  %148 = vmatprep.subr.bf16.mxu0 0
  %149 = vmatpush1.bf16.msra.mxu0 0
  %150 = vmatprep.subr.bf16.mxu0 0
  %151 = vmatpush1.bf16.msra.mxu0 0
  %152 = vmatprep.subr.bf16.mxu0 0
  %153 = vmatpush1.bf16.msra.mxu0 0
  %154 = vmatprep.subr.bf16.mxu0 0
  %155 = vmatpush1.bf16.msra.mxu0 0
  %156 = vmatprep.subr.bf16.mxu0 0
  %157 = vmatpush1.bf16.msra.mxu0 0
  %158 = vmatprep.subr.bf16.mxu0 0
  %159 = vmatpush1.bf16.msra.mxu0 0
  %160 = vmatprep.mubr.bf16.mxu0 0
  %161 = vmatmul.mubr.bf16.gmra.mrb[0].mxu0 %v105
  %v162 = vpop.f32.mrb[0].mxu0
  %v163 = vadd.f32 0.0, %v162
  %v164 = vpop.f32.mrb[0].mxu0
  %v165 = vpop.f32.mrb[0].mxu0
  %v166 = vadd.f32 0.0, %v165
  %v167 = vpop.f32.mrb[0].mxu0
  %168 = vmatprep.mubr.bf16.mxu0 0
  %169 = vmatmul.mubr.bf16.gmra.mrb[0].mxu0 %v108
  %v170 = vpop.f32.mrb[0].mxu0
  %v171 = vadd.f32 0.0, %v170
  %v172 = vpop.f32.mrb[0].mxu0
  %v173 = vpop.f32.mrb[0].mxu0
  %v174 = vadd.f32 0.0, %v173
  %v175 = vpop.f32.mrb[0].mxu0
  %176 = vmatprep.mubr.bf16.mxu0 0
  %177 = vmatmul.mubr.bf16.gmra.mrb[0].mxu0 %v111
  %v178 = vpop.f32.mrb[0].mxu0
  %v179 = vadd.f32 0.0, %v178
  %v180 = vpop.f32.mrb[0].mxu0
  %v181 = vpop.f32.mrb[0].mxu0
  %v182 = vadd.f32 0.0, %v181
  %v183 = vpop.f32.mrb[0].mxu0
  %184 = vmatprep.mubr.bf16.mxu0 0
  %185 = vmatmul.mubr.bf16.gmra.mrb[0].mxu0 %v114
  %v186 = vpop.f32.mrb[0].mxu0
  %v187 = vadd.f32 0.0, %v186
  %v188 = vpop.f32.mrb[0].mxu0
  %v189 = vpop.f32.mrb[0].mxu0
  %v190 = vadd.f32 0.0, %v189
  %v191 = vpop.f32.mrb[0].mxu0
  %192 = vmatprep.mubr.bf16.mxu0 0
  %193 = vmatmul.mubr.bf16.gmra.mrb[0].mxu0 %v117
  %v194 = vpop.f32.mrb[0].mxu0
  %v195 = vadd.f32 0.0, %v194
  %v196 = vpop.f32.mrb[0].mxu0
  %v197 = vpop.f32.mrb[0].mxu0
  %v198 = vadd.f32 0.0, %v197
  %v199 = vpop.f32.mrb[0].mxu0
  %200 = vmatprep.mubr.bf16.mxu0 0
  %201 = vmatmul.mubr.bf16.gmra.mrb[0].mxu0 %v120
  %v202 = vpop.f32.mrb[0].mxu0
  %v203 = vadd.f32 0.0, %v202
  %v204 = vpop.f32.mrb[0].mxu0
  %v205 = vpop.f32.mrb[0].mxu0
  %v206 = vadd.f32 0.0, %v205
  %v207 = vpop.f32.mrb[0].mxu0
  %208 = vmatprep.mubr.bf16.mxu0 0
  %209 = vmatmul.mubr.bf16.gmra.mrb[0].mxu0 %v123
  %v210 = vpop.f32.mrb[0].mxu0
  %v211 = vadd.f32 0.0, %v210
  %v212 = vpop.f32.mrb[0].mxu0
  %v213 = vpop.f32.mrb[0].mxu0
  %v214 = vadd.f32 0.0, %v213
  %v215 = vpop.f32.mrb[0].mxu0
  %216 = vmatprep.mubr.bf16.mxu0 0
  %217 = vmatmul.mubr.bf16.gmra.mrb[0].mxu0 %v126
  %v218 = vpop.f32.mrb[0].mxu0
  %v219 = vadd.f32 0.0, %v218
  %v220 = vpop.f32.mrb[0].mxu0
  %v221 = vpop.f32.mrb[0].mxu0
  %v222 = vadd.f32 0.0, %v221
  %v223 = vpop.f32.mrb[0].mxu0
  %224 = vdwg.mxu0
  %vm225 = vcmask 64512
  %226 = vst.msk [vmem:[%s2] sm:$0xff] %vm225, %v163
  %227 = vst.msk [vmem:[%s2 + $0x8] sm:$0xff] %vm225, %v166
  %228 = vst.msk [vmem:[%s2 + $0x10] sm:$0xff] %vm225, %v171
  %229 = vst.msk [vmem:[%s2 + $0x18] sm:$0xff] %vm225, %v174
  %230 = vst.msk [vmem:[%s2 + $0x20] sm:$0xff] %vm225, %v179
  %231 = vst.msk [vmem:[%s2 + $0x28] sm:$0xff] %vm225, %v182
  %232 = vst.msk [vmem:[%s2 + $0x30] sm:$0xff] %vm225, %v187
  %233 = vst.msk [vmem:[%s2 + $0x38] sm:$0xff] %vm225, %v190
  %234 = vst.msk [vmem:[%s2 + $0x40] sm:$0xff] %vm225, %v195
  %235 = vst.msk [vmem:[%s2 + $0x48] sm:$0xff] %vm225, %v198
  %236 = vst.msk [vmem:[%s2 + $0x50] sm:$0xff] %vm225, %v203
  %237 = vst.msk [vmem:[%s2 + $0x58] sm:$0xff] %vm225, %v206
  %238 = vst.msk [vmem:[%s2 + $0x60] sm:$0xff] %vm225, %v211
  %239 = vst.msk [vmem:[%s2 + $0x68] sm:$0xff] %vm225, %v214
  %240 = vst.msk [vmem:[%s2 + $0x70] sm:$0xff] %vm225, %v219
  %241 = vst.msk [vmem:[%s2 + $0x78] sm:$0xff] %vm225, %v222
  %v242 = vsel %vm225, %v163, 0.0
  %v243 = vsel %vm225, %v166, 0.0
  %v244 = vadd.f32 %v242, %v243
  %v245 = vsel %vm225, %v171, 0.0
  %v246 = vadd.f32 %v244, %v245
  %v247 = vsel %vm225, %v174, 0.0
  %v248 = vadd.f32 %v246, %v247
  %v249 = vsel %vm225, %v179, 0.0
  %v250 = vadd.f32 %v248, %v249
  %v251 = vsel %vm225, %v182, 0.0
  %v252 = vadd.f32 %v250, %v251
  %v253 = vsel %vm225, %v187, 0.0
  %v254 = vadd.f32 %v252, %v253
  %v255 = vsel %vm225, %v190, 0.0
  %v256 = vadd.f32 %v254, %v255
  %v257 = vsel %vm225, %v195, 0.0
  %v258 = vadd.f32 %v256, %v257
  %v259 = vsel %vm225, %v198, 0.0
  %v260 = vadd.f32 %v258, %v259
  %v261 = vsel %vm225, %v203, 0.0
  %v262 = vadd.f32 %v260, %v261
  %v263 = vsel %vm225, %v206, 0.0
  %v264 = vadd.f32 %v262, %v263
  %v265 = vsel %vm225, %v211, 0.0
  %v266 = vadd.f32 %v264, %v265
  %v267 = vsel %vm225, %v214, 0.0
  %v268 = vadd.f32 %v266, %v267
  %v269 = vsel %vm225, %v219, 0.0
  %v270 = vadd.f32 %v268, %v269
  %v271 = vsel %vm225, %v222, 0.0
  %v272 = vadd.f32 %v270, %v271
  %v273 = vrot.slane %v272, 4
  %v274 = vadd.f32 %v272, %v273
  %v275 = vrot.slane %v274, 2
  %v276 = vadd.f32 %v274, %v275
  %v277 = vrot.slane %v276, 1
  %v278 = vadd.f32 %v276, %v277
  %v279 = vmul.f32 %v163, %v163
  %v280 = vmul.f32 %v166, %v166
  %v281 = vmul.f32 %v171, %v171
  %v282 = vmul.f32 %v174, %v174
  %v283 = vmul.f32 %v179, %v179
  %v284 = vmul.f32 %v182, %v182
  %v285 = vmul.f32 %v187, %v187
  %v286 = vmul.f32 %v190, %v190
  %v287 = vmul.f32 %v195, %v195
  %v288 = vmul.f32 %v198, %v198
  %v289 = vmul.f32 %v203, %v203
  %v290 = vmul.f32 %v206, %v206
  %v291 = vmul.f32 %v211, %v211
  %v292 = vmul.f32 %v214, %v214
  %v293 = vmul.f32 %v219, %v219
  %v294 = vmul.f32 %v222, %v222
  %v295 = vsel %vm225, %v279, 0.0
  %v296 = vsel %vm225, %v280, 0.0
  %v297 = vadd.f32 %v295, %v296
  %v298 = vsel %vm225, %v281, 0.0
  %v299 = vadd.f32 %v297, %v298
  %v300 = vsel %vm225, %v282, 0.0
  %v301 = vadd.f32 %v299, %v300
  %v302 = vsel %vm225, %v283, 0.0
  %v303 = vadd.f32 %v301, %v302
  %v304 = vsel %vm225, %v284, 0.0
  %v305 = vadd.f32 %v303, %v304
  %v306 = vsel %vm225, %v285, 0.0
  %v307 = vadd.f32 %v305, %v306
  %v308 = vsel %vm225, %v286, 0.0
  %v309 = vadd.f32 %v307, %v308
  %v310 = vsel %vm225, %v287, 0.0
  %v311 = vadd.f32 %v309, %v310
  %v312 = vsel %vm225, %v288, 0.0
  %v313 = vadd.f32 %v311, %v312
  %v314 = vsel %vm225, %v289, 0.0
  %v315 = vadd.f32 %v313, %v314
  %v316 = vsel %vm225, %v290, 0.0
  %v317 = vadd.f32 %v315, %v316
  %v318 = vsel %vm225, %v291, 0.0
  %v319 = vadd.f32 %v317, %v318
  %v320 = vsel %vm225, %v292, 0.0
  %v321 = vadd.f32 %v319, %v320
  %v322 = vsel %vm225, %v293, 0.0
  %v323 = vadd.f32 %v321, %v322
  %v324 = vsel %vm225, %v294, 0.0
  %v325 = vadd.f32 %v323, %v324
  %v326 = vrot.slane %v325, 4
  %v327 = vadd.f32 %v325, %v326
  %v328 = vrot.slane %v327, 2
  %v329 = vadd.f32 %v327, %v328
  %v330 = vrot.slane %v329, 1
  %v331 = vadd.f32 %v329, %v330
  %p332 = scmp.eq.s32.totalorder 0, 0
  // Predicated region
  $region10: #{resnet_generator_forward.55} parent=0 // pred_check
    %p333 = pneg %p332
  $region11: #{resnet_generator_forward.55} parent=0 // pred_check_branch
    %335 = sbr.rel (%p333) target = $region13
  $region12: #{resnet_generator_forward.55} parent=0 // pred_region
    %vm336 = vcmask 57344
    %337 = vst.msk [vmem:[%s3] sm:$0x1] %vm336, %v278
    %338 = vst.msk [vmem:[%s4] sm:$0x1] %vm336, %v331
  $region13: #{resnet_generator_forward.55} parent=0 // pred_fallthru
    _
  %p339 = scmp.ne.s32.totalorder 0, 0
  // Predicated region
  $region14: #{resnet_generator_forward.55} parent=0 // pred_check
    %p340 = pneg %p339
  $region15: #{resnet_generator_forward.55} parent=0 // pred_check_branch
    %342 = sbr.rel (%p340) target = $region17
  $region16: #{resnet_generator_forward.55} parent=0 // pred_region
    %v343 = vld [vmem:[%s3] sm:$0x1]
    %v344 = vadd.f32 %v343, %v278
    %vm345 = vcmask 57344
    %346 = vst.msk [vmem:[%s3] sm:$0x1] %vm345, %v344
    %v347 = vld [vmem:[%s4] sm:$0x1]
    %v348 = vadd.f32 %v347, %v331
    %349 = vst.msk [vmem:[%s4] sm:$0x1] %vm345, %v348
  $region17: #{resnet_generator_forward.55} parent=0 // pred_fallthru
    _
  // Predicated region
  $region18: #{resnet_generator_forward.55} parent=0 // pred_check
    _
  $region19: #{resnet_generator_forward.55} parent=0 // pred_check_branch
    %351 = sbr.rel (0) target = $region21
  $region20: #{resnet_generator_forward.55} parent=0 // pred_region
    _
  $region21: #{resnet_generator_forward.55} parent=0 // pred_fallthru
    _
  // Predicated region
  $region22: #{resnet_generator_forward.55} parent=0 // pred_check
    _
  $region23: #{resnet_generator_forward.55} parent=0 // pred_check_branch
    %353 = sbr.rel (0) target = $region25
  $region24: #{resnet_generator_forward.55} parent=0 // pred_region
    _
  $region25: #{resnet_generator_forward.55} parent=0 // pred_fallthru
    _
  // Predicated region
  $region26: #{resnet_generator_forward.55} parent=0 // pred_check
    _
  $region27: #{resnet_generator_forward.55} parent=0 // pred_check_branch
    %355 = sbr.rel (0) target = $region29
  $region28: #{resnet_generator_forward.55} parent=0 // pred_region
    _
  $region29: #{resnet_generator_forward.55} parent=0 // pred_fallthru
    _
  // Predicated region
  $region30: #{resnet_generator_forward.55} parent=0 // pred_check
    _
  $region31: #{resnet_generator_forward.55} parent=0 // pred_check_branch
    %357 = sbr.rel (0) target = $region33
  $region32: #{resnet_generator_forward.55} parent=0 // pred_region
    _
  $region33: #{resnet_generator_forward.55} parent=0 // pred_fallthru
    _
  // Predicated region
  $region34: #{resnet_generator_forward.55} parent=0 // pred_check
    _
  $region35: #{resnet_generator_forward.55} parent=0 // pred_check_branch
    %359 = sbr.rel (0) target = $region37
  $region36: #{resnet_generator_forward.55} parent=0 // pred_region
    _
  $region37: #{resnet_generator_forward.55} parent=0 // pred_fallthru
    _
  // Predicated region
  $region38: #{resnet_generator_forward.55} parent=0 // pred_check
    _
  $region39: #{resnet_generator_forward.55} parent=0 // pred_check_branch
    %361 = sbr.rel (0) target = $region41
  $region40: #{resnet_generator_forward.55} parent=0 // pred_region
    _
  $region41: #{resnet_generator_forward.55} parent=0 // pred_fallthru
    _

// kernel: resnet_generator_forward.53
$region0: #{resnet_generator_forward.53}
  #allocation0 [shape = 'u32[]', space=smem, size = 0x4, offset = 0x4, fixed_abs, tag = 'smem constant byte address 0x4 - core index']
  #allocation1 [shape = 'u32[144,128]{1,0:T(1,128)}', space=vmem, size = 0x12000, scoped, tag = 'internal scratch']
  %s0 = inlined_call_operand.vmem [shape: bf16[128,32], index: 0, kind: input, shape index: {}]
  %s1 = inlined_call_operand.vmem [shape: bf16[32,8], index: 1, kind: input, shape index: {}]
  %s2 = inlined_call_operand.vmem [shape: f32[128,8], index: 2, kind: output, shape index: {0}]
  %s3 = inlined_call_operand.vmem [shape: f32[1,8], index: 3, kind: output, shape index: {1}]
  %s4 = inlined_call_operand.vmem [shape: f32[1,8], index: 4, kind: output, shape index: {2}]
  %5 = xla_tuple %s2, %s3, %s4
  %s6 = sld [smem:[#allocation0]]
  $region42: #{resnet_generator_forward.53} parent=0
    _
  %s8 = ssub.s32 1, %s6
  %s9 = scalar_select 0, %s8, %s6
  // Predicated region
  $region2: #{resnet_generator_forward.53} parent=0 // pred_check
    _
  $region3: #{resnet_generator_forward.53} parent=0 // pred_check_branch
    %11 = sbr.rel (0) target = $region5
  $region4: #{resnet_generator_forward.53} parent=0 // pred_region
    _
  $region5: #{resnet_generator_forward.53} parent=0 // pred_fallthru
    _
  // Predicated region
  $region6: #{resnet_generator_forward.53} parent=0 // pred_check
    _
  $region7: #{resnet_generator_forward.53} parent=0 // pred_check_branch
    %13 = sbr.rel (0) target = $region9
  $region8: #{resnet_generator_forward.53} parent=0 // pred_region
    _
  $region9: #{resnet_generator_forward.53} parent=0 // pred_fallthru
    _
  %v15 = vld [vmem:[%s0] sm:$0xf]
  %v16 = vld [vmem:[%s0 + $0x4] sm:$0xf]
  %v17 = vld [vmem:[%s0 + $0x8] sm:$0xf]
  %v18 = vld [vmem:[%s0 + $0xc] sm:$0xf]
  %v19 = vld [vmem:[%s0 + $0x10] sm:$0xf]
  %v20 = vld [vmem:[%s0 + $0x14] sm:$0xf]
  %v21 = vld [vmem:[%s0 + $0x18] sm:$0xf]
  %v22 = vld [vmem:[%s0 + $0x1c] sm:$0xf]
  %v23 = vld [vmem:[%s0 + $0x20] sm:$0xf]
  %v24 = vld [vmem:[%s0 + $0x24] sm:$0xf]
  %v25 = vld [vmem:[%s0 + $0x28] sm:$0xf]
  %v26 = vld [vmem:[%s0 + $0x2c] sm:$0xf]
  %v27 = vld [vmem:[%s0 + $0x30] sm:$0xf]
  %v28 = vld [vmem:[%s0 + $0x34] sm:$0xf]
  %v29 = vld [vmem:[%s0 + $0x38] sm:$0xf]
  %v30 = vld [vmem:[%s0 + $0x3c] sm:$0xf]
  %v31 = vld [vmem:[%s1] sm:$0xf]
  %v32 = vld [vmem:[%s1 + $0x4] sm:$0xf]
  %v33 = vld [vmem:[%s1 + $0x8] sm:$0xf]
  %v34 = vld [vmem:[%s1 + $0xc] sm:$0xf]
  %v51 = vunpack.c.l.b16 %v15
  %v52 = vunpack.c.l.b16 %v16
  %v53 = vunpack.c.l.b16 %v17
  %v54 = vunpack.c.l.b16 %v18
  %v55 = vunpack.c.l.b16 %v19
  %v56 = vunpack.c.l.b16 %v20
  %v57 = vunpack.c.l.b16 %v21
  %v58 = vunpack.c.l.b16 %v22
  %v59 = vunpack.c.l.b16 %v23
  %v60 = vunpack.c.l.b16 %v24
  %v61 = vunpack.c.l.b16 %v25
  %v62 = vunpack.c.l.b16 %v26
  %v63 = vunpack.c.l.b16 %v27
  %v64 = vunpack.c.l.b16 %v28
  %v65 = vunpack.c.l.b16 %v29
  %v66 = vunpack.c.l.b16 %v30
  %v67 = vpack.c.b16 %v52, %v51
  %v68 = vpack.c.b16 %v54, %v53
  %v69 = vpack.c.b16 %v56, %v55
  %v70 = vpack.c.b16 %v58, %v57
  %v71 = vpack.c.b16 %v60, %v59
  %v72 = vpack.c.b16 %v62, %v61
  %v73 = vpack.c.b16 %v64, %v63
  %v74 = vpack.c.b16 %v66, %v65
  %v79 = vunpack.c.l.b16 %v31
  %v80 = vunpack.c.l.b16 %v32
  %v81 = vunpack.c.l.b16 %v33
  %v82 = vunpack.c.l.b16 %v34
  %v83 = vpack.c.b16 %v80, %v79
  %v84 = vpack.c.b16 %v82, %v81
  %vm87 = vcmask 261120
  %v89 = vsel %vm87, %v67, 0
  %v92 = vsel %vm87, %v68, 0
  %v95 = vsel %vm87, %v69, 0
  %v98 = vsel %vm87, %v70, 0
  %v101 = vsel %vm87, %v71, 0
  %v104 = vsel %vm87, %v72, 0
  %v107 = vsel %vm87, %v73, 0
  %v110 = vsel %vm87, %v74, 0
  %112 = vmatprep.subr.bf16.mxu0 0
  %113 = vmatpush1.bf16.msra.mxu0 %v83
  %114 = vmatprep.subr.bf16.mxu0 0
  %115 = vmatpush1.bf16.msra.mxu0 %v84
  %116 = vmatprep.subr.bf16.mxu0 0
  %117 = vmatpush1.bf16.msra.mxu0 0
  %118 = vmatprep.subr.bf16.mxu0 0
  %119 = vmatpush1.bf16.msra.mxu0 0
  %120 = vmatprep.subr.bf16.mxu0 0
  %121 = vmatpush1.bf16.msra.mxu0 0
  %122 = vmatprep.subr.bf16.mxu0 0
  %123 = vmatpush1.bf16.msra.mxu0 0
  %124 = vmatprep.subr.bf16.mxu0 0
  %125 = vmatpush1.bf16.msra.mxu0 0
  %126 = vmatprep.subr.bf16.mxu0 0
  %127 = vmatpush1.bf16.msra.mxu0 0
  %128 = vmatprep.subr.bf16.mxu0 0
  %129 = vmatpush1.bf16.msra.mxu0 0
  %130 = vmatprep.subr.bf16.mxu0 0
  %131 = vmatpush1.bf16.msra.mxu0 0
  %132 = vmatprep.subr.bf16.mxu0 0
  %133 = vmatpush1.bf16.msra.mxu0 0
  %134 = vmatprep.subr.bf16.mxu0 0
  %135 = vmatpush1.bf16.msra.mxu0 0
  %136 = vmatprep.subr.bf16.mxu0 0
  %137 = vmatpush1.bf16.msra.mxu0 0
  %138 = vmatprep.subr.bf16.mxu0 0
  %139 = vmatpush1.bf16.msra.mxu0 0
  %140 = vmatprep.subr.bf16.mxu0 0
  %141 = vmatpush1.bf16.msra.mxu0 0
  %142 = vmatprep.subr.bf16.mxu0 0
  %143 = vmatpush1.bf16.msra.mxu0 0
  %144 = vmatprep.mubr.bf16.mxu0 0
  %145 = vmatmul.mubr.bf16.gmra.mrb[0].mxu0 %v89
  %v146 = vpop.f32.mrb[0].mxu0
  %v147 = vadd.f32 0.0, %v146
  %v148 = vpop.f32.mrb[0].mxu0
  %v149 = vpop.f32.mrb[0].mxu0
  %v150 = vadd.f32 0.0, %v149
  %v151 = vpop.f32.mrb[0].mxu0
  %152 = vmatprep.mubr.bf16.mxu0 0
  %153 = vmatmul.mubr.bf16.gmra.mrb[0].mxu0 %v92
  %v154 = vpop.f32.mrb[0].mxu0
  %v155 = vadd.f32 0.0, %v154
  %v156 = vpop.f32.mrb[0].mxu0
  %v157 = vpop.f32.mrb[0].mxu0
  %v158 = vadd.f32 0.0, %v157
  %v159 = vpop.f32.mrb[0].mxu0
  %160 = vmatprep.mubr.bf16.mxu0 0
  %161 = vmatmul.mubr.bf16.gmra.mrb[0].mxu0 %v95
  %v162 = vpop.f32.mrb[0].mxu0
  %v163 = vadd.f32 0.0, %v162
  %v164 = vpop.f32.mrb[0].mxu0
  %v165 = vpop.f32.mrb[0].mxu0
  %v166 = vadd.f32 0.0, %v165
  %v167 = vpop.f32.mrb[0].mxu0
  %168 = vmatprep.mubr.bf16.mxu0 0
  %169 = vmatmul.mubr.bf16.gmra.mrb[0].mxu0 %v98
  %v170 = vpop.f32.mrb[0].mxu0
  %v171 = vadd.f32 0.0, %v170
  %v172 = vpop.f32.mrb[0].mxu0
  %v173 = vpop.f32.mrb[0].mxu0
  %v174 = vadd.f32 0.0, %v173
  %v175 = vpop.f32.mrb[0].mxu0
  %176 = vmatprep.mubr.bf16.mxu0 0
  %177 = vmatmul.mubr.bf16.gmra.mrb[0].mxu0 %v101
  %v178 = vpop.f32.mrb[0].mxu0
  %v179 = vadd.f32 0.0, %v178
  %v180 = vpop.f32.mrb[0].mxu0
  %v181 = vpop.f32.mrb[0].mxu0
  %v182 = vadd.f32 0.0, %v181
  %v183 = vpop.f32.mrb[0].mxu0
  %184 = vmatprep.mubr.bf16.mxu0 0
  %185 = vmatmul.mubr.bf16.gmra.mrb[0].mxu0 %v104
  %v186 = vpop.f32.mrb[0].mxu0
  %v187 = vadd.f32 0.0, %v186
  %v188 = vpop.f32.mrb[0].mxu0
  %v189 = vpop.f32.mrb[0].mxu0
  %v190 = vadd.f32 0.0, %v189
  %v191 = vpop.f32.mrb[0].mxu0
  %192 = vmatprep.mubr.bf16.mxu0 0
  %193 = vmatmul.mubr.bf16.gmra.mrb[0].mxu0 %v107
  %v194 = vpop.f32.mrb[0].mxu0
  %v195 = vadd.f32 0.0, %v194
  %v196 = vpop.f32.mrb[0].mxu0
  %v197 = vpop.f32.mrb[0].mxu0
  %v198 = vadd.f32 0.0, %v197
  %v199 = vpop.f32.mrb[0].mxu0
  %200 = vmatprep.mubr.bf16.mxu0 0
  %201 = vmatmul.mubr.bf16.gmra.mrb[0].mxu0 %v110
  %v202 = vpop.f32.mrb[0].mxu0
  %v203 = vadd.f32 0.0, %v202
  %v204 = vpop.f32.mrb[0].mxu0
  %v205 = vpop.f32.mrb[0].mxu0
  %v206 = vadd.f32 0.0, %v205
  %v207 = vpop.f32.mrb[0].mxu0
  %208 = vdwg.mxu0
  %vm209 = vcmask 64512
  %210 = vst.msk [vmem:[%s2] sm:$0xff] %vm209, %v147
  %211 = vst.msk [vmem:[%s2 + $0x8] sm:$0xff] %vm209, %v150
  %212 = vst.msk [vmem:[%s2 + $0x10] sm:$0xff] %vm209, %v155
  %213 = vst.msk [vmem:[%s2 + $0x18] sm:$0xff] %vm209, %v158
  %214 = vst.msk [vmem:[%s2 + $0x20] sm:$0xff] %vm209, %v163
  %215 = vst.msk [vmem:[%s2 + $0x28] sm:$0xff] %vm209, %v166
  %216 = vst.msk [vmem:[%s2 + $0x30] sm:$0xff] %vm209, %v171
  %217 = vst.msk [vmem:[%s2 + $0x38] sm:$0xff] %vm209, %v174
  %218 = vst.msk [vmem:[%s2 + $0x40] sm:$0xff] %vm209, %v179
  %219 = vst.msk [vmem:[%s2 + $0x48] sm:$0xff] %vm209, %v182
  %220 = vst.msk [vmem:[%s2 + $0x50] sm:$0xff] %vm209, %v187
  %221 = vst.msk [vmem:[%s2 + $0x58] sm:$0xff] %vm209, %v190
  %222 = vst.msk [vmem:[%s2 + $0x60] sm:$0xff] %vm209, %v195
  %223 = vst.msk [vmem:[%s2 + $0x68] sm:$0xff] %vm209, %v198
  %224 = vst.msk [vmem:[%s2 + $0x70] sm:$0xff] %vm209, %v203
  %225 = vst.msk [vmem:[%s2 + $0x78] sm:$0xff] %vm209, %v206
  %v226 = vsel %vm209, %v147, 0.0
  %v227 = vsel %vm209, %v150, 0.0
  %v228 = vadd.f32 %v226, %v227
  %v229 = vsel %vm209, %v155, 0.0
  %v230 = vadd.f32 %v228, %v229
  %v231 = vsel %vm209, %v158, 0.0
  %v232 = vadd.f32 %v230, %v231
  %v233 = vsel %vm209, %v163, 0.0
  %v234 = vadd.f32 %v232, %v233
  %v235 = vsel %vm209, %v166, 0.0
  %v236 = vadd.f32 %v234, %v235
  %v237 = vsel %vm209, %v171, 0.0
  %v238 = vadd.f32 %v236, %v237
  %v239 = vsel %vm209, %v174, 0.0
  %v240 = vadd.f32 %v238, %v239
  %v241 = vsel %vm209, %v179, 0.0
  %v242 = vadd.f32 %v240, %v241
  %v243 = vsel %vm209, %v182, 0.0
  %v244 = vadd.f32 %v242, %v243
  %v245 = vsel %vm209, %v187, 0.0
  %v246 = vadd.f32 %v244, %v245
  %v247 = vsel %vm209, %v190, 0.0
  %v248 = vadd.f32 %v246, %v247
  %v249 = vsel %vm209, %v195, 0.0
  %v250 = vadd.f32 %v248, %v249
  %v251 = vsel %vm209, %v198, 0.0
  %v252 = vadd.f32 %v250, %v251
  %v253 = vsel %vm209, %v203, 0.0
  %v254 = vadd.f32 %v252, %v253
  %v255 = vsel %vm209, %v206, 0.0
  %v256 = vadd.f32 %v254, %v255
  %v257 = vrot.slane %v256, 4
  %v258 = vadd.f32 %v256, %v257
  %v259 = vrot.slane %v258, 2
  %v260 = vadd.f32 %v258, %v259
  %v261 = vrot.slane %v260, 1
  %v262 = vadd.f32 %v260, %v261
  %v263 = vmul.f32 %v147, %v147
  %v264 = vmul.f32 %v150, %v150
  %v265 = vmul.f32 %v155, %v155
  %v266 = vmul.f32 %v158, %v158
  %v267 = vmul.f32 %v163, %v163
  %v268 = vmul.f32 %v166, %v166
  %v269 = vmul.f32 %v171, %v171
  %v270 = vmul.f32 %v174, %v174
  %v271 = vmul.f32 %v179, %v179
  %v272 = vmul.f32 %v182, %v182
  %v273 = vmul.f32 %v187, %v187
  %v274 = vmul.f32 %v190, %v190
  %v275 = vmul.f32 %v195, %v195
  %v276 = vmul.f32 %v198, %v198
  %v277 = vmul.f32 %v203, %v203
  %v278 = vmul.f32 %v206, %v206
  %v279 = vsel %vm209, %v263, 0.0
  %v280 = vsel %vm209, %v264, 0.0
  %v281 = vadd.f32 %v279, %v280
  %v282 = vsel %vm209, %v265, 0.0
  %v283 = vadd.f32 %v281, %v282
  %v284 = vsel %vm209, %v266, 0.0
  %v285 = vadd.f32 %v283, %v284
  %v286 = vsel %vm209, %v267, 0.0
  %v287 = vadd.f32 %v285, %v286
  %v288 = vsel %vm209, %v268, 0.0
  %v289 = vadd.f32 %v287, %v288
  %v290 = vsel %vm209, %v269, 0.0
  %v291 = vadd.f32 %v289, %v290
  %v292 = vsel %vm209, %v270, 0.0
  %v293 = vadd.f32 %v291, %v292
  %v294 = vsel %vm209, %v271, 0.0
  %v295 = vadd.f32 %v293, %v294
  %v296 = vsel %vm209, %v272, 0.0
  %v297 = vadd.f32 %v295, %v296
  %v298 = vsel %vm209, %v273, 0.0
  %v299 = vadd.f32 %v297, %v298
  %v300 = vsel %vm209, %v274, 0.0
  %v301 = vadd.f32 %v299, %v300
  %v302 = vsel %vm209, %v275, 0.0
  %v303 = vadd.f32 %v301, %v302
  %v304 = vsel %vm209, %v276, 0.0
  %v305 = vadd.f32 %v303, %v304
  %v306 = vsel %vm209, %v277, 0.0
  %v307 = vadd.f32 %v305, %v306
  %v308 = vsel %vm209, %v278, 0.0
  %v309 = vadd.f32 %v307, %v308
  %v310 = vrot.slane %v309, 4
  %v311 = vadd.f32 %v309, %v310
  %v312 = vrot.slane %v311, 2
  %v313 = vadd.f32 %v311, %v312
  %v314 = vrot.slane %v313, 1
  %v315 = vadd.f32 %v313, %v314
  %p316 = scmp.eq.s32.totalorder 0, 0
  // Predicated region
  $region10: #{resnet_generator_forward.53} parent=0 // pred_check
    %p317 = pneg %p316
  $region11: #{resnet_generator_forward.53} parent=0 // pred_check_branch
    %319 = sbr.rel (%p317) target = $region13
  $region12: #{resnet_generator_forward.53} parent=0 // pred_region
    %vm320 = vcmask 57344
    %321 = vst.msk [vmem:[%s3] sm:$0x1] %vm320, %v262
    %322 = vst.msk [vmem:[%s4] sm:$0x1] %vm320, %v315
  $region13: #{resnet_generator_forward.53} parent=0 // pred_fallthru
    _
  %p323 = scmp.ne.s32.totalorder 0, 0
  // Predicated region
  $region14: #{resnet_generator_forward.53} parent=0 // pred_check
    %p324 = pneg %p323
  $region15: #{resnet_generator_forward.53} parent=0 // pred_check_branch
    %326 = sbr.rel (%p324) target = $region17
  $region16: #{resnet_generator_forward.53} parent=0 // pred_region
    %v327 = vld [vmem:[%s3] sm:$0x1]
    %v328 = vadd.f32 %v327, %v262
    %vm329 = vcmask 57344
    %330 = vst.msk [vmem:[%s3] sm:$0x1] %vm329, %v328
    %v331 = vld [vmem:[%s4] sm:$0x1]
    %v332 = vadd.f32 %v331, %v315
    %333 = vst.msk [vmem:[%s4] sm:$0x1] %vm329, %v332
  $region17: #{resnet_generator_forward.53} parent=0 // pred_fallthru
    _
  // Predicated region
  $region18: #{resnet_generator_forward.53} parent=0 // pred_check
    _
  $region19: #{resnet_generator_forward.53} parent=0 // pred_check_branch
    %335 = sbr.rel (0) target = $region21
  $region20: #{resnet_generator_forward.53} parent=0 // pred_region
    _
  $region21: #{resnet_generator_forward.53} parent=0 // pred_fallthru
    _
  // Predicated region
  $region22: #{resnet_generator_forward.53} parent=0 // pred_check
    _
  $region23: #{resnet_generator_forward.53} parent=0 // pred_check_branch
    %337 = sbr.rel (0) target = $region25
  $region24: #{resnet_generator_forward.53} parent=0 // pred_region
    _
  $region25: #{resnet_generator_forward.53} parent=0 // pred_fallthru
    _
  // Predicated region
  $region26: #{resnet_generator_forward.53} parent=0 // pred_check
    _
  $region27: #{resnet_generator_forward.53} parent=0 // pred_check_branch
    %339 = sbr.rel (0) target = $region29
  $region28: #{resnet_generator_forward.53} parent=0 // pred_region
    _
  $region29: #{resnet_generator_forward.53} parent=0 // pred_fallthru
    _
  // Predicated region
  $region30: #{resnet_generator_forward.53} parent=0 // pred_check
    _
  $region31: #{resnet_generator_forward.53} parent=0 // pred_check_branch
    %341 = sbr.rel (0) target = $region33
  $region32: #{resnet_generator_forward.53} parent=0 // pred_region
    _
  $region33: #{resnet_generator_forward.53} parent=0 // pred_fallthru
    _
  // Predicated region
  $region34: #{resnet_generator_forward.53} parent=0 // pred_check
    _
  $region35: #{resnet_generator_forward.53} parent=0 // pred_check_branch
    %343 = sbr.rel (0) target = $region37
  $region36: #{resnet_generator_forward.53} parent=0 // pred_region
    _
  $region37: #{resnet_generator_forward.53} parent=0 // pred_fallthru
    _
  // Predicated region
  $region38: #{resnet_generator_forward.53} parent=0 // pred_check
    _
  $region39: #{resnet_generator_forward.53} parent=0 // pred_check_branch
    %345 = sbr.rel (0) target = $region41
  $region40: #{resnet_generator_forward.53} parent=0 // pred_region
    _
  $region41: #{resnet_generator_forward.53} parent=0 // pred_fallthru
    _

// kernel: resnet_generator_forward.57
$region0: #{resnet_generator_forward.57}
  #allocation0 [shape = 'u32[]', space=smem, size = 0x4, offset = 0x4, fixed_abs, tag = 'smem constant byte address 0x4 - core index']
  #allocation1 [shape = 'u32[144,128]{1,0:T(1,128)}', space=vmem, size = 0x12000, scoped, tag = 'internal scratch']
  %s0 = inlined_call_operand.vmem [shape: bf16[512,392], index: 0, kind: input, shape index: {}]
  %s1 = inlined_call_operand.vmem [shape: bf16[392,3], index: 1, kind: input, shape index: {}]
  %s2 = inlined_call_operand.vmem [shape: f32[1,3], index: 2, kind: input, shape index: {}]
  %s3 = inlined_call_operand.vmem [shape: f32[512,3], index: 3, kind: output, shape index: {}]
  %s4 = sld [smem:[#allocation0]]
  $region22: #{resnet_generator_forward.57} parent=0
    _
  %s6 = ssub.s32 1, %s4
  %s7 = scalar_select 0, %s6, %s4
  // Predicated region
  $region2: #{resnet_generator_forward.57} parent=0 // pred_check
    _
  $region3: #{resnet_generator_forward.57} parent=0 // pred_check_branch
    %9 = sbr.rel (0) target = $region5
  $region4: #{resnet_generator_forward.57} parent=0 // pred_region
    _
  $region5: #{resnet_generator_forward.57} parent=0 // pred_fallthru
    _
  // Predicated region
  $region6: #{resnet_generator_forward.57} parent=0 // pred_check
    _
  $region7: #{resnet_generator_forward.57} parent=0 // pred_check_branch
    %11 = sbr.rel (0) target = $region9
  $region8: #{resnet_generator_forward.57} parent=0 // pred_region
    _
  $region9: #{resnet_generator_forward.57} parent=0 // pred_fallthru
    _
  // Predicated region
  $region10: #{resnet_generator_forward.57} parent=0 // pred_check
    _
  $region11: #{resnet_generator_forward.57} parent=0 // pred_check_branch
    %13 = sbr.rel (0) target = $region13
  $region12: #{resnet_generator_forward.57} parent=0 // pred_region
    _
  $region13: #{resnet_generator_forward.57} parent=0 // pred_fallthru
    _
  %v15 = vld [vmem:[%s0] sm:$0xff]
  %v16 = vld [vmem:[%s0 + $0x8] sm:$0xff]
  %v17 = vld [vmem:[%s0 + $0x10] sm:$0xff]
  %v18 = vld [vmem:[%s0 + $0x18] sm:$0xff]
  %v19 = vld [vmem:[%s0 + $0x20] sm:$0xff]
  %v20 = vld [vmem:[%s0 + $0x28] sm:$0xff]
  %v21 = vld [vmem:[%s0 + $0x30] sm:$0xff]
  %v22 = vld [vmem:[%s0 + $0x38] sm:$0xff]
  %v23 = vld [vmem:[%s0 + $0x40] sm:$0xff]
  %v24 = vld [vmem:[%s0 + $0x48] sm:$0xff]
  %v25 = vld [vmem:[%s0 + $0x50] sm:$0xff]
  %v26 = vld [vmem:[%s0 + $0x58] sm:$0xff]
  %v27 = vld [vmem:[%s0 + $0x60] sm:$0xff]
  %v28 = vld [vmem:[%s0 + $0x68] sm:$0xff]
  %v29 = vld [vmem:[%s0 + $0x70] sm:$0xff]
  %v30 = vld [vmem:[%s0 + $0x78] sm:$0xff]
  %v31 = vld [vmem:[%s0 + $0x80] sm:$0xff]
  %v32 = vld [vmem:[%s0 + $0x88] sm:$0xff]
  %v33 = vld [vmem:[%s0 + $0x90] sm:$0xff]
  %v34 = vld [vmem:[%s0 + $0x98] sm:$0xff]
  %v35 = vld [vmem:[%s0 + $0xa0] sm:$0xff]
  %v36 = vld [vmem:[%s0 + $0xa8] sm:$0xff]
  %v37 = vld [vmem:[%s0 + $0xb0] sm:$0xff]
  %v38 = vld [vmem:[%s0 + $0xb8] sm:$0xff]
  %v39 = vld [vmem:[%s0 + $0xc0] sm:$0xff]
  %v40 = vld [vmem:[%s0 + $0xc8] sm:$0xff]
  %v41 = vld [vmem:[%s0 + $0xd0] sm:$0xff]
  %v42 = vld [vmem:[%s0 + $0xd8] sm:$0xff]
  %v43 = vld [vmem:[%s0 + $0xe0] sm:$0xff]
  %v44 = vld [vmem:[%s0 + $0xe8] sm:$0xff]
  %v45 = vld [vmem:[%s0 + $0xf0] sm:$0xff]
  %v46 = vld [vmem:[%s0 + $0xf8] sm:$0xff]
  %v47 = vld [vmem:[%s0 + $0x100] sm:$0xff]
  %v48 = vld [vmem:[%s0 + $0x108] sm:$0xff]
  %v49 = vld [vmem:[%s0 + $0x110] sm:$0xff]
  %v50 = vld [vmem:[%s0 + $0x118] sm:$0xff]
  %v51 = vld [vmem:[%s0 + $0x120] sm:$0xff]
  %v52 = vld [vmem:[%s0 + $0x128] sm:$0xff]
  %v53 = vld [vmem:[%s0 + $0x130] sm:$0xff]
  %v54 = vld [vmem:[%s0 + $0x138] sm:$0xff]
  %v55 = vld [vmem:[%s0 + $0x140] sm:$0xff]
  %v56 = vld [vmem:[%s0 + $0x148] sm:$0xff]
  %v57 = vld [vmem:[%s0 + $0x150] sm:$0xff]
  %v58 = vld [vmem:[%s0 + $0x158] sm:$0xff]
  %v59 = vld [vmem:[%s0 + $0x160] sm:$0xff]
  %v60 = vld [vmem:[%s0 + $0x168] sm:$0xff]
  %v61 = vld [vmem:[%s0 + $0x170] sm:$0xff]
  %v62 = vld [vmem:[%s0 + $0x178] sm:$0xff]
  %v63 = vld [vmem:[%s0 + $0x180] sm:$0xff]
  %v64 = vld [vmem:[%s0 + $0x188] sm:$0xff]
  %v65 = vld [vmem:[%s0 + $0x190] sm:$0xff]
  %v66 = vld [vmem:[%s0 + $0x198] sm:$0xff]
  %v67 = vld [vmem:[%s0 + $0x1a0] sm:$0xff]
  %v68 = vld [vmem:[%s0 + $0x1a8] sm:$0xff]
  %v69 = vld [vmem:[%s0 + $0x1b0] sm:$0xff]
  %v70 = vld [vmem:[%s0 + $0x1b8] sm:$0xff]
  %v71 = vld [vmem:[%s0 + $0x1c0] sm:$0xff]
  %v72 = vld [vmem:[%s0 + $0x1c8] sm:$0xff]
  %v73 = vld [vmem:[%s0 + $0x1d0] sm:$0xff]
  %v74 = vld [vmem:[%s0 + $0x1d8] sm:$0xff]
  %v75 = vld [vmem:[%s0 + $0x1e0] sm:$0xff]
  %v76 = vld [vmem:[%s0 + $0x1e8] sm:$0xff]
  %v77 = vld [vmem:[%s0 + $0x1f0] sm:$0xff]
  %v78 = vld [vmem:[%s0 + $0x1f8] sm:$0xff]
  %v79 = vld [vmem:[%s0 + $0x200] sm:$0xff]
  %v80 = vld [vmem:[%s0 + $0x208] sm:$0xff]
  %v81 = vld [vmem:[%s0 + $0x210] sm:$0xff]
  %v82 = vld [vmem:[%s0 + $0x218] sm:$0xff]
  %v83 = vld [vmem:[%s0 + $0x220] sm:$0xff]
  %v84 = vld [vmem:[%s0 + $0x228] sm:$0xff]
  %v85 = vld [vmem:[%s0 + $0x230] sm:$0xff]
  %v86 = vld [vmem:[%s0 + $0x238] sm:$0xff]
  %v87 = vld [vmem:[%s0 + $0x240] sm:$0xff]
  %v88 = vld [vmem:[%s0 + $0x248] sm:$0xff]
  %v89 = vld [vmem:[%s0 + $0x250] sm:$0xff]
  %v90 = vld [vmem:[%s0 + $0x258] sm:$0xff]
  %v91 = vld [vmem:[%s0 + $0x260] sm:$0xff]
  %v92 = vld [vmem:[%s0 + $0x268] sm:$0xff]
  %v93 = vld [vmem:[%s0 + $0x270] sm:$0xff]
  %v94 = vld [vmem:[%s0 + $0x278] sm:$0xff]
  %v95 = vld [vmem:[%s0 + $0x280] sm:$0xff]
  %v96 = vld [vmem:[%s0 + $0x288] sm:$0xff]
  %v97 = vld [vmem:[%s0 + $0x290] sm:$0xff]
  %v98 = vld [vmem:[%s0 + $0x298] sm:$0xff]
  %v99 = vld [vmem:[%s0 + $0x2a0] sm:$0xff]
  %v100 = vld [vmem:[%s0 + $0x2a8] sm:$0xff]
  %v101 = vld [vmem:[%s0 + $0x2b0] sm:$0xff]
  %v102 = vld [vmem:[%s0 + $0x2b8] sm:$0xff]
  %v103 = vld [vmem:[%s0 + $0x2c0] sm:$0xff]
  %v104 = vld [vmem:[%s0 + $0x2c8] sm:$0xff]
  %v105 = vld [vmem:[%s0 + $0x2d0] sm:$0xff]
  %v106 = vld [vmem:[%s0 + $0x2d8] sm:$0xff]
  %v107 = vld [vmem:[%s0 + $0x2e0] sm:$0xff]
  %v108 = vld [vmem:[%s0 + $0x2e8] sm:$0xff]
  %v109 = vld [vmem:[%s0 + $0x2f0] sm:$0xff]
  %v110 = vld [vmem:[%s0 + $0x2f8] sm:$0xff]
  %v111 = vld [vmem:[%s0 + $0x300] sm:$0xff]
  %v112 = vld [vmem:[%s0 + $0x308] sm:$0xff]
  %v113 = vld [vmem:[%s0 + $0x310] sm:$0xff]
  %v114 = vld [vmem:[%s0 + $0x318] sm:$0xff]
  %v115 = vld [vmem:[%s0 + $0x320] sm:$0xff]
  %v116 = vld [vmem:[%s0 + $0x328] sm:$0xff]
  %v117 = vld [vmem:[%s0 + $0x330] sm:$0xff]
  %v118 = vld [vmem:[%s0 + $0x338] sm:$0xff]
  %v119 = vld [vmem:[%s0 + $0x340] sm:$0xff]
  %v120 = vld [vmem:[%s0 + $0x348] sm:$0xff]
  %v121 = vld [vmem:[%s0 + $0x350] sm:$0xff]
  %v122 = vld [vmem:[%s0 + $0x358] sm:$0xff]
  %v123 = vld [vmem:[%s0 + $0x360] sm:$0xff]
  %v124 = vld [vmem:[%s0 + $0x368] sm:$0xff]
  %v125 = vld [vmem:[%s0 + $0x370] sm:$0xff]
  %v126 = vld [vmem:[%s0 + $0x378] sm:$0xff]
  %v127 = vld [vmem:[%s0 + $0x380] sm:$0xff]
  %v128 = vld [vmem:[%s0 + $0x388] sm:$0xff]
  %v129 = vld [vmem:[%s0 + $0x390] sm:$0xff]
  %v130 = vld [vmem:[%s0 + $0x398] sm:$0xff]
  %v131 = vld [vmem:[%s0 + $0x3a0] sm:$0xff]
  %v132 = vld [vmem:[%s0 + $0x3a8] sm:$0xff]
  %v133 = vld [vmem:[%s0 + $0x3b0] sm:$0xff]
  %v134 = vld [vmem:[%s0 + $0x3b8] sm:$0xff]
  %v135 = vld [vmem:[%s0 + $0x3c0] sm:$0xff]
  %v136 = vld [vmem:[%s0 + $0x3c8] sm:$0xff]
  %v137 = vld [vmem:[%s0 + $0x3d0] sm:$0xff]
  %v138 = vld [vmem:[%s0 + $0x3d8] sm:$0xff]
  %v139 = vld [vmem:[%s0 + $0x3e0] sm:$0xff]
  %v140 = vld [vmem:[%s0 + $0x3e8] sm:$0xff]
  %v141 = vld [vmem:[%s0 + $0x3f0] sm:$0xff]
  %v142 = vld [vmem:[%s0 + $0x3f8] sm:$0xff]
  %v143 = vld [vmem:[%s1] sm:$0xf]
  %v144 = vld [vmem:[%s1 + $0x4] sm:$0xf]
  %v145 = vld [vmem:[%s1 + $0x8] sm:$0xf]
  %v146 = vld [vmem:[%s1 + $0xc] sm:$0xf]
  %v147 = vld [vmem:[%s1 + $0x10] sm:$0xf]
  %v148 = vld [vmem:[%s1 + $0x14] sm:$0xf]
  %v149 = vld [vmem:[%s1 + $0x18] sm:$0xf]
  %v150 = vld [vmem:[%s1 + $0x1c] sm:$0xf]
  %v151 = vld [vmem:[%s1 + $0x20] sm:$0xf]
  %v152 = vld [vmem:[%s1 + $0x24] sm:$0xf]
  %v153 = vld [vmem:[%s1 + $0x28] sm:$0xf]
  %v154 = vld [vmem:[%s1 + $0x2c] sm:$0xf]
  %v155 = vld [vmem:[%s1 + $0x30] sm:$0xf]
  %v156 = vld [vmem:[%s1 + $0x34] sm:$0xf]
  %v157 = vld [vmem:[%s1 + $0x38] sm:$0xf]
  %v158 = vld [vmem:[%s1 + $0x3c] sm:$0xf]
  %v159 = vld [vmem:[%s1 + $0x40] sm:$0xf]
  %v160 = vld [vmem:[%s1 + $0x44] sm:$0xf]
  %v161 = vld [vmem:[%s1 + $0x48] sm:$0xf]
  %v162 = vld [vmem:[%s1 + $0x4c] sm:$0xf]
  %v163 = vld [vmem:[%s1 + $0x50] sm:$0xf]
  %v164 = vld [vmem:[%s1 + $0x54] sm:$0xf]
  %v165 = vld [vmem:[%s1 + $0x58] sm:$0xf]
  %v166 = vld [vmem:[%s1 + $0x5c] sm:$0xf]
  %v167 = vld [vmem:[%s1 + $0x60] sm:$0xf]
  %v168 = vld [vmem:[%s1 + $0x64] sm:$0xf]
  %v169 = vld [vmem:[%s1 + $0x68] sm:$0xf]
  %v170 = vld [vmem:[%s1 + $0x6c] sm:$0xf]
  %v171 = vld [vmem:[%s1 + $0x70] sm:$0xf]
  %v172 = vld [vmem:[%s1 + $0x74] sm:$0xf]
  %v173 = vld [vmem:[%s1 + $0x78] sm:$0xf]
  %v174 = vld [vmem:[%s1 + $0x7c] sm:$0xf]
  %v175 = vld [vmem:[%s1 + $0x80] sm:$0xf]
  %v176 = vld [vmem:[%s1 + $0x84] sm:$0xf]
  %v177 = vld [vmem:[%s1 + $0x88] sm:$0xf]
  %v178 = vld [vmem:[%s1 + $0x8c] sm:$0xf]
  %v179 = vld [vmem:[%s1 + $0x90] sm:$0xf]
  %v180 = vld [vmem:[%s1 + $0x94] sm:$0xf]
  %v181 = vld [vmem:[%s1 + $0x98] sm:$0xf]
  %v182 = vld [vmem:[%s1 + $0x9c] sm:$0xf]
  %v183 = vld [vmem:[%s1 + $0xa0] sm:$0xf]
  %v184 = vld [vmem:[%s1 + $0xa4] sm:$0xf]
  %v185 = vld [vmem:[%s1 + $0xa8] sm:$0xf]
  %v186 = vld [vmem:[%s1 + $0xac] sm:$0xf]
  %v187 = vld [vmem:[%s1 + $0xb0] sm:$0xf]
  %v188 = vld [vmem:[%s1 + $0xb4] sm:$0xf]
  %v189 = vld [vmem:[%s1 + $0xb8] sm:$0xf]
  %v190 = vld [vmem:[%s1 + $0xbc] sm:$0xf]
  %v191 = vld [vmem:[%s1 + $0xc0] sm:$0xf]
  %v192 = vld [vmem:[%s2] sm:$0x1]
  %v194 = vlaneseq
  %v195 = vshrl.u32 %v194, 7
  %v196 = vsub.s32 0, %v195
  %v197 = vrot.slane %v192, %v196
  %v327 = vunpack.c.l.b16 %v15
  %v328 = vunpack.c.h.b16 %v15
  %v329 = vunpack.c.l.b16 %v16
  %v330 = vunpack.c.h.b16 %v16
  %v331 = vunpack.c.l.b16 %v17
  %v332 = vunpack.c.h.b16 %v17
  %v333 = vunpack.c.l.b16 %v18
  %v334 = vunpack.c.h.b16 %v18
  %v335 = vunpack.c.l.b16 %v19
  %v336 = vunpack.c.h.b16 %v19
  %v337 = vunpack.c.l.b16 %v20
  %v338 = vunpack.c.h.b16 %v20
  %v339 = vunpack.c.l.b16 %v21
  %v340 = vunpack.c.h.b16 %v21
  %v341 = vunpack.c.l.b16 %v22
  %v342 = vunpack.c.h.b16 %v22
  %v343 = vunpack.c.l.b16 %v23
  %v344 = vunpack.c.h.b16 %v23
  %v345 = vunpack.c.l.b16 %v24
  %v346 = vunpack.c.h.b16 %v24
  %v347 = vunpack.c.l.b16 %v25
  %v348 = vunpack.c.h.b16 %v25
  %v349 = vunpack.c.l.b16 %v26
  %v350 = vunpack.c.h.b16 %v26
  %v351 = vunpack.c.l.b16 %v27
  %v352 = vunpack.c.h.b16 %v27
  %v353 = vunpack.c.l.b16 %v28
  %v354 = vunpack.c.h.b16 %v28
  %v355 = vunpack.c.l.b16 %v29
  %v356 = vunpack.c.h.b16 %v29
  %v357 = vunpack.c.l.b16 %v30
  %v358 = vunpack.c.h.b16 %v30
  %v359 = vunpack.c.l.b16 %v31
  %v360 = vunpack.c.h.b16 %v31
  %v361 = vunpack.c.l.b16 %v32
  %v362 = vunpack.c.h.b16 %v32
  %v363 = vunpack.c.l.b16 %v33
  %v364 = vunpack.c.h.b16 %v33
  %v365 = vunpack.c.l.b16 %v34
  %v366 = vunpack.c.h.b16 %v34
  %v367 = vunpack.c.l.b16 %v35
  %v368 = vunpack.c.h.b16 %v35
  %v369 = vunpack.c.l.b16 %v36
  %v370 = vunpack.c.h.b16 %v36
  %v371 = vunpack.c.l.b16 %v37
  %v372 = vunpack.c.h.b16 %v37
  %v373 = vunpack.c.l.b16 %v38
  %v374 = vunpack.c.h.b16 %v38
  %v375 = vunpack.c.l.b16 %v39
  %v376 = vunpack.c.h.b16 %v39
  %v377 = vunpack.c.l.b16 %v40
  %v378 = vunpack.c.h.b16 %v40
  %v379 = vunpack.c.l.b16 %v41
  %v380 = vunpack.c.h.b16 %v41
  %v381 = vunpack.c.l.b16 %v42
  %v382 = vunpack.c.h.b16 %v42
  %v383 = vunpack.c.l.b16 %v43
  %v384 = vunpack.c.h.b16 %v43
  %v385 = vunpack.c.l.b16 %v44
  %v386 = vunpack.c.h.b16 %v44
  %v387 = vunpack.c.l.b16 %v45
  %v388 = vunpack.c.h.b16 %v45
  %v389 = vunpack.c.l.b16 %v46
  %v390 = vunpack.c.h.b16 %v46
  %v391 = vunpack.c.l.b16 %v47
  %v392 = vunpack.c.h.b16 %v47
  %v393 = vunpack.c.l.b16 %v48
  %v394 = vunpack.c.h.b16 %v48
  %v395 = vunpack.c.l.b16 %v49
  %v396 = vunpack.c.h.b16 %v49
  %v397 = vunpack.c.l.b16 %v50
  %v398 = vunpack.c.h.b16 %v50
  %v399 = vunpack.c.l.b16 %v51
  %v400 = vunpack.c.h.b16 %v51
  %v401 = vunpack.c.l.b16 %v52
  %v402 = vunpack.c.h.b16 %v52
  %v403 = vunpack.c.l.b16 %v53
  %v404 = vunpack.c.h.b16 %v53
  %v405 = vunpack.c.l.b16 %v54
  %v406 = vunpack.c.h.b16 %v54
  %v407 = vunpack.c.l.b16 %v55
  %v408 = vunpack.c.h.b16 %v55
  %v409 = vunpack.c.l.b16 %v56
  %v410 = vunpack.c.h.b16 %v56
  %v411 = vunpack.c.l.b16 %v57
  %v412 = vunpack.c.h.b16 %v57
  %v413 = vunpack.c.l.b16 %v58
  %v414 = vunpack.c.h.b16 %v58
  %v415 = vunpack.c.l.b16 %v59
  %v416 = vunpack.c.h.b16 %v59
  %v417 = vunpack.c.l.b16 %v60
  %v418 = vunpack.c.h.b16 %v60
  %v419 = vunpack.c.l.b16 %v61
  %v420 = vunpack.c.h.b16 %v61
  %v421 = vunpack.c.l.b16 %v62
  %v422 = vunpack.c.h.b16 %v62
  %v423 = vunpack.c.l.b16 %v63
  %v424 = vunpack.c.h.b16 %v63
  %v425 = vunpack.c.l.b16 %v64
  %v426 = vunpack.c.h.b16 %v64
  %v427 = vunpack.c.l.b16 %v65
  %v428 = vunpack.c.h.b16 %v65
  %v429 = vunpack.c.l.b16 %v66
  %v430 = vunpack.c.h.b16 %v66
  %v431 = vunpack.c.l.b16 %v67
  %v432 = vunpack.c.h.b16 %v67
  %v433 = vunpack.c.l.b16 %v68
  %v434 = vunpack.c.h.b16 %v68
  %v435 = vunpack.c.l.b16 %v69
  %v436 = vunpack.c.h.b16 %v69
  %v437 = vunpack.c.l.b16 %v70
  %v438 = vunpack.c.h.b16 %v70
  %v439 = vunpack.c.l.b16 %v71
  %v440 = vunpack.c.h.b16 %v71
  %v441 = vunpack.c.l.b16 %v72
  %v442 = vunpack.c.h.b16 %v72
  %v443 = vunpack.c.l.b16 %v73
  %v444 = vunpack.c.h.b16 %v73
  %v445 = vunpack.c.l.b16 %v74
  %v446 = vunpack.c.h.b16 %v74
  %v447 = vunpack.c.l.b16 %v75
  %v448 = vunpack.c.h.b16 %v75
  %v449 = vunpack.c.l.b16 %v76
  %v450 = vunpack.c.h.b16 %v76
  %v451 = vunpack.c.l.b16 %v77
  %v452 = vunpack.c.h.b16 %v77
  %v453 = vunpack.c.l.b16 %v78
  %v454 = vunpack.c.h.b16 %v78
  %v455 = vunpack.c.l.b16 %v79
  %v456 = vunpack.c.h.b16 %v79
  %v457 = vunpack.c.l.b16 %v80
  %v458 = vunpack.c.h.b16 %v80
  %v459 = vunpack.c.l.b16 %v81
  %v460 = vunpack.c.h.b16 %v81
  %v461 = vunpack.c.l.b16 %v82
  %v462 = vunpack.c.h.b16 %v82
  %v463 = vunpack.c.l.b16 %v83
  %v464 = vunpack.c.h.b16 %v83
  %v465 = vunpack.c.l.b16 %v84
  %v466 = vunpack.c.h.b16 %v84
  %v467 = vunpack.c.l.b16 %v85
  %v468 = vunpack.c.h.b16 %v85
  %v469 = vunpack.c.l.b16 %v86
  %v470 = vunpack.c.h.b16 %v86
  %v471 = vunpack.c.l.b16 %v87
  %v472 = vunpack.c.h.b16 %v87
  %v473 = vunpack.c.l.b16 %v88
  %v474 = vunpack.c.h.b16 %v88
  %v475 = vunpack.c.l.b16 %v89
  %v476 = vunpack.c.h.b16 %v89
  %v477 = vunpack.c.l.b16 %v90
  %v478 = vunpack.c.h.b16 %v90
  %v479 = vunpack.c.l.b16 %v91
  %v480 = vunpack.c.h.b16 %v91
  %v481 = vunpack.c.l.b16 %v92
  %v482 = vunpack.c.h.b16 %v92
  %v483 = vunpack.c.l.b16 %v93
  %v484 = vunpack.c.h.b16 %v93
  %v485 = vunpack.c.l.b16 %v94
  %v486 = vunpack.c.h.b16 %v94
  %v487 = vunpack.c.l.b16 %v95
  %v488 = vunpack.c.h.b16 %v95
  %v489 = vunpack.c.l.b16 %v96
  %v490 = vunpack.c.h.b16 %v96
  %v491 = vunpack.c.l.b16 %v97
  %v492 = vunpack.c.h.b16 %v97
  %v493 = vunpack.c.l.b16 %v98
  %v494 = vunpack.c.h.b16 %v98
  %v495 = vunpack.c.l.b16 %v99
  %v496 = vunpack.c.h.b16 %v99
  %v497 = vunpack.c.l.b16 %v100
  %v498 = vunpack.c.h.b16 %v100
  %v499 = vunpack.c.l.b16 %v101
  %v500 = vunpack.c.h.b16 %v101
  %v501 = vunpack.c.l.b16 %v102
  %v502 = vunpack.c.h.b16 %v102
  %v503 = vunpack.c.l.b16 %v103
  %v504 = vunpack.c.h.b16 %v103
  %v505 = vunpack.c.l.b16 %v104
  %v506 = vunpack.c.h.b16 %v104
  %v507 = vunpack.c.l.b16 %v105
  %v508 = vunpack.c.h.b16 %v105
  %v509 = vunpack.c.l.b16 %v106
  %v510 = vunpack.c.h.b16 %v106
  %v511 = vunpack.c.l.b16 %v107
  %v512 = vunpack.c.h.b16 %v107
  %v513 = vunpack.c.l.b16 %v108
  %v514 = vunpack.c.h.b16 %v108
  %v515 = vunpack.c.l.b16 %v109
  %v516 = vunpack.c.h.b16 %v109
  %v517 = vunpack.c.l.b16 %v110
  %v518 = vunpack.c.h.b16 %v110
  %v519 = vunpack.c.l.b16 %v111
  %v520 = vunpack.c.h.b16 %v111
  %v521 = vunpack.c.l.b16 %v112
  %v522 = vunpack.c.h.b16 %v112
  %v523 = vunpack.c.l.b16 %v113
  %v524 = vunpack.c.h.b16 %v113
  %v525 = vunpack.c.l.b16 %v114
  %v526 = vunpack.c.h.b16 %v114
  %v527 = vunpack.c.l.b16 %v115
  %v528 = vunpack.c.h.b16 %v115
  %v529 = vunpack.c.l.b16 %v116
  %v530 = vunpack.c.h.b16 %v116
  %v531 = vunpack.c.l.b16 %v117
  %v532 = vunpack.c.h.b16 %v117
  %v533 = vunpack.c.l.b16 %v118
  %v534 = vunpack.c.h.b16 %v118
  %v535 = vunpack.c.l.b16 %v119
  %v536 = vunpack.c.h.b16 %v119
  %v537 = vunpack.c.l.b16 %v120
  %v538 = vunpack.c.h.b16 %v120
  %v539 = vunpack.c.l.b16 %v121
  %v540 = vunpack.c.h.b16 %v121
  %v541 = vunpack.c.l.b16 %v122
  %v542 = vunpack.c.h.b16 %v122
  %v543 = vunpack.c.l.b16 %v123
  %v544 = vunpack.c.h.b16 %v123
  %v545 = vunpack.c.l.b16 %v124
  %v546 = vunpack.c.h.b16 %v124
  %v547 = vunpack.c.l.b16 %v125
  %v548 = vunpack.c.h.b16 %v125
  %v549 = vunpack.c.l.b16 %v126
  %v550 = vunpack.c.h.b16 %v126
  %v551 = vunpack.c.l.b16 %v127
  %v552 = vunpack.c.h.b16 %v127
  %v553 = vunpack.c.l.b16 %v128
  %v554 = vunpack.c.h.b16 %v128
  %v555 = vunpack.c.l.b16 %v129
  %v556 = vunpack.c.h.b16 %v129
  %v557 = vunpack.c.l.b16 %v130
  %v558 = vunpack.c.h.b16 %v130
  %v559 = vunpack.c.l.b16 %v131
  %v560 = vunpack.c.h.b16 %v131
  %v561 = vunpack.c.l.b16 %v132
  %v562 = vunpack.c.h.b16 %v132
  %v563 = vunpack.c.l.b16 %v133
  %v564 = vunpack.c.h.b16 %v133
  %v565 = vunpack.c.l.b16 %v134
  %v566 = vunpack.c.h.b16 %v134
  %v567 = vunpack.c.l.b16 %v135
  %v568 = vunpack.c.h.b16 %v135
  %v569 = vunpack.c.l.b16 %v136
  %v570 = vunpack.c.h.b16 %v136
  %v571 = vunpack.c.l.b16 %v137
  %v572 = vunpack.c.h.b16 %v137
  %v573 = vunpack.c.l.b16 %v138
  %v574 = vunpack.c.h.b16 %v138
  %v575 = vunpack.c.l.b16 %v139
  %v576 = vunpack.c.h.b16 %v139
  %v577 = vunpack.c.l.b16 %v140
  %v578 = vunpack.c.h.b16 %v140
  %v579 = vunpack.c.l.b16 %v141
  %v580 = vunpack.c.h.b16 %v141
  %v581 = vunpack.c.l.b16 %v142
  %v582 = vunpack.c.h.b16 %v142
  %v583 = vpack.c.b16 %v331, %v327
  %v584 = vpack.c.b16 %v332, %v328
  %v585 = vpack.c.b16 %v333, %v329
  %v586 = vpack.c.b16 %v334, %v330
  %v587 = vpack.c.b16 %v339, %v335
  %v588 = vpack.c.b16 %v340, %v336
  %v589 = vpack.c.b16 %v341, %v337
  %v590 = vpack.c.b16 %v342, %v338
  %v591 = vpack.c.b16 %v347, %v343
  %v592 = vpack.c.b16 %v348, %v344
  %v593 = vpack.c.b16 %v349, %v345
  %v594 = vpack.c.b16 %v350, %v346
  %v595 = vpack.c.b16 %v355, %v351
  %v596 = vpack.c.b16 %v356, %v352
  %v597 = vpack.c.b16 %v357, %v353
  %v598 = vpack.c.b16 %v358, %v354
  %v599 = vpack.c.b16 %v363, %v359
  %v600 = vpack.c.b16 %v364, %v360
  %v601 = vpack.c.b16 %v365, %v361
  %v602 = vpack.c.b16 %v366, %v362
  %v603 = vpack.c.b16 %v371, %v367
  %v604 = vpack.c.b16 %v372, %v368
  %v605 = vpack.c.b16 %v373, %v369
  %v606 = vpack.c.b16 %v374, %v370
  %v607 = vpack.c.b16 %v379, %v375
  %v608 = vpack.c.b16 %v380, %v376
  %v609 = vpack.c.b16 %v381, %v377
  %v610 = vpack.c.b16 %v382, %v378
  %v611 = vpack.c.b16 %v387, %v383
  %v612 = vpack.c.b16 %v388, %v384
  %v613 = vpack.c.b16 %v389, %v385
  %v614 = vpack.c.b16 %v390, %v386
  %v615 = vpack.c.b16 %v395, %v391
  %v616 = vpack.c.b16 %v396, %v392
  %v617 = vpack.c.b16 %v397, %v393
  %v618 = vpack.c.b16 %v398, %v394
  %v619 = vpack.c.b16 %v403, %v399
  %v620 = vpack.c.b16 %v404, %v400
  %v621 = vpack.c.b16 %v405, %v401
  %v622 = vpack.c.b16 %v406, %v402
  %v623 = vpack.c.b16 %v411, %v407
  %v624 = vpack.c.b16 %v412, %v408
  %v625 = vpack.c.b16 %v413, %v409
  %v626 = vpack.c.b16 %v414, %v410
  %v627 = vpack.c.b16 %v419, %v415
  %v628 = vpack.c.b16 %v420, %v416
  %v629 = vpack.c.b16 %v421, %v417
  %v630 = vpack.c.b16 %v422, %v418
  %v631 = vpack.c.b16 %v427, %v423
  %v632 = vpack.c.b16 %v428, %v424
  %v633 = vpack.c.b16 %v429, %v425
  %v634 = vpack.c.b16 %v430, %v426
  %v635 = vpack.c.b16 %v435, %v431
  %v636 = vpack.c.b16 %v436, %v432
  %v637 = vpack.c.b16 %v437, %v433
  %v638 = vpack.c.b16 %v438, %v434
  %v639 = vpack.c.b16 %v443, %v439
  %v640 = vpack.c.b16 %v444, %v440
  %v641 = vpack.c.b16 %v445, %v441
  %v642 = vpack.c.b16 %v446, %v442
  %v643 = vpack.c.b16 %v451, %v447
  %v644 = vpack.c.b16 %v452, %v448
  %v645 = vpack.c.b16 %v453, %v449
  %v646 = vpack.c.b16 %v454, %v450
  %v647 = vpack.c.b16 %v459, %v455
  %v648 = vpack.c.b16 %v460, %v456
  %v649 = vpack.c.b16 %v461, %v457
  %v650 = vpack.c.b16 %v462, %v458
  %v651 = vpack.c.b16 %v467, %v463
  %v652 = vpack.c.b16 %v468, %v464
  %v653 = vpack.c.b16 %v469, %v465
  %v654 = vpack.c.b16 %v470, %v466
  %v655 = vpack.c.b16 %v475, %v471
  %v656 = vpack.c.b16 %v476, %v472
  %v657 = vpack.c.b16 %v477, %v473
  %v658 = vpack.c.b16 %v478, %v474
  %v659 = vpack.c.b16 %v483, %v479
  %v660 = vpack.c.b16 %v484, %v480
  %v661 = vpack.c.b16 %v485, %v481
  %v662 = vpack.c.b16 %v486, %v482
  %v663 = vpack.c.b16 %v491, %v487
  %v664 = vpack.c.b16 %v492, %v488
  %v665 = vpack.c.b16 %v493, %v489
  %v666 = vpack.c.b16 %v494, %v490
  %v667 = vpack.c.b16 %v499, %v495
  %v668 = vpack.c.b16 %v500, %v496
  %v669 = vpack.c.b16 %v501, %v497
  %v670 = vpack.c.b16 %v502, %v498
  %v671 = vpack.c.b16 %v507, %v503
  %v672 = vpack.c.b16 %v508, %v504
  %v673 = vpack.c.b16 %v509, %v505
  %v674 = vpack.c.b16 %v510, %v506
  %v675 = vpack.c.b16 %v515, %v511
  %v676 = vpack.c.b16 %v516, %v512
  %v677 = vpack.c.b16 %v517, %v513
  %v678 = vpack.c.b16 %v518, %v514
  %v679 = vpack.c.b16 %v523, %v519
  %v680 = vpack.c.b16 %v524, %v520
  %v681 = vpack.c.b16 %v525, %v521
  %v682 = vpack.c.b16 %v526, %v522
  %v683 = vpack.c.b16 %v531, %v527
  %v684 = vpack.c.b16 %v532, %v528
  %v685 = vpack.c.b16 %v533, %v529
  %v686 = vpack.c.b16 %v534, %v530
  %v687 = vpack.c.b16 %v539, %v535
  %v688 = vpack.c.b16 %v540, %v536
  %v689 = vpack.c.b16 %v541, %v537
  %v690 = vpack.c.b16 %v542, %v538
  %v691 = vpack.c.b16 %v547, %v543
  %v692 = vpack.c.b16 %v548, %v544
  %v693 = vpack.c.b16 %v549, %v545
  %v694 = vpack.c.b16 %v550, %v546
  %v695 = vpack.c.b16 %v555, %v551
  %v696 = vpack.c.b16 %v556, %v552
  %v697 = vpack.c.b16 %v557, %v553
  %v698 = vpack.c.b16 %v558, %v554
  %v699 = vpack.c.b16 %v563, %v559
  %v700 = vpack.c.b16 %v564, %v560
  %v701 = vpack.c.b16 %v565, %v561
  %v702 = vpack.c.b16 %v566, %v562
  %v703 = vpack.c.b16 %v571, %v567
  %v704 = vpack.c.b16 %v572, %v568
  %v705 = vpack.c.b16 %v573, %v569
  %v706 = vpack.c.b16 %v574, %v570
  %v707 = vpack.c.b16 %v579, %v575
  %v708 = vpack.c.b16 %v580, %v576
  %v709 = vpack.c.b16 %v581, %v577
  %v710 = vpack.c.b16 %v582, %v578
  %v856 = vunpack.c.l.b16 %v143
  %v857 = vunpack.c.l.b16 %v144
  %v858 = vunpack.c.l.b16 %v145
  %v859 = vunpack.c.l.b16 %v146
  %v860 = vunpack.c.l.b16 %v147
  %v861 = vunpack.c.l.b16 %v148
  %v862 = vunpack.c.l.b16 %v149
  %v863 = vunpack.c.l.b16 %v150
  %v864 = vunpack.c.l.b16 %v151
  %v865 = vunpack.c.l.b16 %v152
  %v866 = vunpack.c.l.b16 %v153
  %v867 = vunpack.c.l.b16 %v154
  %v868 = vunpack.c.l.b16 %v155
  %v869 = vunpack.c.l.b16 %v156
  %v870 = vunpack.c.l.b16 %v157
  %v871 = vunpack.c.l.b16 %v158
  %v872 = vunpack.c.l.b16 %v159
  %v873 = vunpack.c.l.b16 %v160
  %v874 = vunpack.c.l.b16 %v161
  %v875 = vunpack.c.l.b16 %v162
  %v876 = vunpack.c.l.b16 %v163
  %v877 = vunpack.c.l.b16 %v164
  %v878 = vunpack.c.l.b16 %v165
  %v879 = vunpack.c.l.b16 %v166
  %v880 = vunpack.c.l.b16 %v167
  %v881 = vunpack.c.l.b16 %v168
  %v882 = vunpack.c.l.b16 %v169
  %v883 = vunpack.c.l.b16 %v170
  %v884 = vunpack.c.l.b16 %v171
  %v885 = vunpack.c.l.b16 %v172
  %v886 = vunpack.c.l.b16 %v173
  %v887 = vunpack.c.l.b16 %v174
  %v888 = vunpack.c.l.b16 %v175
  %v889 = vunpack.c.l.b16 %v176
  %v890 = vunpack.c.l.b16 %v177
  %v891 = vunpack.c.l.b16 %v178
  %v892 = vunpack.c.l.b16 %v179
  %v893 = vunpack.c.l.b16 %v180
  %v894 = vunpack.c.l.b16 %v181
  %v895 = vunpack.c.l.b16 %v182
  %v896 = vunpack.c.l.b16 %v183
  %v897 = vunpack.c.l.b16 %v184
  %v898 = vunpack.c.l.b16 %v185
  %v899 = vunpack.c.l.b16 %v186
  %v900 = vunpack.c.l.b16 %v187
  %v901 = vunpack.c.l.b16 %v188
  %v902 = vunpack.c.l.b16 %v189
  %v903 = vunpack.c.l.b16 %v190
  %v904 = vunpack.c.l.b16 %v191
  %v905 = vpack.c.b16 %v857, %v856
  %v906 = vpack.c.b16 %v859, %v858
  %v907 = vpack.c.b16 %v861, %v860
  %v908 = vpack.c.b16 %v863, %v862
  %v909 = vpack.c.b16 %v865, %v864
  %v910 = vpack.c.b16 %v867, %v866
  %v911 = vpack.c.b16 %v869, %v868
  %v912 = vpack.c.b16 %v871, %v870
  %v913 = vpack.c.b16 %v873, %v872
  %v914 = vpack.c.b16 %v875, %v874
  %v915 = vpack.c.b16 %v877, %v876
  %v916 = vpack.c.b16 %v879, %v878
  %v917 = vpack.c.b16 %v881, %v880
  %v918 = vpack.c.b16 %v883, %v882
  %v919 = vpack.c.b16 %v885, %v884
  %v920 = vpack.c.b16 %v887, %v886
  %v921 = vpack.c.b16 %v889, %v888
  %v922 = vpack.c.b16 %v891, %v890
  %v923 = vpack.c.b16 %v893, %v892
  %v924 = vpack.c.b16 %v895, %v894
  %v925 = vpack.c.b16 %v897, %v896
  %v926 = vpack.c.b16 %v899, %v898
  %v927 = vpack.c.b16 %v901, %v900
  %v928 = vpack.c.b16 %v903, %v902
  %v929 = vpack.c.b16 %v904, %v904
  %vm954 = vcmask 64512
  %v956 = vsel %vm954, %v586, 0
  %v959 = vsel %vm954, %v590, 0
  %v962 = vsel %vm954, %v594, 0
  %v965 = vsel %vm954, %v598, 0
  %v968 = vsel %vm954, %v602, 0
  %v971 = vsel %vm954, %v606, 0
  %v974 = vsel %vm954, %v610, 0
  %v977 = vsel %vm954, %v614, 0
  %v980 = vsel %vm954, %v618, 0
  %v983 = vsel %vm954, %v622, 0
  %v986 = vsel %vm954, %v626, 0
  %v989 = vsel %vm954, %v630, 0
  %v992 = vsel %vm954, %v634, 0
  %v995 = vsel %vm954, %v638, 0
  %v998 = vsel %vm954, %v642, 0
  %v1001 = vsel %vm954, %v646, 0
  %v1004 = vsel %vm954, %v650, 0
  %v1007 = vsel %vm954, %v654, 0
  %v1010 = vsel %vm954, %v658, 0
  %v1013 = vsel %vm954, %v662, 0
  %v1016 = vsel %vm954, %v666, 0
  %v1019 = vsel %vm954, %v670, 0
  %v1022 = vsel %vm954, %v674, 0
  %v1025 = vsel %vm954, %v678, 0
  %v1028 = vsel %vm954, %v682, 0
  %v1031 = vsel %vm954, %v686, 0
  %v1034 = vsel %vm954, %v690, 0
  %v1037 = vsel %vm954, %v694, 0
  %v1040 = vsel %vm954, %v698, 0
  %v1043 = vsel %vm954, %v702, 0
  %v1046 = vsel %vm954, %v706, 0
  %v1049 = vsel %vm954, %v710, 0
  %vm1051 = vcmask 1043456
  %v1053 = vsel %vm1051, %v929, 0
  %1055 = vmatprep.subr.bf16.mxu0 0
  %1056 = vmatpush1.bf16.msra.mxu0 %v905
  %1057 = vmatprep.subr.bf16.mxu0 0
  %1058 = vmatpush1.bf16.msra.mxu0 %v906
  %1059 = vmatprep.subr.bf16.mxu0 0
  %1060 = vmatpush1.bf16.msra.mxu0 %v907
  %1061 = vmatprep.subr.bf16.mxu0 0
  %1062 = vmatpush1.bf16.msra.mxu0 %v908
  %1063 = vmatprep.subr.bf16.mxu0 0
  %1064 = vmatpush1.bf16.msra.mxu0 %v909
  %1065 = vmatprep.subr.bf16.mxu0 0
  %1066 = vmatpush1.bf16.msra.mxu0 %v910
  %1067 = vmatprep.subr.bf16.mxu0 0
  %1068 = vmatpush1.bf16.msra.mxu0 %v911
  %1069 = vmatprep.subr.bf16.mxu0 0
  %1070 = vmatpush1.bf16.msra.mxu0 %v912
  %1071 = vmatprep.subr.bf16.mxu0 0
  %1072 = vmatpush1.bf16.msra.mxu0 %v913
  %1073 = vmatprep.subr.bf16.mxu0 0
  %1074 = vmatpush1.bf16.msra.mxu0 %v914
  %1075 = vmatprep.subr.bf16.mxu0 0
  %1076 = vmatpush1.bf16.msra.mxu0 %v915
  %1077 = vmatprep.subr.bf16.mxu0 0
  %1078 = vmatpush1.bf16.msra.mxu0 %v916
  %1079 = vmatprep.subr.bf16.mxu0 0
  %1080 = vmatpush1.bf16.msra.mxu0 %v917
  %1081 = vmatprep.subr.bf16.mxu0 0
  %1082 = vmatpush1.bf16.msra.mxu0 %v918
  %1083 = vmatprep.subr.bf16.mxu0 0
  %1084 = vmatpush1.bf16.msra.mxu0 %v919
  %1085 = vmatprep.subr.bf16.mxu0 0
  %1086 = vmatpush1.bf16.msra.mxu0 %v920
  %1087 = vmatprep.mubr.bf16.mxu0 %v584
  %1088 = vmatmul.mubr.bf16.gmra.mrb[0].mxu0 %v583
  %v1089 = vpop.f32.mrb[0].mxu0
  %v1090 = vadd.f32 %v197, %v1089
  %v1091 = vpop.f32.mrb[0].mxu0
  %v1092 = vpop.f32.mrb[0].mxu0
  %v1093 = vadd.f32 %v197, %v1092
  %v1094 = vpop.f32.mrb[0].mxu0
  %1095 = vmatprep.mubr.bf16.mxu0 %v588
  %1096 = vmatmul.mubr.bf16.gmra.mrb[0].mxu0 %v587
  %v1097 = vpop.f32.mrb[0].mxu0
  %v1098 = vadd.f32 %v197, %v1097
  %v1099 = vpop.f32.mrb[0].mxu0
  %v1100 = vpop.f32.mrb[0].mxu0
  %v1101 = vadd.f32 %v197, %v1100
  %v1102 = vpop.f32.mrb[0].mxu0
  %1103 = vmatprep.mubr.bf16.mxu0 %v592
  %1104 = vmatmul.mubr.bf16.gmra.mrb[0].mxu0 %v591
  %v1105 = vpop.f32.mrb[0].mxu0
  %v1106 = vadd.f32 %v197, %v1105
  %v1107 = vpop.f32.mrb[0].mxu0
  %v1108 = vpop.f32.mrb[0].mxu0
  %v1109 = vadd.f32 %v197, %v1108
  %v1110 = vpop.f32.mrb[0].mxu0
  %1111 = vmatprep.mubr.bf16.mxu0 %v596
  %1112 = vmatmul.mubr.bf16.gmra.mrb[0].mxu0 %v595
  %v1113 = vpop.f32.mrb[0].mxu0
  %v1114 = vadd.f32 %v197, %v1113
  %v1115 = vpop.f32.mrb[0].mxu0
  %v1116 = vpop.f32.mrb[0].mxu0
  %v1117 = vadd.f32 %v197, %v1116
  %v1118 = vpop.f32.mrb[0].mxu0
  %1119 = vmatprep.mubr.bf16.mxu0 %v600
  %1120 = vmatmul.mubr.bf16.gmra.mrb[0].mxu0 %v599
  %v1121 = vpop.f32.mrb[0].mxu0
  %v1122 = vadd.f32 %v197, %v1121
  %v1123 = vpop.f32.mrb[0].mxu0
  %v1124 = vpop.f32.mrb[0].mxu0
  %v1125 = vadd.f32 %v197, %v1124
  %v1126 = vpop.f32.mrb[0].mxu0
  %1127 = vmatprep.mubr.bf16.mxu0 %v604
  %1128 = vmatmul.mubr.bf16.gmra.mrb[0].mxu0 %v603
  %v1129 = vpop.f32.mrb[0].mxu0
  %v1130 = vadd.f32 %v197, %v1129
  %v1131 = vpop.f32.mrb[0].mxu0
  %v1132 = vpop.f32.mrb[0].mxu0
  %v1133 = vadd.f32 %v197, %v1132
  %v1134 = vpop.f32.mrb[0].mxu0
  %1135 = vmatprep.mubr.bf16.mxu0 %v608
  %1136 = vmatmul.mubr.bf16.gmra.mrb[0].mxu0 %v607
  %v1137 = vpop.f32.mrb[0].mxu0
  %v1138 = vadd.f32 %v197, %v1137
  %v1139 = vpop.f32.mrb[0].mxu0
  %v1140 = vpop.f32.mrb[0].mxu0
  %v1141 = vadd.f32 %v197, %v1140
  %v1142 = vpop.f32.mrb[0].mxu0
  %1143 = vmatprep.mubr.bf16.mxu0 %v612
  %1144 = vmatmul.mubr.bf16.gmra.mrb[0].mxu0 %v611
  %v1145 = vpop.f32.mrb[0].mxu0
  %v1146 = vadd.f32 %v197, %v1145
  %v1147 = vpop.f32.mrb[0].mxu0
  %v1148 = vpop.f32.mrb[0].mxu0
  %v1149 = vadd.f32 %v197, %v1148
  %v1150 = vpop.f32.mrb[0].mxu0
  %1151 = vmatprep.mubr.bf16.mxu0 %v616
  %1152 = vmatmul.mubr.bf16.gmra.mrb[0].mxu0 %v615
  %v1153 = vpop.f32.mrb[0].mxu0
  %v1154 = vadd.f32 %v197, %v1153
  %v1155 = vpop.f32.mrb[0].mxu0
  %v1156 = vpop.f32.mrb[0].mxu0
  %v1157 = vadd.f32 %v197, %v1156
  %v1158 = vpop.f32.mrb[0].mxu0
  %1159 = vmatprep.mubr.bf16.mxu0 %v620
  %1160 = vmatmul.mubr.bf16.gmra.mrb[0].mxu0 %v619
  %v1161 = vpop.f32.mrb[0].mxu0
  %v1162 = vadd.f32 %v197, %v1161
  %v1163 = vpop.f32.mrb[0].mxu0
  %v1164 = vpop.f32.mrb[0].mxu0
  %v1165 = vadd.f32 %v197, %v1164
  %v1166 = vpop.f32.mrb[0].mxu0
  %1167 = vmatprep.mubr.bf16.mxu0 %v624
  %1168 = vmatmul.mubr.bf16.gmra.mrb[0].mxu0 %v623
  %v1169 = vpop.f32.mrb[0].mxu0
  %v1170 = vadd.f32 %v197, %v1169
  %v1171 = vpop.f32.mrb[0].mxu0
  %v1172 = vpop.f32.mrb[0].mxu0
  %v1173 = vadd.f32 %v197, %v1172
  %v1174 = vpop.f32.mrb[0].mxu0
  %1175 = vmatprep.mubr.bf16.mxu0 %v628
  %1176 = vmatmul.mubr.bf16.gmra.mrb[0].mxu0 %v627
  %v1177 = vpop.f32.mrb[0].mxu0
  %v1178 = vadd.f32 %v197, %v1177
  %v1179 = vpop.f32.mrb[0].mxu0
  %v1180 = vpop.f32.mrb[0].mxu0
  %v1181 = vadd.f32 %v197, %v1180
  %v1182 = vpop.f32.mrb[0].mxu0
  %1183 = vmatprep.mubr.bf16.mxu0 %v632
  %1184 = vmatmul.mubr.bf16.gmra.mrb[0].mxu0 %v631
  %v1185 = vpop.f32.mrb[0].mxu0
  %v1186 = vadd.f32 %v197, %v1185
  %v1187 = vpop.f32.mrb[0].mxu0
  %v1188 = vpop.f32.mrb[0].mxu0
  %v1189 = vadd.f32 %v197, %v1188
  %v1190 = vpop.f32.mrb[0].mxu0
  %1191 = vmatprep.mubr.bf16.mxu0 %v636
  %1192 = vmatmul.mubr.bf16.gmra.mrb[0].mxu0 %v635
  %v1193 = vpop.f32.mrb[0].mxu0
  %v1194 = vadd.f32 %v197, %v1193
  %v1195 = vpop.f32.mrb[0].mxu0
  %v1196 = vpop.f32.mrb[0].mxu0
  %v1197 = vadd.f32 %v197, %v1196
  %v1198 = vpop.f32.mrb[0].mxu0
  %1199 = vmatprep.mubr.bf16.mxu0 %v640
  %1200 = vmatmul.mubr.bf16.gmra.mrb[0].mxu0 %v639
  %v1201 = vpop.f32.mrb[0].mxu0
  %v1202 = vadd.f32 %v197, %v1201
  %v1203 = vpop.f32.mrb[0].mxu0
  %v1204 = vpop.f32.mrb[0].mxu0
  %v1205 = vadd.f32 %v197, %v1204
  %v1206 = vpop.f32.mrb[0].mxu0
  %1207 = vmatprep.mubr.bf16.mxu0 %v644
  %1208 = vmatmul.mubr.bf16.gmra.mrb[0].mxu0 %v643
  %v1209 = vpop.f32.mrb[0].mxu0
  %v1210 = vadd.f32 %v197, %v1209
  %v1211 = vpop.f32.mrb[0].mxu0
  %v1212 = vpop.f32.mrb[0].mxu0
  %v1213 = vadd.f32 %v197, %v1212
  %v1214 = vpop.f32.mrb[0].mxu0
  %1215 = vmatprep.mubr.bf16.mxu0 %v648
  %1216 = vmatmul.mubr.bf16.gmra.mrb[0].mxu0 %v647
  %v1217 = vpop.f32.mrb[0].mxu0
  %v1218 = vadd.f32 %v197, %v1217
  %v1219 = vpop.f32.mrb[0].mxu0
  %v1220 = vpop.f32.mrb[0].mxu0
  %v1221 = vadd.f32 %v197, %v1220
  %v1222 = vpop.f32.mrb[0].mxu0
  %1223 = vmatprep.mubr.bf16.mxu0 %v652
  %1224 = vmatmul.mubr.bf16.gmra.mrb[0].mxu0 %v651
  %v1225 = vpop.f32.mrb[0].mxu0
  %v1226 = vadd.f32 %v197, %v1225
  %v1227 = vpop.f32.mrb[0].mxu0
  %v1228 = vpop.f32.mrb[0].mxu0
  %v1229 = vadd.f32 %v197, %v1228
  %v1230 = vpop.f32.mrb[0].mxu0
  %1231 = vmatprep.mubr.bf16.mxu0 %v656
  %1232 = vmatmul.mubr.bf16.gmra.mrb[0].mxu0 %v655
  %v1233 = vpop.f32.mrb[0].mxu0
  %v1234 = vadd.f32 %v197, %v1233
  %v1235 = vpop.f32.mrb[0].mxu0
  %v1236 = vpop.f32.mrb[0].mxu0
  %v1237 = vadd.f32 %v197, %v1236
  %v1238 = vpop.f32.mrb[0].mxu0
  %1239 = vmatprep.mubr.bf16.mxu0 %v660
  %1240 = vmatmul.mubr.bf16.gmra.mrb[0].mxu0 %v659
  %v1241 = vpop.f32.mrb[0].mxu0
  %v1242 = vadd.f32 %v197, %v1241
  %v1243 = vpop.f32.mrb[0].mxu0
  %v1244 = vpop.f32.mrb[0].mxu0
  %v1245 = vadd.f32 %v197, %v1244
  %v1246 = vpop.f32.mrb[0].mxu0
  %1247 = vmatprep.mubr.bf16.mxu0 %v664
  %1248 = vmatmul.mubr.bf16.gmra.mrb[0].mxu0 %v663
  %v1249 = vpop.f32.mrb[0].mxu0
  %v1250 = vadd.f32 %v197, %v1249
  %v1251 = vpop.f32.mrb[0].mxu0
  %v1252 = vpop.f32.mrb[0].mxu0
  %v1253 = vadd.f32 %v197, %v1252
  %v1254 = vpop.f32.mrb[0].mxu0
  %1255 = vmatprep.mubr.bf16.mxu0 %v668
  %1256 = vmatmul.mubr.bf16.gmra.mrb[0].mxu0 %v667
  %v1257 = vpop.f32.mrb[0].mxu0
  %v1258 = vadd.f32 %v197, %v1257
  %v1259 = vpop.f32.mrb[0].mxu0
  %v1260 = vpop.f32.mrb[0].mxu0
  %v1261 = vadd.f32 %v197, %v1260
  %v1262 = vpop.f32.mrb[0].mxu0
  %1263 = vmatprep.mubr.bf16.mxu0 %v672
  %1264 = vmatmul.mubr.bf16.gmra.mrb[0].mxu0 %v671
  %v1265 = vpop.f32.mrb[0].mxu0
  %v1266 = vadd.f32 %v197, %v1265
  %v1267 = vpop.f32.mrb[0].mxu0
  %v1268 = vpop.f32.mrb[0].mxu0
  %v1269 = vadd.f32 %v197, %v1268
  %v1270 = vpop.f32.mrb[0].mxu0
  %1271 = vmatprep.mubr.bf16.mxu0 %v676
  %1272 = vmatmul.mubr.bf16.gmra.mrb[0].mxu0 %v675
  %v1273 = vpop.f32.mrb[0].mxu0
  %v1274 = vadd.f32 %v197, %v1273
  %v1275 = vpop.f32.mrb[0].mxu0
  %v1276 = vpop.f32.mrb[0].mxu0
  %v1277 = vadd.f32 %v197, %v1276
  %v1278 = vpop.f32.mrb[0].mxu0
  %1279 = vmatprep.mubr.bf16.mxu0 %v680
  %1280 = vmatmul.mubr.bf16.gmra.mrb[0].mxu0 %v679
  %v1281 = vpop.f32.mrb[0].mxu0
  %v1282 = vadd.f32 %v197, %v1281
  %v1283 = vpop.f32.mrb[0].mxu0
  %v1284 = vpop.f32.mrb[0].mxu0
  %v1285 = vadd.f32 %v197, %v1284
  %v1286 = vpop.f32.mrb[0].mxu0
  %1287 = vmatprep.mubr.bf16.mxu0 %v684
  %1288 = vmatmul.mubr.bf16.gmra.mrb[0].mxu0 %v683
  %v1289 = vpop.f32.mrb[0].mxu0
  %v1290 = vadd.f32 %v197, %v1289
  %v1291 = vpop.f32.mrb[0].mxu0
  %v1292 = vpop.f32.mrb[0].mxu0
  %v1293 = vadd.f32 %v197, %v1292
  %v1294 = vpop.f32.mrb[0].mxu0
  %1295 = vmatprep.mubr.bf16.mxu0 %v688
  %1296 = vmatmul.mubr.bf16.gmra.mrb[0].mxu0 %v687
  %v1297 = vpop.f32.mrb[0].mxu0
  %v1298 = vadd.f32 %v197, %v1297
  %v1299 = vpop.f32.mrb[0].mxu0
  %v1300 = vpop.f32.mrb[0].mxu0
  %v1301 = vadd.f32 %v197, %v1300
  %v1302 = vpop.f32.mrb[0].mxu0
  %1303 = vmatprep.mubr.bf16.mxu0 %v692
  %1304 = vmatmul.mubr.bf16.gmra.mrb[0].mxu0 %v691
  %v1305 = vpop.f32.mrb[0].mxu0
  %v1306 = vadd.f32 %v197, %v1305
  %v1307 = vpop.f32.mrb[0].mxu0
  %v1308 = vpop.f32.mrb[0].mxu0
  %v1309 = vadd.f32 %v197, %v1308
  %v1310 = vpop.f32.mrb[0].mxu0
  %1311 = vmatprep.mubr.bf16.mxu0 %v696
  %1312 = vmatmul.mubr.bf16.gmra.mrb[0].mxu0 %v695
  %v1313 = vpop.f32.mrb[0].mxu0
  %v1314 = vadd.f32 %v197, %v1313
  %v1315 = vpop.f32.mrb[0].mxu0
  %v1316 = vpop.f32.mrb[0].mxu0
  %v1317 = vadd.f32 %v197, %v1316
  %v1318 = vpop.f32.mrb[0].mxu0
  %1319 = vmatprep.mubr.bf16.mxu0 %v700
  %1320 = vmatmul.mubr.bf16.gmra.mrb[0].mxu0 %v699
  %v1321 = vpop.f32.mrb[0].mxu0
  %v1322 = vadd.f32 %v197, %v1321
  %v1323 = vpop.f32.mrb[0].mxu0
  %v1324 = vpop.f32.mrb[0].mxu0
  %v1325 = vadd.f32 %v197, %v1324
  %v1326 = vpop.f32.mrb[0].mxu0
  %1327 = vmatprep.mubr.bf16.mxu0 %v704
  %1328 = vmatmul.mubr.bf16.gmra.mrb[0].mxu0 %v703
  %v1329 = vpop.f32.mrb[0].mxu0
  %v1330 = vadd.f32 %v197, %v1329
  %v1331 = vpop.f32.mrb[0].mxu0
  %v1332 = vpop.f32.mrb[0].mxu0
  %v1333 = vadd.f32 %v197, %v1332
  %v1334 = vpop.f32.mrb[0].mxu0
  %1335 = vmatprep.mubr.bf16.mxu0 %v708
  %1336 = vmatmul.mubr.bf16.gmra.mrb[0].mxu0 %v707
  %v1337 = vpop.f32.mrb[0].mxu0
  %v1338 = vadd.f32 %v197, %v1337
  %v1339 = vpop.f32.mrb[0].mxu0
  %v1340 = vpop.f32.mrb[0].mxu0
  %v1341 = vadd.f32 %v197, %v1340
  %v1342 = vpop.f32.mrb[0].mxu0
  %1343 = vdwg.mxu0
  %1344 = vmatprep.subr.bf16.mxu0 0
  %1345 = vmatpush1.bf16.msra.mxu0 %v921
  %1346 = vmatprep.subr.bf16.mxu0 0
  %1347 = vmatpush1.bf16.msra.mxu0 %v922
  %1348 = vmatprep.subr.bf16.mxu0 0
  %1349 = vmatpush1.bf16.msra.mxu0 %v923
  %1350 = vmatprep.subr.bf16.mxu0 0
  %1351 = vmatpush1.bf16.msra.mxu0 %v924
  %1352 = vmatprep.subr.bf16.mxu0 0
  %1353 = vmatpush1.bf16.msra.mxu0 %v925
  %1354 = vmatprep.subr.bf16.mxu0 0
  %1355 = vmatpush1.bf16.msra.mxu0 %v926
  %1356 = vmatprep.subr.bf16.mxu0 0
  %1357 = vmatpush1.bf16.msra.mxu0 %v927
  %1358 = vmatprep.subr.bf16.mxu0 0
  %1359 = vmatpush1.bf16.msra.mxu0 %v928
  %1360 = vmatprep.subr.bf16.mxu0 0
  %1361 = vmatpush1.bf16.msra.mxu0 %v1053
  %1362 = vmatprep.subr.bf16.mxu0 0
  %1363 = vmatpush1.bf16.msra.mxu0 0
  %1364 = vmatprep.subr.bf16.mxu0 0
  %1365 = vmatpush1.bf16.msra.mxu0 0
  %1366 = vmatprep.subr.bf16.mxu0 0
  %1367 = vmatpush1.bf16.msra.mxu0 0
  %1368 = vmatprep.subr.bf16.mxu0 0
  %1369 = vmatpush1.bf16.msra.mxu0 0
  %1370 = vmatprep.subr.bf16.mxu0 0
  %1371 = vmatpush1.bf16.msra.mxu0 0
  %1372 = vmatprep.subr.bf16.mxu0 0
  %1373 = vmatpush1.bf16.msra.mxu0 0
  %1374 = vmatprep.subr.bf16.mxu0 0
  %1375 = vmatpush1.bf16.msra.mxu0 0
  %1376 = vmatprep.mubr.bf16.mxu0 %v956
  %1377 = vmatmul.mubr.bf16.gmra.mrb[0].mxu0 %v585
  %v1378 = vpop.f32.mrb[0].mxu0
  %v1379 = vadd.f32 %v1090, %v1378
  %v1380 = vpop.f32.mrb[0].mxu0
  %v1381 = vpop.f32.mrb[0].mxu0
  %v1382 = vadd.f32 %v1093, %v1381
  %v1383 = vpop.f32.mrb[0].mxu0
  %1384 = vmatprep.mubr.bf16.mxu0 %v959
  %1385 = vmatmul.mubr.bf16.gmra.mrb[0].mxu0 %v589
  %v1386 = vpop.f32.mrb[0].mxu0
  %v1387 = vadd.f32 %v1098, %v1386
  %v1388 = vpop.f32.mrb[0].mxu0
  %v1389 = vpop.f32.mrb[0].mxu0
  %v1390 = vadd.f32 %v1101, %v1389
  %v1391 = vpop.f32.mrb[0].mxu0
  %1392 = vmatprep.mubr.bf16.mxu0 %v962
  %1393 = vmatmul.mubr.bf16.gmra.mrb[0].mxu0 %v593
  %v1394 = vpop.f32.mrb[0].mxu0
  %v1395 = vadd.f32 %v1106, %v1394
  %v1396 = vpop.f32.mrb[0].mxu0
  %v1397 = vpop.f32.mrb[0].mxu0
  %v1398 = vadd.f32 %v1109, %v1397
  %v1399 = vpop.f32.mrb[0].mxu0
  %1400 = vmatprep.mubr.bf16.mxu0 %v965
  %1401 = vmatmul.mubr.bf16.gmra.mrb[0].mxu0 %v597
  %v1402 = vpop.f32.mrb[0].mxu0
  %v1403 = vadd.f32 %v1114, %v1402
  %v1404 = vpop.f32.mrb[0].mxu0
  %v1405 = vpop.f32.mrb[0].mxu0
  %v1406 = vadd.f32 %v1117, %v1405
  %v1407 = vpop.f32.mrb[0].mxu0
  %1408 = vmatprep.mubr.bf16.mxu0 %v968
  %1409 = vmatmul.mubr.bf16.gmra.mrb[0].mxu0 %v601
  %v1410 = vpop.f32.mrb[0].mxu0
  %v1411 = vadd.f32 %v1122, %v1410
  %v1412 = vpop.f32.mrb[0].mxu0
  %v1413 = vpop.f32.mrb[0].mxu0
  %v1414 = vadd.f32 %v1125, %v1413
  %v1415 = vpop.f32.mrb[0].mxu0
  %1416 = vmatprep.mubr.bf16.mxu0 %v971
  %1417 = vmatmul.mubr.bf16.gmra.mrb[0].mxu0 %v605
  %v1418 = vpop.f32.mrb[0].mxu0
  %v1419 = vadd.f32 %v1130, %v1418
  %v1420 = vpop.f32.mrb[0].mxu0
  %v1421 = vpop.f32.mrb[0].mxu0
  %v1422 = vadd.f32 %v1133, %v1421
  %v1423 = vpop.f32.mrb[0].mxu0
  %1424 = vmatprep.mubr.bf16.mxu0 %v974
  %1425 = vmatmul.mubr.bf16.gmra.mrb[0].mxu0 %v609
  %v1426 = vpop.f32.mrb[0].mxu0
  %v1427 = vadd.f32 %v1138, %v1426
  %v1428 = vpop.f32.mrb[0].mxu0
  %v1429 = vpop.f32.mrb[0].mxu0
  %v1430 = vadd.f32 %v1141, %v1429
  %v1431 = vpop.f32.mrb[0].mxu0
  %1432 = vmatprep.mubr.bf16.mxu0 %v977
  %1433 = vmatmul.mubr.bf16.gmra.mrb[0].mxu0 %v613
  %v1434 = vpop.f32.mrb[0].mxu0
  %v1435 = vadd.f32 %v1146, %v1434
  %v1436 = vpop.f32.mrb[0].mxu0
  %v1437 = vpop.f32.mrb[0].mxu0
  %v1438 = vadd.f32 %v1149, %v1437
  %v1439 = vpop.f32.mrb[0].mxu0
  %1440 = vmatprep.mubr.bf16.mxu0 %v980
  %1441 = vmatmul.mubr.bf16.gmra.mrb[0].mxu0 %v617
  %v1442 = vpop.f32.mrb[0].mxu0
  %v1443 = vadd.f32 %v1154, %v1442
  %v1444 = vpop.f32.mrb[0].mxu0
  %v1445 = vpop.f32.mrb[0].mxu0
  %v1446 = vadd.f32 %v1157, %v1445
  %v1447 = vpop.f32.mrb[0].mxu0
  %1448 = vmatprep.mubr.bf16.mxu0 %v983
  %1449 = vmatmul.mubr.bf16.gmra.mrb[0].mxu0 %v621
  %v1450 = vpop.f32.mrb[0].mxu0
  %v1451 = vadd.f32 %v1162, %v1450
  %v1452 = vpop.f32.mrb[0].mxu0
  %v1453 = vpop.f32.mrb[0].mxu0
  %v1454 = vadd.f32 %v1165, %v1453
  %v1455 = vpop.f32.mrb[0].mxu0
  %1456 = vmatprep.mubr.bf16.mxu0 %v986
  %1457 = vmatmul.mubr.bf16.gmra.mrb[0].mxu0 %v625
  %v1458 = vpop.f32.mrb[0].mxu0
  %v1459 = vadd.f32 %v1170, %v1458
  %v1460 = vpop.f32.mrb[0].mxu0
  %v1461 = vpop.f32.mrb[0].mxu0
  %v1462 = vadd.f32 %v1173, %v1461
  %v1463 = vpop.f32.mrb[0].mxu0
  %1464 = vmatprep.mubr.bf16.mxu0 %v989
  %1465 = vmatmul.mubr.bf16.gmra.mrb[0].mxu0 %v629
  %v1466 = vpop.f32.mrb[0].mxu0
  %v1467 = vadd.f32 %v1178, %v1466
  %v1468 = vpop.f32.mrb[0].mxu0
  %v1469 = vpop.f32.mrb[0].mxu0
  %v1470 = vadd.f32 %v1181, %v1469
  %v1471 = vpop.f32.mrb[0].mxu0
  %1472 = vmatprep.mubr.bf16.mxu0 %v992
  %1473 = vmatmul.mubr.bf16.gmra.mrb[0].mxu0 %v633
  %v1474 = vpop.f32.mrb[0].mxu0
  %v1475 = vadd.f32 %v1186, %v1474
  %v1476 = vpop.f32.mrb[0].mxu0
  %v1477 = vpop.f32.mrb[0].mxu0
  %v1478 = vadd.f32 %v1189, %v1477
  %v1479 = vpop.f32.mrb[0].mxu0
  %1480 = vmatprep.mubr.bf16.mxu0 %v995
  %1481 = vmatmul.mubr.bf16.gmra.mrb[0].mxu0 %v637
  %v1482 = vpop.f32.mrb[0].mxu0
  %v1483 = vadd.f32 %v1194, %v1482
  %v1484 = vpop.f32.mrb[0].mxu0
  %v1485 = vpop.f32.mrb[0].mxu0
  %v1486 = vadd.f32 %v1197, %v1485
  %v1487 = vpop.f32.mrb[0].mxu0
  %1488 = vmatprep.mubr.bf16.mxu0 %v998
  %1489 = vmatmul.mubr.bf16.gmra.mrb[0].mxu0 %v641
  %v1490 = vpop.f32.mrb[0].mxu0
  %v1491 = vadd.f32 %v1202, %v1490
  %v1492 = vpop.f32.mrb[0].mxu0
  %v1493 = vpop.f32.mrb[0].mxu0
  %v1494 = vadd.f32 %v1205, %v1493
  %v1495 = vpop.f32.mrb[0].mxu0
  %1496 = vmatprep.mubr.bf16.mxu0 %v1001
  %1497 = vmatmul.mubr.bf16.gmra.mrb[0].mxu0 %v645
  %v1498 = vpop.f32.mrb[0].mxu0
  %v1499 = vadd.f32 %v1210, %v1498
  %v1500 = vpop.f32.mrb[0].mxu0
  %v1501 = vpop.f32.mrb[0].mxu0
  %v1502 = vadd.f32 %v1213, %v1501
  %v1503 = vpop.f32.mrb[0].mxu0
  %1504 = vmatprep.mubr.bf16.mxu0 %v1004
  %1505 = vmatmul.mubr.bf16.gmra.mrb[0].mxu0 %v649
  %v1506 = vpop.f32.mrb[0].mxu0
  %v1507 = vadd.f32 %v1218, %v1506
  %v1508 = vpop.f32.mrb[0].mxu0
  %v1509 = vpop.f32.mrb[0].mxu0
  %v1510 = vadd.f32 %v1221, %v1509
  %v1511 = vpop.f32.mrb[0].mxu0
  %1512 = vmatprep.mubr.bf16.mxu0 %v1007
  %1513 = vmatmul.mubr.bf16.gmra.mrb[0].mxu0 %v653
  %v1514 = vpop.f32.mrb[0].mxu0
  %v1515 = vadd.f32 %v1226, %v1514
  %v1516 = vpop.f32.mrb[0].mxu0
  %v1517 = vpop.f32.mrb[0].mxu0
  %v1518 = vadd.f32 %v1229, %v1517
  %v1519 = vpop.f32.mrb[0].mxu0
  %1520 = vmatprep.mubr.bf16.mxu0 %v1010
  %1521 = vmatmul.mubr.bf16.gmra.mrb[0].mxu0 %v657
  %v1522 = vpop.f32.mrb[0].mxu0
  %v1523 = vadd.f32 %v1234, %v1522
  %v1524 = vpop.f32.mrb[0].mxu0
  %v1525 = vpop.f32.mrb[0].mxu0
  %v1526 = vadd.f32 %v1237, %v1525
  %v1527 = vpop.f32.mrb[0].mxu0
  %1528 = vmatprep.mubr.bf16.mxu0 %v1013
  %1529 = vmatmul.mubr.bf16.gmra.mrb[0].mxu0 %v661
  %v1530 = vpop.f32.mrb[0].mxu0
  %v1531 = vadd.f32 %v1242, %v1530
  %v1532 = vpop.f32.mrb[0].mxu0
  %v1533 = vpop.f32.mrb[0].mxu0
  %v1534 = vadd.f32 %v1245, %v1533
  %v1535 = vpop.f32.mrb[0].mxu0
  %1536 = vmatprep.mubr.bf16.mxu0 %v1016
  %1537 = vmatmul.mubr.bf16.gmra.mrb[0].mxu0 %v665
  %v1538 = vpop.f32.mrb[0].mxu0
  %v1539 = vadd.f32 %v1250, %v1538
  %v1540 = vpop.f32.mrb[0].mxu0
  %v1541 = vpop.f32.mrb[0].mxu0
  %v1542 = vadd.f32 %v1253, %v1541
  %v1543 = vpop.f32.mrb[0].mxu0
  %1544 = vmatprep.mubr.bf16.mxu0 %v1019
  %1545 = vmatmul.mubr.bf16.gmra.mrb[0].mxu0 %v669
  %v1546 = vpop.f32.mrb[0].mxu0
  %v1547 = vadd.f32 %v1258, %v1546
  %v1548 = vpop.f32.mrb[0].mxu0
  %v1549 = vpop.f32.mrb[0].mxu0
  %v1550 = vadd.f32 %v1261, %v1549
  %v1551 = vpop.f32.mrb[0].mxu0
  %1552 = vmatprep.mubr.bf16.mxu0 %v1022
  %1553 = vmatmul.mubr.bf16.gmra.mrb[0].mxu0 %v673
  %v1554 = vpop.f32.mrb[0].mxu0
  %v1555 = vadd.f32 %v1266, %v1554
  %v1556 = vpop.f32.mrb[0].mxu0
  %v1557 = vpop.f32.mrb[0].mxu0
  %v1558 = vadd.f32 %v1269, %v1557
  %v1559 = vpop.f32.mrb[0].mxu0
  %1560 = vmatprep.mubr.bf16.mxu0 %v1025
  %1561 = vmatmul.mubr.bf16.gmra.mrb[0].mxu0 %v677
  %v1562 = vpop.f32.mrb[0].mxu0
  %v1563 = vadd.f32 %v1274, %v1562
  %v1564 = vpop.f32.mrb[0].mxu0
  %v1565 = vpop.f32.mrb[0].mxu0
  %v1566 = vadd.f32 %v1277, %v1565
  %v1567 = vpop.f32.mrb[0].mxu0
  %1568 = vmatprep.mubr.bf16.mxu0 %v1028
  %1569 = vmatmul.mubr.bf16.gmra.mrb[0].mxu0 %v681
  %v1570 = vpop.f32.mrb[0].mxu0
  %v1571 = vadd.f32 %v1282, %v1570
  %v1572 = vpop.f32.mrb[0].mxu0
  %v1573 = vpop.f32.mrb[0].mxu0
  %v1574 = vadd.f32 %v1285, %v1573
  %v1575 = vpop.f32.mrb[0].mxu0
  %1576 = vmatprep.mubr.bf16.mxu0 %v1031
  %1577 = vmatmul.mubr.bf16.gmra.mrb[0].mxu0 %v685
  %v1578 = vpop.f32.mrb[0].mxu0
  %v1579 = vadd.f32 %v1290, %v1578
  %v1580 = vpop.f32.mrb[0].mxu0
  %v1581 = vpop.f32.mrb[0].mxu0
  %v1582 = vadd.f32 %v1293, %v1581
  %v1583 = vpop.f32.mrb[0].mxu0
  %1584 = vmatprep.mubr.bf16.mxu0 %v1034
  %1585 = vmatmul.mubr.bf16.gmra.mrb[0].mxu0 %v689
  %v1586 = vpop.f32.mrb[0].mxu0
  %v1587 = vadd.f32 %v1298, %v1586
  %v1588 = vpop.f32.mrb[0].mxu0
  %v1589 = vpop.f32.mrb[0].mxu0
  %v1590 = vadd.f32 %v1301, %v1589
  %v1591 = vpop.f32.mrb[0].mxu0
  %1592 = vmatprep.mubr.bf16.mxu0 %v1037
  %1593 = vmatmul.mubr.bf16.gmra.mrb[0].mxu0 %v693
  %v1594 = vpop.f32.mrb[0].mxu0
  %v1595 = vadd.f32 %v1306, %v1594
  %v1596 = vpop.f32.mrb[0].mxu0
  %v1597 = vpop.f32.mrb[0].mxu0
  %v1598 = vadd.f32 %v1309, %v1597
  %v1599 = vpop.f32.mrb[0].mxu0
  %1600 = vmatprep.mubr.bf16.mxu0 %v1040
  %1601 = vmatmul.mubr.bf16.gmra.mrb[0].mxu0 %v697
  %v1602 = vpop.f32.mrb[0].mxu0
  %v1603 = vadd.f32 %v1314, %v1602
  %v1604 = vpop.f32.mrb[0].mxu0
  %v1605 = vpop.f32.mrb[0].mxu0
  %v1606 = vadd.f32 %v1317, %v1605
  %v1607 = vpop.f32.mrb[0].mxu0
  %1608 = vmatprep.mubr.bf16.mxu0 %v1043
  %1609 = vmatmul.mubr.bf16.gmra.mrb[0].mxu0 %v701
  %v1610 = vpop.f32.mrb[0].mxu0
  %v1611 = vadd.f32 %v1322, %v1610
  %v1612 = vpop.f32.mrb[0].mxu0
  %v1613 = vpop.f32.mrb[0].mxu0
  %v1614 = vadd.f32 %v1325, %v1613
  %v1615 = vpop.f32.mrb[0].mxu0
  %1616 = vmatprep.mubr.bf16.mxu0 %v1046
  %1617 = vmatmul.mubr.bf16.gmra.mrb[0].mxu0 %v705
  %v1618 = vpop.f32.mrb[0].mxu0
  %v1619 = vadd.f32 %v1330, %v1618
  %v1620 = vpop.f32.mrb[0].mxu0
  %v1621 = vpop.f32.mrb[0].mxu0
  %v1622 = vadd.f32 %v1333, %v1621
  %v1623 = vpop.f32.mrb[0].mxu0
  %1624 = vmatprep.mubr.bf16.mxu0 %v1049
  %1625 = vmatmul.mubr.bf16.gmra.mrb[0].mxu0 %v709
  %v1626 = vpop.f32.mrb[0].mxu0
  %v1627 = vadd.f32 %v1338, %v1626
  %v1628 = vpop.f32.mrb[0].mxu0
  %v1629 = vpop.f32.mrb[0].mxu0
  %v1630 = vadd.f32 %v1341, %v1629
  %v1631 = vpop.f32.mrb[0].mxu0
  %1632 = vdwg.mxu0
  %v1633 = vtanh.pop %v1379
  %v1634 = vtanh.pop %v1382
  %v1635 = vtanh.pop %v1387
  %v1636 = vtanh.pop %v1390
  %v1637 = vtanh.pop %v1395
  %v1638 = vtanh.pop %v1398
  %v1639 = vtanh.pop %v1403
  %v1640 = vtanh.pop %v1406
  %v1641 = vtanh.pop %v1411
  %v1642 = vtanh.pop %v1414
  %v1643 = vtanh.pop %v1419
  %v1644 = vtanh.pop %v1422
  %v1645 = vtanh.pop %v1427
  %v1646 = vtanh.pop %v1430
  %v1647 = vtanh.pop %v1435
  %v1648 = vtanh.pop %v1438
  %v1649 = vtanh.pop %v1443
  %v1650 = vtanh.pop %v1446
  %v1651 = vtanh.pop %v1451
  %v1652 = vtanh.pop %v1454
  %v1653 = vtanh.pop %v1459
  %v1654 = vtanh.pop %v1462
  %v1655 = vtanh.pop %v1467
  %v1656 = vtanh.pop %v1470
  %v1657 = vtanh.pop %v1475
  %v1658 = vtanh.pop %v1478
  %v1659 = vtanh.pop %v1483
  %v1660 = vtanh.pop %v1486
  %v1661 = vtanh.pop %v1491
  %v1662 = vtanh.pop %v1494
  %v1663 = vtanh.pop %v1499
  %v1664 = vtanh.pop %v1502
  %v1665 = vtanh.pop %v1507
  %v1666 = vtanh.pop %v1510
  %v1667 = vtanh.pop %v1515
  %v1668 = vtanh.pop %v1518
  %v1669 = vtanh.pop %v1523
  %v1670 = vtanh.pop %v1526
  %v1671 = vtanh.pop %v1531
  %v1672 = vtanh.pop %v1534
  %v1673 = vtanh.pop %v1539
  %v1674 = vtanh.pop %v1542
  %v1675 = vtanh.pop %v1547
  %v1676 = vtanh.pop %v1550
  %v1677 = vtanh.pop %v1555
  %v1678 = vtanh.pop %v1558
  %v1679 = vtanh.pop %v1563
  %v1680 = vtanh.pop %v1566
  %v1681 = vtanh.pop %v1571
  %v1682 = vtanh.pop %v1574
  %v1683 = vtanh.pop %v1579
  %v1684 = vtanh.pop %v1582
  %v1685 = vtanh.pop %v1587
  %v1686 = vtanh.pop %v1590
  %v1687 = vtanh.pop %v1595
  %v1688 = vtanh.pop %v1598
  %v1689 = vtanh.pop %v1603
  %v1690 = vtanh.pop %v1606
  %v1691 = vtanh.pop %v1611
  %v1692 = vtanh.pop %v1614
  %v1693 = vtanh.pop %v1619
  %v1694 = vtanh.pop %v1622
  %v1695 = vtanh.pop %v1627
  %v1696 = vtanh.pop %v1630
  %vm1697 = vcmask 23552
  %1698 = vst.msk [vmem:[%s3] sm:$0xff] %vm1697, %v1633
  %1699 = vst.msk [vmem:[%s3 + $0x8] sm:$0xff] %vm1697, %v1634
  %1700 = vst.msk [vmem:[%s3 + $0x10] sm:$0xff] %vm1697, %v1635
  %1701 = vst.msk [vmem:[%s3 + $0x18] sm:$0xff] %vm1697, %v1636
  %1702 = vst.msk [vmem:[%s3 + $0x20] sm:$0xff] %vm1697, %v1637
  %1703 = vst.msk [vmem:[%s3 + $0x28] sm:$0xff] %vm1697, %v1638
  %1704 = vst.msk [vmem:[%s3 + $0x30] sm:$0xff] %vm1697, %v1639
  %1705 = vst.msk [vmem:[%s3 + $0x38] sm:$0xff] %vm1697, %v1640
  %1706 = vst.msk [vmem:[%s3 + $0x40] sm:$0xff] %vm1697, %v1641
  %1707 = vst.msk [vmem:[%s3 + $0x48] sm:$0xff] %vm1697, %v1642
  %1708 = vst.msk [vmem:[%s3 + $0x50] sm:$0xff] %vm1697, %v1643
  %1709 = vst.msk [vmem:[%s3 + $0x58] sm:$0xff] %vm1697, %v1644
  %1710 = vst.msk [vmem:[%s3 + $0x60] sm:$0xff] %vm1697, %v1645
  %1711 = vst.msk [vmem:[%s3 + $0x68] sm:$0xff] %vm1697, %v1646
  %1712 = vst.msk [vmem:[%s3 + $0x70] sm:$0xff] %vm1697, %v1647
  %1713 = vst.msk [vmem:[%s3 + $0x78] sm:$0xff] %vm1697, %v1648
  %1714 = vst.msk [vmem:[%s3 + $0x80] sm:$0xff] %vm1697, %v1649
  %1715 = vst.msk [vmem:[%s3 + $0x88] sm:$0xff] %vm1697, %v1650
  %1716 = vst.msk [vmem:[%s3 + $0x90] sm:$0xff] %vm1697, %v1651
  %1717 = vst.msk [vmem:[%s3 + $0x98] sm:$0xff] %vm1697, %v1652
  %1718 = vst.msk [vmem:[%s3 + $0xa0] sm:$0xff] %vm1697, %v1653
  %1719 = vst.msk [vmem:[%s3 + $0xa8] sm:$0xff] %vm1697, %v1654
  %1720 = vst.msk [vmem:[%s3 + $0xb0] sm:$0xff] %vm1697, %v1655
  %1721 = vst.msk [vmem:[%s3 + $0xb8] sm:$0xff] %vm1697, %v1656
  %1722 = vst.msk [vmem:[%s3 + $0xc0] sm:$0xff] %vm1697, %v1657
  %1723 = vst.msk [vmem:[%s3 + $0xc8] sm:$0xff] %vm1697, %v1658
  %1724 = vst.msk [vmem:[%s3 + $0xd0] sm:$0xff] %vm1697, %v1659
  %1725 = vst.msk [vmem:[%s3 + $0xd8] sm:$0xff] %vm1697, %v1660
  %1726 = vst.msk [vmem:[%s3 + $0xe0] sm:$0xff] %vm1697, %v1661
  %1727 = vst.msk [vmem:[%s3 + $0xe8] sm:$0xff] %vm1697, %v1662
  %1728 = vst.msk [vmem:[%s3 + $0xf0] sm:$0xff] %vm1697, %v1663
  %1729 = vst.msk [vmem:[%s3 + $0xf8] sm:$0xff] %vm1697, %v1664
  %1730 = vst.msk [vmem:[%s3 + $0x100] sm:$0xff] %vm1697, %v1665
  %1731 = vst.msk [vmem:[%s3 + $0x108] sm:$0xff] %vm1697, %v1666
  %1732 = vst.msk [vmem:[%s3 + $0x110] sm:$0xff] %vm1697, %v1667
  %1733 = vst.msk [vmem:[%s3 + $0x118] sm:$0xff] %vm1697, %v1668
  %1734 = vst.msk [vmem:[%s3 + $0x120] sm:$0xff] %vm1697, %v1669
  %1735 = vst.msk [vmem:[%s3 + $0x128] sm:$0xff] %vm1697, %v1670
  %1736 = vst.msk [vmem:[%s3 + $0x130] sm:$0xff] %vm1697, %v1671
  %1737 = vst.msk [vmem:[%s3 + $0x138] sm:$0xff] %vm1697, %v1672
  %1738 = vst.msk [vmem:[%s3 + $0x140] sm:$0xff] %vm1697, %v1673
  %1739 = vst.msk [vmem:[%s3 + $0x148] sm:$0xff] %vm1697, %v1674
  %1740 = vst.msk [vmem:[%s3 + $0x150] sm:$0xff] %vm1697, %v1675
  %1741 = vst.msk [vmem:[%s3 + $0x158] sm:$0xff] %vm1697, %v1676
  %1742 = vst.msk [vmem:[%s3 + $0x160] sm:$0xff] %vm1697, %v1677
  %1743 = vst.msk [vmem:[%s3 + $0x168] sm:$0xff] %vm1697, %v1678
  %1744 = vst.msk [vmem:[%s3 + $0x170] sm:$0xff] %vm1697, %v1679
  %1745 = vst.msk [vmem:[%s3 + $0x178] sm:$0xff] %vm1697, %v1680
  %1746 = vst.msk [vmem:[%s3 + $0x180] sm:$0xff] %vm1697, %v1681
  %1747 = vst.msk [vmem:[%s3 + $0x188] sm:$0xff] %vm1697, %v1682
  %1748 = vst.msk [vmem:[%s3 + $0x190] sm:$0xff] %vm1697, %v1683
  %1749 = vst.msk [vmem:[%s3 + $0x198] sm:$0xff] %vm1697, %v1684
  %1750 = vst.msk [vmem:[%s3 + $0x1a0] sm:$0xff] %vm1697, %v1685
  %1751 = vst.msk [vmem:[%s3 + $0x1a8] sm:$0xff] %vm1697, %v1686
  %1752 = vst.msk [vmem:[%s3 + $0x1b0] sm:$0xff] %vm1697, %v1687
  %1753 = vst.msk [vmem:[%s3 + $0x1b8] sm:$0xff] %vm1697, %v1688
  %1754 = vst.msk [vmem:[%s3 + $0x1c0] sm:$0xff] %vm1697, %v1689
  %1755 = vst.msk [vmem:[%s3 + $0x1c8] sm:$0xff] %vm1697, %v1690
  %1756 = vst.msk [vmem:[%s3 + $0x1d0] sm:$0xff] %vm1697, %v1691
  %1757 = vst.msk [vmem:[%s3 + $0x1d8] sm:$0xff] %vm1697, %v1692
  %1758 = vst.msk [vmem:[%s3 + $0x1e0] sm:$0xff] %vm1697, %v1693
  %1759 = vst.msk [vmem:[%s3 + $0x1e8] sm:$0xff] %vm1697, %v1694
  %1760 = vst.msk [vmem:[%s3 + $0x1f0] sm:$0xff] %vm1697, %v1695
  %1761 = vst.msk [vmem:[%s3 + $0x1f8] sm:$0xff] %vm1697, %v1696
  // Predicated region
  $region14: #{resnet_generator_forward.57} parent=0 // pred_check
    _
  $region15: #{resnet_generator_forward.57} parent=0 // pred_check_branch
    %1763 = sbr.rel (0) target = $region17
  $region16: #{resnet_generator_forward.57} parent=0 // pred_region
    _
  $region17: #{resnet_generator_forward.57} parent=0 // pred_fallthru
    _
  // Predicated region
  $region18: #{resnet_generator_forward.57} parent=0 // pred_check
    _
  $region19: #{resnet_generator_forward.57} parent=0 // pred_check_branch
    %1765 = sbr.rel (0) target = $region21
  $region20: #{resnet_generator_forward.57} parent=0 // pred_region
    _
  $region21: #{resnet_generator_forward.57} parent=0 // pred_fallthru
    _

</llo_original>
